<compile_context>
chip_gen: v7x
topology: tpu7x:2x2x1
jax: 0.10.0
libtpu: 0.0.40
codegen_flags: <defaults>
</compile_context>

<pallas_src>
import functools

import jax
import jax.numpy as jnp
import numpy as np
from jax.experimental import pallas as pl
from jax.experimental.pallas import tpu as pltpu

_MAXPAD = 2  # largest conv padding in the network (kernel_size 5)


# ----------------------------------------------------------------------------
# In-kernel helpers (traced inline; values live in VMEM/vregs).
# ----------------------------------------------------------------------------
def _shift_lanes(v, off):
    """result[:, l] = v[:, l + off], zero-filled at the buffer ends.  v: (R, L)."""
    if off == 0:
        return v
    L = v.shape[-1]
    z = jnp.zeros(v.shape[:-1] + (abs(off),), v.dtype)
    if off > 0:
        return jnp.concatenate([v[:, off:], z], axis=-1)
    return jnp.concatenate([z, v[:, :L + off]], axis=-1)


def _conv_relu_bn(x, w_ref, b_ref, scale_ref, shift_ref, wm_ref, *, K, NW):
    """Conv2d(SAME, stride 1) -> +bias -> ReLU -> BatchNorm(eval), one matmul.

    x:      (Cin, L) value, lane l = h*NW + n*W + w.
    w_ref:  (Cout, K*K*Cin) bf16 ref, flattened (dh, dw, ci) major->minor.
    b/scale/shift refs: (Cout, 1) f32.
    wm_ref: (2*_MAXPAD+1, Lmax) f32 ref of horizontal-tap validity masks.
    returns (Cout, L) float32.
    """
    pad = K // 2
    L = x.shape[-1]

    # K horizontally shifted + edge-masked copies, stacked on sublanes.
    cols = []
    for dw in range(K):
        ow = dw - pad
        xs = _shift_lanes(x, ow)
        if ow != 0:
            m = wm_ref[ow + _MAXPAD:ow + _MAXPAD + 1, :L]     # (1, L) 0/1
            xs = jnp.where(m > 0.5, xs, jnp.zeros_like(xs))
        cols.append(xs)
    xw = jnp.concatenate(cols, axis=0)                        # (K*Cin, L)

    # K vertically shifted copies of the stacked block.  Shifts are multiples
    # of NW (128-aligned); the zero fill at the ends IS the SAME padding on H.
    rows = [_shift_lanes(xw, (dh - pad) * NW) for dh in range(K)]
    rhs = jnp.concatenate(rows, axis=0).astype(jnp.bfloat16)  # (K*K*Cin, L)

    acc = jnp.dot(w_ref[...], rhs, preferred_element_type=jnp.float32)
    z = acc + b_ref[...]                                      # conv bias
    return jnp.maximum(z, 0.0) * scale_ref[...] + shift_ref[...]   # ReLU -> BN


def _maxpool_h2(y, *, NW):
    """MaxPool2d((2,1)) on the (C, H*NW) flat layout -> (C, (H//2)*NW)."""
    H = y.shape[-1] // NW
    even = jnp.concatenate([y[:, (2 * i) * NW:(2 * i + 1) * NW]
                            for i in range(H // 2)], axis=-1)
    odd = jnp.concatenate([y[:, (2 * i + 1) * NW:(2 * i + 2) * NW]
                           for i in range(H // 2)], axis=-1)
    return jnp.maximum(even, odd)


def _simple_cnn_kernel(x_ref,
                       w1, b1, s1, t1,
                       w2, b2, s2, t2,
                       w3, b3, s3, t3,
                       w4, b4, s4, t4,
                       hw_ref, hb_ref, wm_ref,
                       o_ref, *, NW):
    # x_ref: (1, Cin, H*NW) f32;  o_ref: (1, OUT, NW) f32.  One step = N_b samples.
    x = x_ref[0]                                              # (Cin, H*NW)
    H = x.shape[-1] // NW

    y = _conv_relu_bn(x, w1, b1, s1, t1, wm_ref, K=5, NW=NW)                     # (nk,  H  *NW)
    y = _conv_relu_bn(y.astype(jnp.bfloat16), w2, b2, s2, t2, wm_ref, K=3, NW=NW)
    y = _maxpool_h2(y, NW=NW)                                                    # (nk,  H/2*NW)
    y = _conv_relu_bn(y.astype(jnp.bfloat16), w3, b3, s3, t3, wm_ref, K=3, NW=NW)
    y = _conv_relu_bn(y.astype(jnp.bfloat16), w4, b4, s4, t4, wm_ref, K=3, NW=NW)
    y = _maxpool_h2(y, NW=NW)                                                    # (2nk, H/4*NW)
    h4 = H // 4
    yb = y.astype(jnp.bfloat16)

    # 18 fused Linear(F,1)+Sigmoid heads as ONE (OUT, C4*H4)@(C4*H4, NW) matmul.
    rhs = jnp.concatenate([yb[:, i * NW:(i + 1) * NW] for i in range(h4)],
                          axis=0)                             # (h4*C4, NW)
    z = jnp.dot(hw_ref[...], rhs, preferred_element_type=jnp.float32) + hb_ref[...]
    o_ref[0] = pl.reciprocal(1.0 + jnp.exp(-z), approx=True).astype(o_ref.dtype)


# ----------------------------------------------------------------------------
# Host-side wrapper: one pallas_call for the whole forward pass.
# ----------------------------------------------------------------------------
def simple_cnn_forward(x_nchw, params):
    """Forward pass of SimpleCNN (inference mode).

    x_nchw: (N, in_channels, n_features, seq)  -- PyTorch NCHW layout.
    returns (N, out_features, seq).
    """
    N, Cin, H, W = x_nchw.shape
    assert H % 4 == 0, "n_features must be divisible by 4 (two (2,1) max-pools)"
    OUT = params["head_b"].shape[0]

    # Samples per grid step chosen so that N_b*W >= 128 (lane-dense blocks).
    N_b = max(1, -(-128 // W))
    NW = N_b * W
    G = -(-N // N_b)
    N_pad = G * N_b

    xp = x_nchw
    if N_pad != N:
        xp = jnp.pad(xp, ((0, N_pad - N), (0, 0), (0, 0), (0, 0)))
    # (G, Cin, H*N_b*W), lane = h*NW + n*W + w  (layout plumbing done by XLA).
    xp = (xp.reshape(G, N_b, Cin, H, W)
            .transpose(0, 2, 3, 1, 4)
            .reshape(G, Cin, H * NW))

    def conv_args(layer):
        w, b, scale, shift = layer                     # w: (K, K, Cin, Cout) HWIO
        K, _, cin, cout = w.shape
        wmat = jnp.transpose(w, (3, 0, 1, 2)).reshape(cout, K * K * cin)
        return (wmat.astype(jnp.bfloat16), b.reshape(-1, 1),
                scale.reshape(-1, 1), shift.reshape(-1, 1))

    layer_args = [conv_args(params[f"layer{i}"]) for i in (1, 2, 3, 4)]

    C4 = layer_args[3][0].shape[0]                     # 2 * n_kernels
    H4 = H // 4
    # head_w: (F, OUT) with f = c*H4 + h (torch .view order)  ->  (OUT, H4*C4)
    # with column index = h*C4 + c to match the in-kernel sublane stack.
    hwm = params["head_w"].reshape(C4, H4, OUT).transpose(1, 0, 2)
    hwm = hwm.reshape(H4 * C4, OUT).T.astype(jnp.bfloat16)
    hb = params["head_b"].reshape(OUT, 1)

    # Horizontal-tap validity masks (periodic in W) -- shared by every layer,
    # built once host-side and kept resident in VMEM.
    lane = np.arange(H * NW)
    wmask = np.stack([((lane % W) + ow >= 0) & ((lane % W) + ow < W)
                      for ow in range(-_MAXPAD, _MAXPAD + 1)]).astype(np.float32)
    wmask = jnp.asarray(wmask)                         # (2*_MAXPAD+1, H*NW)

    def _rep_spec(shape):                # full array, fetched once (const index)
        zeros = (0,) * len(shape)
        return pl.BlockSpec(shape, lambda g: zeros)

    in_specs = [pl.BlockSpec((1, Cin, H * NW), lambda g: (g, 0, 0))]
    args = [xp]
    for tensors in layer_args:
        for t in tensors:
            in_specs.append(_rep_spec(t.shape))
            args.append(t)
    for t in (hwm, hb, wmask):
        in_specs.append(_rep_spec(t.shape))
        args.append(t)

    kernel = functools.partial(_simple_cnn_kernel, NW=NW)
    out = pl.pallas_call(
        kernel,
        out_shape=jax.ShapeDtypeStruct((G, OUT, NW), jnp.float32),
        grid=(G,),
        in_specs=in_specs,
        out_specs=pl.BlockSpec((1, OUT, NW), lambda g: (g, 0, 0)),
        compiler_params=pltpu.CompilerParams(
            dimension_semantics=("parallel",)),
    )(*args)

    out = (out.reshape(G, OUT, N_b, W)
              .transpose(0, 2, 1, 3)
              .reshape(N_pad, OUT, W))
    return out[:N]


# ----------------------------------------------------------------------------
# Deterministic parameter init (synthetic; BN folded to eval-mode scale/shift).
# ----------------------------------------------------------------------------
def init_params(key, *, in_channels, n_kernels, n_features, out_features):
    eps = 1e-5

    def conv_layer(k, cin, cout, ksz):
        kw, kb, kg, kbe, km, kv = jax.random.split(k, 6)
        fan_in = cin * ksz * ksz
        w = jax.random.normal(kw, (ksz, ksz, cin, cout), jnp.float32) / np.sqrt(fan_in)
        b = 0.1 * jax.random.normal(kb, (cout,), jnp.float32)
        gamma = 1.0 + 0.1 * jax.random.normal(kg, (cout,), jnp.float32)
        beta = 0.1 * jax.random.normal(kbe, (cout,), jnp.float32)
        mean = 0.1 * jax.random.normal(km, (cout,), jnp.float32)
        var = jax.random.uniform(kv, (cout,), jnp.float32, 0.5, 1.5)
        scale = gamma / jnp.sqrt(var + eps)
        shift = beta - mean * scale
        return (w, b, scale, shift)

    k1, k2, k3, k4, kh1, kh2 = jax.random.split(key, 6)
    F = 2 * n_kernels * (n_features // 4)
    return {
        "layer1": conv_layer(k1, in_channels, n_kernels, 5),
        "layer2": conv_layer(k2, n_kernels, n_kernels, 3),
        "layer3": conv_layer(k3, n_kernels, 2 * n_kernels, 3),
        "layer4": conv_layer(k4, 2 * n_kernels, 2 * n_kernels, 3),
        "head_w": jax.random.normal(kh1, (F, out_features), jnp.float32) / np.sqrt(F),
        "head_b": 0.1 * jax.random.normal(kh2, (out_features,), jnp.float32),
    }


# ----------------------------------------------------------------------------
# Pure-JAX (XLA) reference for validation.
# ----------------------------------------------------------------------------
def reference_forward(x_nchw, params):
    hp = jax.lax.Precision.HIGHEST

    def block(x, layer, pool):
        w_hwio, b, scale, shift = layer
        w_oihw = jnp.transpose(w_hwio, (3, 2, 0, 1))
        y = jax.lax.conv_general_dilated(
            x, w_oihw, window_strides=(1, 1), padding="SAME",
            dimension_numbers=("NCHW", "OIHW", "NCHW"), precision=hp)
        y = y + b[None, :, None, None]
        y = jnp.maximum(y, 0.0)
        y = y * scale[None, :, None, None] + shift[None, :, None, None]
        if pool:
            n, c, h, w = y.shape
            y = jnp.max(y.reshape(n, c, h // 2, 2, w), axis=3)
        return y

    y = block(x_nchw, params["layer1"], False)
    y = block(y, params["layer2"], True)
    y = block(y, params["layer3"], False)
    y = block(y, params["layer4"], True)
    n, c, h4, t = y.shape
    feats = jnp.transpose(y.reshape(n, c * h4, t), (0, 2, 1))
    z = jnp.einsum("ntf,fo->nto", feats, params["head_w"], precision=hp)
    z = z + params["head_b"]
    return jnp.transpose(jax.nn.sigmoid(z), (0, 2, 1))


if __name__ == "__main__":
    # Small, module-consistent shapes; batch=32 so the batched grid has length 2.
    N, Cin, n_features, seq = 32, 1, 32, 8
    n_kernels, out_features = 16, 18

    key = jax.random.PRNGKey(0)
    kx, kp = jax.random.split(key)
    x = jax.random.normal(kx, (N, Cin, n_features, seq), jnp.float32)  # NCHW
    params = init_params(kp, in_channels=Cin, n_kernels=n_kernels,
                         n_features=n_features, out_features=out_features)

    out = jax.jit(simple_cnn_forward)(x, params)
    out = jax.block_until_ready(out)
    assert out.shape == (N, out_features, seq), out.shape

    ref = reference_forward(x, params)
    np.testing.assert_allclose(np.asarray(out), np.asarray(ref), atol=2e-2, rtol=0)

    print("KERNEL_OK")
</pallas_src>

<mosaic_0001>
module attributes {stable_mosaic.version = 11 : i64} {
  func.func @_simple_cnn_kernel(%arg0: i32, %arg1: memref<1x1x4096xf32, #tpu.memory_space<vmem>>, %arg2: memref<16x25xbf16, #tpu.memory_space<vmem>>, %arg3: memref<16x1xf32, #tpu.memory_space<vmem>>, %arg4: memref<16x1xf32, #tpu.memory_space<vmem>>, %arg5: memref<16x1xf32, #tpu.memory_space<vmem>>, %arg6: memref<16x144xbf16, #tpu.memory_space<vmem>>, %arg7: memref<16x1xf32, #tpu.memory_space<vmem>>, %arg8: memref<16x1xf32, #tpu.memory_space<vmem>>, %arg9: memref<16x1xf32, #tpu.memory_space<vmem>>, %arg10: memref<32x144xbf16, #tpu.memory_space<vmem>>, %arg11: memref<32x1xf32, #tpu.memory_space<vmem>>, %arg12: memref<32x1xf32, #tpu.memory_space<vmem>>, %arg13: memref<32x1xf32, #tpu.memory_space<vmem>>, %arg14: memref<32x288xbf16, #tpu.memory_space<vmem>>, %arg15: memref<32x1xf32, #tpu.memory_space<vmem>>, %arg16: memref<32x1xf32, #tpu.memory_space<vmem>>, %arg17: memref<32x1xf32, #tpu.memory_space<vmem>>, %arg18: memref<18x256xbf16, #tpu.memory_space<vmem>>, %arg19: memref<18x1xf32, #tpu.memory_space<vmem>>, %arg20: memref<5x4096xf32, #tpu.memory_space<vmem>>, %arg21: memref<1x18x128xf32, #tpu.memory_space<vmem>>) attributes {dimension_semantics = [#tpu.dimension_semantics<parallel>], iteration_bounds = array<i64: 2>, scalar_prefetch = 0 : i64, scratch_operands = 0 : i64, tpu.core_type = #tpu.core_type<tc>, window_params = [{transform_indices = @transform_0, window_bounds = array<i64: 1, 1, 4096>}, {pipeline_mode = #tpu.pipeline_mode<synchronous>, transform_indices = @transform_1, window_bounds = array<i64: 16, 25>}, {pipeline_mode = #tpu.pipeline_mode<synchronous>, transform_indices = @transform_2, window_bounds = array<i64: 16, 1>}, {pipeline_mode = #tpu.pipeline_mode<synchronous>, transform_indices = @transform_3, window_bounds = array<i64: 16, 1>}, {pipeline_mode = #tpu.pipeline_mode<synchronous>, transform_indices = @transform_4, window_bounds = array<i64: 16, 1>}, {pipeline_mode = #tpu.pipeline_mode<synchronous>, transform_indices = @transform_5, window_bounds = array<i64: 16, 144>}, {pipeline_mode = #tpu.pipeline_mode<synchronous>, transform_indices = @transform_6, window_bounds = array<i64: 16, 1>}, {pipeline_mode = #tpu.pipeline_mode<synchronous>, transform_indices = @transform_7, window_bounds = array<i64: 16, 1>}, {pipeline_mode = #tpu.pipeline_mode<synchronous>, transform_indices = @transform_8, window_bounds = array<i64: 16, 1>}, {pipeline_mode = #tpu.pipeline_mode<synchronous>, transform_indices = @transform_9, window_bounds = array<i64: 32, 144>}, {pipeline_mode = #tpu.pipeline_mode<synchronous>, transform_indices = @transform_10, window_bounds = array<i64: 32, 1>}, {pipeline_mode = #tpu.pipeline_mode<synchronous>, transform_indices = @transform_11, window_bounds = array<i64: 32, 1>}, {pipeline_mode = #tpu.pipeline_mode<synchronous>, transform_indices = @transform_12, window_bounds = array<i64: 32, 1>}, {pipeline_mode = #tpu.pipeline_mode<synchronous>, transform_indices = @transform_13, window_bounds = array<i64: 32, 288>}, {pipeline_mode = #tpu.pipeline_mode<synchronous>, transform_indices = @transform_14, window_bounds = array<i64: 32, 1>}, {pipeline_mode = #tpu.pipeline_mode<synchronous>, transform_indices = @transform_15, window_bounds = array<i64: 32, 1>}, {pipeline_mode = #tpu.pipeline_mode<synchronous>, transform_indices = @transform_16, window_bounds = array<i64: 32, 1>}, {pipeline_mode = #tpu.pipeline_mode<synchronous>, transform_indices = @transform_17, window_bounds = array<i64: 18, 256>}, {pipeline_mode = #tpu.pipeline_mode<synchronous>, transform_indices = @transform_18, window_bounds = array<i64: 18, 1>}, {pipeline_mode = #tpu.pipeline_mode<synchronous>, transform_indices = @transform_19, window_bounds = array<i64: 5, 4096>}, {transform_indices = @transform_20, window_bounds = array<i64: 1, 18, 128>}]} {
    %c0 = arith.constant 0 : index
    %c0_0 = arith.constant 0 : index
    %c0_1 = arith.constant 0 : index
    %0 = vector.load %arg1[%c0, %c0_0, %c0_1] : memref<1x1x4096xf32, #tpu.memory_space<vmem>>, vector<1x1x4096xf32>
    %1 = vector.shape_cast %0 : vector<1x1x4096xf32> to vector<1x4096xf32>
    %cst = arith.constant 0.000000e+00 : f32
    %2 = vector.broadcast %cst : f32 to vector<1x2xf32>
    %3 = vector.extract_strided_slice %1 {offsets = [0, 0], sizes = [1, 4094], strides = [1, 1]} : vector<1x4096xf32> to vector<1x4094xf32>
    %4 = tpu.concatenate %2, %3 in 1 : vector<1x2xf32>, vector<1x4094xf32> -> vector<1x4096xf32>
    %c0_2 = arith.constant 0 : index
    %c0_3 = arith.constant 0 : index
    %5 = vector.load %arg20[%c0_2, %c0_3] : memref<5x4096xf32, #tpu.memory_space<vmem>>, vector<1x4096xf32>
    %cst_4 = arith.constant 5.000000e-01 : f32
    %6 = vector.broadcast %cst_4 : f32 to vector<1x4096xf32>
    %7 = arith.cmpf ogt, %5, %6 : vector<1x4096xf32>
    %cst_5 = arith.constant 0.000000e+00 : f32
    %8 = vector.broadcast %cst_5 : f32 to vector<1x4096xf32>
    %9 = arith.select %7, %4, %8 : vector<1x4096xi1>, vector<1x4096xf32>
    %cst_6 = arith.constant 0.000000e+00 : f32
    %10 = vector.broadcast %cst_6 : f32 to vector<1x1xf32>
    %11 = vector.extract_strided_slice %1 {offsets = [0, 0], sizes = [1, 4095], strides = [1, 1]} : vector<1x4096xf32> to vector<1x4095xf32>
    %12 = tpu.concatenate %10, %11 in 1 : vector<1x1xf32>, vector<1x4095xf32> -> vector<1x4096xf32>
    %c1 = arith.constant 1 : index
    %c0_7 = arith.constant 0 : index
    %13 = vector.load %arg20[%c1, %c0_7] : memref<5x4096xf32, #tpu.memory_space<vmem>>, vector<1x4096xf32>
    %cst_8 = arith.constant 5.000000e-01 : f32
    %14 = vector.broadcast %cst_8 : f32 to vector<1x4096xf32>
    %15 = arith.cmpf ogt, %13, %14 : vector<1x4096xf32>
    %cst_9 = arith.constant 0.000000e+00 : f32
    %16 = vector.broadcast %cst_9 : f32 to vector<1x4096xf32>
    %17 = arith.select %15, %12, %16 : vector<1x4096xi1>, vector<1x4096xf32>
    %cst_10 = arith.constant 0.000000e+00 : f32
    %18 = vector.broadcast %cst_10 : f32 to vector<1x1xf32>
    %19 = vector.extract_strided_slice %1 {offsets = [0, 1], sizes = [1, 4095], strides = [1, 1]} : vector<1x4096xf32> to vector<1x4095xf32>
    %20 = tpu.concatenate %19, %18 in 1 : vector<1x4095xf32>, vector<1x1xf32> -> vector<1x4096xf32>
    %c3 = arith.constant 3 : index
    %c0_11 = arith.constant 0 : index
    %21 = vector.load %arg20[%c3, %c0_11] : memref<5x4096xf32, #tpu.memory_space<vmem>>, vector<1x4096xf32>
    %cst_12 = arith.constant 5.000000e-01 : f32
    %22 = vector.broadcast %cst_12 : f32 to vector<1x4096xf32>
    %23 = arith.cmpf ogt, %21, %22 : vector<1x4096xf32>
    %cst_13 = arith.constant 0.000000e+00 : f32
    %24 = vector.broadcast %cst_13 : f32 to vector<1x4096xf32>
    %25 = arith.select %23, %20, %24 : vector<1x4096xi1>, vector<1x4096xf32>
    %cst_14 = arith.constant 0.000000e+00 : f32
    %26 = vector.broadcast %cst_14 : f32 to vector<1x2xf32>
    %27 = vector.extract_strided_slice %1 {offsets = [0, 2], sizes = [1, 4094], strides = [1, 1]} : vector<1x4096xf32> to vector<1x4094xf32>
    %28 = tpu.concatenate %27, %26 in 1 : vector<1x4094xf32>, vector<1x2xf32> -> vector<1x4096xf32>
    %c4 = arith.constant 4 : index
    %c0_15 = arith.constant 0 : index
    %29 = vector.load %arg20[%c4, %c0_15] : memref<5x4096xf32, #tpu.memory_space<vmem>>, vector<1x4096xf32>
    %cst_16 = arith.constant 5.000000e-01 : f32
    %30 = vector.broadcast %cst_16 : f32 to vector<1x4096xf32>
    %31 = arith.cmpf ogt, %29, %30 : vector<1x4096xf32>
    %cst_17 = arith.constant 0.000000e+00 : f32
    %32 = vector.broadcast %cst_17 : f32 to vector<1x4096xf32>
    %33 = arith.select %31, %28, %32 : vector<1x4096xi1>, vector<1x4096xf32>
    %34 = tpu.concatenate %9, %17, %1, %25, %33 in 0 : vector<1x4096xf32>, vector<1x4096xf32>, vector<1x4096xf32>, vector<1x4096xf32>, vector<1x4096xf32> -> vector<5x4096xf32>
    %cst_18 = arith.constant 0.000000e+00 : f32
    %35 = vector.broadcast %cst_18 : f32 to vector<5x256xf32>
    %36 = vector.extract_strided_slice %34 {offsets = [0, 0], sizes = [5, 3840], strides = [1, 1]} : vector<5x4096xf32> to vector<5x3840xf32>
    %37 = tpu.concatenate %35, %36 in 1 : vector<5x256xf32>, vector<5x3840xf32> -> vector<5x4096xf32>
    %cst_19 = arith.constant 0.000000e+00 : f32
    %38 = vector.broadcast %cst_19 : f32 to vector<5x128xf32>
    %39 = vector.extract_strided_slice %34 {offsets = [0, 0], sizes = [5, 3968], strides = [1, 1]} : vector<5x4096xf32> to vector<5x3968xf32>
    %40 = tpu.concatenate %38, %39 in 1 : vector<5x128xf32>, vector<5x3968xf32> -> vector<5x4096xf32>
    %cst_20 = arith.constant 0.000000e+00 : f32
    %41 = vector.broadcast %cst_20 : f32 to vector<5x128xf32>
    %42 = vector.extract_strided_slice %34 {offsets = [0, 128], sizes = [5, 3968], strides = [1, 1]} : vector<5x4096xf32> to vector<5x3968xf32>
    %43 = tpu.concatenate %42, %41 in 1 : vector<5x3968xf32>, vector<5x128xf32> -> vector<5x4096xf32>
    %cst_21 = arith.constant 0.000000e+00 : f32
    %44 = vector.broadcast %cst_21 : f32 to vector<5x256xf32>
    %45 = vector.extract_strided_slice %34 {offsets = [0, 256], sizes = [5, 3840], strides = [1, 1]} : vector<5x4096xf32> to vector<5x3840xf32>
    %46 = tpu.concatenate %45, %44 in 1 : vector<5x3840xf32>, vector<5x256xf32> -> vector<5x4096xf32>
    %47 = tpu.concatenate %37, %40, %34, %43, %46 in 0 : vector<5x4096xf32>, vector<5x4096xf32>, vector<5x4096xf32>, vector<5x4096xf32>, vector<5x4096xf32> -> vector<25x4096xf32>
    %48 = arith.truncf %47 : vector<25x4096xf32> to vector<25x4096xbf16>
    %c0_22 = arith.constant 0 : index
    %c0_23 = arith.constant 0 : index
    %49 = vector.load %arg2[%c0_22, %c0_23] : memref<16x25xbf16, #tpu.memory_space<vmem>>, vector<16x25xbf16>
    %cst_24 = arith.constant dense<0.000000e+00> : vector<16x4096xf32>
    %50 = tpu.matmul %49, %48, %cst_24 {dimension_numbers = #tpu.dot_dimension_numbers<[1], [0], [0], [1], [0, 0, 1, 1], [], []>} : vector<16x25xbf16>, vector<25x4096xbf16>, vector<16x4096xf32> -> vector<16x4096xf32>
    %c0_25 = arith.constant 0 : index
    %c0_26 = arith.constant 0 : index
    %51 = vector.load %arg3[%c0_25, %c0_26] : memref<16x1xf32, #tpu.memory_space<vmem>>, vector<16x1xf32>
    %52 = vector.broadcast %51 : vector<16x1xf32> to vector<16x4096xf32>
    %53 = arith.addf %50, %52 : vector<16x4096xf32>
    %cst_27 = arith.constant 0.000000e+00 : f32
    %54 = vector.broadcast %cst_27 : f32 to vector<16x4096xf32>
    %55 = arith.maximumf %53, %54 : vector<16x4096xf32>
    %c0_28 = arith.constant 0 : index
    %c0_29 = arith.constant 0 : index
    %56 = vector.load %arg4[%c0_28, %c0_29] : memref<16x1xf32, #tpu.memory_space<vmem>>, vector<16x1xf32>
    %57 = vector.broadcast %56 : vector<16x1xf32> to vector<16x4096xf32>
    %58 = arith.mulf %55, %57 : vector<16x4096xf32>
    %c0_30 = arith.constant 0 : index
    %c0_31 = arith.constant 0 : index
    %59 = vector.load %arg5[%c0_30, %c0_31] : memref<16x1xf32, #tpu.memory_space<vmem>>, vector<16x1xf32>
    %60 = vector.broadcast %59 : vector<16x1xf32> to vector<16x4096xf32>
    %61 = arith.addf %58, %60 : vector<16x4096xf32>
    %62 = arith.truncf %61 : vector<16x4096xf32> to vector<16x4096xbf16>
    %cst_32 = arith.constant 0.000000e+00 : bf16
    %63 = vector.broadcast %cst_32 : bf16 to vector<16x1xbf16>
    %64 = vector.extract_strided_slice %62 {offsets = [0, 0], sizes = [16, 4095], strides = [1, 1]} : vector<16x4096xbf16> to vector<16x4095xbf16>
    %65 = tpu.concatenate %63, %64 in 1 : vector<16x1xbf16>, vector<16x4095xbf16> -> vector<16x4096xbf16>
    %c1_33 = arith.constant 1 : index
    %c0_34 = arith.constant 0 : index
    %66 = vector.load %arg20[%c1_33, %c0_34] : memref<5x4096xf32, #tpu.memory_space<vmem>>, vector<1x4096xf32>
    %cst_35 = arith.constant 5.000000e-01 : f32
    %67 = vector.broadcast %cst_35 : f32 to vector<1x4096xf32>
    %68 = arith.cmpf ogt, %66, %67 : vector<1x4096xf32>
    %cst_36 = arith.constant 0.000000e+00 : bf16
    %69 = vector.broadcast %cst_36 : bf16 to vector<16x4096xbf16>
    %70 = vector.shape_cast %68 : vector<1x4096xi1> to vector<1x4096xi1>
    %71 = vector.broadcast %70 : vector<1x4096xi1> to vector<16x4096xi1>
    %72 = arith.select %71, %65, %69 : vector<16x4096xi1>, vector<16x4096xbf16>
    %cst_37 = arith.constant 0.000000e+00 : bf16
    %73 = vector.broadcast %cst_37 : bf16 to vector<16x1xbf16>
    %74 = vector.extract_strided_slice %62 {offsets = [0, 1], sizes = [16, 4095], strides = [1, 1]} : vector<16x4096xbf16> to vector<16x4095xbf16>
    %75 = tpu.concatenate %74, %73 in 1 : vector<16x4095xbf16>, vector<16x1xbf16> -> vector<16x4096xbf16>
    %c3_38 = arith.constant 3 : index
    %c0_39 = arith.constant 0 : index
    %76 = vector.load %arg20[%c3_38, %c0_39] : memref<5x4096xf32, #tpu.memory_space<vmem>>, vector<1x4096xf32>
    %cst_40 = arith.constant 5.000000e-01 : f32
    %77 = vector.broadcast %cst_40 : f32 to vector<1x4096xf32>
    %78 = arith.cmpf ogt, %76, %77 : vector<1x4096xf32>
    %cst_41 = arith.constant 0.000000e+00 : bf16
    %79 = vector.broadcast %cst_41 : bf16 to vector<16x4096xbf16>
    %80 = vector.shape_cast %78 : vector<1x4096xi1> to vector<1x4096xi1>
    %81 = vector.broadcast %80 : vector<1x4096xi1> to vector<16x4096xi1>
    %82 = arith.select %81, %75, %79 : vector<16x4096xi1>, vector<16x4096xbf16>
    %83 = tpu.concatenate %72, %62, %82 in 0 : vector<16x4096xbf16>, vector<16x4096xbf16>, vector<16x4096xbf16> -> vector<48x4096xbf16>
    %cst_42 = arith.constant 0.000000e+00 : bf16
    %84 = vector.broadcast %cst_42 : bf16 to vector<48x128xbf16>
    %85 = vector.extract_strided_slice %83 {offsets = [0, 0], sizes = [48, 3968], strides = [1, 1]} : vector<48x4096xbf16> to vector<48x3968xbf16>
    %86 = tpu.concatenate %84, %85 in 1 : vector<48x128xbf16>, vector<48x3968xbf16> -> vector<48x4096xbf16>
    %cst_43 = arith.constant 0.000000e+00 : bf16
    %87 = vector.broadcast %cst_43 : bf16 to vector<48x128xbf16>
    %88 = vector.extract_strided_slice %83 {offsets = [0, 128], sizes = [48, 3968], strides = [1, 1]} : vector<48x4096xbf16> to vector<48x3968xbf16>
    %89 = tpu.concatenate %88, %87 in 1 : vector<48x3968xbf16>, vector<48x128xbf16> -> vector<48x4096xbf16>
    %90 = tpu.concatenate %86, %83, %89 in 0 : vector<48x4096xbf16>, vector<48x4096xbf16>, vector<48x4096xbf16> -> vector<144x4096xbf16>
    %c0_44 = arith.constant 0 : index
    %c0_45 = arith.constant 0 : index
    %91 = vector.load %arg6[%c0_44, %c0_45] : memref<16x144xbf16, #tpu.memory_space<vmem>>, vector<16x144xbf16>
    %cst_46 = arith.constant dense<0.000000e+00> : vector<16x4096xf32>
    %92 = tpu.matmul %91, %90, %cst_46 {dimension_numbers = #tpu.dot_dimension_numbers<[1], [0], [0], [1], [0, 0, 1, 1], [], []>} : vector<16x144xbf16>, vector<144x4096xbf16>, vector<16x4096xf32> -> vector<16x4096xf32>
    %c0_47 = arith.constant 0 : index
    %c0_48 = arith.constant 0 : index
    %93 = vector.load %arg7[%c0_47, %c0_48] : memref<16x1xf32, #tpu.memory_space<vmem>>, vector<16x1xf32>
    %94 = vector.broadcast %93 : vector<16x1xf32> to vector<16x4096xf32>
    %95 = arith.addf %92, %94 : vector<16x4096xf32>
    %cst_49 = arith.constant 0.000000e+00 : f32
    %96 = vector.broadcast %cst_49 : f32 to vector<16x4096xf32>
    %97 = arith.maximumf %95, %96 : vector<16x4096xf32>
    %c0_50 = arith.constant 0 : index
    %c0_51 = arith.constant 0 : index
    %98 = vector.load %arg8[%c0_50, %c0_51] : memref<16x1xf32, #tpu.memory_space<vmem>>, vector<16x1xf32>
    %99 = vector.broadcast %98 : vector<16x1xf32> to vector<16x4096xf32>
    %100 = arith.mulf %97, %99 : vector<16x4096xf32>
    %c0_52 = arith.constant 0 : index
    %c0_53 = arith.constant 0 : index
    %101 = vector.load %arg9[%c0_52, %c0_53] : memref<16x1xf32, #tpu.memory_space<vmem>>, vector<16x1xf32>
    %102 = vector.broadcast %101 : vector<16x1xf32> to vector<16x4096xf32>
    %103 = arith.addf %100, %102 : vector<16x4096xf32>
    %104 = vector.extract_strided_slice %103 {offsets = [0, 0], sizes = [16, 128], strides = [1, 1]} : vector<16x4096xf32> to vector<16x128xf32>
    %105 = vector.extract_strided_slice %103 {offsets = [0, 256], sizes = [16, 128], strides = [1, 1]} : vector<16x4096xf32> to vector<16x128xf32>
    %106 = vector.extract_strided_slice %103 {offsets = [0, 512], sizes = [16, 128], strides = [1, 1]} : vector<16x4096xf32> to vector<16x128xf32>
    %107 = vector.extract_strided_slice %103 {offsets = [0, 768], sizes = [16, 128], strides = [1, 1]} : vector<16x4096xf32> to vector<16x128xf32>
    %108 = vector.extract_strided_slice %103 {offsets = [0, 1024], sizes = [16, 128], strides = [1, 1]} : vector<16x4096xf32> to vector<16x128xf32>
    %109 = vector.extract_strided_slice %103 {offsets = [0, 1280], sizes = [16, 128], strides = [1, 1]} : vector<16x4096xf32> to vector<16x128xf32>
    %110 = vector.extract_strided_slice %103 {offsets = [0, 1536], sizes = [16, 128], strides = [1, 1]} : vector<16x4096xf32> to vector<16x128xf32>
    %111 = vector.extract_strided_slice %103 {offsets = [0, 1792], sizes = [16, 128], strides = [1, 1]} : vector<16x4096xf32> to vector<16x128xf32>
    %112 = vector.extract_strided_slice %103 {offsets = [0, 2048], sizes = [16, 128], strides = [1, 1]} : vector<16x4096xf32> to vector<16x128xf32>
    %113 = vector.extract_strided_slice %103 {offsets = [0, 2304], sizes = [16, 128], strides = [1, 1]} : vector<16x4096xf32> to vector<16x128xf32>
    %114 = vector.extract_strided_slice %103 {offsets = [0, 2560], sizes = [16, 128], strides = [1, 1]} : vector<16x4096xf32> to vector<16x128xf32>
    %115 = vector.extract_strided_slice %103 {offsets = [0, 2816], sizes = [16, 128], strides = [1, 1]} : vector<16x4096xf32> to vector<16x128xf32>
    %116 = vector.extract_strided_slice %103 {offsets = [0, 3072], sizes = [16, 128], strides = [1, 1]} : vector<16x4096xf32> to vector<16x128xf32>
    %117 = vector.extract_strided_slice %103 {offsets = [0, 3328], sizes = [16, 128], strides = [1, 1]} : vector<16x4096xf32> to vector<16x128xf32>
    %118 = vector.extract_strided_slice %103 {offsets = [0, 3584], sizes = [16, 128], strides = [1, 1]} : vector<16x4096xf32> to vector<16x128xf32>
    %119 = vector.extract_strided_slice %103 {offsets = [0, 3840], sizes = [16, 128], strides = [1, 1]} : vector<16x4096xf32> to vector<16x128xf32>
    %120 = tpu.concatenate %104, %105, %106, %107, %108, %109, %110, %111, %112, %113, %114, %115, %116, %117, %118, %119 in 1 : vector<16x128xf32>, vector<16x128xf32>, vector<16x128xf32>, vector<16x128xf32>, vector<16x128xf32>, vector<16x128xf32>, vector<16x128xf32>, vector<16x128xf32>, vector<16x128xf32>, vector<16x128xf32>, vector<16x128xf32>, vector<16x128xf32>, vector<16x128xf32>, vector<16x128xf32>, vector<16x128xf32>, vector<16x128xf32> -> vector<16x2048xf32>
    %121 = vector.extract_strided_slice %103 {offsets = [0, 128], sizes = [16, 128], strides = [1, 1]} : vector<16x4096xf32> to vector<16x128xf32>
    %122 = vector.extract_strided_slice %103 {offsets = [0, 384], sizes = [16, 128], strides = [1, 1]} : vector<16x4096xf32> to vector<16x128xf32>
    %123 = vector.extract_strided_slice %103 {offsets = [0, 640], sizes = [16, 128], strides = [1, 1]} : vector<16x4096xf32> to vector<16x128xf32>
    %124 = vector.extract_strided_slice %103 {offsets = [0, 896], sizes = [16, 128], strides = [1, 1]} : vector<16x4096xf32> to vector<16x128xf32>
    %125 = vector.extract_strided_slice %103 {offsets = [0, 1152], sizes = [16, 128], strides = [1, 1]} : vector<16x4096xf32> to vector<16x128xf32>
    %126 = vector.extract_strided_slice %103 {offsets = [0, 1408], sizes = [16, 128], strides = [1, 1]} : vector<16x4096xf32> to vector<16x128xf32>
    %127 = vector.extract_strided_slice %103 {offsets = [0, 1664], sizes = [16, 128], strides = [1, 1]} : vector<16x4096xf32> to vector<16x128xf32>
    %128 = vector.extract_strided_slice %103 {offsets = [0, 1920], sizes = [16, 128], strides = [1, 1]} : vector<16x4096xf32> to vector<16x128xf32>
    %129 = vector.extract_strided_slice %103 {offsets = [0, 2176], sizes = [16, 128], strides = [1, 1]} : vector<16x4096xf32> to vector<16x128xf32>
    %130 = vector.extract_strided_slice %103 {offsets = [0, 2432], sizes = [16, 128], strides = [1, 1]} : vector<16x4096xf32> to vector<16x128xf32>
    %131 = vector.extract_strided_slice %103 {offsets = [0, 2688], sizes = [16, 128], strides = [1, 1]} : vector<16x4096xf32> to vector<16x128xf32>
    %132 = vector.extract_strided_slice %103 {offsets = [0, 2944], sizes = [16, 128], strides = [1, 1]} : vector<16x4096xf32> to vector<16x128xf32>
    %133 = vector.extract_strided_slice %103 {offsets = [0, 3200], sizes = [16, 128], strides = [1, 1]} : vector<16x4096xf32> to vector<16x128xf32>
    %134 = vector.extract_strided_slice %103 {offsets = [0, 3456], sizes = [16, 128], strides = [1, 1]} : vector<16x4096xf32> to vector<16x128xf32>
    %135 = vector.extract_strided_slice %103 {offsets = [0, 3712], sizes = [16, 128], strides = [1, 1]} : vector<16x4096xf32> to vector<16x128xf32>
    %136 = vector.extract_strided_slice %103 {offsets = [0, 3968], sizes = [16, 128], strides = [1, 1]} : vector<16x4096xf32> to vector<16x128xf32>
    %137 = tpu.concatenate %121, %122, %123, %124, %125, %126, %127, %128, %129, %130, %131, %132, %133, %134, %135, %136 in 1 : vector<16x128xf32>, vector<16x128xf32>, vector<16x128xf32>, vector<16x128xf32>, vector<16x128xf32>, vector<16x128xf32>, vector<16x128xf32>, vector<16x128xf32>, vector<16x128xf32>, vector<16x128xf32>, vector<16x128xf32>, vector<16x128xf32>, vector<16x128xf32>, vector<16x128xf32>, vector<16x128xf32>, vector<16x128xf32> -> vector<16x2048xf32>
    %138 = arith.maximumf %120, %137 : vector<16x2048xf32>
    %139 = arith.truncf %138 : vector<16x2048xf32> to vector<16x2048xbf16>
    %cst_54 = arith.constant 0.000000e+00 : bf16
    %140 = vector.broadcast %cst_54 : bf16 to vector<16x1xbf16>
    %141 = vector.extract_strided_slice %139 {offsets = [0, 0], sizes = [16, 2047], strides = [1, 1]} : vector<16x2048xbf16> to vector<16x2047xbf16>
    %142 = tpu.concatenate %140, %141 in 1 : vector<16x1xbf16>, vector<16x2047xbf16> -> vector<16x2048xbf16>
    %c1_55 = arith.constant 1 : index
    %c0_56 = arith.constant 0 : index
    %143 = vector.load %arg20[%c1_55, %c0_56] : memref<5x4096xf32, #tpu.memory_space<vmem>>, vector<1x2048xf32>
    %cst_57 = arith.constant 5.000000e-01 : f32
    %144 = vector.broadcast %cst_57 : f32 to vector<1x2048xf32>
    %145 = arith.cmpf ogt, %143, %144 : vector<1x2048xf32>
    %cst_58 = arith.constant 0.000000e+00 : bf16
    %146 = vector.broadcast %cst_58 : bf16 to vector<16x2048xbf16>
    %147 = vector.shape_cast %145 : vector<1x2048xi1> to vector<1x2048xi1>
    %148 = vector.broadcast %147 : vector<1x2048xi1> to vector<16x2048xi1>
    %149 = arith.select %148, %142, %146 : vector<16x2048xi1>, vector<16x2048xbf16>
    %cst_59 = arith.constant 0.000000e+00 : bf16
    %150 = vector.broadcast %cst_59 : bf16 to vector<16x1xbf16>
    %151 = vector.extract_strided_slice %139 {offsets = [0, 1], sizes = [16, 2047], strides = [1, 1]} : vector<16x2048xbf16> to vector<16x2047xbf16>
    %152 = tpu.concatenate %151, %150 in 1 : vector<16x2047xbf16>, vector<16x1xbf16> -> vector<16x2048xbf16>
    %c3_60 = arith.constant 3 : index
    %c0_61 = arith.constant 0 : index
    %153 = vector.load %arg20[%c3_60, %c0_61] : memref<5x4096xf32, #tpu.memory_space<vmem>>, vector<1x2048xf32>
    %cst_62 = arith.constant 5.000000e-01 : f32
    %154 = vector.broadcast %cst_62 : f32 to vector<1x2048xf32>
    %155 = arith.cmpf ogt, %153, %154 : vector<1x2048xf32>
    %cst_63 = arith.constant 0.000000e+00 : bf16
    %156 = vector.broadcast %cst_63 : bf16 to vector<16x2048xbf16>
    %157 = vector.shape_cast %155 : vector<1x2048xi1> to vector<1x2048xi1>
    %158 = vector.broadcast %157 : vector<1x2048xi1> to vector<16x2048xi1>
    %159 = arith.select %158, %152, %156 : vector<16x2048xi1>, vector<16x2048xbf16>
    %160 = tpu.concatenate %149, %139, %159 in 0 : vector<16x2048xbf16>, vector<16x2048xbf16>, vector<16x2048xbf16> -> vector<48x2048xbf16>
    %cst_64 = arith.constant 0.000000e+00 : bf16
    %161 = vector.broadcast %cst_64 : bf16 to vector<48x128xbf16>
    %162 = vector.extract_strided_slice %160 {offsets = [0, 0], sizes = [48, 1920], strides = [1, 1]} : vector<48x2048xbf16> to vector<48x1920xbf16>
    %163 = tpu.concatenate %161, %162 in 1 : vector<48x128xbf16>, vector<48x1920xbf16> -> vector<48x2048xbf16>
    %cst_65 = arith.constant 0.000000e+00 : bf16
    %164 = vector.broadcast %cst_65 : bf16 to vector<48x128xbf16>
    %165 = vector.extract_strided_slice %160 {offsets = [0, 128], sizes = [48, 1920], strides = [1, 1]} : vector<48x2048xbf16> to vector<48x1920xbf16>
    %166 = tpu.concatenate %165, %164 in 1 : vector<48x1920xbf16>, vector<48x128xbf16> -> vector<48x2048xbf16>
    %167 = tpu.concatenate %163, %160, %166 in 0 : vector<48x2048xbf16>, vector<48x2048xbf16>, vector<48x2048xbf16> -> vector<144x2048xbf16>
    %c0_66 = arith.constant 0 : index
    %c0_67 = arith.constant 0 : index
    %168 = vector.load %arg10[%c0_66, %c0_67] : memref<32x144xbf16, #tpu.memory_space<vmem>>, vector<32x144xbf16>
    %cst_68 = arith.constant dense<0.000000e+00> : vector<32x2048xf32>
    %169 = tpu.matmul %168, %167, %cst_68 {dimension_numbers = #tpu.dot_dimension_numbers<[1], [0], [0], [1], [0, 0, 1, 1], [], []>} : vector<32x144xbf16>, vector<144x2048xbf16>, vector<32x2048xf32> -> vector<32x2048xf32>
    %c0_69 = arith.constant 0 : index
    %c0_70 = arith.constant 0 : index
    %170 = vector.load %arg11[%c0_69, %c0_70] : memref<32x1xf32, #tpu.memory_space<vmem>>, vector<32x1xf32>
    %171 = vector.broadcast %170 : vector<32x1xf32> to vector<32x2048xf32>
    %172 = arith.addf %169, %171 : vector<32x2048xf32>
    %cst_71 = arith.constant 0.000000e+00 : f32
    %173 = vector.broadcast %cst_71 : f32 to vector<32x2048xf32>
    %174 = arith.maximumf %172, %173 : vector<32x2048xf32>
    %c0_72 = arith.constant 0 : index
    %c0_73 = arith.constant 0 : index
    %175 = vector.load %arg12[%c0_72, %c0_73] : memref<32x1xf32, #tpu.memory_space<vmem>>, vector<32x1xf32>
    %176 = vector.broadcast %175 : vector<32x1xf32> to vector<32x2048xf32>
    %177 = arith.mulf %174, %176 : vector<32x2048xf32>
    %c0_74 = arith.constant 0 : index
    %c0_75 = arith.constant 0 : index
    %178 = vector.load %arg13[%c0_74, %c0_75] : memref<32x1xf32, #tpu.memory_space<vmem>>, vector<32x1xf32>
    %179 = vector.broadcast %178 : vector<32x1xf32> to vector<32x2048xf32>
    %180 = arith.addf %177, %179 : vector<32x2048xf32>
    %181 = arith.truncf %180 : vector<32x2048xf32> to vector<32x2048xbf16>
    %cst_76 = arith.constant 0.000000e+00 : bf16
    %182 = vector.broadcast %cst_76 : bf16 to vector<32x1xbf16>
    %183 = vector.extract_strided_slice %181 {offsets = [0, 0], sizes = [32, 2047], strides = [1, 1]} : vector<32x2048xbf16> to vector<32x2047xbf16>
    %184 = tpu.concatenate %182, %183 in 1 : vector<32x1xbf16>, vector<32x2047xbf16> -> vector<32x2048xbf16>
    %c1_77 = arith.constant 1 : index
    %c0_78 = arith.constant 0 : index
    %185 = vector.load %arg20[%c1_77, %c0_78] : memref<5x4096xf32, #tpu.memory_space<vmem>>, vector<1x2048xf32>
    %cst_79 = arith.constant 5.000000e-01 : f32
    %186 = vector.broadcast %cst_79 : f32 to vector<1x2048xf32>
    %187 = arith.cmpf ogt, %185, %186 : vector<1x2048xf32>
    %cst_80 = arith.constant 0.000000e+00 : bf16
    %188 = vector.broadcast %cst_80 : bf16 to vector<32x2048xbf16>
    %189 = vector.shape_cast %187 : vector<1x2048xi1> to vector<1x2048xi1>
    %190 = vector.broadcast %189 : vector<1x2048xi1> to vector<32x2048xi1>
    %191 = arith.select %190, %184, %188 : vector<32x2048xi1>, vector<32x2048xbf16>
    %cst_81 = arith.constant 0.000000e+00 : bf16
    %192 = vector.broadcast %cst_81 : bf16 to vector<32x1xbf16>
    %193 = vector.extract_strided_slice %181 {offsets = [0, 1], sizes = [32, 2047], strides = [1, 1]} : vector<32x2048xbf16> to vector<32x2047xbf16>
    %194 = tpu.concatenate %193, %192 in 1 : vector<32x2047xbf16>, vector<32x1xbf16> -> vector<32x2048xbf16>
    %c3_82 = arith.constant 3 : index
    %c0_83 = arith.constant 0 : index
    %195 = vector.load %arg20[%c3_82, %c0_83] : memref<5x4096xf32, #tpu.memory_space<vmem>>, vector<1x2048xf32>
    %cst_84 = arith.constant 5.000000e-01 : f32
    %196 = vector.broadcast %cst_84 : f32 to vector<1x2048xf32>
    %197 = arith.cmpf ogt, %195, %196 : vector<1x2048xf32>
    %cst_85 = arith.constant 0.000000e+00 : bf16
    %198 = vector.broadcast %cst_85 : bf16 to vector<32x2048xbf16>
    %199 = vector.shape_cast %197 : vector<1x2048xi1> to vector<1x2048xi1>
    %200 = vector.broadcast %199 : vector<1x2048xi1> to vector<32x2048xi1>
    %201 = arith.select %200, %194, %198 : vector<32x2048xi1>, vector<32x2048xbf16>
    %202 = tpu.concatenate %191, %181, %201 in 0 : vector<32x2048xbf16>, vector<32x2048xbf16>, vector<32x2048xbf16> -> vector<96x2048xbf16>
    %cst_86 = arith.constant 0.000000e+00 : bf16
    %203 = vector.broadcast %cst_86 : bf16 to vector<96x128xbf16>
    %204 = vector.extract_strided_slice %202 {offsets = [0, 0], sizes = [96, 1920], strides = [1, 1]} : vector<96x2048xbf16> to vector<96x1920xbf16>
    %205 = tpu.concatenate %203, %204 in 1 : vector<96x128xbf16>, vector<96x1920xbf16> -> vector<96x2048xbf16>
    %cst_87 = arith.constant 0.000000e+00 : bf16
    %206 = vector.broadcast %cst_87 : bf16 to vector<96x128xbf16>
    %207 = vector.extract_strided_slice %202 {offsets = [0, 128], sizes = [96, 1920], strides = [1, 1]} : vector<96x2048xbf16> to vector<96x1920xbf16>
    %208 = tpu.concatenate %207, %206 in 1 : vector<96x1920xbf16>, vector<96x128xbf16> -> vector<96x2048xbf16>
    %209 = tpu.concatenate %205, %202, %208 in 0 : vector<96x2048xbf16>, vector<96x2048xbf16>, vector<96x2048xbf16> -> vector<288x2048xbf16>
    %c0_88 = arith.constant 0 : index
    %c0_89 = arith.constant 0 : index
    %210 = vector.load %arg14[%c0_88, %c0_89] : memref<32x288xbf16, #tpu.memory_space<vmem>>, vector<32x288xbf16>
    %cst_90 = arith.constant dense<0.000000e+00> : vector<32x2048xf32>
    %211 = tpu.matmul %210, %209, %cst_90 {dimension_numbers = #tpu.dot_dimension_numbers<[1], [0], [0], [1], [0, 0, 1, 1], [], []>} : vector<32x288xbf16>, vector<288x2048xbf16>, vector<32x2048xf32> -> vector<32x2048xf32>
    %c0_91 = arith.constant 0 : index
    %c0_92 = arith.constant 0 : index
    %212 = vector.load %arg15[%c0_91, %c0_92] : memref<32x1xf32, #tpu.memory_space<vmem>>, vector<32x1xf32>
    %213 = vector.broadcast %212 : vector<32x1xf32> to vector<32x2048xf32>
    %214 = arith.addf %211, %213 : vector<32x2048xf32>
    %cst_93 = arith.constant 0.000000e+00 : f32
    %215 = vector.broadcast %cst_93 : f32 to vector<32x2048xf32>
    %216 = arith.maximumf %214, %215 : vector<32x2048xf32>
    %c0_94 = arith.constant 0 : index
    %c0_95 = arith.constant 0 : index
    %217 = vector.load %arg16[%c0_94, %c0_95] : memref<32x1xf32, #tpu.memory_space<vmem>>, vector<32x1xf32>
    %218 = vector.broadcast %217 : vector<32x1xf32> to vector<32x2048xf32>
    %219 = arith.mulf %216, %218 : vector<32x2048xf32>
    %c0_96 = arith.constant 0 : index
    %c0_97 = arith.constant 0 : index
    %220 = vector.load %arg17[%c0_96, %c0_97] : memref<32x1xf32, #tpu.memory_space<vmem>>, vector<32x1xf32>
    %221 = vector.broadcast %220 : vector<32x1xf32> to vector<32x2048xf32>
    %222 = arith.addf %219, %221 : vector<32x2048xf32>
    %223 = vector.extract_strided_slice %222 {offsets = [0, 0], sizes = [32, 128], strides = [1, 1]} : vector<32x2048xf32> to vector<32x128xf32>
    %224 = vector.extract_strided_slice %222 {offsets = [0, 256], sizes = [32, 128], strides = [1, 1]} : vector<32x2048xf32> to vector<32x128xf32>
    %225 = vector.extract_strided_slice %222 {offsets = [0, 512], sizes = [32, 128], strides = [1, 1]} : vector<32x2048xf32> to vector<32x128xf32>
    %226 = vector.extract_strided_slice %222 {offsets = [0, 768], sizes = [32, 128], strides = [1, 1]} : vector<32x2048xf32> to vector<32x128xf32>
    %227 = vector.extract_strided_slice %222 {offsets = [0, 1024], sizes = [32, 128], strides = [1, 1]} : vector<32x2048xf32> to vector<32x128xf32>
    %228 = vector.extract_strided_slice %222 {offsets = [0, 1280], sizes = [32, 128], strides = [1, 1]} : vector<32x2048xf32> to vector<32x128xf32>
    %229 = vector.extract_strided_slice %222 {offsets = [0, 1536], sizes = [32, 128], strides = [1, 1]} : vector<32x2048xf32> to vector<32x128xf32>
    %230 = vector.extract_strided_slice %222 {offsets = [0, 1792], sizes = [32, 128], strides = [1, 1]} : vector<32x2048xf32> to vector<32x128xf32>
    %231 = tpu.concatenate %223, %224, %225, %226, %227, %228, %229, %230 in 1 : vector<32x128xf32>, vector<32x128xf32>, vector<32x128xf32>, vector<32x128xf32>, vector<32x128xf32>, vector<32x128xf32>, vector<32x128xf32>, vector<32x128xf32> -> vector<32x1024xf32>
    %232 = vector.extract_strided_slice %222 {offsets = [0, 128], sizes = [32, 128], strides = [1, 1]} : vector<32x2048xf32> to vector<32x128xf32>
    %233 = vector.extract_strided_slice %222 {offsets = [0, 384], sizes = [32, 128], strides = [1, 1]} : vector<32x2048xf32> to vector<32x128xf32>
    %234 = vector.extract_strided_slice %222 {offsets = [0, 640], sizes = [32, 128], strides = [1, 1]} : vector<32x2048xf32> to vector<32x128xf32>
    %235 = vector.extract_strided_slice %222 {offsets = [0, 896], sizes = [32, 128], strides = [1, 1]} : vector<32x2048xf32> to vector<32x128xf32>
    %236 = vector.extract_strided_slice %222 {offsets = [0, 1152], sizes = [32, 128], strides = [1, 1]} : vector<32x2048xf32> to vector<32x128xf32>
    %237 = vector.extract_strided_slice %222 {offsets = [0, 1408], sizes = [32, 128], strides = [1, 1]} : vector<32x2048xf32> to vector<32x128xf32>
    %238 = vector.extract_strided_slice %222 {offsets = [0, 1664], sizes = [32, 128], strides = [1, 1]} : vector<32x2048xf32> to vector<32x128xf32>
    %239 = vector.extract_strided_slice %222 {offsets = [0, 1920], sizes = [32, 128], strides = [1, 1]} : vector<32x2048xf32> to vector<32x128xf32>
    %240 = tpu.concatenate %232, %233, %234, %235, %236, %237, %238, %239 in 1 : vector<32x128xf32>, vector<32x128xf32>, vector<32x128xf32>, vector<32x128xf32>, vector<32x128xf32>, vector<32x128xf32>, vector<32x128xf32>, vector<32x128xf32> -> vector<32x1024xf32>
    %241 = arith.maximumf %231, %240 : vector<32x1024xf32>
    %242 = arith.truncf %241 : vector<32x1024xf32> to vector<32x1024xbf16>
    %243 = vector.extract_strided_slice %242 {offsets = [0, 0], sizes = [32, 128], strides = [1, 1]} : vector<32x1024xbf16> to vector<32x128xbf16>
    %244 = vector.extract_strided_slice %242 {offsets = [0, 128], sizes = [32, 128], strides = [1, 1]} : vector<32x1024xbf16> to vector<32x128xbf16>
    %245 = vector.extract_strided_slice %242 {offsets = [0, 256], sizes = [32, 128], strides = [1, 1]} : vector<32x1024xbf16> to vector<32x128xbf16>
    %246 = vector.extract_strided_slice %242 {offsets = [0, 384], sizes = [32, 128], strides = [1, 1]} : vector<32x1024xbf16> to vector<32x128xbf16>
    %247 = vector.extract_strided_slice %242 {offsets = [0, 512], sizes = [32, 128], strides = [1, 1]} : vector<32x1024xbf16> to vector<32x128xbf16>
    %248 = vector.extract_strided_slice %242 {offsets = [0, 640], sizes = [32, 128], strides = [1, 1]} : vector<32x1024xbf16> to vector<32x128xbf16>
    %249 = vector.extract_strided_slice %242 {offsets = [0, 768], sizes = [32, 128], strides = [1, 1]} : vector<32x1024xbf16> to vector<32x128xbf16>
    %250 = vector.extract_strided_slice %242 {offsets = [0, 896], sizes = [32, 128], strides = [1, 1]} : vector<32x1024xbf16> to vector<32x128xbf16>
    %251 = tpu.concatenate %243, %244, %245, %246, %247, %248, %249, %250 in 0 : vector<32x128xbf16>, vector<32x128xbf16>, vector<32x128xbf16>, vector<32x128xbf16>, vector<32x128xbf16>, vector<32x128xbf16>, vector<32x128xbf16>, vector<32x128xbf16> -> vector<256x128xbf16>
    %c0_98 = arith.constant 0 : index
    %c0_99 = arith.constant 0 : index
    %252 = vector.load %arg18[%c0_98, %c0_99] : memref<18x256xbf16, #tpu.memory_space<vmem>>, vector<18x256xbf16>
    %cst_100 = arith.constant dense<0.000000e+00> : vector<18x128xf32>
    %253 = tpu.matmul %252, %251, %cst_100 {dimension_numbers = #tpu.dot_dimension_numbers<[1], [0], [0], [1], [0, 0, 1, 1], [], []>} : vector<18x256xbf16>, vector<256x128xbf16>, vector<18x128xf32> -> vector<18x128xf32>
    %c0_101 = arith.constant 0 : index
    %c0_102 = arith.constant 0 : index
    %254 = vector.load %arg19[%c0_101, %c0_102] : memref<18x1xf32, #tpu.memory_space<vmem>>, vector<18x1xf32>
    %255 = vector.broadcast %254 : vector<18x1xf32> to vector<18x128xf32>
    %256 = arith.addf %253, %255 : vector<18x128xf32>
    %cst_103 = arith.constant 0.000000e+00 : f32
    %257 = vector.broadcast %cst_103 : f32 to vector<18x128xf32>
    %258 = arith.subf %257, %256 : vector<18x128xf32>
    %259 = math.exp %258 : vector<18x128xf32>
    %cst_104 = arith.constant 1.000000e+00 : f32
    %260 = vector.broadcast %cst_104 : f32 to vector<18x128xf32>
    %261 = arith.addf %260, %259 : vector<18x128xf32>
    %262 = tpu.reciprocal %261 {approx = true} : vector<18x128xf32> -> vector<18x128xf32>
    %c0_105 = arith.constant 0 : index
    %c0_106 = arith.constant 0 : index
    %c0_107 = arith.constant 0 : index
    %263 = vector.load %arg21[%c0_105, %c0_106, %c0_107] : memref<1x18x128xf32, #tpu.memory_space<vmem>>, vector<1x18x128xf32>
    %264 = vector.shape_cast %263 : vector<1x18x128xf32> to vector<18x128xf32>
    %265 = vector.shape_cast %262 : vector<18x128xf32> to vector<1x18x128xf32>
    tpu.vector_store %arg21[%c0_105, %c0_106, %c0_107], %265 {strides = array<i32>} : memref<1x18x128xf32, #tpu.memory_space<vmem>>, vector<1x18x128xf32>,
    return
  }
  func.func @transform_0(%arg0: i32) -> (i32, i32, i32) {
    %c0_i32 = arith.constant 0 : i32
    %c0_i32_0 = arith.constant 0 : i32
    %c0_i32_1 = arith.constant 0 : i32
    return %arg0, %c0_i32, %c0_i32_0 : i32, i32, i32
  }
  func.func @transform_1(%arg0: i32) -> (i32, i32) {
    %c0_i32 = arith.constant 0 : i32
    %c0_i32_0 = arith.constant 0 : i32
    %c0_i32_1 = arith.constant 0 : i32
    return %c0_i32, %c0_i32_0 : i32, i32
  }
  func.func @transform_2(%arg0: i32) -> (i32, i32) {
    %c0_i32 = arith.constant 0 : i32
    %c0_i32_0 = arith.constant 0 : i32
    %c0_i32_1 = arith.constant 0 : i32
    return %c0_i32, %c0_i32_0 : i32, i32
  }
  func.func @transform_3(%arg0: i32) -> (i32, i32) {
    %c0_i32 = arith.constant 0 : i32
    %c0_i32_0 = arith.constant 0 : i32
    %c0_i32_1 = arith.constant 0 : i32
    return %c0_i32, %c0_i32_0 : i32, i32
  }
  func.func @transform_4(%arg0: i32) -> (i32, i32) {
    %c0_i32 = arith.constant 0 : i32
    %c0_i32_0 = arith.constant 0 : i32
    %c0_i32_1 = arith.constant 0 : i32
    return %c0_i32, %c0_i32_0 : i32, i32
  }
  func.func @transform_5(%arg0: i32) -> (i32, i32) {
    %c0_i32 = arith.constant 0 : i32
    %c0_i32_0 = arith.constant 0 : i32
    %c0_i32_1 = arith.constant 0 : i32
    return %c0_i32, %c0_i32_0 : i32, i32
  }
  func.func @transform_6(%arg0: i32) -> (i32, i32) {
    %c0_i32 = arith.constant 0 : i32
    %c0_i32_0 = arith.constant 0 : i32
    %c0_i32_1 = arith.constant 0 : i32
    return %c0_i32, %c0_i32_0 : i32, i32
  }
  func.func @transform_7(%arg0: i32) -> (i32, i32) {
    %c0_i32 = arith.constant 0 : i32
    %c0_i32_0 = arith.constant 0 : i32
    %c0_i32_1 = arith.constant 0 : i32
    return %c0_i32, %c0_i32_0 : i32, i32
  }
  func.func @transform_8(%arg0: i32) -> (i32, i32) {
    %c0_i32 = arith.constant 0 : i32
    %c0_i32_0 = arith.constant 0 : i32
    %c0_i32_1 = arith.constant 0 : i32
    return %c0_i32, %c0_i32_0 : i32, i32
  }
  func.func @transform_9(%arg0: i32) -> (i32, i32) {
    %c0_i32 = arith.constant 0 : i32
    %c0_i32_0 = arith.constant 0 : i32
    %c0_i32_1 = arith.constant 0 : i32
    return %c0_i32, %c0_i32_0 : i32, i32
  }
  func.func @transform_10(%arg0: i32) -> (i32, i32) {
    %c0_i32 = arith.constant 0 : i32
    %c0_i32_0 = arith.constant 0 : i32
    %c0_i32_1 = arith.constant 0 : i32
    return %c0_i32, %c0_i32_0 : i32, i32
  }
  func.func @transform_11(%arg0: i32) -> (i32, i32) {
    %c0_i32 = arith.constant 0 : i32
    %c0_i32_0 = arith.constant 0 : i32
    %c0_i32_1 = arith.constant 0 : i32
    return %c0_i32, %c0_i32_0 : i32, i32
  }
  func.func @transform_12(%arg0: i32) -> (i32, i32) {
    %c0_i32 = arith.constant 0 : i32
    %c0_i32_0 = arith.constant 0 : i32
    %c0_i32_1 = arith.constant 0 : i32
    return %c0_i32, %c0_i32_0 : i32, i32
  }
  func.func @transform_13(%arg0: i32) -> (i32, i32) {
    %c0_i32 = arith.constant 0 : i32
    %c0_i32_0 = arith.constant 0 : i32
    %c0_i32_1 = arith.constant 0 : i32
    return %c0_i32, %c0_i32_0 : i32, i32
  }
  func.func @transform_14(%arg0: i32) -> (i32, i32) {
    %c0_i32 = arith.constant 0 : i32
    %c0_i32_0 = arith.constant 0 : i32
    %c0_i32_1 = arith.constant 0 : i32
    return %c0_i32, %c0_i32_0 : i32, i32
  }
  func.func @transform_15(%arg0: i32) -> (i32, i32) {
    %c0_i32 = arith.constant 0 : i32
    %c0_i32_0 = arith.constant 0 : i32
    %c0_i32_1 = arith.constant 0 : i32
    return %c0_i32, %c0_i32_0 : i32, i32
  }
  func.func @transform_16(%arg0: i32) -> (i32, i32) {
    %c0_i32 = arith.constant 0 : i32
    %c0_i32_0 = arith.constant 0 : i32
    %c0_i32_1 = arith.constant 0 : i32
    return %c0_i32, %c0_i32_0 : i32, i32
  }
  func.func @transform_17(%arg0: i32) -> (i32, i32) {
    %c0_i32 = arith.constant 0 : i32
    %c0_i32_0 = arith.constant 0 : i32
    %c0_i32_1 = arith.constant 0 : i32
    return %c0_i32, %c0_i32_0 : i32, i32
  }
  func.func @transform_18(%arg0: i32) -> (i32, i32) {
    %c0_i32 = arith.constant 0 : i32
    %c0_i32_0 = arith.constant 0 : i32
    %c0_i32_1 = arith.constant 0 : i32
    return %c0_i32, %c0_i32_0 : i32, i32
  }
  func.func @transform_19(%arg0: i32) -> (i32, i32) {
    %c0_i32 = arith.constant 0 : i32
    %c0_i32_0 = arith.constant 0 : i32
    %c0_i32_1 = arith.constant 0 : i32
    return %c0_i32, %c0_i32_0 : i32, i32
  }
  func.func @transform_20(%arg0: i32) -> (i32, i32, i32) {
    %c0_i32 = arith.constant 0 : i32
    %c0_i32_0 = arith.constant 0 : i32
    %c0_i32_1 = arith.constant 0 : i32
    return %arg0, %c0_i32, %c0_i32_0 : i32, i32, i32
  }
}

</mosaic_0001>

<llo_original>
// kernel: simple_cnn_forward.1
$region0: #{simple_cnn_forward.1}
  #allocation0 [shape = 'u32[]', space=smem, size = 0x4, offset = 0x4, fixed_abs, tag = 'smem constant byte address 0x4 - core index']
  #allocation1 [shape = 'u32[144,128]{1,0:T(1,128)}', space=vmem, size = 0x12000, scoped, tag = 'internal scratch']
  %s0 = inlined_call_operand.vmem [shape: f32[2,1,4096], index: 0, kind: input, shape index: {}]
  %s1 = inlined_call_operand.vmem [shape: bf16[16,25], index: 1, kind: input, shape index: {}]
  %s2 = inlined_call_operand.vmem [shape: f32[16,1], index: 2, kind: input, shape index: {}]
  %s3 = inlined_call_operand.vmem [shape: f32[16,1], index: 3, kind: input, shape index: {}]
  %s4 = inlined_call_operand.vmem [shape: f32[16,1], index: 4, kind: input, shape index: {}]
  %s5 = inlined_call_operand.vmem [shape: bf16[16,144], index: 5, kind: input, shape index: {}]
  %s6 = inlined_call_operand.vmem [shape: f32[16,1], index: 6, kind: input, shape index: {}]
  %s7 = inlined_call_operand.vmem [shape: f32[16,1], index: 7, kind: input, shape index: {}]
  %s8 = inlined_call_operand.vmem [shape: f32[16,1], index: 8, kind: input, shape index: {}]
  %s9 = inlined_call_operand.vmem [shape: bf16[32,144], index: 9, kind: input, shape index: {}]
  %s10 = inlined_call_operand.vmem [shape: f32[32,1], index: 10, kind: input, shape index: {}]
  %s11 = inlined_call_operand.vmem [shape: f32[32,1], index: 11, kind: input, shape index: {}]
  %s12 = inlined_call_operand.vmem [shape: f32[32,1], index: 12, kind: input, shape index: {}]
  %s13 = inlined_call_operand.vmem [shape: bf16[32,288], index: 13, kind: input, shape index: {}]
  %s14 = inlined_call_operand.vmem [shape: f32[32,1], index: 14, kind: input, shape index: {}]
  %s15 = inlined_call_operand.vmem [shape: f32[32,1], index: 15, kind: input, shape index: {}]
  %s16 = inlined_call_operand.vmem [shape: f32[32,1], index: 16, kind: input, shape index: {}]
  %s17 = inlined_call_operand.vmem [shape: bf16[18,256], index: 17, kind: input, shape index: {}]
  %s18 = inlined_call_operand.vmem [shape: f32[18,1], index: 18, kind: input, shape index: {}]
  %s19 = inlined_call_operand.vmem [shape: f32[5,4096], index: 19, kind: input, shape index: {}]
  %s20 = inlined_call_operand.vmem [shape: f32[2,18,128], index: 20, kind: output, shape index: {}]
  %s21 = sld [smem:[#allocation0]]
  $region113: #{simple_cnn_forward.1} parent=0
    _
  %s23 = ssub.s32 1, %s21
  %s24 = scalar_select 0, %s23, %s21
  loop: start=0, step=1, limit=4
  $region2: #{simple_cnn_forward.1} parent=0 // loop_pre_header
    _
  $region3: #{simple_cnn_forward.1} parent=0 // loop_header
    %s26 = sphi 0, %s30
    %p27 = scmp.ge.s32.totalorder %s26, 4
    %s36 = sphi 0, %s38
    %s39 = sphi 0, %s36
    %s40 = sphi 0, %s39
    %s56 = sphi 0, %s40
    %s60 = sphi 0, %s60
    %s62 = sphi 0, %s60
    %s63 = sphi 0, %s62
    %s77 = sphi 0, %s63
    %s81 = sphi 0, %s81
    %s83 = sphi 0, %s81
    %s84 = sphi 0, %s83
    %s98 = sphi 0, %s84
    %s102 = sphi 0, %s102
    %s104 = sphi 0, %s102
    %s105 = sphi 0, %s104
    %s119 = sphi 0, %s105
    %s123 = sphi 0, %s123
    %s125 = sphi 0, %s123
    %s126 = sphi 0, %s125
    %s140 = sphi 0, %s126
    %s144 = sphi 0, %s144
    %s146 = sphi 0, %s144
    %s147 = sphi 0, %s146
    %s161 = sphi 0, %s147
    %s165 = sphi 0, %s165
    %s167 = sphi 0, %s165
    %s168 = sphi 0, %s167
    %s182 = sphi 0, %s168
    %s186 = sphi 0, %s186
    %s188 = sphi 0, %s186
    %s189 = sphi 0, %s188
    %s203 = sphi 0, %s189
    %s207 = sphi 0, %s207
    %s209 = sphi 0, %s207
    %s210 = sphi 0, %s209
    %s224 = sphi 0, %s210
    %s228 = sphi 0, %s228
    %s230 = sphi 0, %s228
    %s231 = sphi 0, %s230
    %s245 = sphi 0, %s231
    %s249 = sphi 0, %s249
    %s251 = sphi 0, %s249
    %s252 = sphi 0, %s251
    %s266 = sphi 0, %s252
    %s270 = sphi 0, %s270
    %s272 = sphi 0, %s270
    %s273 = sphi 0, %s272
    %s287 = sphi 0, %s273
    %s291 = sphi 0, %s291
    %s293 = sphi 0, %s291
    %s294 = sphi 0, %s293
    %s308 = sphi 0, %s294
    %s312 = sphi 0, %s312
    %s314 = sphi 0, %s312
    %s315 = sphi 0, %s314
    %s329 = sphi 0, %s315
    %s333 = sphi 0, %s333
    %s335 = sphi 0, %s333
    %s336 = sphi 0, %s335
    %s350 = sphi 0, %s336
    %s354 = sphi 0, %s354
    %s356 = sphi 0, %s354
    %s357 = sphi 0, %s356
    %s371 = sphi 0, %s357
    %s375 = sphi 0, %s375
    %s377 = sphi 0, %s375
    %s378 = sphi 0, %s377
    %s392 = sphi 0, %s378
    %s396 = sphi 0, %s396
    %s398 = sphi 0, %s396
    %s399 = sphi 0, %s398
    %s413 = sphi 0, %s399
    %s417 = sphi 0, %s417
    %s419 = sphi 0, %s417
    %s420 = sphi 0, %s419
    %s434 = sphi 0, %s420
    %s438 = sphi 0, %s438
    %s440 = sphi 0, %s438
    %s441 = sphi 0, %s440
    %s455 = sphi 0, %s441
    %s461 = sphi 0, %s463
    %s464 = sphi 0, %s461
    %s465 = sphi 0, %s464
    %s481 = sphi 0, %s465
  $region4: #{simple_cnn_forward.1} parent=0 // loop_header_branch
    %29 = sbr.rel (%p27) target = $region8
  $region5: #{simple_cnn_forward.1} parent=0 // loop_body
    %s31 = ssub.s32 %s26, 1
    %s32 = ssub.s32 %s26, 2
    %s33 = sadd.s32 %s26, 1
    %s34 = ssub.s32 %s26, %s33
    %p35 = scmp.eq.s32.totalorder %s34, 0
    %s37 = sadd.s32 %s36, 1
    %s38 = scalar_select %p35, %s36, %s37
    %p41 = pneg %p35
    %p42 = scmp.eq.s32.totalorder %s26, 1
    %p43 = por %p41, %p42
    %p44 = scmp.ne.s32.totalorder %s36, %s39
    %p45 = scmp.eq.s32.totalorder %s26, 0
    %p46 = por %p44, %p45
    %p47 = scmp.ne.s32.totalorder %s36, %s39
    %p48 = scmp.eq.s32.totalorder %s31, 1
    %p49 = por %p47, %p48
    %p50 = scmp.ne.s32.totalorder %s39, %s40
    %p51 = scmp.eq.s32.totalorder %s31, 0
    %p52 = por %p50, %p51
    %p53 = scmp.ne.s32.totalorder %s39, %s40
    %p54 = scmp.eq.s32.totalorder %s32, 1
    %p55 = por %p53, %p54
    %p57 = scmp.ne.s32.totalorder %s40, %s56
    %p58 = scmp.eq.s32.totalorder %s32, 0
    %p59 = por %p57, %p58
    %s61 = sadd.s32 %s60, 1
    %p64 = scmp.eq.s32.totalorder %s26, 1
    %p65 = scmp.ne.s32.totalorder %s60, %s62
    %p66 = scmp.eq.s32.totalorder %s26, 0
    %p67 = por %p65, %p66
    %p68 = scmp.ne.s32.totalorder %s60, %s62
    %p69 = scmp.eq.s32.totalorder %s31, 1
    %p70 = por %p68, %p69
    %p71 = scmp.ne.s32.totalorder %s62, %s63
    %p72 = scmp.eq.s32.totalorder %s31, 0
    %p73 = por %p71, %p72
    %p74 = scmp.ne.s32.totalorder %s62, %s63
    %p75 = scmp.eq.s32.totalorder %s32, 1
    %p76 = por %p74, %p75
    %p78 = scmp.ne.s32.totalorder %s63, %s77
    %p79 = scmp.eq.s32.totalorder %s32, 0
    %p80 = por %p78, %p79
    %s82 = sadd.s32 %s81, 1
    %p85 = scmp.eq.s32.totalorder %s26, 1
    %p86 = scmp.ne.s32.totalorder %s81, %s83
    %p87 = scmp.eq.s32.totalorder %s26, 0
    %p88 = por %p86, %p87
    %p89 = scmp.ne.s32.totalorder %s81, %s83
    %p90 = scmp.eq.s32.totalorder %s31, 1
    %p91 = por %p89, %p90
    %p92 = scmp.ne.s32.totalorder %s83, %s84
    %p93 = scmp.eq.s32.totalorder %s31, 0
    %p94 = por %p92, %p93
    %p95 = scmp.ne.s32.totalorder %s83, %s84
    %p96 = scmp.eq.s32.totalorder %s32, 1
    %p97 = por %p95, %p96
    %p99 = scmp.ne.s32.totalorder %s84, %s98
    %p100 = scmp.eq.s32.totalorder %s32, 0
    %p101 = por %p99, %p100
    %s103 = sadd.s32 %s102, 1
    %p106 = scmp.eq.s32.totalorder %s26, 1
    %p107 = scmp.ne.s32.totalorder %s102, %s104
    %p108 = scmp.eq.s32.totalorder %s26, 0
    %p109 = por %p107, %p108
    %p110 = scmp.ne.s32.totalorder %s102, %s104
    %p111 = scmp.eq.s32.totalorder %s31, 1
    %p112 = por %p110, %p111
    %p113 = scmp.ne.s32.totalorder %s104, %s105
    %p114 = scmp.eq.s32.totalorder %s31, 0
    %p115 = por %p113, %p114
    %p116 = scmp.ne.s32.totalorder %s104, %s105
    %p117 = scmp.eq.s32.totalorder %s32, 1
    %p118 = por %p116, %p117
    %p120 = scmp.ne.s32.totalorder %s105, %s119
    %p121 = scmp.eq.s32.totalorder %s32, 0
    %p122 = por %p120, %p121
    %s124 = sadd.s32 %s123, 1
    %p127 = scmp.eq.s32.totalorder %s26, 1
    %p128 = scmp.ne.s32.totalorder %s123, %s125
    %p129 = scmp.eq.s32.totalorder %s26, 0
    %p130 = por %p128, %p129
    %p131 = scmp.ne.s32.totalorder %s123, %s125
    %p132 = scmp.eq.s32.totalorder %s31, 1
    %p133 = por %p131, %p132
    %p134 = scmp.ne.s32.totalorder %s125, %s126
    %p135 = scmp.eq.s32.totalorder %s31, 0
    %p136 = por %p134, %p135
    %p137 = scmp.ne.s32.totalorder %s125, %s126
    %p138 = scmp.eq.s32.totalorder %s32, 1
    %p139 = por %p137, %p138
    %p141 = scmp.ne.s32.totalorder %s126, %s140
    %p142 = scmp.eq.s32.totalorder %s32, 0
    %p143 = por %p141, %p142
    %s145 = sadd.s32 %s144, 1
    %p148 = scmp.eq.s32.totalorder %s26, 1
    %p149 = scmp.ne.s32.totalorder %s144, %s146
    %p150 = scmp.eq.s32.totalorder %s26, 0
    %p151 = por %p149, %p150
    %p152 = scmp.ne.s32.totalorder %s144, %s146
    %p153 = scmp.eq.s32.totalorder %s31, 1
    %p154 = por %p152, %p153
    %p155 = scmp.ne.s32.totalorder %s146, %s147
    %p156 = scmp.eq.s32.totalorder %s31, 0
    %p157 = por %p155, %p156
    %p158 = scmp.ne.s32.totalorder %s146, %s147
    %p159 = scmp.eq.s32.totalorder %s32, 1
    %p160 = por %p158, %p159
    %p162 = scmp.ne.s32.totalorder %s147, %s161
    %p163 = scmp.eq.s32.totalorder %s32, 0
    %p164 = por %p162, %p163
    %s166 = sadd.s32 %s165, 1
    %p169 = scmp.eq.s32.totalorder %s26, 1
    %p170 = scmp.ne.s32.totalorder %s165, %s167
    %p171 = scmp.eq.s32.totalorder %s26, 0
    %p172 = por %p170, %p171
    %p173 = scmp.ne.s32.totalorder %s165, %s167
    %p174 = scmp.eq.s32.totalorder %s31, 1
    %p175 = por %p173, %p174
    %p176 = scmp.ne.s32.totalorder %s167, %s168
    %p177 = scmp.eq.s32.totalorder %s31, 0
    %p178 = por %p176, %p177
    %p179 = scmp.ne.s32.totalorder %s167, %s168
    %p180 = scmp.eq.s32.totalorder %s32, 1
    %p181 = por %p179, %p180
    %p183 = scmp.ne.s32.totalorder %s168, %s182
    %p184 = scmp.eq.s32.totalorder %s32, 0
    %p185 = por %p183, %p184
    %s187 = sadd.s32 %s186, 1
    %p190 = scmp.eq.s32.totalorder %s26, 1
    %p191 = scmp.ne.s32.totalorder %s186, %s188
    %p192 = scmp.eq.s32.totalorder %s26, 0
    %p193 = por %p191, %p192
    %p194 = scmp.ne.s32.totalorder %s186, %s188
    %p195 = scmp.eq.s32.totalorder %s31, 1
    %p196 = por %p194, %p195
    %p197 = scmp.ne.s32.totalorder %s188, %s189
    %p198 = scmp.eq.s32.totalorder %s31, 0
    %p199 = por %p197, %p198
    %p200 = scmp.ne.s32.totalorder %s188, %s189
    %p201 = scmp.eq.s32.totalorder %s32, 1
    %p202 = por %p200, %p201
    %p204 = scmp.ne.s32.totalorder %s189, %s203
    %p205 = scmp.eq.s32.totalorder %s32, 0
    %p206 = por %p204, %p205
    %s208 = sadd.s32 %s207, 1
    %p211 = scmp.eq.s32.totalorder %s26, 1
    %p212 = scmp.ne.s32.totalorder %s207, %s209
    %p213 = scmp.eq.s32.totalorder %s26, 0
    %p214 = por %p212, %p213
    %p215 = scmp.ne.s32.totalorder %s207, %s209
    %p216 = scmp.eq.s32.totalorder %s31, 1
    %p217 = por %p215, %p216
    %p218 = scmp.ne.s32.totalorder %s209, %s210
    %p219 = scmp.eq.s32.totalorder %s31, 0
    %p220 = por %p218, %p219
    %p221 = scmp.ne.s32.totalorder %s209, %s210
    %p222 = scmp.eq.s32.totalorder %s32, 1
    %p223 = por %p221, %p222
    %p225 = scmp.ne.s32.totalorder %s210, %s224
    %p226 = scmp.eq.s32.totalorder %s32, 0
    %p227 = por %p225, %p226
    %s229 = sadd.s32 %s228, 1
    %p232 = scmp.eq.s32.totalorder %s26, 1
    %p233 = scmp.ne.s32.totalorder %s228, %s230
    %p234 = scmp.eq.s32.totalorder %s26, 0
    %p235 = por %p233, %p234
    %p236 = scmp.ne.s32.totalorder %s228, %s230
    %p237 = scmp.eq.s32.totalorder %s31, 1
    %p238 = por %p236, %p237
    %p239 = scmp.ne.s32.totalorder %s230, %s231
    %p240 = scmp.eq.s32.totalorder %s31, 0
    %p241 = por %p239, %p240
    %p242 = scmp.ne.s32.totalorder %s230, %s231
    %p243 = scmp.eq.s32.totalorder %s32, 1
    %p244 = por %p242, %p243
    %p246 = scmp.ne.s32.totalorder %s231, %s245
    %p247 = scmp.eq.s32.totalorder %s32, 0
    %p248 = por %p246, %p247
    %s250 = sadd.s32 %s249, 1
    %p253 = scmp.eq.s32.totalorder %s26, 1
    %p254 = scmp.ne.s32.totalorder %s249, %s251
    %p255 = scmp.eq.s32.totalorder %s26, 0
    %p256 = por %p254, %p255
    %p257 = scmp.ne.s32.totalorder %s249, %s251
    %p258 = scmp.eq.s32.totalorder %s31, 1
    %p259 = por %p257, %p258
    %p260 = scmp.ne.s32.totalorder %s251, %s252
    %p261 = scmp.eq.s32.totalorder %s31, 0
    %p262 = por %p260, %p261
    %p263 = scmp.ne.s32.totalorder %s251, %s252
    %p264 = scmp.eq.s32.totalorder %s32, 1
    %p265 = por %p263, %p264
    %p267 = scmp.ne.s32.totalorder %s252, %s266
    %p268 = scmp.eq.s32.totalorder %s32, 0
    %p269 = por %p267, %p268
    %s271 = sadd.s32 %s270, 1
    %p274 = scmp.eq.s32.totalorder %s26, 1
    %p275 = scmp.ne.s32.totalorder %s270, %s272
    %p276 = scmp.eq.s32.totalorder %s26, 0
    %p277 = por %p275, %p276
    %p278 = scmp.ne.s32.totalorder %s270, %s272
    %p279 = scmp.eq.s32.totalorder %s31, 1
    %p280 = por %p278, %p279
    %p281 = scmp.ne.s32.totalorder %s272, %s273
    %p282 = scmp.eq.s32.totalorder %s31, 0
    %p283 = por %p281, %p282
    %p284 = scmp.ne.s32.totalorder %s272, %s273
    %p285 = scmp.eq.s32.totalorder %s32, 1
    %p286 = por %p284, %p285
    %p288 = scmp.ne.s32.totalorder %s273, %s287
    %p289 = scmp.eq.s32.totalorder %s32, 0
    %p290 = por %p288, %p289
    %s292 = sadd.s32 %s291, 1
    %p295 = scmp.eq.s32.totalorder %s26, 1
    %p296 = scmp.ne.s32.totalorder %s291, %s293
    %p297 = scmp.eq.s32.totalorder %s26, 0
    %p298 = por %p296, %p297
    %p299 = scmp.ne.s32.totalorder %s291, %s293
    %p300 = scmp.eq.s32.totalorder %s31, 1
    %p301 = por %p299, %p300
    %p302 = scmp.ne.s32.totalorder %s293, %s294
    %p303 = scmp.eq.s32.totalorder %s31, 0
    %p304 = por %p302, %p303
    %p305 = scmp.ne.s32.totalorder %s293, %s294
    %p306 = scmp.eq.s32.totalorder %s32, 1
    %p307 = por %p305, %p306
    %p309 = scmp.ne.s32.totalorder %s294, %s308
    %p310 = scmp.eq.s32.totalorder %s32, 0
    %p311 = por %p309, %p310
    %s313 = sadd.s32 %s312, 1
    %p316 = scmp.eq.s32.totalorder %s26, 1
    %p317 = scmp.ne.s32.totalorder %s312, %s314
    %p318 = scmp.eq.s32.totalorder %s26, 0
    %p319 = por %p317, %p318
    %p320 = scmp.ne.s32.totalorder %s312, %s314
    %p321 = scmp.eq.s32.totalorder %s31, 1
    %p322 = por %p320, %p321
    %p323 = scmp.ne.s32.totalorder %s314, %s315
    %p324 = scmp.eq.s32.totalorder %s31, 0
    %p325 = por %p323, %p324
    %p326 = scmp.ne.s32.totalorder %s314, %s315
    %p327 = scmp.eq.s32.totalorder %s32, 1
    %p328 = por %p326, %p327
    %p330 = scmp.ne.s32.totalorder %s315, %s329
    %p331 = scmp.eq.s32.totalorder %s32, 0
    %p332 = por %p330, %p331
    %s334 = sadd.s32 %s333, 1
    %p337 = scmp.eq.s32.totalorder %s26, 1
    %p338 = scmp.ne.s32.totalorder %s333, %s335
    %p339 = scmp.eq.s32.totalorder %s26, 0
    %p340 = por %p338, %p339
    %p341 = scmp.ne.s32.totalorder %s333, %s335
    %p342 = scmp.eq.s32.totalorder %s31, 1
    %p343 = por %p341, %p342
    %p344 = scmp.ne.s32.totalorder %s335, %s336
    %p345 = scmp.eq.s32.totalorder %s31, 0
    %p346 = por %p344, %p345
    %p347 = scmp.ne.s32.totalorder %s335, %s336
    %p348 = scmp.eq.s32.totalorder %s32, 1
    %p349 = por %p347, %p348
    %p351 = scmp.ne.s32.totalorder %s336, %s350
    %p352 = scmp.eq.s32.totalorder %s32, 0
    %p353 = por %p351, %p352
    %s355 = sadd.s32 %s354, 1
    %p358 = scmp.eq.s32.totalorder %s26, 1
    %p359 = scmp.ne.s32.totalorder %s354, %s356
    %p360 = scmp.eq.s32.totalorder %s26, 0
    %p361 = por %p359, %p360
    %p362 = scmp.ne.s32.totalorder %s354, %s356
    %p363 = scmp.eq.s32.totalorder %s31, 1
    %p364 = por %p362, %p363
    %p365 = scmp.ne.s32.totalorder %s356, %s357
    %p366 = scmp.eq.s32.totalorder %s31, 0
    %p367 = por %p365, %p366
    %p368 = scmp.ne.s32.totalorder %s356, %s357
    %p369 = scmp.eq.s32.totalorder %s32, 1
    %p370 = por %p368, %p369
    %p372 = scmp.ne.s32.totalorder %s357, %s371
    %p373 = scmp.eq.s32.totalorder %s32, 0
    %p374 = por %p372, %p373
    %s376 = sadd.s32 %s375, 1
    %p379 = scmp.eq.s32.totalorder %s26, 1
    %p380 = scmp.ne.s32.totalorder %s375, %s377
    %p381 = scmp.eq.s32.totalorder %s26, 0
    %p382 = por %p380, %p381
    %p383 = scmp.ne.s32.totalorder %s375, %s377
    %p384 = scmp.eq.s32.totalorder %s31, 1
    %p385 = por %p383, %p384
    %p386 = scmp.ne.s32.totalorder %s377, %s378
    %p387 = scmp.eq.s32.totalorder %s31, 0
    %p388 = por %p386, %p387
    %p389 = scmp.ne.s32.totalorder %s377, %s378
    %p390 = scmp.eq.s32.totalorder %s32, 1
    %p391 = por %p389, %p390
    %p393 = scmp.ne.s32.totalorder %s378, %s392
    %p394 = scmp.eq.s32.totalorder %s32, 0
    %p395 = por %p393, %p394
    %s397 = sadd.s32 %s396, 1
    %p400 = scmp.eq.s32.totalorder %s26, 1
    %p401 = scmp.ne.s32.totalorder %s396, %s398
    %p402 = scmp.eq.s32.totalorder %s26, 0
    %p403 = por %p401, %p402
    %p404 = scmp.ne.s32.totalorder %s396, %s398
    %p405 = scmp.eq.s32.totalorder %s31, 1
    %p406 = por %p404, %p405
    %p407 = scmp.ne.s32.totalorder %s398, %s399
    %p408 = scmp.eq.s32.totalorder %s31, 0
    %p409 = por %p407, %p408
    %p410 = scmp.ne.s32.totalorder %s398, %s399
    %p411 = scmp.eq.s32.totalorder %s32, 1
    %p412 = por %p410, %p411
    %p414 = scmp.ne.s32.totalorder %s399, %s413
    %p415 = scmp.eq.s32.totalorder %s32, 0
    %p416 = por %p414, %p415
    %s418 = sadd.s32 %s417, 1
    %p421 = scmp.eq.s32.totalorder %s26, 1
    %p422 = scmp.ne.s32.totalorder %s417, %s419
    %p423 = scmp.eq.s32.totalorder %s26, 0
    %p424 = por %p422, %p423
    %p425 = scmp.ne.s32.totalorder %s417, %s419
    %p426 = scmp.eq.s32.totalorder %s31, 1
    %p427 = por %p425, %p426
    %p428 = scmp.ne.s32.totalorder %s419, %s420
    %p429 = scmp.eq.s32.totalorder %s31, 0
    %p430 = por %p428, %p429
    %p431 = scmp.ne.s32.totalorder %s419, %s420
    %p432 = scmp.eq.s32.totalorder %s32, 1
    %p433 = por %p431, %p432
    %p435 = scmp.ne.s32.totalorder %s420, %s434
    %p436 = scmp.eq.s32.totalorder %s32, 0
    %p437 = por %p435, %p436
    %s439 = sadd.s32 %s438, 1
    %p442 = scmp.eq.s32.totalorder %s26, 1
    %p443 = scmp.ne.s32.totalorder %s438, %s440
    %p444 = scmp.eq.s32.totalorder %s26, 0
    %p445 = por %p443, %p444
    %p446 = scmp.ne.s32.totalorder %s438, %s440
    %p447 = scmp.eq.s32.totalorder %s31, 1
    %p448 = por %p446, %p447
    %p449 = scmp.ne.s32.totalorder %s440, %s441
    %p450 = scmp.eq.s32.totalorder %s31, 0
    %p451 = por %p449, %p450
    %p452 = scmp.ne.s32.totalorder %s440, %s441
    %p453 = scmp.eq.s32.totalorder %s32, 1
    %p454 = por %p452, %p453
    %p456 = scmp.ne.s32.totalorder %s441, %s455
    %p457 = scmp.eq.s32.totalorder %s32, 0
    %p458 = por %p456, %p457
    %s459 = ssub.s32 %s26, %s33
    %p460 = scmp.eq.s32.totalorder %s459, 0
    %s462 = sadd.s32 %s461, 1
    %s463 = scalar_select %p460, %s461, %s462
    %p466 = pneg %p460
    %p467 = scmp.eq.s32.totalorder %s26, 1
    %p468 = por %p466, %p467
    %p469 = scmp.ne.s32.totalorder %s461, %s464
    %p470 = scmp.eq.s32.totalorder %s26, 0
    %p471 = por %p469, %p470
    %p472 = scmp.ne.s32.totalorder %s461, %s464
    %p473 = scmp.eq.s32.totalorder %s31, 1
    %p474 = por %p472, %p473
    %p475 = scmp.ne.s32.totalorder %s464, %s465
    %p476 = scmp.eq.s32.totalorder %s31, 0
    %p477 = por %p475, %p476
    %p478 = scmp.ne.s32.totalorder %s464, %s465
    %p479 = scmp.eq.s32.totalorder %s32, 1
    %p480 = por %p478, %p479
    %p482 = scmp.ne.s32.totalorder %s465, %s481
    %p483 = scmp.eq.s32.totalorder %s32, 0
    %p484 = por %p482, %p483
    %p485 = scmp.le.s32.totalorder 1, %s26
    %p486 = scmp.lt.s32.totalorder %s26, 3
    %p487 = pnand %p485, %p486
    %p488 = pneg %p487
    // Predicated region
    $region9: #{simple_cnn_forward.1} parent=5 // pred_check
      _
    $region10: #{simple_cnn_forward.1} parent=5 // pred_check_branch
      %490 = sbr.rel (%p487) target = $region12
    $region11: #{simple_cnn_forward.1} parent=5 // pred_region
      %s491 = ssub.s32 %s26, 1
      // Predicated region
      $region13: #{simple_cnn_forward.1} parent=11 // pred_check
        %p492 = pneg %p73
      $region14: #{simple_cnn_forward.1} parent=11 // pred_check_branch
        %494 = sbr.rel (%p492) target = $region16
      $region15: #{simple_cnn_forward.1} parent=11 // pred_region
        _
      $region16: #{simple_cnn_forward.1} parent=11 // pred_fallthru
        _
      // Predicated region
      $region17: #{simple_cnn_forward.1} parent=11 // pred_check
        %p495 = pneg %p94
      $region18: #{simple_cnn_forward.1} parent=11 // pred_check_branch
        %497 = sbr.rel (%p495) target = $region20
      $region19: #{simple_cnn_forward.1} parent=11 // pred_region
        _
      $region20: #{simple_cnn_forward.1} parent=11 // pred_fallthru
        _
      // Predicated region
      $region21: #{simple_cnn_forward.1} parent=11 // pred_check
        %p498 = pneg %p115
      $region22: #{simple_cnn_forward.1} parent=11 // pred_check_branch
        %500 = sbr.rel (%p498) target = $region24
      $region23: #{simple_cnn_forward.1} parent=11 // pred_region
        _
      $region24: #{simple_cnn_forward.1} parent=11 // pred_fallthru
        _
      // Predicated region
      $region25: #{simple_cnn_forward.1} parent=11 // pred_check
        %p501 = pneg %p136
      $region26: #{simple_cnn_forward.1} parent=11 // pred_check_branch
        %503 = sbr.rel (%p501) target = $region28
      $region27: #{simple_cnn_forward.1} parent=11 // pred_region
        _
      $region28: #{simple_cnn_forward.1} parent=11 // pred_fallthru
        _
      // Predicated region
      $region29: #{simple_cnn_forward.1} parent=11 // pred_check
        %p504 = pneg %p157
      $region30: #{simple_cnn_forward.1} parent=11 // pred_check_branch
        %506 = sbr.rel (%p504) target = $region32
      $region31: #{simple_cnn_forward.1} parent=11 // pred_region
        _
      $region32: #{simple_cnn_forward.1} parent=11 // pred_fallthru
        _
      // Predicated region
      $region33: #{simple_cnn_forward.1} parent=11 // pred_check
        %p507 = pneg %p178
      $region34: #{simple_cnn_forward.1} parent=11 // pred_check_branch
        %509 = sbr.rel (%p507) target = $region36
      $region35: #{simple_cnn_forward.1} parent=11 // pred_region
        _
      $region36: #{simple_cnn_forward.1} parent=11 // pred_fallthru
        _
      // Predicated region
      $region37: #{simple_cnn_forward.1} parent=11 // pred_check
        %p510 = pneg %p199
      $region38: #{simple_cnn_forward.1} parent=11 // pred_check_branch
        %512 = sbr.rel (%p510) target = $region40
      $region39: #{simple_cnn_forward.1} parent=11 // pred_region
        _
      $region40: #{simple_cnn_forward.1} parent=11 // pred_fallthru
        _
      // Predicated region
      $region41: #{simple_cnn_forward.1} parent=11 // pred_check
        %p513 = pneg %p220
      $region42: #{simple_cnn_forward.1} parent=11 // pred_check_branch
        %515 = sbr.rel (%p513) target = $region44
      $region43: #{simple_cnn_forward.1} parent=11 // pred_region
        _
      $region44: #{simple_cnn_forward.1} parent=11 // pred_fallthru
        _
      // Predicated region
      $region45: #{simple_cnn_forward.1} parent=11 // pred_check
        %p516 = pneg %p241
      $region46: #{simple_cnn_forward.1} parent=11 // pred_check_branch
        %518 = sbr.rel (%p516) target = $region48
      $region47: #{simple_cnn_forward.1} parent=11 // pred_region
        _
      $region48: #{simple_cnn_forward.1} parent=11 // pred_fallthru
        _
      // Predicated region
      $region49: #{simple_cnn_forward.1} parent=11 // pred_check
        %p519 = pneg %p262
      $region50: #{simple_cnn_forward.1} parent=11 // pred_check_branch
        %521 = sbr.rel (%p519) target = $region52
      $region51: #{simple_cnn_forward.1} parent=11 // pred_region
        _
      $region52: #{simple_cnn_forward.1} parent=11 // pred_fallthru
        _
      // Predicated region
      $region53: #{simple_cnn_forward.1} parent=11 // pred_check
        %p522 = pneg %p283
      $region54: #{simple_cnn_forward.1} parent=11 // pred_check_branch
        %524 = sbr.rel (%p522) target = $region56
      $region55: #{simple_cnn_forward.1} parent=11 // pred_region
        _
      $region56: #{simple_cnn_forward.1} parent=11 // pred_fallthru
        _
      // Predicated region
      $region57: #{simple_cnn_forward.1} parent=11 // pred_check
        %p525 = pneg %p304
      $region58: #{simple_cnn_forward.1} parent=11 // pred_check_branch
        %527 = sbr.rel (%p525) target = $region60
      $region59: #{simple_cnn_forward.1} parent=11 // pred_region
        _
      $region60: #{simple_cnn_forward.1} parent=11 // pred_fallthru
        _
      // Predicated region
      $region61: #{simple_cnn_forward.1} parent=11 // pred_check
        %p528 = pneg %p325
      $region62: #{simple_cnn_forward.1} parent=11 // pred_check_branch
        %530 = sbr.rel (%p528) target = $region64
      $region63: #{simple_cnn_forward.1} parent=11 // pred_region
        _
      $region64: #{simple_cnn_forward.1} parent=11 // pred_fallthru
        _
      // Predicated region
      $region65: #{simple_cnn_forward.1} parent=11 // pred_check
        %p531 = pneg %p346
      $region66: #{simple_cnn_forward.1} parent=11 // pred_check_branch
        %533 = sbr.rel (%p531) target = $region68
      $region67: #{simple_cnn_forward.1} parent=11 // pred_region
        _
      $region68: #{simple_cnn_forward.1} parent=11 // pred_fallthru
        _
      // Predicated region
      $region69: #{simple_cnn_forward.1} parent=11 // pred_check
        %p534 = pneg %p367
      $region70: #{simple_cnn_forward.1} parent=11 // pred_check_branch
        %536 = sbr.rel (%p534) target = $region72
      $region71: #{simple_cnn_forward.1} parent=11 // pred_region
        _
      $region72: #{simple_cnn_forward.1} parent=11 // pred_fallthru
        _
      // Predicated region
      $region73: #{simple_cnn_forward.1} parent=11 // pred_check
        %p537 = pneg %p388
      $region74: #{simple_cnn_forward.1} parent=11 // pred_check_branch
        %539 = sbr.rel (%p537) target = $region76
      $region75: #{simple_cnn_forward.1} parent=11 // pred_region
        _
      $region76: #{simple_cnn_forward.1} parent=11 // pred_fallthru
        _
      // Predicated region
      $region77: #{simple_cnn_forward.1} parent=11 // pred_check
        %p540 = pneg %p409
      $region78: #{simple_cnn_forward.1} parent=11 // pred_check_branch
        %542 = sbr.rel (%p540) target = $region80
      $region79: #{simple_cnn_forward.1} parent=11 // pred_region
        _
      $region80: #{simple_cnn_forward.1} parent=11 // pred_fallthru
        _
      // Predicated region
      $region81: #{simple_cnn_forward.1} parent=11 // pred_check
        %p543 = pneg %p430
      $region82: #{simple_cnn_forward.1} parent=11 // pred_check_branch
        %545 = sbr.rel (%p543) target = $region84
      $region83: #{simple_cnn_forward.1} parent=11 // pred_region
        _
      $region84: #{simple_cnn_forward.1} parent=11 // pred_fallthru
        _
      // Predicated region
      $region85: #{simple_cnn_forward.1} parent=11 // pred_check
        %p546 = pneg %p451
      $region86: #{simple_cnn_forward.1} parent=11 // pred_check_branch
        %548 = sbr.rel (%p546) target = $region88
      $region87: #{simple_cnn_forward.1} parent=11 // pred_region
        _
      $region88: #{simple_cnn_forward.1} parent=11 // pred_fallthru
        _
    $region12: #{simple_cnn_forward.1} parent=5 // pred_fallthru
      _
    %p549 = scmp.lt.s32.totalorder %s26, 2
    // Predicated region
    $region89: #{simple_cnn_forward.1} parent=5 // pred_check
      %p550 = pneg %p549
    $region90: #{simple_cnn_forward.1} parent=5 // pred_check_branch
      %552 = sbr.rel (%p550) target = $region92
    $region91: #{simple_cnn_forward.1} parent=5 // pred_region
      // Predicated region
      $region93: #{simple_cnn_forward.1} parent=91 // pred_check
        %p553 = pneg %p46
      $region94: #{simple_cnn_forward.1} parent=91 // pred_check_branch
        %555 = sbr.rel (%p553) target = $region96
      $region95: #{simple_cnn_forward.1} parent=91 // pred_region
        %p556 = scmp.lt.s32.totalorder %s26, 1
        %s557 = scalar_select %p556, %s26, 1
        %s558 = smul.addr %s557, 32
        %s559 = scalar_lea.vmem %s0, %s558
      $region96: #{simple_cnn_forward.1} parent=91 // pred_fallthru
        _
    $region92: #{simple_cnn_forward.1} parent=5 // pred_fallthru
      _
    %p560 = scmp.le.s32.totalorder 1, %s26
    %p561 = scmp.lt.s32.totalorder %s26, 3
    %p562 = pnand %p560, %p561
    %p563 = pneg %p562
    // Predicated region
    $region97: #{simple_cnn_forward.1} parent=5 // pred_check
      _
    $region98: #{simple_cnn_forward.1} parent=5 // pred_check_branch
      %565 = sbr.rel (%p562) target = $region100
    $region99: #{simple_cnn_forward.1} parent=5 // pred_region
      %s566 = ssub.s32 %s26, 1
      %p567 = scmp.lt.s32.totalorder %s31, 1
      %s568 = scalar_select %p567, %s31, 1
      %s569 = smul.addr %s568, 32
      %s570 = scalar_lea.vmem %s0, %s569
      %p571 = pneg %p52
      %p572 = pneg %p49
      %p573 = pneg %p73
      %p574 = pneg %p70
      %p575 = pneg %p94
      %p576 = pneg %p91
      %p577 = pneg %p115
      %p578 = pneg %p112
      %p579 = pneg %p136
      %p580 = pneg %p133
      %p581 = pneg %p157
      %p582 = pneg %p154
      %p583 = pneg %p178
      %p584 = pneg %p175
      %p585 = pneg %p199
      %p586 = pneg %p196
      %p587 = pneg %p220
      %p588 = pneg %p217
      %p589 = pneg %p241
      %p590 = pneg %p238
      %p591 = pneg %p262
      %p592 = pneg %p259
      %p593 = pneg %p283
      %p594 = pneg %p280
      %p595 = pneg %p304
      %p596 = pneg %p301
      %p597 = pneg %p325
      %p598 = pneg %p322
      %p599 = pneg %p346
      %p600 = pneg %p343
      %p601 = pneg %p367
      %p602 = pneg %p364
      %p603 = pneg %p388
      %p604 = pneg %p385
      %p605 = pneg %p409
      %p606 = pneg %p406
      %p607 = pneg %p430
      %p608 = pneg %p427
      %p609 = pneg %p451
      %p610 = pneg %p448
      %p611 = pneg %p477
      %p612 = pneg %p474
      %p613 = scmp.lt.s32.totalorder %s31, 1
      %s614 = scalar_select %p613, %s31, 1
      %s615 = smul.addr %s614, 3
      %s616 = smul.addr %s615, 8
      %s617 = scalar_lea.vmem %s20, %s616
      %p618 = scmp.lt.s32.totalorder %s31, 1
      %s619 = scalar_select %p618, %s31, 1
      %s620 = smul.addr %s619, 32
      %s621 = scalar_lea.vmem %s0, %s620
      %p622 = scmp.lt.s32.totalorder %s31, 1
      %s623 = scalar_select %p622, %s31, 1
      %s624 = smul.addr %s623, 3
      %s625 = smul.addr %s624, 8
      %s626 = scalar_lea.vmem %s20, %s625
      %v630 = vld [vmem:[%s621] sm:$0xff]
      %v631 = vld [vmem:[%s621 + $0x8] sm:$0xff]
      %v632 = vld [vmem:[%s621 + $0x10] sm:$0xff]
      %v633 = vld [vmem:[%s621 + $0x18] sm:$0xff]
      %v638 = vlaneseq
      %v639 = vshrl.u32 %v638, 7
      %v640 = vsub.s32 0, %v639
      %v641 = vrot.slane %v630, %v640
      %v642 = vlaneseq
      %v643 = vshrl.u32 %v642, 7
      %v644 = vsub.s32 1, %v643
      %v645 = vrot.slane %v630, %v644
      %v646 = vlaneseq
      %v647 = vshrl.u32 %v646, 7
      %v648 = vsub.s32 2, %v647
      %v649 = vrot.slane %v630, %v648
      %v650 = vlaneseq
      %v651 = vshrl.u32 %v650, 7
      %v652 = vsub.s32 3, %v651
      %v653 = vrot.slane %v630, %v652
      %v654 = vlaneseq
      %v655 = vshrl.u32 %v654, 7
      %v656 = vsub.s32 4, %v655
      %v657 = vrot.slane %v630, %v656
      %v658 = vlaneseq
      %v659 = vshrl.u32 %v658, 7
      %v660 = vsub.s32 5, %v659
      %v661 = vrot.slane %v630, %v660
      %v662 = vlaneseq
      %v663 = vshrl.u32 %v662, 7
      %v664 = vsub.s32 6, %v663
      %v665 = vrot.slane %v630, %v664
      %v666 = vlaneseq
      %v667 = vshrl.u32 %v666, 7
      %v668 = vsub.s32 7, %v667
      %v669 = vrot.slane %v630, %v668
      %v670 = vlaneseq
      %v671 = vshrl.u32 %v670, 7
      %v672 = vsub.s32 0, %v671
      %v673 = vrot.slane %v631, %v672
      %v674 = vlaneseq
      %v675 = vshrl.u32 %v674, 7
      %v676 = vsub.s32 1, %v675
      %v677 = vrot.slane %v631, %v676
      %v678 = vlaneseq
      %v679 = vshrl.u32 %v678, 7
      %v680 = vsub.s32 2, %v679
      %v681 = vrot.slane %v631, %v680
      %v682 = vlaneseq
      %v683 = vshrl.u32 %v682, 7
      %v684 = vsub.s32 3, %v683
      %v685 = vrot.slane %v631, %v684
      %v686 = vlaneseq
      %v687 = vshrl.u32 %v686, 7
      %v688 = vsub.s32 4, %v687
      %v689 = vrot.slane %v631, %v688
      %v690 = vlaneseq
      %v691 = vshrl.u32 %v690, 7
      %v692 = vsub.s32 5, %v691
      %v693 = vrot.slane %v631, %v692
      %v694 = vlaneseq
      %v695 = vshrl.u32 %v694, 7
      %v696 = vsub.s32 6, %v695
      %v697 = vrot.slane %v631, %v696
      %v698 = vlaneseq
      %v699 = vshrl.u32 %v698, 7
      %v700 = vsub.s32 7, %v699
      %v701 = vrot.slane %v631, %v700
      %v702 = vlaneseq
      %v703 = vshrl.u32 %v702, 7
      %v704 = vsub.s32 0, %v703
      %v705 = vrot.slane %v632, %v704
      %v706 = vlaneseq
      %v707 = vshrl.u32 %v706, 7
      %v708 = vsub.s32 1, %v707
      %v709 = vrot.slane %v632, %v708
      %v710 = vlaneseq
      %v711 = vshrl.u32 %v710, 7
      %v712 = vsub.s32 2, %v711
      %v713 = vrot.slane %v632, %v712
      %v714 = vlaneseq
      %v715 = vshrl.u32 %v714, 7
      %v716 = vsub.s32 3, %v715
      %v717 = vrot.slane %v632, %v716
      %v718 = vlaneseq
      %v719 = vshrl.u32 %v718, 7
      %v720 = vsub.s32 4, %v719
      %v721 = vrot.slane %v632, %v720
      %v722 = vlaneseq
      %v723 = vshrl.u32 %v722, 7
      %v724 = vsub.s32 5, %v723
      %v725 = vrot.slane %v632, %v724
      %v726 = vlaneseq
      %v727 = vshrl.u32 %v726, 7
      %v728 = vsub.s32 6, %v727
      %v729 = vrot.slane %v632, %v728
      %v730 = vlaneseq
      %v731 = vshrl.u32 %v730, 7
      %v732 = vsub.s32 7, %v731
      %v733 = vrot.slane %v632, %v732
      %v734 = vlaneseq
      %v735 = vshrl.u32 %v734, 7
      %v736 = vsub.s32 0, %v735
      %v737 = vrot.slane %v633, %v736
      %v738 = vlaneseq
      %v739 = vshrl.u32 %v738, 7
      %v740 = vsub.s32 1, %v739
      %v741 = vrot.slane %v633, %v740
      %v742 = vlaneseq
      %v743 = vshrl.u32 %v742, 7
      %v744 = vsub.s32 2, %v743
      %v745 = vrot.slane %v633, %v744
      %v746 = vlaneseq
      %v747 = vshrl.u32 %v746, 7
      %v748 = vsub.s32 3, %v747
      %v749 = vrot.slane %v633, %v748
      %v750 = vlaneseq
      %v751 = vshrl.u32 %v750, 7
      %v752 = vsub.s32 4, %v751
      %v753 = vrot.slane %v633, %v752
      %v754 = vlaneseq
      %v755 = vshrl.u32 %v754, 7
      %v756 = vsub.s32 5, %v755
      %v757 = vrot.slane %v633, %v756
      %v758 = vlaneseq
      %v759 = vshrl.u32 %v758, 7
      %v760 = vsub.s32 6, %v759
      %v761 = vrot.slane %v633, %v760
      %v762 = vlaneseq
      %v763 = vshrl.u32 %v762, 7
      %v764 = vsub.s32 7, %v763
      %v765 = vrot.slane %v633, %v764
      %766 = vrot.lane.b32.xlu0 %v641, 2
      %v767 = vpop.permute.xlu0 %766
      %768 = vrot.lane.b32.xlu0 %v645, 2
      %v769 = vpop.permute.xlu0 %768
      %770 = vrot.lane.b32.xlu0 %v649, 2
      %v771 = vpop.permute.xlu0 %770
      %772 = vrot.lane.b32.xlu0 %v653, 2
      %v773 = vpop.permute.xlu0 %772
      %774 = vrot.lane.b32.xlu0 %v657, 2
      %v775 = vpop.permute.xlu0 %774
      %776 = vrot.lane.b32.xlu0 %v661, 2
      %v777 = vpop.permute.xlu0 %776
      %778 = vrot.lane.b32.xlu0 %v665, 2
      %v779 = vpop.permute.xlu0 %778
      %780 = vrot.lane.b32.xlu0 %v669, 2
      %v781 = vpop.permute.xlu0 %780
      %782 = vrot.lane.b32.xlu0 %v673, 2
      %v783 = vpop.permute.xlu0 %782
      %784 = vrot.lane.b32.xlu0 %v677, 2
      %v785 = vpop.permute.xlu0 %784
      %786 = vrot.lane.b32.xlu0 %v681, 2
      %v787 = vpop.permute.xlu0 %786
      %788 = vrot.lane.b32.xlu0 %v685, 2
      %v789 = vpop.permute.xlu0 %788
      %790 = vrot.lane.b32.xlu0 %v689, 2
      %v791 = vpop.permute.xlu0 %790
      %792 = vrot.lane.b32.xlu0 %v693, 2
      %v793 = vpop.permute.xlu0 %792
      %794 = vrot.lane.b32.xlu0 %v697, 2
      %v795 = vpop.permute.xlu0 %794
      %796 = vrot.lane.b32.xlu0 %v701, 2
      %v797 = vpop.permute.xlu0 %796
      %798 = vrot.lane.b32.xlu0 %v705, 2
      %v799 = vpop.permute.xlu0 %798
      %800 = vrot.lane.b32.xlu0 %v709, 2
      %v801 = vpop.permute.xlu0 %800
      %802 = vrot.lane.b32.xlu0 %v713, 2
      %v803 = vpop.permute.xlu0 %802
      %804 = vrot.lane.b32.xlu0 %v717, 2
      %v805 = vpop.permute.xlu0 %804
      %806 = vrot.lane.b32.xlu0 %v721, 2
      %v807 = vpop.permute.xlu0 %806
      %808 = vrot.lane.b32.xlu0 %v725, 2
      %v809 = vpop.permute.xlu0 %808
      %810 = vrot.lane.b32.xlu0 %v729, 2
      %v811 = vpop.permute.xlu0 %810
      %812 = vrot.lane.b32.xlu0 %v733, 2
      %v813 = vpop.permute.xlu0 %812
      %814 = vrot.lane.b32.xlu0 %v737, 2
      %v815 = vpop.permute.xlu0 %814
      %816 = vrot.lane.b32.xlu0 %v741, 2
      %v817 = vpop.permute.xlu0 %816
      %818 = vrot.lane.b32.xlu0 %v745, 2
      %v819 = vpop.permute.xlu0 %818
      %820 = vrot.lane.b32.xlu0 %v749, 2
      %v821 = vpop.permute.xlu0 %820
      %822 = vrot.lane.b32.xlu0 %v753, 2
      %v823 = vpop.permute.xlu0 %822
      %824 = vrot.lane.b32.xlu0 %v757, 2
      %v825 = vpop.permute.xlu0 %824
      %826 = vrot.lane.b32.xlu0 %v761, 2
      %v827 = vpop.permute.xlu0 %826
      %828 = vrot.lane.b32.xlu0 %v765, 2
      %v829 = vpop.permute.xlu0 %828
      %vm830 = vcmask 15360
      %v831 = vsel %vm830, %v767, %v769
      %v832 = vsel %vm830, %v769, %v771
      %v833 = vsel %vm830, %v771, %v773
      %v834 = vsel %vm830, %v773, %v775
      %v835 = vsel %vm830, %v775, %v777
      %v836 = vsel %vm830, %v777, %v779
      %v837 = vsel %vm830, %v779, %v781
      %v838 = vsel %vm830, %v781, %v783
      %v839 = vsel %vm830, %v783, %v785
      %v840 = vsel %vm830, %v785, %v787
      %v841 = vsel %vm830, %v787, %v789
      %v842 = vsel %vm830, %v789, %v791
      %v843 = vsel %vm830, %v791, %v793
      %v844 = vsel %vm830, %v793, %v795
      %v845 = vsel %vm830, %v795, %v797
      %v846 = vsel %vm830, %v797, %v799
      %v847 = vsel %vm830, %v799, %v801
      %v848 = vsel %vm830, %v801, %v803
      %v849 = vsel %vm830, %v803, %v805
      %v850 = vsel %vm830, %v805, %v807
      %v851 = vsel %vm830, %v807, %v809
      %v852 = vsel %vm830, %v809, %v811
      %v853 = vsel %vm830, %v811, %v813
      %v854 = vsel %vm830, %v813, %v815
      %v855 = vsel %vm830, %v815, %v817
      %v856 = vsel %vm830, %v817, %v819
      %v857 = vsel %vm830, %v819, %v821
      %v858 = vsel %vm830, %v821, %v823
      %v859 = vsel %vm830, %v823, %v825
      %v860 = vsel %vm830, %v825, %v827
      %v861 = vsel %vm830, %v827, %v829
      %v863 = vsel %vm830, 0.0, %v767
      %v864 = vld [vmem:[%s19] ss:$8 sm:$0xf]
      %v865 = vld [vmem:[%s19] ss:$8 sm:$0xf0]
      %v866 = vor.u32 %v864, %v865
      %s867 = scalar_lea.vmem %s19, 64
      %v868 = vld [vmem:[%s867] ss:$8 sm:$0xf]
      %v869 = vld [vmem:[%s867] ss:$8 sm:$0xf0]
      %v870 = vor.u32 %v868, %v869
      %s871 = scalar_lea.vmem %s19, 128
      %v872 = vld [vmem:[%s871] ss:$8 sm:$0xf]
      %v873 = vld [vmem:[%s871] ss:$8 sm:$0xf0]
      %v874 = vor.u32 %v872, %v873
      %s875 = scalar_lea.vmem %s19, 192
      %v876 = vld [vmem:[%s875] ss:$8 sm:$0xf]
      %v877 = vld [vmem:[%s875] ss:$8 sm:$0xf0]
      %v878 = vor.u32 %v876, %v877
      %vm879 = vcmp.gt.f32.partialorder %v866, 0.5
      %vm880 = vcmp.gt.f32.partialorder %v870, 0.5
      %vm881 = vcmp.gt.f32.partialorder %v874, 0.5
      %vm882 = vcmp.gt.f32.partialorder %v878, 0.5
      %v884 = vcombine.low %v863, %v831
      %v885 = vcombine.low %v832, %v833
      %v886 = vcombine.low %v834, %v835
      %v887 = vcombine.low %v836, %v837
      %v889 = vunpack.c.l.s4 1966171168
      %v890 = vunpack.c.0.s8 %v889
      %v891 = vlaneseq
      %v892 = vshrl.u32 %v891, 7
      %v893 = vsub.s32 %v890, %v892
      %v894 = vrot.slane %v884, %v893
      %v896 = vunpack.c.l.s4 1966171168
      %v897 = vunpack.c.0.s8 %v896
      %v898 = vlaneseq
      %v899 = vshrl.u32 %v898, 7
      %v900 = vsub.s32 %v897, %v899
      %v901 = vrot.slane %v885, %v900
      %v903 = vunpack.c.l.s4 1966171168
      %v904 = vunpack.c.0.s8 %v903
      %v905 = vlaneseq
      %v906 = vshrl.u32 %v905, 7
      %v907 = vsub.s32 %v904, %v906
      %v908 = vrot.slane %v886, %v907
      %v910 = vunpack.c.l.s4 1966171168
      %v911 = vunpack.c.0.s8 %v910
      %v912 = vlaneseq
      %v913 = vshrl.u32 %v912, 7
      %v914 = vsub.s32 %v911, %v913
      %v915 = vrot.slane %v887, %v914
      %v916 = vcombine.low %v894, %v901
      %v917 = vcombine.low %v908, %v915
      %v919 = vunpack.c.l.s4 1966171168
      %v920 = vunpack.c.0.s8 %v919
      %v921 = vlaneseq
      %v922 = vshrl.u32 %v921, 7
      %v923 = vsub.s32 %v920, %v922
      %v924 = vrot.slane %v916, %v923
      %v926 = vunpack.c.l.s4 1966171168
      %v927 = vunpack.c.0.s8 %v926
      %v928 = vlaneseq
      %v929 = vshrl.u32 %v928, 7
      %v930 = vsub.s32 %v927, %v929
      %v931 = vrot.slane %v917, %v930
      %v932 = vcombine.low %v924, %v931
      %v933 = vcombine.low %v838, %v839
      %v934 = vcombine.low %v840, %v841
      %v935 = vcombine.low %v842, %v843
      %v936 = vcombine.low %v844, %v845
      %v938 = vunpack.c.l.s4 1966171168
      %v939 = vunpack.c.0.s8 %v938
      %v940 = vlaneseq
      %v941 = vshrl.u32 %v940, 7
      %v942 = vsub.s32 %v939, %v941
      %v943 = vrot.slane %v933, %v942
      %v945 = vunpack.c.l.s4 1966171168
      %v946 = vunpack.c.0.s8 %v945
      %v947 = vlaneseq
      %v948 = vshrl.u32 %v947, 7
      %v949 = vsub.s32 %v946, %v948
      %v950 = vrot.slane %v934, %v949
      %v952 = vunpack.c.l.s4 1966171168
      %v953 = vunpack.c.0.s8 %v952
      %v954 = vlaneseq
      %v955 = vshrl.u32 %v954, 7
      %v956 = vsub.s32 %v953, %v955
      %v957 = vrot.slane %v935, %v956
      %v959 = vunpack.c.l.s4 1966171168
      %v960 = vunpack.c.0.s8 %v959
      %v961 = vlaneseq
      %v962 = vshrl.u32 %v961, 7
      %v963 = vsub.s32 %v960, %v962
      %v964 = vrot.slane %v936, %v963
      %v965 = vcombine.low %v943, %v950
      %v966 = vcombine.low %v957, %v964
      %v968 = vunpack.c.l.s4 1966171168
      %v969 = vunpack.c.0.s8 %v968
      %v970 = vlaneseq
      %v971 = vshrl.u32 %v970, 7
      %v972 = vsub.s32 %v969, %v971
      %v973 = vrot.slane %v965, %v972
      %v975 = vunpack.c.l.s4 1966171168
      %v976 = vunpack.c.0.s8 %v975
      %v977 = vlaneseq
      %v978 = vshrl.u32 %v977, 7
      %v979 = vsub.s32 %v976, %v978
      %v980 = vrot.slane %v966, %v979
      %v981 = vcombine.low %v973, %v980
      %v982 = vcombine.low %v846, %v847
      %v983 = vcombine.low %v848, %v849
      %v984 = vcombine.low %v850, %v851
      %v985 = vcombine.low %v852, %v853
      %v987 = vunpack.c.l.s4 1966171168
      %v988 = vunpack.c.0.s8 %v987
      %v989 = vlaneseq
      %v990 = vshrl.u32 %v989, 7
      %v991 = vsub.s32 %v988, %v990
      %v992 = vrot.slane %v982, %v991
      %v994 = vunpack.c.l.s4 1966171168
      %v995 = vunpack.c.0.s8 %v994
      %v996 = vlaneseq
      %v997 = vshrl.u32 %v996, 7
      %v998 = vsub.s32 %v995, %v997
      %v999 = vrot.slane %v983, %v998
      %v1001 = vunpack.c.l.s4 1966171168
      %v1002 = vunpack.c.0.s8 %v1001
      %v1003 = vlaneseq
      %v1004 = vshrl.u32 %v1003, 7
      %v1005 = vsub.s32 %v1002, %v1004
      %v1006 = vrot.slane %v984, %v1005
      %v1008 = vunpack.c.l.s4 1966171168
      %v1009 = vunpack.c.0.s8 %v1008
      %v1010 = vlaneseq
      %v1011 = vshrl.u32 %v1010, 7
      %v1012 = vsub.s32 %v1009, %v1011
      %v1013 = vrot.slane %v985, %v1012
      %v1014 = vcombine.low %v992, %v999
      %v1015 = vcombine.low %v1006, %v1013
      %v1017 = vunpack.c.l.s4 1966171168
      %v1018 = vunpack.c.0.s8 %v1017
      %v1019 = vlaneseq
      %v1020 = vshrl.u32 %v1019, 7
      %v1021 = vsub.s32 %v1018, %v1020
      %v1022 = vrot.slane %v1014, %v1021
      %v1024 = vunpack.c.l.s4 1966171168
      %v1025 = vunpack.c.0.s8 %v1024
      %v1026 = vlaneseq
      %v1027 = vshrl.u32 %v1026, 7
      %v1028 = vsub.s32 %v1025, %v1027
      %v1029 = vrot.slane %v1015, %v1028
      %v1030 = vcombine.low %v1022, %v1029
      %v1031 = vcombine.low %v854, %v855
      %v1032 = vcombine.low %v856, %v857
      %v1033 = vcombine.low %v858, %v859
      %v1034 = vcombine.low %v860, %v861
      %v1036 = vunpack.c.l.s4 1966171168
      %v1037 = vunpack.c.0.s8 %v1036
      %v1038 = vlaneseq
      %v1039 = vshrl.u32 %v1038, 7
      %v1040 = vsub.s32 %v1037, %v1039
      %v1041 = vrot.slane %v1031, %v1040
      %v1043 = vunpack.c.l.s4 1966171168
      %v1044 = vunpack.c.0.s8 %v1043
      %v1045 = vlaneseq
      %v1046 = vshrl.u32 %v1045, 7
      %v1047 = vsub.s32 %v1044, %v1046
      %v1048 = vrot.slane %v1032, %v1047
      %v1050 = vunpack.c.l.s4 1966171168
      %v1051 = vunpack.c.0.s8 %v1050
      %v1052 = vlaneseq
      %v1053 = vshrl.u32 %v1052, 7
      %v1054 = vsub.s32 %v1051, %v1053
      %v1055 = vrot.slane %v1033, %v1054
      %v1057 = vunpack.c.l.s4 1966171168
      %v1058 = vunpack.c.0.s8 %v1057
      %v1059 = vlaneseq
      %v1060 = vshrl.u32 %v1059, 7
      %v1061 = vsub.s32 %v1058, %v1060
      %v1062 = vrot.slane %v1034, %v1061
      %v1063 = vcombine.low %v1041, %v1048
      %v1064 = vcombine.low %v1055, %v1062
      %v1066 = vunpack.c.l.s4 1966171168
      %v1067 = vunpack.c.0.s8 %v1066
      %v1068 = vlaneseq
      %v1069 = vshrl.u32 %v1068, 7
      %v1070 = vsub.s32 %v1067, %v1069
      %v1071 = vrot.slane %v1063, %v1070
      %v1073 = vunpack.c.l.s4 1966171168
      %v1074 = vunpack.c.0.s8 %v1073
      %v1075 = vlaneseq
      %v1076 = vshrl.u32 %v1075, 7
      %v1077 = vsub.s32 %v1074, %v1076
      %v1078 = vrot.slane %v1064, %v1077
      %v1079 = vcombine.low %v1071, %v1078
      %v1084 = vsel %vm879, %v932, 0.0
      %v1085 = vsel %vm880, %v981, 0.0
      %v1086 = vsel %vm881, %v1030, 0.0
      %v1087 = vsel %vm882, %v1079, 0.0
      %1088 = vrot.lane.b32.xlu0 %v641, 1
      %v1089 = vpop.permute.xlu0 %1088
      %1090 = vrot.lane.b32.xlu0 %v645, 1
      %v1091 = vpop.permute.xlu0 %1090
      %1092 = vrot.lane.b32.xlu0 %v649, 1
      %v1093 = vpop.permute.xlu0 %1092
      %1094 = vrot.lane.b32.xlu0 %v653, 1
      %v1095 = vpop.permute.xlu0 %1094
      %1096 = vrot.lane.b32.xlu0 %v657, 1
      %v1097 = vpop.permute.xlu0 %1096
      %1098 = vrot.lane.b32.xlu0 %v661, 1
      %v1099 = vpop.permute.xlu0 %1098
      %1100 = vrot.lane.b32.xlu0 %v665, 1
      %v1101 = vpop.permute.xlu0 %1100
      %1102 = vrot.lane.b32.xlu0 %v669, 1
      %v1103 = vpop.permute.xlu0 %1102
      %1104 = vrot.lane.b32.xlu0 %v673, 1
      %v1105 = vpop.permute.xlu0 %1104
      %1106 = vrot.lane.b32.xlu0 %v677, 1
      %v1107 = vpop.permute.xlu0 %1106
      %1108 = vrot.lane.b32.xlu0 %v681, 1
      %v1109 = vpop.permute.xlu0 %1108
      %1110 = vrot.lane.b32.xlu0 %v685, 1
      %v1111 = vpop.permute.xlu0 %1110
      %1112 = vrot.lane.b32.xlu0 %v689, 1
      %v1113 = vpop.permute.xlu0 %1112
      %1114 = vrot.lane.b32.xlu0 %v693, 1
      %v1115 = vpop.permute.xlu0 %1114
      %1116 = vrot.lane.b32.xlu0 %v697, 1
      %v1117 = vpop.permute.xlu0 %1116
      %1118 = vrot.lane.b32.xlu0 %v701, 1
      %v1119 = vpop.permute.xlu0 %1118
      %1120 = vrot.lane.b32.xlu0 %v705, 1
      %v1121 = vpop.permute.xlu0 %1120
      %1122 = vrot.lane.b32.xlu0 %v709, 1
      %v1123 = vpop.permute.xlu0 %1122
      %1124 = vrot.lane.b32.xlu0 %v713, 1
      %v1125 = vpop.permute.xlu0 %1124
      %1126 = vrot.lane.b32.xlu0 %v717, 1
      %v1127 = vpop.permute.xlu0 %1126
      %1128 = vrot.lane.b32.xlu0 %v721, 1
      %v1129 = vpop.permute.xlu0 %1128
      %1130 = vrot.lane.b32.xlu0 %v725, 1
      %v1131 = vpop.permute.xlu0 %1130
      %1132 = vrot.lane.b32.xlu0 %v729, 1
      %v1133 = vpop.permute.xlu0 %1132
      %1134 = vrot.lane.b32.xlu0 %v733, 1
      %v1135 = vpop.permute.xlu0 %1134
      %1136 = vrot.lane.b32.xlu0 %v737, 1
      %v1137 = vpop.permute.xlu0 %1136
      %1138 = vrot.lane.b32.xlu0 %v741, 1
      %v1139 = vpop.permute.xlu0 %1138
      %1140 = vrot.lane.b32.xlu0 %v745, 1
      %v1141 = vpop.permute.xlu0 %1140
      %1142 = vrot.lane.b32.xlu0 %v749, 1
      %v1143 = vpop.permute.xlu0 %1142
      %1144 = vrot.lane.b32.xlu0 %v753, 1
      %v1145 = vpop.permute.xlu0 %1144
      %1146 = vrot.lane.b32.xlu0 %v757, 1
      %v1147 = vpop.permute.xlu0 %1146
      %1148 = vrot.lane.b32.xlu0 %v761, 1
      %v1149 = vpop.permute.xlu0 %1148
      %1150 = vrot.lane.b32.xlu0 %v765, 1
      %v1151 = vpop.permute.xlu0 %1150
      %vm1152 = vcmask 7168
      %v1153 = vsel %vm1152, %v1089, %v1091
      %v1154 = vsel %vm1152, %v1091, %v1093
      %v1155 = vsel %vm1152, %v1093, %v1095
      %v1156 = vsel %vm1152, %v1095, %v1097
      %v1157 = vsel %vm1152, %v1097, %v1099
      %v1158 = vsel %vm1152, %v1099, %v1101
      %v1159 = vsel %vm1152, %v1101, %v1103
      %v1160 = vsel %vm1152, %v1103, %v1105
      %v1161 = vsel %vm1152, %v1105, %v1107
      %v1162 = vsel %vm1152, %v1107, %v1109
      %v1163 = vsel %vm1152, %v1109, %v1111
      %v1164 = vsel %vm1152, %v1111, %v1113
      %v1165 = vsel %vm1152, %v1113, %v1115
      %v1166 = vsel %vm1152, %v1115, %v1117
      %v1167 = vsel %vm1152, %v1117, %v1119
      %v1168 = vsel %vm1152, %v1119, %v1121
      %v1169 = vsel %vm1152, %v1121, %v1123
      %v1170 = vsel %vm1152, %v1123, %v1125
      %v1171 = vsel %vm1152, %v1125, %v1127
      %v1172 = vsel %vm1152, %v1127, %v1129
      %v1173 = vsel %vm1152, %v1129, %v1131
      %v1174 = vsel %vm1152, %v1131, %v1133
      %v1175 = vsel %vm1152, %v1133, %v1135
      %v1176 = vsel %vm1152, %v1135, %v1137
      %v1177 = vsel %vm1152, %v1137, %v1139
      %v1178 = vsel %vm1152, %v1139, %v1141
      %v1179 = vsel %vm1152, %v1141, %v1143
      %v1180 = vsel %vm1152, %v1143, %v1145
      %v1181 = vsel %vm1152, %v1145, %v1147
      %v1182 = vsel %vm1152, %v1147, %v1149
      %v1183 = vsel %vm1152, %v1149, %v1151
      %v1185 = vsel %vm1152, 0.0, %v1089
      %s1186 = scalar_lea.vmem %s19, 1
      %v1187 = vld [vmem:[%s1186] ss:$8 sm:$0xf]
      %v1188 = vld [vmem:[%s1186] ss:$8 sm:$0xf0]
      %v1189 = vor.u32 %v1187, %v1188
      %s1190 = scalar_lea.vmem %s19, 65
      %v1191 = vld [vmem:[%s1190] ss:$8 sm:$0xf]
      %v1192 = vld [vmem:[%s1190] ss:$8 sm:$0xf0]
      %v1193 = vor.u32 %v1191, %v1192
      %s1194 = scalar_lea.vmem %s19, 129
      %v1195 = vld [vmem:[%s1194] ss:$8 sm:$0xf]
      %v1196 = vld [vmem:[%s1194] ss:$8 sm:$0xf0]
      %v1197 = vor.u32 %v1195, %v1196
      %s1198 = scalar_lea.vmem %s19, 193
      %v1199 = vld [vmem:[%s1198] ss:$8 sm:$0xf]
      %v1200 = vld [vmem:[%s1198] ss:$8 sm:$0xf0]
      %v1201 = vor.u32 %v1199, %v1200
      %vm1202 = vcmp.gt.f32.partialorder %v1189, 0.5
      %vm1203 = vcmp.gt.f32.partialorder %v1193, 0.5
      %vm1204 = vcmp.gt.f32.partialorder %v1197, 0.5
      %vm1205 = vcmp.gt.f32.partialorder %v1201, 0.5
      %v1207 = vcombine.low %v1185, %v1153
      %v1208 = vcombine.low %v1154, %v1155
      %v1209 = vcombine.low %v1156, %v1157
      %v1210 = vcombine.low %v1158, %v1159
      %v1212 = vunpack.c.l.s4 1966171168
      %v1213 = vunpack.c.0.s8 %v1212
      %v1214 = vlaneseq
      %v1215 = vshrl.u32 %v1214, 7
      %v1216 = vsub.s32 %v1213, %v1215
      %v1217 = vrot.slane %v1207, %v1216
      %v1219 = vunpack.c.l.s4 1966171168
      %v1220 = vunpack.c.0.s8 %v1219
      %v1221 = vlaneseq
      %v1222 = vshrl.u32 %v1221, 7
      %v1223 = vsub.s32 %v1220, %v1222
      %v1224 = vrot.slane %v1208, %v1223
      %v1226 = vunpack.c.l.s4 1966171168
      %v1227 = vunpack.c.0.s8 %v1226
      %v1228 = vlaneseq
      %v1229 = vshrl.u32 %v1228, 7
      %v1230 = vsub.s32 %v1227, %v1229
      %v1231 = vrot.slane %v1209, %v1230
      %v1233 = vunpack.c.l.s4 1966171168
      %v1234 = vunpack.c.0.s8 %v1233
      %v1235 = vlaneseq
      %v1236 = vshrl.u32 %v1235, 7
      %v1237 = vsub.s32 %v1234, %v1236
      %v1238 = vrot.slane %v1210, %v1237
      %v1239 = vcombine.low %v1217, %v1224
      %v1240 = vcombine.low %v1231, %v1238
      %v1242 = vunpack.c.l.s4 1966171168
      %v1243 = vunpack.c.0.s8 %v1242
      %v1244 = vlaneseq
      %v1245 = vshrl.u32 %v1244, 7
      %v1246 = vsub.s32 %v1243, %v1245
      %v1247 = vrot.slane %v1239, %v1246
      %v1249 = vunpack.c.l.s4 1966171168
      %v1250 = vunpack.c.0.s8 %v1249
      %v1251 = vlaneseq
      %v1252 = vshrl.u32 %v1251, 7
      %v1253 = vsub.s32 %v1250, %v1252
      %v1254 = vrot.slane %v1240, %v1253
      %v1255 = vcombine.low %v1247, %v1254
      %v1256 = vcombine.low %v1160, %v1161
      %v1257 = vcombine.low %v1162, %v1163
      %v1258 = vcombine.low %v1164, %v1165
      %v1259 = vcombine.low %v1166, %v1167
      %v1261 = vunpack.c.l.s4 1966171168
      %v1262 = vunpack.c.0.s8 %v1261
      %v1263 = vlaneseq
      %v1264 = vshrl.u32 %v1263, 7
      %v1265 = vsub.s32 %v1262, %v1264
      %v1266 = vrot.slane %v1256, %v1265
      %v1268 = vunpack.c.l.s4 1966171168
      %v1269 = vunpack.c.0.s8 %v1268
      %v1270 = vlaneseq
      %v1271 = vshrl.u32 %v1270, 7
      %v1272 = vsub.s32 %v1269, %v1271
      %v1273 = vrot.slane %v1257, %v1272
      %v1275 = vunpack.c.l.s4 1966171168
      %v1276 = vunpack.c.0.s8 %v1275
      %v1277 = vlaneseq
      %v1278 = vshrl.u32 %v1277, 7
      %v1279 = vsub.s32 %v1276, %v1278
      %v1280 = vrot.slane %v1258, %v1279
      %v1282 = vunpack.c.l.s4 1966171168
      %v1283 = vunpack.c.0.s8 %v1282
      %v1284 = vlaneseq
      %v1285 = vshrl.u32 %v1284, 7
      %v1286 = vsub.s32 %v1283, %v1285
      %v1287 = vrot.slane %v1259, %v1286
      %v1288 = vcombine.low %v1266, %v1273
      %v1289 = vcombine.low %v1280, %v1287
      %v1291 = vunpack.c.l.s4 1966171168
      %v1292 = vunpack.c.0.s8 %v1291
      %v1293 = vlaneseq
      %v1294 = vshrl.u32 %v1293, 7
      %v1295 = vsub.s32 %v1292, %v1294
      %v1296 = vrot.slane %v1288, %v1295
      %v1298 = vunpack.c.l.s4 1966171168
      %v1299 = vunpack.c.0.s8 %v1298
      %v1300 = vlaneseq
      %v1301 = vshrl.u32 %v1300, 7
      %v1302 = vsub.s32 %v1299, %v1301
      %v1303 = vrot.slane %v1289, %v1302
      %v1304 = vcombine.low %v1296, %v1303
      %v1305 = vcombine.low %v1168, %v1169
      %v1306 = vcombine.low %v1170, %v1171
      %v1307 = vcombine.low %v1172, %v1173
      %v1308 = vcombine.low %v1174, %v1175
      %v1310 = vunpack.c.l.s4 1966171168
      %v1311 = vunpack.c.0.s8 %v1310
      %v1312 = vlaneseq
      %v1313 = vshrl.u32 %v1312, 7
      %v1314 = vsub.s32 %v1311, %v1313
      %v1315 = vrot.slane %v1305, %v1314
      %v1317 = vunpack.c.l.s4 1966171168
      %v1318 = vunpack.c.0.s8 %v1317
      %v1319 = vlaneseq
      %v1320 = vshrl.u32 %v1319, 7
      %v1321 = vsub.s32 %v1318, %v1320
      %v1322 = vrot.slane %v1306, %v1321
      %v1324 = vunpack.c.l.s4 1966171168
      %v1325 = vunpack.c.0.s8 %v1324
      %v1326 = vlaneseq
      %v1327 = vshrl.u32 %v1326, 7
      %v1328 = vsub.s32 %v1325, %v1327
      %v1329 = vrot.slane %v1307, %v1328
      %v1331 = vunpack.c.l.s4 1966171168
      %v1332 = vunpack.c.0.s8 %v1331
      %v1333 = vlaneseq
      %v1334 = vshrl.u32 %v1333, 7
      %v1335 = vsub.s32 %v1332, %v1334
      %v1336 = vrot.slane %v1308, %v1335
      %v1337 = vcombine.low %v1315, %v1322
      %v1338 = vcombine.low %v1329, %v1336
      %v1340 = vunpack.c.l.s4 1966171168
      %v1341 = vunpack.c.0.s8 %v1340
      %v1342 = vlaneseq
      %v1343 = vshrl.u32 %v1342, 7
      %v1344 = vsub.s32 %v1341, %v1343
      %v1345 = vrot.slane %v1337, %v1344
      %v1347 = vunpack.c.l.s4 1966171168
      %v1348 = vunpack.c.0.s8 %v1347
      %v1349 = vlaneseq
      %v1350 = vshrl.u32 %v1349, 7
      %v1351 = vsub.s32 %v1348, %v1350
      %v1352 = vrot.slane %v1338, %v1351
      %v1353 = vcombine.low %v1345, %v1352
      %v1354 = vcombine.low %v1176, %v1177
      %v1355 = vcombine.low %v1178, %v1179
      %v1356 = vcombine.low %v1180, %v1181
      %v1357 = vcombine.low %v1182, %v1183
      %v1359 = vunpack.c.l.s4 1966171168
      %v1360 = vunpack.c.0.s8 %v1359
      %v1361 = vlaneseq
      %v1362 = vshrl.u32 %v1361, 7
      %v1363 = vsub.s32 %v1360, %v1362
      %v1364 = vrot.slane %v1354, %v1363
      %v1366 = vunpack.c.l.s4 1966171168
      %v1367 = vunpack.c.0.s8 %v1366
      %v1368 = vlaneseq
      %v1369 = vshrl.u32 %v1368, 7
      %v1370 = vsub.s32 %v1367, %v1369
      %v1371 = vrot.slane %v1355, %v1370
      %v1373 = vunpack.c.l.s4 1966171168
      %v1374 = vunpack.c.0.s8 %v1373
      %v1375 = vlaneseq
      %v1376 = vshrl.u32 %v1375, 7
      %v1377 = vsub.s32 %v1374, %v1376
      %v1378 = vrot.slane %v1356, %v1377
      %v1380 = vunpack.c.l.s4 1966171168
      %v1381 = vunpack.c.0.s8 %v1380
      %v1382 = vlaneseq
      %v1383 = vshrl.u32 %v1382, 7
      %v1384 = vsub.s32 %v1381, %v1383
      %v1385 = vrot.slane %v1357, %v1384
      %v1386 = vcombine.low %v1364, %v1371
      %v1387 = vcombine.low %v1378, %v1385
      %v1389 = vunpack.c.l.s4 1966171168
      %v1390 = vunpack.c.0.s8 %v1389
      %v1391 = vlaneseq
      %v1392 = vshrl.u32 %v1391, 7
      %v1393 = vsub.s32 %v1390, %v1392
      %v1394 = vrot.slane %v1386, %v1393
      %v1396 = vunpack.c.l.s4 1966171168
      %v1397 = vunpack.c.0.s8 %v1396
      %v1398 = vlaneseq
      %v1399 = vshrl.u32 %v1398, 7
      %v1400 = vsub.s32 %v1397, %v1399
      %v1401 = vrot.slane %v1387, %v1400
      %v1402 = vcombine.low %v1394, %v1401
      %v1407 = vsel %vm1202, %v1255, 0.0
      %v1408 = vsel %vm1203, %v1304, 0.0
      %v1409 = vsel %vm1204, %v1353, 0.0
      %v1410 = vsel %vm1205, %v1402, 0.0
      %1411 = vrot.lane.b32.xlu0 %v641, 127
      %v1412 = vpop.permute.xlu0 %1411
      %1413 = vrot.lane.b32.xlu0 %v645, 127
      %v1414 = vpop.permute.xlu0 %1413
      %1415 = vrot.lane.b32.xlu0 %v649, 127
      %v1416 = vpop.permute.xlu0 %1415
      %1417 = vrot.lane.b32.xlu0 %v653, 127
      %v1418 = vpop.permute.xlu0 %1417
      %1419 = vrot.lane.b32.xlu0 %v657, 127
      %v1420 = vpop.permute.xlu0 %1419
      %1421 = vrot.lane.b32.xlu0 %v661, 127
      %v1422 = vpop.permute.xlu0 %1421
      %1423 = vrot.lane.b32.xlu0 %v665, 127
      %v1424 = vpop.permute.xlu0 %1423
      %1425 = vrot.lane.b32.xlu0 %v669, 127
      %v1426 = vpop.permute.xlu0 %1425
      %1427 = vrot.lane.b32.xlu0 %v673, 127
      %v1428 = vpop.permute.xlu0 %1427
      %1429 = vrot.lane.b32.xlu0 %v677, 127
      %v1430 = vpop.permute.xlu0 %1429
      %1431 = vrot.lane.b32.xlu0 %v681, 127
      %v1432 = vpop.permute.xlu0 %1431
      %1433 = vrot.lane.b32.xlu0 %v685, 127
      %v1434 = vpop.permute.xlu0 %1433
      %1435 = vrot.lane.b32.xlu0 %v689, 127
      %v1436 = vpop.permute.xlu0 %1435
      %1437 = vrot.lane.b32.xlu0 %v693, 127
      %v1438 = vpop.permute.xlu0 %1437
      %1439 = vrot.lane.b32.xlu0 %v697, 127
      %v1440 = vpop.permute.xlu0 %1439
      %1441 = vrot.lane.b32.xlu0 %v701, 127
      %v1442 = vpop.permute.xlu0 %1441
      %1443 = vrot.lane.b32.xlu0 %v705, 127
      %v1444 = vpop.permute.xlu0 %1443
      %1445 = vrot.lane.b32.xlu0 %v709, 127
      %v1446 = vpop.permute.xlu0 %1445
      %1447 = vrot.lane.b32.xlu0 %v713, 127
      %v1448 = vpop.permute.xlu0 %1447
      %1449 = vrot.lane.b32.xlu0 %v717, 127
      %v1450 = vpop.permute.xlu0 %1449
      %1451 = vrot.lane.b32.xlu0 %v721, 127
      %v1452 = vpop.permute.xlu0 %1451
      %1453 = vrot.lane.b32.xlu0 %v725, 127
      %v1454 = vpop.permute.xlu0 %1453
      %1455 = vrot.lane.b32.xlu0 %v729, 127
      %v1456 = vpop.permute.xlu0 %1455
      %1457 = vrot.lane.b32.xlu0 %v733, 127
      %v1458 = vpop.permute.xlu0 %1457
      %1459 = vrot.lane.b32.xlu0 %v737, 127
      %v1460 = vpop.permute.xlu0 %1459
      %1461 = vrot.lane.b32.xlu0 %v741, 127
      %v1462 = vpop.permute.xlu0 %1461
      %1463 = vrot.lane.b32.xlu0 %v745, 127
      %v1464 = vpop.permute.xlu0 %1463
      %1465 = vrot.lane.b32.xlu0 %v749, 127
      %v1466 = vpop.permute.xlu0 %1465
      %1467 = vrot.lane.b32.xlu0 %v753, 127
      %v1468 = vpop.permute.xlu0 %1467
      %1469 = vrot.lane.b32.xlu0 %v757, 127
      %v1470 = vpop.permute.xlu0 %1469
      %1471 = vrot.lane.b32.xlu0 %v761, 127
      %v1472 = vpop.permute.xlu0 %1471
      %1473 = vrot.lane.b32.xlu0 %v765, 127
      %v1474 = vpop.permute.xlu0 %1473
      %vm1475 = vcmask 1039360
      %v1476 = vsel %vm1475, %v1412, %v1414
      %v1477 = vsel %vm1475, %v1414, %v1416
      %v1478 = vsel %vm1475, %v1416, %v1418
      %v1479 = vsel %vm1475, %v1418, %v1420
      %v1480 = vsel %vm1475, %v1420, %v1422
      %v1481 = vsel %vm1475, %v1422, %v1424
      %v1482 = vsel %vm1475, %v1424, %v1426
      %v1483 = vsel %vm1475, %v1426, %v1428
      %v1484 = vsel %vm1475, %v1428, %v1430
      %v1485 = vsel %vm1475, %v1430, %v1432
      %v1486 = vsel %vm1475, %v1432, %v1434
      %v1487 = vsel %vm1475, %v1434, %v1436
      %v1488 = vsel %vm1475, %v1436, %v1438
      %v1489 = vsel %vm1475, %v1438, %v1440
      %v1490 = vsel %vm1475, %v1440, %v1442
      %v1491 = vsel %vm1475, %v1442, %v1444
      %v1492 = vsel %vm1475, %v1444, %v1446
      %v1493 = vsel %vm1475, %v1446, %v1448
      %v1494 = vsel %vm1475, %v1448, %v1450
      %v1495 = vsel %vm1475, %v1450, %v1452
      %v1496 = vsel %vm1475, %v1452, %v1454
      %v1497 = vsel %vm1475, %v1454, %v1456
      %v1498 = vsel %vm1475, %v1456, %v1458
      %v1499 = vsel %vm1475, %v1458, %v1460
      %v1500 = vsel %vm1475, %v1460, %v1462
      %v1501 = vsel %vm1475, %v1462, %v1464
      %v1502 = vsel %vm1475, %v1464, %v1466
      %v1503 = vsel %vm1475, %v1466, %v1468
      %v1504 = vsel %vm1475, %v1468, %v1470
      %v1505 = vsel %vm1475, %v1470, %v1472
      %v1506 = vsel %vm1475, %v1472, %v1474
      %v1508 = vsel %vm1475, %v1474, 0.0
      %s1509 = scalar_lea.vmem %s19, 3
      %v1510 = vld [vmem:[%s1509] ss:$8 sm:$0xf]
      %v1511 = vld [vmem:[%s1509] ss:$8 sm:$0xf0]
      %v1512 = vor.u32 %v1510, %v1511
      %s1513 = scalar_lea.vmem %s19, 67
      %v1514 = vld [vmem:[%s1513] ss:$8 sm:$0xf]
      %v1515 = vld [vmem:[%s1513] ss:$8 sm:$0xf0]
      %v1516 = vor.u32 %v1514, %v1515
      %s1517 = scalar_lea.vmem %s19, 131
      %v1518 = vld [vmem:[%s1517] ss:$8 sm:$0xf]
      %v1519 = vld [vmem:[%s1517] ss:$8 sm:$0xf0]
      %v1520 = vor.u32 %v1518, %v1519
      %s1521 = scalar_lea.vmem %s19, 195
      %v1522 = vld [vmem:[%s1521] ss:$8 sm:$0xf]
      %v1523 = vld [vmem:[%s1521] ss:$8 sm:$0xf0]
      %v1524 = vor.u32 %v1522, %v1523
      %vm1525 = vcmp.gt.f32.partialorder %v1512, 0.5
      %vm1526 = vcmp.gt.f32.partialorder %v1516, 0.5
      %vm1527 = vcmp.gt.f32.partialorder %v1520, 0.5
      %vm1528 = vcmp.gt.f32.partialorder %v1524, 0.5
      %v1530 = vcombine.low %v1476, %v1477
      %v1531 = vcombine.low %v1478, %v1479
      %v1532 = vcombine.low %v1480, %v1481
      %v1533 = vcombine.low %v1482, %v1483
      %v1535 = vunpack.c.l.s4 1966171168
      %v1536 = vunpack.c.0.s8 %v1535
      %v1537 = vlaneseq
      %v1538 = vshrl.u32 %v1537, 7
      %v1539 = vsub.s32 %v1536, %v1538
      %v1540 = vrot.slane %v1530, %v1539
      %v1542 = vunpack.c.l.s4 1966171168
      %v1543 = vunpack.c.0.s8 %v1542
      %v1544 = vlaneseq
      %v1545 = vshrl.u32 %v1544, 7
      %v1546 = vsub.s32 %v1543, %v1545
      %v1547 = vrot.slane %v1531, %v1546
      %v1549 = vunpack.c.l.s4 1966171168
      %v1550 = vunpack.c.0.s8 %v1549
      %v1551 = vlaneseq
      %v1552 = vshrl.u32 %v1551, 7
      %v1553 = vsub.s32 %v1550, %v1552
      %v1554 = vrot.slane %v1532, %v1553
      %v1556 = vunpack.c.l.s4 1966171168
      %v1557 = vunpack.c.0.s8 %v1556
      %v1558 = vlaneseq
      %v1559 = vshrl.u32 %v1558, 7
      %v1560 = vsub.s32 %v1557, %v1559
      %v1561 = vrot.slane %v1533, %v1560
      %v1562 = vcombine.low %v1540, %v1547
      %v1563 = vcombine.low %v1554, %v1561
      %v1565 = vunpack.c.l.s4 1966171168
      %v1566 = vunpack.c.0.s8 %v1565
      %v1567 = vlaneseq
      %v1568 = vshrl.u32 %v1567, 7
      %v1569 = vsub.s32 %v1566, %v1568
      %v1570 = vrot.slane %v1562, %v1569
      %v1572 = vunpack.c.l.s4 1966171168
      %v1573 = vunpack.c.0.s8 %v1572
      %v1574 = vlaneseq
      %v1575 = vshrl.u32 %v1574, 7
      %v1576 = vsub.s32 %v1573, %v1575
      %v1577 = vrot.slane %v1563, %v1576
      %v1578 = vcombine.low %v1570, %v1577
      %v1579 = vcombine.low %v1484, %v1485
      %v1580 = vcombine.low %v1486, %v1487
      %v1581 = vcombine.low %v1488, %v1489
      %v1582 = vcombine.low %v1490, %v1491
      %v1584 = vunpack.c.l.s4 1966171168
      %v1585 = vunpack.c.0.s8 %v1584
      %v1586 = vlaneseq
      %v1587 = vshrl.u32 %v1586, 7
      %v1588 = vsub.s32 %v1585, %v1587
      %v1589 = vrot.slane %v1579, %v1588
      %v1591 = vunpack.c.l.s4 1966171168
      %v1592 = vunpack.c.0.s8 %v1591
      %v1593 = vlaneseq
      %v1594 = vshrl.u32 %v1593, 7
      %v1595 = vsub.s32 %v1592, %v1594
      %v1596 = vrot.slane %v1580, %v1595
      %v1598 = vunpack.c.l.s4 1966171168
      %v1599 = vunpack.c.0.s8 %v1598
      %v1600 = vlaneseq
      %v1601 = vshrl.u32 %v1600, 7
      %v1602 = vsub.s32 %v1599, %v1601
      %v1603 = vrot.slane %v1581, %v1602
      %v1605 = vunpack.c.l.s4 1966171168
      %v1606 = vunpack.c.0.s8 %v1605
      %v1607 = vlaneseq
      %v1608 = vshrl.u32 %v1607, 7
      %v1609 = vsub.s32 %v1606, %v1608
      %v1610 = vrot.slane %v1582, %v1609
      %v1611 = vcombine.low %v1589, %v1596
      %v1612 = vcombine.low %v1603, %v1610
      %v1614 = vunpack.c.l.s4 1966171168
      %v1615 = vunpack.c.0.s8 %v1614
      %v1616 = vlaneseq
      %v1617 = vshrl.u32 %v1616, 7
      %v1618 = vsub.s32 %v1615, %v1617
      %v1619 = vrot.slane %v1611, %v1618
      %v1621 = vunpack.c.l.s4 1966171168
      %v1622 = vunpack.c.0.s8 %v1621
      %v1623 = vlaneseq
      %v1624 = vshrl.u32 %v1623, 7
      %v1625 = vsub.s32 %v1622, %v1624
      %v1626 = vrot.slane %v1612, %v1625
      %v1627 = vcombine.low %v1619, %v1626
      %v1628 = vcombine.low %v1492, %v1493
      %v1629 = vcombine.low %v1494, %v1495
      %v1630 = vcombine.low %v1496, %v1497
      %v1631 = vcombine.low %v1498, %v1499
      %v1633 = vunpack.c.l.s4 1966171168
      %v1634 = vunpack.c.0.s8 %v1633
      %v1635 = vlaneseq
      %v1636 = vshrl.u32 %v1635, 7
      %v1637 = vsub.s32 %v1634, %v1636
      %v1638 = vrot.slane %v1628, %v1637
      %v1640 = vunpack.c.l.s4 1966171168
      %v1641 = vunpack.c.0.s8 %v1640
      %v1642 = vlaneseq
      %v1643 = vshrl.u32 %v1642, 7
      %v1644 = vsub.s32 %v1641, %v1643
      %v1645 = vrot.slane %v1629, %v1644
      %v1647 = vunpack.c.l.s4 1966171168
      %v1648 = vunpack.c.0.s8 %v1647
      %v1649 = vlaneseq
      %v1650 = vshrl.u32 %v1649, 7
      %v1651 = vsub.s32 %v1648, %v1650
      %v1652 = vrot.slane %v1630, %v1651
      %v1654 = vunpack.c.l.s4 1966171168
      %v1655 = vunpack.c.0.s8 %v1654
      %v1656 = vlaneseq
      %v1657 = vshrl.u32 %v1656, 7
      %v1658 = vsub.s32 %v1655, %v1657
      %v1659 = vrot.slane %v1631, %v1658
      %v1660 = vcombine.low %v1638, %v1645
      %v1661 = vcombine.low %v1652, %v1659
      %v1663 = vunpack.c.l.s4 1966171168
      %v1664 = vunpack.c.0.s8 %v1663
      %v1665 = vlaneseq
      %v1666 = vshrl.u32 %v1665, 7
      %v1667 = vsub.s32 %v1664, %v1666
      %v1668 = vrot.slane %v1660, %v1667
      %v1670 = vunpack.c.l.s4 1966171168
      %v1671 = vunpack.c.0.s8 %v1670
      %v1672 = vlaneseq
      %v1673 = vshrl.u32 %v1672, 7
      %v1674 = vsub.s32 %v1671, %v1673
      %v1675 = vrot.slane %v1661, %v1674
      %v1676 = vcombine.low %v1668, %v1675
      %v1677 = vcombine.low %v1500, %v1501
      %v1678 = vcombine.low %v1502, %v1503
      %v1679 = vcombine.low %v1504, %v1505
      %v1680 = vcombine.low %v1506, %v1508
      %v1682 = vunpack.c.l.s4 1966171168
      %v1683 = vunpack.c.0.s8 %v1682
      %v1684 = vlaneseq
      %v1685 = vshrl.u32 %v1684, 7
      %v1686 = vsub.s32 %v1683, %v1685
      %v1687 = vrot.slane %v1677, %v1686
      %v1689 = vunpack.c.l.s4 1966171168
      %v1690 = vunpack.c.0.s8 %v1689
      %v1691 = vlaneseq
      %v1692 = vshrl.u32 %v1691, 7
      %v1693 = vsub.s32 %v1690, %v1692
      %v1694 = vrot.slane %v1678, %v1693
      %v1696 = vunpack.c.l.s4 1966171168
      %v1697 = vunpack.c.0.s8 %v1696
      %v1698 = vlaneseq
      %v1699 = vshrl.u32 %v1698, 7
      %v1700 = vsub.s32 %v1697, %v1699
      %v1701 = vrot.slane %v1679, %v1700
      %v1703 = vunpack.c.l.s4 1966171168
      %v1704 = vunpack.c.0.s8 %v1703
      %v1705 = vlaneseq
      %v1706 = vshrl.u32 %v1705, 7
      %v1707 = vsub.s32 %v1704, %v1706
      %v1708 = vrot.slane %v1680, %v1707
      %v1709 = vcombine.low %v1687, %v1694
      %v1710 = vcombine.low %v1701, %v1708
      %v1712 = vunpack.c.l.s4 1966171168
      %v1713 = vunpack.c.0.s8 %v1712
      %v1714 = vlaneseq
      %v1715 = vshrl.u32 %v1714, 7
      %v1716 = vsub.s32 %v1713, %v1715
      %v1717 = vrot.slane %v1709, %v1716
      %v1719 = vunpack.c.l.s4 1966171168
      %v1720 = vunpack.c.0.s8 %v1719
      %v1721 = vlaneseq
      %v1722 = vshrl.u32 %v1721, 7
      %v1723 = vsub.s32 %v1720, %v1722
      %v1724 = vrot.slane %v1710, %v1723
      %v1725 = vcombine.low %v1717, %v1724
      %v1730 = vsel %vm1525, %v1578, 0.0
      %v1731 = vsel %vm1526, %v1627, 0.0
      %v1732 = vsel %vm1527, %v1676, 0.0
      %v1733 = vsel %vm1528, %v1725, 0.0
      %1734 = vrot.lane.b32.xlu0 %v641, 126
      %v1735 = vpop.permute.xlu0 %1734
      %1736 = vrot.lane.b32.xlu0 %v645, 126
      %v1737 = vpop.permute.xlu0 %1736
      %1738 = vrot.lane.b32.xlu0 %v649, 126
      %v1739 = vpop.permute.xlu0 %1738
      %1740 = vrot.lane.b32.xlu0 %v653, 126
      %v1741 = vpop.permute.xlu0 %1740
      %1742 = vrot.lane.b32.xlu0 %v657, 126
      %v1743 = vpop.permute.xlu0 %1742
      %1744 = vrot.lane.b32.xlu0 %v661, 126
      %v1745 = vpop.permute.xlu0 %1744
      %1746 = vrot.lane.b32.xlu0 %v665, 126
      %v1747 = vpop.permute.xlu0 %1746
      %1748 = vrot.lane.b32.xlu0 %v669, 126
      %v1749 = vpop.permute.xlu0 %1748
      %1750 = vrot.lane.b32.xlu0 %v673, 126
      %v1751 = vpop.permute.xlu0 %1750
      %1752 = vrot.lane.b32.xlu0 %v677, 126
      %v1753 = vpop.permute.xlu0 %1752
      %1754 = vrot.lane.b32.xlu0 %v681, 126
      %v1755 = vpop.permute.xlu0 %1754
      %1756 = vrot.lane.b32.xlu0 %v685, 126
      %v1757 = vpop.permute.xlu0 %1756
      %1758 = vrot.lane.b32.xlu0 %v689, 126
      %v1759 = vpop.permute.xlu0 %1758
      %1760 = vrot.lane.b32.xlu0 %v693, 126
      %v1761 = vpop.permute.xlu0 %1760
      %1762 = vrot.lane.b32.xlu0 %v697, 126
      %v1763 = vpop.permute.xlu0 %1762
      %1764 = vrot.lane.b32.xlu0 %v701, 126
      %v1765 = vpop.permute.xlu0 %1764
      %1766 = vrot.lane.b32.xlu0 %v705, 126
      %v1767 = vpop.permute.xlu0 %1766
      %1768 = vrot.lane.b32.xlu0 %v709, 126
      %v1769 = vpop.permute.xlu0 %1768
      %1770 = vrot.lane.b32.xlu0 %v713, 126
      %v1771 = vpop.permute.xlu0 %1770
      %1772 = vrot.lane.b32.xlu0 %v717, 126
      %v1773 = vpop.permute.xlu0 %1772
      %1774 = vrot.lane.b32.xlu0 %v721, 126
      %v1775 = vpop.permute.xlu0 %1774
      %1776 = vrot.lane.b32.xlu0 %v725, 126
      %v1777 = vpop.permute.xlu0 %1776
      %1778 = vrot.lane.b32.xlu0 %v729, 126
      %v1779 = vpop.permute.xlu0 %1778
      %1780 = vrot.lane.b32.xlu0 %v733, 126
      %v1781 = vpop.permute.xlu0 %1780
      %1782 = vrot.lane.b32.xlu0 %v737, 126
      %v1783 = vpop.permute.xlu0 %1782
      %1784 = vrot.lane.b32.xlu0 %v741, 126
      %v1785 = vpop.permute.xlu0 %1784
      %1786 = vrot.lane.b32.xlu0 %v745, 126
      %v1787 = vpop.permute.xlu0 %1786
      %1788 = vrot.lane.b32.xlu0 %v749, 126
      %v1789 = vpop.permute.xlu0 %1788
      %1790 = vrot.lane.b32.xlu0 %v753, 126
      %v1791 = vpop.permute.xlu0 %1790
      %1792 = vrot.lane.b32.xlu0 %v757, 126
      %v1793 = vpop.permute.xlu0 %1792
      %1794 = vrot.lane.b32.xlu0 %v761, 126
      %v1795 = vpop.permute.xlu0 %1794
      %1796 = vrot.lane.b32.xlu0 %v765, 126
      %v1797 = vpop.permute.xlu0 %1796
      %vm1798 = vcmask 1031168
      %v1799 = vsel %vm1798, %v1735, %v1737
      %v1800 = vsel %vm1798, %v1737, %v1739
      %v1801 = vsel %vm1798, %v1739, %v1741
      %v1802 = vsel %vm1798, %v1741, %v1743
      %v1803 = vsel %vm1798, %v1743, %v1745
      %v1804 = vsel %vm1798, %v1745, %v1747
      %v1805 = vsel %vm1798, %v1747, %v1749
      %v1806 = vsel %vm1798, %v1749, %v1751
      %v1807 = vsel %vm1798, %v1751, %v1753
      %v1808 = vsel %vm1798, %v1753, %v1755
      %v1809 = vsel %vm1798, %v1755, %v1757
      %v1810 = vsel %vm1798, %v1757, %v1759
      %v1811 = vsel %vm1798, %v1759, %v1761
      %v1812 = vsel %vm1798, %v1761, %v1763
      %v1813 = vsel %vm1798, %v1763, %v1765
      %v1814 = vsel %vm1798, %v1765, %v1767
      %v1815 = vsel %vm1798, %v1767, %v1769
      %v1816 = vsel %vm1798, %v1769, %v1771
      %v1817 = vsel %vm1798, %v1771, %v1773
      %v1818 = vsel %vm1798, %v1773, %v1775
      %v1819 = vsel %vm1798, %v1775, %v1777
      %v1820 = vsel %vm1798, %v1777, %v1779
      %v1821 = vsel %vm1798, %v1779, %v1781
      %v1822 = vsel %vm1798, %v1781, %v1783
      %v1823 = vsel %vm1798, %v1783, %v1785
      %v1824 = vsel %vm1798, %v1785, %v1787
      %v1825 = vsel %vm1798, %v1787, %v1789
      %v1826 = vsel %vm1798, %v1789, %v1791
      %v1827 = vsel %vm1798, %v1791, %v1793
      %v1828 = vsel %vm1798, %v1793, %v1795
      %v1829 = vsel %vm1798, %v1795, %v1797
      %v1831 = vsel %vm1798, %v1797, 0.0
      %s1832 = scalar_lea.vmem %s19, 4
      %v1833 = vld [vmem:[%s1832] ss:$8 sm:$0xf]
      %v1834 = vld [vmem:[%s1832] ss:$8 sm:$0xf0]
      %v1835 = vor.u32 %v1833, %v1834
      %s1836 = scalar_lea.vmem %s19, 68
      %v1837 = vld [vmem:[%s1836] ss:$8 sm:$0xf]
      %v1838 = vld [vmem:[%s1836] ss:$8 sm:$0xf0]
      %v1839 = vor.u32 %v1837, %v1838
      %s1840 = scalar_lea.vmem %s19, 132
      %v1841 = vld [vmem:[%s1840] ss:$8 sm:$0xf]
      %v1842 = vld [vmem:[%s1840] ss:$8 sm:$0xf0]
      %v1843 = vor.u32 %v1841, %v1842
      %s1844 = scalar_lea.vmem %s19, 196
      %v1845 = vld [vmem:[%s1844] ss:$8 sm:$0xf]
      %v1846 = vld [vmem:[%s1844] ss:$8 sm:$0xf0]
      %v1847 = vor.u32 %v1845, %v1846
      %vm1848 = vcmp.gt.f32.partialorder %v1835, 0.5
      %vm1849 = vcmp.gt.f32.partialorder %v1839, 0.5
      %vm1850 = vcmp.gt.f32.partialorder %v1843, 0.5
      %vm1851 = vcmp.gt.f32.partialorder %v1847, 0.5
      %v1853 = vcombine.low %v1799, %v1800
      %v1854 = vcombine.low %v1801, %v1802
      %v1855 = vcombine.low %v1803, %v1804
      %v1856 = vcombine.low %v1805, %v1806
      %v1858 = vunpack.c.l.s4 1966171168
      %v1859 = vunpack.c.0.s8 %v1858
      %v1860 = vlaneseq
      %v1861 = vshrl.u32 %v1860, 7
      %v1862 = vsub.s32 %v1859, %v1861
      %v1863 = vrot.slane %v1853, %v1862
      %v1865 = vunpack.c.l.s4 1966171168
      %v1866 = vunpack.c.0.s8 %v1865
      %v1867 = vlaneseq
      %v1868 = vshrl.u32 %v1867, 7
      %v1869 = vsub.s32 %v1866, %v1868
      %v1870 = vrot.slane %v1854, %v1869
      %v1872 = vunpack.c.l.s4 1966171168
      %v1873 = vunpack.c.0.s8 %v1872
      %v1874 = vlaneseq
      %v1875 = vshrl.u32 %v1874, 7
      %v1876 = vsub.s32 %v1873, %v1875
      %v1877 = vrot.slane %v1855, %v1876
      %v1879 = vunpack.c.l.s4 1966171168
      %v1880 = vunpack.c.0.s8 %v1879
      %v1881 = vlaneseq
      %v1882 = vshrl.u32 %v1881, 7
      %v1883 = vsub.s32 %v1880, %v1882
      %v1884 = vrot.slane %v1856, %v1883
      %v1885 = vcombine.low %v1863, %v1870
      %v1886 = vcombine.low %v1877, %v1884
      %v1888 = vunpack.c.l.s4 1966171168
      %v1889 = vunpack.c.0.s8 %v1888
      %v1890 = vlaneseq
      %v1891 = vshrl.u32 %v1890, 7
      %v1892 = vsub.s32 %v1889, %v1891
      %v1893 = vrot.slane %v1885, %v1892
      %v1895 = vunpack.c.l.s4 1966171168
      %v1896 = vunpack.c.0.s8 %v1895
      %v1897 = vlaneseq
      %v1898 = vshrl.u32 %v1897, 7
      %v1899 = vsub.s32 %v1896, %v1898
      %v1900 = vrot.slane %v1886, %v1899
      %v1901 = vcombine.low %v1893, %v1900
      %v1902 = vcombine.low %v1807, %v1808
      %v1903 = vcombine.low %v1809, %v1810
      %v1904 = vcombine.low %v1811, %v1812
      %v1905 = vcombine.low %v1813, %v1814
      %v1907 = vunpack.c.l.s4 1966171168
      %v1908 = vunpack.c.0.s8 %v1907
      %v1909 = vlaneseq
      %v1910 = vshrl.u32 %v1909, 7
      %v1911 = vsub.s32 %v1908, %v1910
      %v1912 = vrot.slane %v1902, %v1911
      %v1914 = vunpack.c.l.s4 1966171168
      %v1915 = vunpack.c.0.s8 %v1914
      %v1916 = vlaneseq
      %v1917 = vshrl.u32 %v1916, 7
      %v1918 = vsub.s32 %v1915, %v1917
      %v1919 = vrot.slane %v1903, %v1918
      %v1921 = vunpack.c.l.s4 1966171168
      %v1922 = vunpack.c.0.s8 %v1921
      %v1923 = vlaneseq
      %v1924 = vshrl.u32 %v1923, 7
      %v1925 = vsub.s32 %v1922, %v1924
      %v1926 = vrot.slane %v1904, %v1925
      %v1928 = vunpack.c.l.s4 1966171168
      %v1929 = vunpack.c.0.s8 %v1928
      %v1930 = vlaneseq
      %v1931 = vshrl.u32 %v1930, 7
      %v1932 = vsub.s32 %v1929, %v1931
      %v1933 = vrot.slane %v1905, %v1932
      %v1934 = vcombine.low %v1912, %v1919
      %v1935 = vcombine.low %v1926, %v1933
      %v1937 = vunpack.c.l.s4 1966171168
      %v1938 = vunpack.c.0.s8 %v1937
      %v1939 = vlaneseq
      %v1940 = vshrl.u32 %v1939, 7
      %v1941 = vsub.s32 %v1938, %v1940
      %v1942 = vrot.slane %v1934, %v1941
      %v1944 = vunpack.c.l.s4 1966171168
      %v1945 = vunpack.c.0.s8 %v1944
      %v1946 = vlaneseq
      %v1947 = vshrl.u32 %v1946, 7
      %v1948 = vsub.s32 %v1945, %v1947
      %v1949 = vrot.slane %v1935, %v1948
      %v1950 = vcombine.low %v1942, %v1949
      %v1951 = vcombine.low %v1815, %v1816
      %v1952 = vcombine.low %v1817, %v1818
      %v1953 = vcombine.low %v1819, %v1820
      %v1954 = vcombine.low %v1821, %v1822
      %v1956 = vunpack.c.l.s4 1966171168
      %v1957 = vunpack.c.0.s8 %v1956
      %v1958 = vlaneseq
      %v1959 = vshrl.u32 %v1958, 7
      %v1960 = vsub.s32 %v1957, %v1959
      %v1961 = vrot.slane %v1951, %v1960
      %v1963 = vunpack.c.l.s4 1966171168
      %v1964 = vunpack.c.0.s8 %v1963
      %v1965 = vlaneseq
      %v1966 = vshrl.u32 %v1965, 7
      %v1967 = vsub.s32 %v1964, %v1966
      %v1968 = vrot.slane %v1952, %v1967
      %v1970 = vunpack.c.l.s4 1966171168
      %v1971 = vunpack.c.0.s8 %v1970
      %v1972 = vlaneseq
      %v1973 = vshrl.u32 %v1972, 7
      %v1974 = vsub.s32 %v1971, %v1973
      %v1975 = vrot.slane %v1953, %v1974
      %v1977 = vunpack.c.l.s4 1966171168
      %v1978 = vunpack.c.0.s8 %v1977
      %v1979 = vlaneseq
      %v1980 = vshrl.u32 %v1979, 7
      %v1981 = vsub.s32 %v1978, %v1980
      %v1982 = vrot.slane %v1954, %v1981
      %v1983 = vcombine.low %v1961, %v1968
      %v1984 = vcombine.low %v1975, %v1982
      %v1986 = vunpack.c.l.s4 1966171168
      %v1987 = vunpack.c.0.s8 %v1986
      %v1988 = vlaneseq
      %v1989 = vshrl.u32 %v1988, 7
      %v1990 = vsub.s32 %v1987, %v1989
      %v1991 = vrot.slane %v1983, %v1990
      %v1993 = vunpack.c.l.s4 1966171168
      %v1994 = vunpack.c.0.s8 %v1993
      %v1995 = vlaneseq
      %v1996 = vshrl.u32 %v1995, 7
      %v1997 = vsub.s32 %v1994, %v1996
      %v1998 = vrot.slane %v1984, %v1997
      %v1999 = vcombine.low %v1991, %v1998
      %v2000 = vcombine.low %v1823, %v1824
      %v2001 = vcombine.low %v1825, %v1826
      %v2002 = vcombine.low %v1827, %v1828
      %v2003 = vcombine.low %v1829, %v1831
      %v2005 = vunpack.c.l.s4 1966171168
      %v2006 = vunpack.c.0.s8 %v2005
      %v2007 = vlaneseq
      %v2008 = vshrl.u32 %v2007, 7
      %v2009 = vsub.s32 %v2006, %v2008
      %v2010 = vrot.slane %v2000, %v2009
      %v2012 = vunpack.c.l.s4 1966171168
      %v2013 = vunpack.c.0.s8 %v2012
      %v2014 = vlaneseq
      %v2015 = vshrl.u32 %v2014, 7
      %v2016 = vsub.s32 %v2013, %v2015
      %v2017 = vrot.slane %v2001, %v2016
      %v2019 = vunpack.c.l.s4 1966171168
      %v2020 = vunpack.c.0.s8 %v2019
      %v2021 = vlaneseq
      %v2022 = vshrl.u32 %v2021, 7
      %v2023 = vsub.s32 %v2020, %v2022
      %v2024 = vrot.slane %v2002, %v2023
      %v2026 = vunpack.c.l.s4 1966171168
      %v2027 = vunpack.c.0.s8 %v2026
      %v2028 = vlaneseq
      %v2029 = vshrl.u32 %v2028, 7
      %v2030 = vsub.s32 %v2027, %v2029
      %v2031 = vrot.slane %v2003, %v2030
      %v2032 = vcombine.low %v2010, %v2017
      %v2033 = vcombine.low %v2024, %v2031
      %v2035 = vunpack.c.l.s4 1966171168
      %v2036 = vunpack.c.0.s8 %v2035
      %v2037 = vlaneseq
      %v2038 = vshrl.u32 %v2037, 7
      %v2039 = vsub.s32 %v2036, %v2038
      %v2040 = vrot.slane %v2032, %v2039
      %v2042 = vunpack.c.l.s4 1966171168
      %v2043 = vunpack.c.0.s8 %v2042
      %v2044 = vlaneseq
      %v2045 = vshrl.u32 %v2044, 7
      %v2046 = vsub.s32 %v2043, %v2045
      %v2047 = vrot.slane %v2033, %v2046
      %v2048 = vcombine.low %v2040, %v2047
      %v2053 = vsel %vm1848, %v1901, 0.0
      %v2054 = vsel %vm1849, %v1950, 0.0
      %v2055 = vsel %vm1850, %v1999, 0.0
      %v2056 = vsel %vm1851, %v2048, 0.0
      %v2061 = vlaneseq
      %v2062 = vshrl.u32 %v2061, 7
      %v2063 = vsub.s32 0, %v2062
      %v2064 = vrot.slane %v1084, %v2063
      %v2065 = vlaneseq
      %v2066 = vshrl.u32 %v2065, 7
      %v2067 = vsub.s32 1, %v2066
      %v2068 = vrot.slane %v1084, %v2067
      %v2069 = vlaneseq
      %v2070 = vshrl.u32 %v2069, 7
      %v2071 = vsub.s32 2, %v2070
      %v2072 = vrot.slane %v1084, %v2071
      %v2073 = vlaneseq
      %v2074 = vshrl.u32 %v2073, 7
      %v2075 = vsub.s32 3, %v2074
      %v2076 = vrot.slane %v1084, %v2075
      %v2077 = vlaneseq
      %v2078 = vshrl.u32 %v2077, 7
      %v2079 = vsub.s32 4, %v2078
      %v2080 = vrot.slane %v1084, %v2079
      %v2081 = vlaneseq
      %v2082 = vshrl.u32 %v2081, 7
      %v2083 = vsub.s32 5, %v2082
      %v2084 = vrot.slane %v1084, %v2083
      %v2085 = vlaneseq
      %v2086 = vshrl.u32 %v2085, 7
      %v2087 = vsub.s32 6, %v2086
      %v2088 = vrot.slane %v1084, %v2087
      %v2089 = vlaneseq
      %v2090 = vshrl.u32 %v2089, 7
      %v2091 = vsub.s32 7, %v2090
      %v2092 = vrot.slane %v1084, %v2091
      %v2093 = vlaneseq
      %v2094 = vshrl.u32 %v2093, 7
      %v2095 = vsub.s32 0, %v2094
      %v2096 = vrot.slane %v1085, %v2095
      %v2097 = vlaneseq
      %v2098 = vshrl.u32 %v2097, 7
      %v2099 = vsub.s32 1, %v2098
      %v2100 = vrot.slane %v1085, %v2099
      %v2101 = vlaneseq
      %v2102 = vshrl.u32 %v2101, 7
      %v2103 = vsub.s32 2, %v2102
      %v2104 = vrot.slane %v1085, %v2103
      %v2105 = vlaneseq
      %v2106 = vshrl.u32 %v2105, 7
      %v2107 = vsub.s32 3, %v2106
      %v2108 = vrot.slane %v1085, %v2107
      %v2109 = vlaneseq
      %v2110 = vshrl.u32 %v2109, 7
      %v2111 = vsub.s32 4, %v2110
      %v2112 = vrot.slane %v1085, %v2111
      %v2113 = vlaneseq
      %v2114 = vshrl.u32 %v2113, 7
      %v2115 = vsub.s32 5, %v2114
      %v2116 = vrot.slane %v1085, %v2115
      %v2117 = vlaneseq
      %v2118 = vshrl.u32 %v2117, 7
      %v2119 = vsub.s32 6, %v2118
      %v2120 = vrot.slane %v1085, %v2119
      %v2121 = vlaneseq
      %v2122 = vshrl.u32 %v2121, 7
      %v2123 = vsub.s32 7, %v2122
      %v2124 = vrot.slane %v1085, %v2123
      %v2125 = vlaneseq
      %v2126 = vshrl.u32 %v2125, 7
      %v2127 = vsub.s32 0, %v2126
      %v2128 = vrot.slane %v1086, %v2127
      %v2129 = vlaneseq
      %v2130 = vshrl.u32 %v2129, 7
      %v2131 = vsub.s32 1, %v2130
      %v2132 = vrot.slane %v1086, %v2131
      %v2133 = vlaneseq
      %v2134 = vshrl.u32 %v2133, 7
      %v2135 = vsub.s32 2, %v2134
      %v2136 = vrot.slane %v1086, %v2135
      %v2137 = vlaneseq
      %v2138 = vshrl.u32 %v2137, 7
      %v2139 = vsub.s32 3, %v2138
      %v2140 = vrot.slane %v1086, %v2139
      %v2141 = vlaneseq
      %v2142 = vshrl.u32 %v2141, 7
      %v2143 = vsub.s32 4, %v2142
      %v2144 = vrot.slane %v1086, %v2143
      %v2145 = vlaneseq
      %v2146 = vshrl.u32 %v2145, 7
      %v2147 = vsub.s32 5, %v2146
      %v2148 = vrot.slane %v1086, %v2147
      %v2149 = vlaneseq
      %v2150 = vshrl.u32 %v2149, 7
      %v2151 = vsub.s32 6, %v2150
      %v2152 = vrot.slane %v1086, %v2151
      %v2153 = vlaneseq
      %v2154 = vshrl.u32 %v2153, 7
      %v2155 = vsub.s32 7, %v2154
      %v2156 = vrot.slane %v1086, %v2155
      %v2157 = vlaneseq
      %v2158 = vshrl.u32 %v2157, 7
      %v2159 = vsub.s32 0, %v2158
      %v2160 = vrot.slane %v1087, %v2159
      %v2161 = vlaneseq
      %v2162 = vshrl.u32 %v2161, 7
      %v2163 = vsub.s32 1, %v2162
      %v2164 = vrot.slane %v1087, %v2163
      %v2165 = vlaneseq
      %v2166 = vshrl.u32 %v2165, 7
      %v2167 = vsub.s32 2, %v2166
      %v2168 = vrot.slane %v1087, %v2167
      %v2169 = vlaneseq
      %v2170 = vshrl.u32 %v2169, 7
      %v2171 = vsub.s32 3, %v2170
      %v2172 = vrot.slane %v1087, %v2171
      %v2173 = vlaneseq
      %v2174 = vshrl.u32 %v2173, 7
      %v2175 = vsub.s32 4, %v2174
      %v2176 = vrot.slane %v1087, %v2175
      %v2177 = vlaneseq
      %v2178 = vshrl.u32 %v2177, 7
      %v2179 = vsub.s32 5, %v2178
      %v2180 = vrot.slane %v1087, %v2179
      %v2181 = vlaneseq
      %v2182 = vshrl.u32 %v2181, 7
      %v2183 = vsub.s32 6, %v2182
      %v2184 = vrot.slane %v1087, %v2183
      %v2185 = vlaneseq
      %v2186 = vshrl.u32 %v2185, 7
      %v2187 = vsub.s32 7, %v2186
      %v2188 = vrot.slane %v1087, %v2187
      %v2225 = vlaneseq
      %v2226 = vshrl.u32 %v2225, 7
      %v2227 = vsub.s32 0, %v2226
      %v2228 = vrot.slane %v1407, %v2227
      %v2229 = vlaneseq
      %v2230 = vshrl.u32 %v2229, 7
      %v2231 = vsub.s32 1, %v2230
      %v2232 = vrot.slane %v1407, %v2231
      %v2233 = vlaneseq
      %v2234 = vshrl.u32 %v2233, 7
      %v2235 = vsub.s32 2, %v2234
      %v2236 = vrot.slane %v1407, %v2235
      %v2237 = vlaneseq
      %v2238 = vshrl.u32 %v2237, 7
      %v2239 = vsub.s32 3, %v2238
      %v2240 = vrot.slane %v1407, %v2239
      %v2241 = vlaneseq
      %v2242 = vshrl.u32 %v2241, 7
      %v2243 = vsub.s32 4, %v2242
      %v2244 = vrot.slane %v1407, %v2243
      %v2245 = vlaneseq
      %v2246 = vshrl.u32 %v2245, 7
      %v2247 = vsub.s32 5, %v2246
      %v2248 = vrot.slane %v1407, %v2247
      %v2249 = vlaneseq
      %v2250 = vshrl.u32 %v2249, 7
      %v2251 = vsub.s32 6, %v2250
      %v2252 = vrot.slane %v1407, %v2251
      %v2253 = vlaneseq
      %v2254 = vshrl.u32 %v2253, 7
      %v2255 = vsub.s32 7, %v2254
      %v2256 = vrot.slane %v1407, %v2255
      %v2257 = vlaneseq
      %v2258 = vshrl.u32 %v2257, 7
      %v2259 = vsub.s32 0, %v2258
      %v2260 = vrot.slane %v1408, %v2259
      %v2261 = vlaneseq
      %v2262 = vshrl.u32 %v2261, 7
      %v2263 = vsub.s32 1, %v2262
      %v2264 = vrot.slane %v1408, %v2263
      %v2265 = vlaneseq
      %v2266 = vshrl.u32 %v2265, 7
      %v2267 = vsub.s32 2, %v2266
      %v2268 = vrot.slane %v1408, %v2267
      %v2269 = vlaneseq
      %v2270 = vshrl.u32 %v2269, 7
      %v2271 = vsub.s32 3, %v2270
      %v2272 = vrot.slane %v1408, %v2271
      %v2273 = vlaneseq
      %v2274 = vshrl.u32 %v2273, 7
      %v2275 = vsub.s32 4, %v2274
      %v2276 = vrot.slane %v1408, %v2275
      %v2277 = vlaneseq
      %v2278 = vshrl.u32 %v2277, 7
      %v2279 = vsub.s32 5, %v2278
      %v2280 = vrot.slane %v1408, %v2279
      %v2281 = vlaneseq
      %v2282 = vshrl.u32 %v2281, 7
      %v2283 = vsub.s32 6, %v2282
      %v2284 = vrot.slane %v1408, %v2283
      %v2285 = vlaneseq
      %v2286 = vshrl.u32 %v2285, 7
      %v2287 = vsub.s32 7, %v2286
      %v2288 = vrot.slane %v1408, %v2287
      %v2289 = vlaneseq
      %v2290 = vshrl.u32 %v2289, 7
      %v2291 = vsub.s32 0, %v2290
      %v2292 = vrot.slane %v1409, %v2291
      %v2293 = vlaneseq
      %v2294 = vshrl.u32 %v2293, 7
      %v2295 = vsub.s32 1, %v2294
      %v2296 = vrot.slane %v1409, %v2295
      %v2297 = vlaneseq
      %v2298 = vshrl.u32 %v2297, 7
      %v2299 = vsub.s32 2, %v2298
      %v2300 = vrot.slane %v1409, %v2299
      %v2301 = vlaneseq
      %v2302 = vshrl.u32 %v2301, 7
      %v2303 = vsub.s32 3, %v2302
      %v2304 = vrot.slane %v1409, %v2303
      %v2305 = vlaneseq
      %v2306 = vshrl.u32 %v2305, 7
      %v2307 = vsub.s32 4, %v2306
      %v2308 = vrot.slane %v1409, %v2307
      %v2309 = vlaneseq
      %v2310 = vshrl.u32 %v2309, 7
      %v2311 = vsub.s32 5, %v2310
      %v2312 = vrot.slane %v1409, %v2311
      %v2313 = vlaneseq
      %v2314 = vshrl.u32 %v2313, 7
      %v2315 = vsub.s32 6, %v2314
      %v2316 = vrot.slane %v1409, %v2315
      %v2317 = vlaneseq
      %v2318 = vshrl.u32 %v2317, 7
      %v2319 = vsub.s32 7, %v2318
      %v2320 = vrot.slane %v1409, %v2319
      %v2321 = vlaneseq
      %v2322 = vshrl.u32 %v2321, 7
      %v2323 = vsub.s32 0, %v2322
      %v2324 = vrot.slane %v1410, %v2323
      %v2325 = vlaneseq
      %v2326 = vshrl.u32 %v2325, 7
      %v2327 = vsub.s32 1, %v2326
      %v2328 = vrot.slane %v1410, %v2327
      %v2329 = vlaneseq
      %v2330 = vshrl.u32 %v2329, 7
      %v2331 = vsub.s32 2, %v2330
      %v2332 = vrot.slane %v1410, %v2331
      %v2333 = vlaneseq
      %v2334 = vshrl.u32 %v2333, 7
      %v2335 = vsub.s32 3, %v2334
      %v2336 = vrot.slane %v1410, %v2335
      %v2337 = vlaneseq
      %v2338 = vshrl.u32 %v2337, 7
      %v2339 = vsub.s32 4, %v2338
      %v2340 = vrot.slane %v1410, %v2339
      %v2341 = vlaneseq
      %v2342 = vshrl.u32 %v2341, 7
      %v2343 = vsub.s32 5, %v2342
      %v2344 = vrot.slane %v1410, %v2343
      %v2345 = vlaneseq
      %v2346 = vshrl.u32 %v2345, 7
      %v2347 = vsub.s32 6, %v2346
      %v2348 = vrot.slane %v1410, %v2347
      %v2349 = vlaneseq
      %v2350 = vshrl.u32 %v2349, 7
      %v2351 = vsub.s32 7, %v2350
      %v2352 = vrot.slane %v1410, %v2351
      %v2421 = vlaneseq
      %v2422 = vshrl.u32 %v2421, 7
      %v2423 = vsub.s32 0, %v2422
      %v2424 = vrot.slane %v1730, %v2423
      %v2425 = vlaneseq
      %v2426 = vshrl.u32 %v2425, 7
      %v2427 = vsub.s32 1, %v2426
      %v2428 = vrot.slane %v1730, %v2427
      %v2429 = vlaneseq
      %v2430 = vshrl.u32 %v2429, 7
      %v2431 = vsub.s32 2, %v2430
      %v2432 = vrot.slane %v1730, %v2431
      %v2433 = vlaneseq
      %v2434 = vshrl.u32 %v2433, 7
      %v2435 = vsub.s32 3, %v2434
      %v2436 = vrot.slane %v1730, %v2435
      %v2437 = vlaneseq
      %v2438 = vshrl.u32 %v2437, 7
      %v2439 = vsub.s32 4, %v2438
      %v2440 = vrot.slane %v1730, %v2439
      %v2441 = vlaneseq
      %v2442 = vshrl.u32 %v2441, 7
      %v2443 = vsub.s32 5, %v2442
      %v2444 = vrot.slane %v1730, %v2443
      %v2445 = vlaneseq
      %v2446 = vshrl.u32 %v2445, 7
      %v2447 = vsub.s32 6, %v2446
      %v2448 = vrot.slane %v1730, %v2447
      %v2449 = vlaneseq
      %v2450 = vshrl.u32 %v2449, 7
      %v2451 = vsub.s32 7, %v2450
      %v2452 = vrot.slane %v1730, %v2451
      %v2453 = vlaneseq
      %v2454 = vshrl.u32 %v2453, 7
      %v2455 = vsub.s32 0, %v2454
      %v2456 = vrot.slane %v1731, %v2455
      %v2457 = vlaneseq
      %v2458 = vshrl.u32 %v2457, 7
      %v2459 = vsub.s32 1, %v2458
      %v2460 = vrot.slane %v1731, %v2459
      %v2461 = vlaneseq
      %v2462 = vshrl.u32 %v2461, 7
      %v2463 = vsub.s32 2, %v2462
      %v2464 = vrot.slane %v1731, %v2463
      %v2465 = vlaneseq
      %v2466 = vshrl.u32 %v2465, 7
      %v2467 = vsub.s32 3, %v2466
      %v2468 = vrot.slane %v1731, %v2467
      %v2469 = vlaneseq
      %v2470 = vshrl.u32 %v2469, 7
      %v2471 = vsub.s32 4, %v2470
      %v2472 = vrot.slane %v1731, %v2471
      %v2473 = vlaneseq
      %v2474 = vshrl.u32 %v2473, 7
      %v2475 = vsub.s32 5, %v2474
      %v2476 = vrot.slane %v1731, %v2475
      %v2477 = vlaneseq
      %v2478 = vshrl.u32 %v2477, 7
      %v2479 = vsub.s32 6, %v2478
      %v2480 = vrot.slane %v1731, %v2479
      %v2481 = vlaneseq
      %v2482 = vshrl.u32 %v2481, 7
      %v2483 = vsub.s32 7, %v2482
      %v2484 = vrot.slane %v1731, %v2483
      %v2485 = vlaneseq
      %v2486 = vshrl.u32 %v2485, 7
      %v2487 = vsub.s32 0, %v2486
      %v2488 = vrot.slane %v1732, %v2487
      %v2489 = vlaneseq
      %v2490 = vshrl.u32 %v2489, 7
      %v2491 = vsub.s32 1, %v2490
      %v2492 = vrot.slane %v1732, %v2491
      %v2493 = vlaneseq
      %v2494 = vshrl.u32 %v2493, 7
      %v2495 = vsub.s32 2, %v2494
      %v2496 = vrot.slane %v1732, %v2495
      %v2497 = vlaneseq
      %v2498 = vshrl.u32 %v2497, 7
      %v2499 = vsub.s32 3, %v2498
      %v2500 = vrot.slane %v1732, %v2499
      %v2501 = vlaneseq
      %v2502 = vshrl.u32 %v2501, 7
      %v2503 = vsub.s32 4, %v2502
      %v2504 = vrot.slane %v1732, %v2503
      %v2505 = vlaneseq
      %v2506 = vshrl.u32 %v2505, 7
      %v2507 = vsub.s32 5, %v2506
      %v2508 = vrot.slane %v1732, %v2507
      %v2509 = vlaneseq
      %v2510 = vshrl.u32 %v2509, 7
      %v2511 = vsub.s32 6, %v2510
      %v2512 = vrot.slane %v1732, %v2511
      %v2513 = vlaneseq
      %v2514 = vshrl.u32 %v2513, 7
      %v2515 = vsub.s32 7, %v2514
      %v2516 = vrot.slane %v1732, %v2515
      %v2517 = vlaneseq
      %v2518 = vshrl.u32 %v2517, 7
      %v2519 = vsub.s32 0, %v2518
      %v2520 = vrot.slane %v1733, %v2519
      %v2521 = vlaneseq
      %v2522 = vshrl.u32 %v2521, 7
      %v2523 = vsub.s32 1, %v2522
      %v2524 = vrot.slane %v1733, %v2523
      %v2525 = vlaneseq
      %v2526 = vshrl.u32 %v2525, 7
      %v2527 = vsub.s32 2, %v2526
      %v2528 = vrot.slane %v1733, %v2527
      %v2529 = vlaneseq
      %v2530 = vshrl.u32 %v2529, 7
      %v2531 = vsub.s32 3, %v2530
      %v2532 = vrot.slane %v1733, %v2531
      %v2533 = vlaneseq
      %v2534 = vshrl.u32 %v2533, 7
      %v2535 = vsub.s32 4, %v2534
      %v2536 = vrot.slane %v1733, %v2535
      %v2537 = vlaneseq
      %v2538 = vshrl.u32 %v2537, 7
      %v2539 = vsub.s32 5, %v2538
      %v2540 = vrot.slane %v1733, %v2539
      %v2541 = vlaneseq
      %v2542 = vshrl.u32 %v2541, 7
      %v2543 = vsub.s32 6, %v2542
      %v2544 = vrot.slane %v1733, %v2543
      %v2545 = vlaneseq
      %v2546 = vshrl.u32 %v2545, 7
      %v2547 = vsub.s32 7, %v2546
      %v2548 = vrot.slane %v1733, %v2547
      %v2585 = vlaneseq
      %v2586 = vshrl.u32 %v2585, 7
      %v2587 = vsub.s32 0, %v2586
      %v2588 = vrot.slane %v2053, %v2587
      %v2589 = vlaneseq
      %v2590 = vshrl.u32 %v2589, 7
      %v2591 = vsub.s32 1, %v2590
      %v2592 = vrot.slane %v2053, %v2591
      %v2593 = vlaneseq
      %v2594 = vshrl.u32 %v2593, 7
      %v2595 = vsub.s32 2, %v2594
      %v2596 = vrot.slane %v2053, %v2595
      %v2597 = vlaneseq
      %v2598 = vshrl.u32 %v2597, 7
      %v2599 = vsub.s32 3, %v2598
      %v2600 = vrot.slane %v2053, %v2599
      %v2601 = vlaneseq
      %v2602 = vshrl.u32 %v2601, 7
      %v2603 = vsub.s32 4, %v2602
      %v2604 = vrot.slane %v2053, %v2603
      %v2605 = vlaneseq
      %v2606 = vshrl.u32 %v2605, 7
      %v2607 = vsub.s32 5, %v2606
      %v2608 = vrot.slane %v2053, %v2607
      %v2609 = vlaneseq
      %v2610 = vshrl.u32 %v2609, 7
      %v2611 = vsub.s32 6, %v2610
      %v2612 = vrot.slane %v2053, %v2611
      %v2613 = vlaneseq
      %v2614 = vshrl.u32 %v2613, 7
      %v2615 = vsub.s32 7, %v2614
      %v2616 = vrot.slane %v2053, %v2615
      %v2617 = vlaneseq
      %v2618 = vshrl.u32 %v2617, 7
      %v2619 = vsub.s32 0, %v2618
      %v2620 = vrot.slane %v2054, %v2619
      %v2621 = vlaneseq
      %v2622 = vshrl.u32 %v2621, 7
      %v2623 = vsub.s32 1, %v2622
      %v2624 = vrot.slane %v2054, %v2623
      %v2625 = vlaneseq
      %v2626 = vshrl.u32 %v2625, 7
      %v2627 = vsub.s32 2, %v2626
      %v2628 = vrot.slane %v2054, %v2627
      %v2629 = vlaneseq
      %v2630 = vshrl.u32 %v2629, 7
      %v2631 = vsub.s32 3, %v2630
      %v2632 = vrot.slane %v2054, %v2631
      %v2633 = vlaneseq
      %v2634 = vshrl.u32 %v2633, 7
      %v2635 = vsub.s32 4, %v2634
      %v2636 = vrot.slane %v2054, %v2635
      %v2637 = vlaneseq
      %v2638 = vshrl.u32 %v2637, 7
      %v2639 = vsub.s32 5, %v2638
      %v2640 = vrot.slane %v2054, %v2639
      %v2641 = vlaneseq
      %v2642 = vshrl.u32 %v2641, 7
      %v2643 = vsub.s32 6, %v2642
      %v2644 = vrot.slane %v2054, %v2643
      %v2645 = vlaneseq
      %v2646 = vshrl.u32 %v2645, 7
      %v2647 = vsub.s32 7, %v2646
      %v2648 = vrot.slane %v2054, %v2647
      %v2649 = vlaneseq
      %v2650 = vshrl.u32 %v2649, 7
      %v2651 = vsub.s32 0, %v2650
      %v2652 = vrot.slane %v2055, %v2651
      %v2653 = vlaneseq
      %v2654 = vshrl.u32 %v2653, 7
      %v2655 = vsub.s32 1, %v2654
      %v2656 = vrot.slane %v2055, %v2655
      %v2657 = vlaneseq
      %v2658 = vshrl.u32 %v2657, 7
      %v2659 = vsub.s32 2, %v2658
      %v2660 = vrot.slane %v2055, %v2659
      %v2661 = vlaneseq
      %v2662 = vshrl.u32 %v2661, 7
      %v2663 = vsub.s32 3, %v2662
      %v2664 = vrot.slane %v2055, %v2663
      %v2665 = vlaneseq
      %v2666 = vshrl.u32 %v2665, 7
      %v2667 = vsub.s32 4, %v2666
      %v2668 = vrot.slane %v2055, %v2667
      %v2669 = vlaneseq
      %v2670 = vshrl.u32 %v2669, 7
      %v2671 = vsub.s32 5, %v2670
      %v2672 = vrot.slane %v2055, %v2671
      %v2673 = vlaneseq
      %v2674 = vshrl.u32 %v2673, 7
      %v2675 = vsub.s32 6, %v2674
      %v2676 = vrot.slane %v2055, %v2675
      %v2677 = vlaneseq
      %v2678 = vshrl.u32 %v2677, 7
      %v2679 = vsub.s32 7, %v2678
      %v2680 = vrot.slane %v2055, %v2679
      %v2681 = vlaneseq
      %v2682 = vshrl.u32 %v2681, 7
      %v2683 = vsub.s32 0, %v2682
      %v2684 = vrot.slane %v2056, %v2683
      %v2685 = vlaneseq
      %v2686 = vshrl.u32 %v2685, 7
      %v2687 = vsub.s32 1, %v2686
      %v2688 = vrot.slane %v2056, %v2687
      %v2689 = vlaneseq
      %v2690 = vshrl.u32 %v2689, 7
      %v2691 = vsub.s32 2, %v2690
      %v2692 = vrot.slane %v2056, %v2691
      %v2693 = vlaneseq
      %v2694 = vshrl.u32 %v2693, 7
      %v2695 = vsub.s32 3, %v2694
      %v2696 = vrot.slane %v2056, %v2695
      %v2697 = vlaneseq
      %v2698 = vshrl.u32 %v2697, 7
      %v2699 = vsub.s32 4, %v2698
      %v2700 = vrot.slane %v2056, %v2699
      %v2701 = vlaneseq
      %v2702 = vshrl.u32 %v2701, 7
      %v2703 = vsub.s32 5, %v2702
      %v2704 = vrot.slane %v2056, %v2703
      %v2705 = vlaneseq
      %v2706 = vshrl.u32 %v2705, 7
      %v2707 = vsub.s32 6, %v2706
      %v2708 = vrot.slane %v2056, %v2707
      %v2709 = vlaneseq
      %v2710 = vshrl.u32 %v2709, 7
      %v2711 = vsub.s32 7, %v2710
      %v2712 = vrot.slane %v2056, %v2711
      %vm2745 = vcmask 1040384
      %v2746 = vsel %vm2745, %v2064, %v2228
      %v2747 = vsel %vm2745, %v2068, %v2232
      %v2748 = vsel %vm2745, %v2072, %v2236
      %v2749 = vsel %vm2745, %v2076, %v2240
      %v2750 = vsel %vm2745, %v2080, %v2244
      %v2751 = vsel %vm2745, %v2084, %v2248
      %v2752 = vsel %vm2745, %v2088, %v2252
      %v2753 = vsel %vm2745, %v2092, %v2256
      %v2754 = vsel %vm2745, %v2096, %v2260
      %v2755 = vsel %vm2745, %v2100, %v2264
      %v2756 = vsel %vm2745, %v2104, %v2268
      %v2757 = vsel %vm2745, %v2108, %v2272
      %v2758 = vsel %vm2745, %v2112, %v2276
      %v2759 = vsel %vm2745, %v2116, %v2280
      %v2760 = vsel %vm2745, %v2120, %v2284
      %v2761 = vsel %vm2745, %v2124, %v2288
      %v2762 = vsel %vm2745, %v2128, %v2292
      %v2763 = vsel %vm2745, %v2132, %v2296
      %v2764 = vsel %vm2745, %v2136, %v2300
      %v2765 = vsel %vm2745, %v2140, %v2304
      %v2766 = vsel %vm2745, %v2144, %v2308
      %v2767 = vsel %vm2745, %v2148, %v2312
      %v2768 = vsel %vm2745, %v2152, %v2316
      %v2769 = vsel %vm2745, %v2156, %v2320
      %v2770 = vsel %vm2745, %v2160, %v2324
      %v2771 = vsel %vm2745, %v2164, %v2328
      %v2772 = vsel %vm2745, %v2168, %v2332
      %v2773 = vsel %vm2745, %v2172, %v2336
      %v2774 = vsel %vm2745, %v2176, %v2340
      %v2775 = vsel %vm2745, %v2180, %v2344
      %v2776 = vsel %vm2745, %v2184, %v2348
      %v2777 = vsel %vm2745, %v2188, %v2352
      %vm2778 = vcmask 1041408
      %v2779 = vsel %vm2778, %v2746, %v641
      %v2780 = vsel %vm2778, %v2747, %v645
      %v2781 = vsel %vm2778, %v2748, %v649
      %v2782 = vsel %vm2778, %v2749, %v653
      %v2783 = vsel %vm2778, %v2750, %v657
      %v2784 = vsel %vm2778, %v2751, %v661
      %v2785 = vsel %vm2778, %v2752, %v665
      %v2786 = vsel %vm2778, %v2753, %v669
      %v2787 = vsel %vm2778, %v2754, %v673
      %v2788 = vsel %vm2778, %v2755, %v677
      %v2789 = vsel %vm2778, %v2756, %v681
      %v2790 = vsel %vm2778, %v2757, %v685
      %v2791 = vsel %vm2778, %v2758, %v689
      %v2792 = vsel %vm2778, %v2759, %v693
      %v2793 = vsel %vm2778, %v2760, %v697
      %v2794 = vsel %vm2778, %v2761, %v701
      %v2795 = vsel %vm2778, %v2762, %v705
      %v2796 = vsel %vm2778, %v2763, %v709
      %v2797 = vsel %vm2778, %v2764, %v713
      %v2798 = vsel %vm2778, %v2765, %v717
      %v2799 = vsel %vm2778, %v2766, %v721
      %v2800 = vsel %vm2778, %v2767, %v725
      %v2801 = vsel %vm2778, %v2768, %v729
      %v2802 = vsel %vm2778, %v2769, %v733
      %v2803 = vsel %vm2778, %v2770, %v737
      %v2804 = vsel %vm2778, %v2771, %v741
      %v2805 = vsel %vm2778, %v2772, %v745
      %v2806 = vsel %vm2778, %v2773, %v749
      %v2807 = vsel %vm2778, %v2774, %v753
      %v2808 = vsel %vm2778, %v2775, %v757
      %v2809 = vsel %vm2778, %v2776, %v761
      %v2810 = vsel %vm2778, %v2777, %v765
      %vm2811 = vcmask 1042432
      %v2812 = vsel %vm2811, %v2779, %v2424
      %v2813 = vsel %vm2811, %v2780, %v2428
      %v2814 = vsel %vm2811, %v2781, %v2432
      %v2815 = vsel %vm2811, %v2782, %v2436
      %v2816 = vsel %vm2811, %v2783, %v2440
      %v2817 = vsel %vm2811, %v2784, %v2444
      %v2818 = vsel %vm2811, %v2785, %v2448
      %v2819 = vsel %vm2811, %v2786, %v2452
      %v2820 = vsel %vm2811, %v2787, %v2456
      %v2821 = vsel %vm2811, %v2788, %v2460
      %v2822 = vsel %vm2811, %v2789, %v2464
      %v2823 = vsel %vm2811, %v2790, %v2468
      %v2824 = vsel %vm2811, %v2791, %v2472
      %v2825 = vsel %vm2811, %v2792, %v2476
      %v2826 = vsel %vm2811, %v2793, %v2480
      %v2827 = vsel %vm2811, %v2794, %v2484
      %v2828 = vsel %vm2811, %v2795, %v2488
      %v2829 = vsel %vm2811, %v2796, %v2492
      %v2830 = vsel %vm2811, %v2797, %v2496
      %v2831 = vsel %vm2811, %v2798, %v2500
      %v2832 = vsel %vm2811, %v2799, %v2504
      %v2833 = vsel %vm2811, %v2800, %v2508
      %v2834 = vsel %vm2811, %v2801, %v2512
      %v2835 = vsel %vm2811, %v2802, %v2516
      %v2836 = vsel %vm2811, %v2803, %v2520
      %v2837 = vsel %vm2811, %v2804, %v2524
      %v2838 = vsel %vm2811, %v2805, %v2528
      %v2839 = vsel %vm2811, %v2806, %v2532
      %v2840 = vsel %vm2811, %v2807, %v2536
      %v2841 = vsel %vm2811, %v2808, %v2540
      %v2842 = vsel %vm2811, %v2809, %v2544
      %v2843 = vsel %vm2811, %v2810, %v2548
      %vm2844 = vcmask 1043456
      %v2845 = vsel %vm2844, %v2812, %v2588
      %v2846 = vsel %vm2844, %v2813, %v2592
      %v2847 = vsel %vm2844, %v2814, %v2596
      %v2848 = vsel %vm2844, %v2815, %v2600
      %v2849 = vsel %vm2844, %v2816, %v2604
      %v2850 = vsel %vm2844, %v2817, %v2608
      %v2851 = vsel %vm2844, %v2818, %v2612
      %v2852 = vsel %vm2844, %v2819, %v2616
      %v2853 = vsel %vm2844, %v2820, %v2620
      %v2854 = vsel %vm2844, %v2821, %v2624
      %v2855 = vsel %vm2844, %v2822, %v2628
      %v2856 = vsel %vm2844, %v2823, %v2632
      %v2857 = vsel %vm2844, %v2824, %v2636
      %v2858 = vsel %vm2844, %v2825, %v2640
      %v2859 = vsel %vm2844, %v2826, %v2644
      %v2860 = vsel %vm2844, %v2827, %v2648
      %v2861 = vsel %vm2844, %v2828, %v2652
      %v2862 = vsel %vm2844, %v2829, %v2656
      %v2863 = vsel %vm2844, %v2830, %v2660
      %v2864 = vsel %vm2844, %v2831, %v2664
      %v2865 = vsel %vm2844, %v2832, %v2668
      %v2866 = vsel %vm2844, %v2833, %v2672
      %v2867 = vsel %vm2844, %v2834, %v2676
      %v2868 = vsel %vm2844, %v2835, %v2680
      %v2869 = vsel %vm2844, %v2836, %v2684
      %v2870 = vsel %vm2844, %v2837, %v2688
      %v2871 = vsel %vm2844, %v2838, %v2692
      %v2872 = vsel %vm2844, %v2839, %v2696
      %v2873 = vsel %vm2844, %v2840, %v2700
      %v2874 = vsel %vm2844, %v2841, %v2704
      %v2875 = vsel %vm2844, %v2842, %v2708
      %v2876 = vsel %vm2844, %v2843, %v2712
      %v2909 = vrot.slane 0.0, 3
      %v2910 = vrot.slane %v2845, 3
      %v2911 = vrot.slane %v2846, 3
      %v2912 = vrot.slane %v2847, 3
      %v2913 = vrot.slane %v2848, 3
      %v2914 = vrot.slane %v2849, 3
      %v2915 = vrot.slane %v2850, 3
      %v2916 = vrot.slane %v2851, 3
      %v2917 = vrot.slane %v2852, 3
      %v2918 = vrot.slane %v2853, 3
      %v2919 = vrot.slane %v2854, 3
      %v2920 = vrot.slane %v2855, 3
      %v2921 = vrot.slane %v2856, 3
      %v2922 = vrot.slane %v2857, 3
      %v2923 = vrot.slane %v2858, 3
      %v2924 = vrot.slane %v2859, 3
      %v2925 = vrot.slane %v2860, 3
      %v2926 = vrot.slane %v2861, 3
      %v2927 = vrot.slane %v2862, 3
      %v2928 = vrot.slane %v2863, 3
      %v2929 = vrot.slane %v2864, 3
      %v2930 = vrot.slane %v2865, 3
      %v2931 = vrot.slane %v2866, 3
      %v2932 = vrot.slane %v2867, 3
      %v2933 = vrot.slane %v2868, 3
      %v2934 = vrot.slane %v2869, 3
      %v2935 = vrot.slane %v2870, 3
      %v2936 = vrot.slane %v2871, 3
      %v2937 = vrot.slane %v2872, 3
      %v2938 = vrot.slane %v2873, 3
      %v2939 = vrot.slane %v2874, 3
      %v2940 = vrot.slane %v2875, 3
      %v2974 = vrot.slane %v2845, 6
      %v2975 = vrot.slane %v2846, 6
      %v2976 = vrot.slane %v2847, 6
      %v2977 = vrot.slane %v2848, 6
      %v2978 = vrot.slane %v2849, 6
      %v2979 = vrot.slane %v2850, 6
      %v2980 = vrot.slane %v2851, 6
      %v2981 = vrot.slane %v2852, 6
      %v2982 = vrot.slane %v2853, 6
      %v2983 = vrot.slane %v2854, 6
      %v2984 = vrot.slane %v2855, 6
      %v2985 = vrot.slane %v2856, 6
      %v2986 = vrot.slane %v2857, 6
      %v2987 = vrot.slane %v2858, 6
      %v2988 = vrot.slane %v2859, 6
      %v2989 = vrot.slane %v2860, 6
      %v2990 = vrot.slane %v2861, 6
      %v2991 = vrot.slane %v2862, 6
      %v2992 = vrot.slane %v2863, 6
      %v2993 = vrot.slane %v2864, 6
      %v2994 = vrot.slane %v2865, 6
      %v2995 = vrot.slane %v2866, 6
      %v2996 = vrot.slane %v2867, 6
      %v2997 = vrot.slane %v2868, 6
      %v2998 = vrot.slane %v2869, 6
      %v2999 = vrot.slane %v2870, 6
      %v3000 = vrot.slane %v2871, 6
      %v3001 = vrot.slane %v2872, 6
      %v3002 = vrot.slane %v2873, 6
      %v3003 = vrot.slane %v2874, 6
      %v3004 = vrot.slane %v2875, 6
      %v3005 = vrot.slane %v2876, 6
      %v3038 = vrot.slane %v2846, 1
      %v3039 = vrot.slane %v2847, 1
      %v3040 = vrot.slane %v2848, 1
      %v3041 = vrot.slane %v2849, 1
      %v3042 = vrot.slane %v2850, 1
      %v3043 = vrot.slane %v2851, 1
      %v3044 = vrot.slane %v2852, 1
      %v3045 = vrot.slane %v2853, 1
      %v3046 = vrot.slane %v2854, 1
      %v3047 = vrot.slane %v2855, 1
      %v3048 = vrot.slane %v2856, 1
      %v3049 = vrot.slane %v2857, 1
      %v3050 = vrot.slane %v2858, 1
      %v3051 = vrot.slane %v2859, 1
      %v3052 = vrot.slane %v2860, 1
      %v3053 = vrot.slane %v2861, 1
      %v3054 = vrot.slane %v2862, 1
      %v3055 = vrot.slane %v2863, 1
      %v3056 = vrot.slane %v2864, 1
      %v3057 = vrot.slane %v2865, 1
      %v3058 = vrot.slane %v2866, 1
      %v3059 = vrot.slane %v2867, 1
      %v3060 = vrot.slane %v2868, 1
      %v3061 = vrot.slane %v2869, 1
      %v3062 = vrot.slane %v2870, 1
      %v3063 = vrot.slane %v2871, 1
      %v3064 = vrot.slane %v2872, 1
      %v3065 = vrot.slane %v2873, 1
      %v3066 = vrot.slane %v2874, 1
      %v3067 = vrot.slane %v2875, 1
      %v3068 = vrot.slane %v2876, 1
      %v3069 = vrot.slane 0.0, 1
      %v3102 = vrot.slane %v2847, 4
      %v3103 = vrot.slane %v2848, 4
      %v3104 = vrot.slane %v2849, 4
      %v3105 = vrot.slane %v2850, 4
      %v3106 = vrot.slane %v2851, 4
      %v3107 = vrot.slane %v2852, 4
      %v3108 = vrot.slane %v2853, 4
      %v3109 = vrot.slane %v2854, 4
      %v3110 = vrot.slane %v2855, 4
      %v3111 = vrot.slane %v2856, 4
      %v3112 = vrot.slane %v2857, 4
      %v3113 = vrot.slane %v2858, 4
      %v3114 = vrot.slane %v2859, 4
      %v3115 = vrot.slane %v2860, 4
      %v3116 = vrot.slane %v2861, 4
      %v3117 = vrot.slane %v2862, 4
      %v3118 = vrot.slane %v2863, 4
      %v3119 = vrot.slane %v2864, 4
      %v3120 = vrot.slane %v2865, 4
      %v3121 = vrot.slane %v2866, 4
      %v3122 = vrot.slane %v2867, 4
      %v3123 = vrot.slane %v2868, 4
      %v3124 = vrot.slane %v2869, 4
      %v3125 = vrot.slane %v2870, 4
      %v3126 = vrot.slane %v2871, 4
      %v3127 = vrot.slane %v2872, 4
      %v3128 = vrot.slane %v2873, 4
      %v3129 = vrot.slane %v2874, 4
      %v3130 = vrot.slane %v2875, 4
      %v3131 = vrot.slane %v2876, 4
      %v3132 = vrot.slane 0.0, 4
      %vm3164 = vcmask 1044480
      %v3165 = vsel %vm3164, 0.0, %v2909
      %v3166 = vsel %vm3164, 0.0, %v2910
      %v3167 = vsel %vm3164, %v2845, %v2911
      %v3168 = vsel %vm3164, %v2846, %v2912
      %v3169 = vsel %vm3164, %v2847, %v2913
      %v3170 = vsel %vm3164, %v2848, %v2914
      %v3171 = vsel %vm3164, %v2849, %v2915
      %v3172 = vsel %vm3164, %v2850, %v2916
      %v3173 = vsel %vm3164, %v2851, %v2917
      %v3174 = vsel %vm3164, %v2852, %v2918
      %v3175 = vsel %vm3164, %v2853, %v2919
      %v3176 = vsel %vm3164, %v2854, %v2920
      %v3177 = vsel %vm3164, %v2855, %v2921
      %v3178 = vsel %vm3164, %v2856, %v2922
      %v3179 = vsel %vm3164, %v2857, %v2923
      %v3180 = vsel %vm3164, %v2858, %v2924
      %v3181 = vsel %vm3164, %v2859, %v2925
      %v3182 = vsel %vm3164, %v2860, %v2926
      %v3183 = vsel %vm3164, %v2861, %v2927
      %v3184 = vsel %vm3164, %v2862, %v2928
      %v3185 = vsel %vm3164, %v2863, %v2929
      %v3186 = vsel %vm3164, %v2864, %v2930
      %v3187 = vsel %vm3164, %v2865, %v2931
      %v3188 = vsel %vm3164, %v2866, %v2932
      %v3189 = vsel %vm3164, %v2867, %v2933
      %v3190 = vsel %vm3164, %v2868, %v2934
      %v3191 = vsel %vm3164, %v2869, %v2935
      %v3192 = vsel %vm3164, %v2870, %v2936
      %v3193 = vsel %vm3164, %v2871, %v2937
      %v3194 = vsel %vm3164, %v2872, %v2938
      %v3195 = vsel %vm3164, %v2873, %v2939
      %v3196 = vsel %vm3164, %v2874, %v2940
      %v3197 = vsel %vm2778, %v2909, %v2974
      %v3198 = vsel %vm2778, %v2910, %v2975
      %v3199 = vsel %vm2778, %v2911, %v2976
      %v3200 = vsel %vm2778, %v2912, %v2977
      %v3201 = vsel %vm2778, %v2913, %v2978
      %v3202 = vsel %vm2778, %v2914, %v2979
      %v3203 = vsel %vm2778, %v2915, %v2980
      %v3204 = vsel %vm2778, %v2916, %v2981
      %v3205 = vsel %vm2778, %v2917, %v2982
      %v3206 = vsel %vm2778, %v2918, %v2983
      %v3207 = vsel %vm2778, %v2919, %v2984
      %v3208 = vsel %vm2778, %v2920, %v2985
      %v3209 = vsel %vm2778, %v2921, %v2986
      %v3210 = vsel %vm2778, %v2922, %v2987
      %v3211 = vsel %vm2778, %v2923, %v2988
      %v3212 = vsel %vm2778, %v2924, %v2989
      %v3213 = vsel %vm2778, %v2925, %v2990
      %v3214 = vsel %vm2778, %v2926, %v2991
      %v3215 = vsel %vm2778, %v2927, %v2992
      %v3216 = vsel %vm2778, %v2928, %v2993
      %v3217 = vsel %vm2778, %v2929, %v2994
      %v3218 = vsel %vm2778, %v2930, %v2995
      %v3219 = vsel %vm2778, %v2931, %v2996
      %v3220 = vsel %vm2778, %v2932, %v2997
      %v3221 = vsel %vm2778, %v2933, %v2998
      %v3222 = vsel %vm2778, %v2934, %v2999
      %v3223 = vsel %vm2778, %v2935, %v3000
      %v3224 = vsel %vm2778, %v2936, %v3001
      %v3225 = vsel %vm2778, %v2937, %v3002
      %v3226 = vsel %vm2778, %v2938, %v3003
      %v3227 = vsel %vm2778, %v2939, %v3004
      %v3228 = vsel %vm2778, %v2940, %v3005
      %vm3229 = vcmask 1046528
      %v3230 = vsel %vm3229, %v3197, %v3038
      %v3231 = vsel %vm3229, %v3198, %v3039
      %v3232 = vsel %vm3229, %v3199, %v3040
      %v3233 = vsel %vm3229, %v3200, %v3041
      %v3234 = vsel %vm3229, %v3201, %v3042
      %v3235 = vsel %vm3229, %v3202, %v3043
      %v3236 = vsel %vm3229, %v3203, %v3044
      %v3237 = vsel %vm3229, %v3204, %v3045
      %v3238 = vsel %vm3229, %v3205, %v3046
      %v3239 = vsel %vm3229, %v3206, %v3047
      %v3240 = vsel %vm3229, %v3207, %v3048
      %v3241 = vsel %vm3229, %v3208, %v3049
      %v3242 = vsel %vm3229, %v3209, %v3050
      %v3243 = vsel %vm3229, %v3210, %v3051
      %v3244 = vsel %vm3229, %v3211, %v3052
      %v3245 = vsel %vm3229, %v3212, %v3053
      %v3246 = vsel %vm3229, %v3213, %v3054
      %v3247 = vsel %vm3229, %v3214, %v3055
      %v3248 = vsel %vm3229, %v3215, %v3056
      %v3249 = vsel %vm3229, %v3216, %v3057
      %v3250 = vsel %vm3229, %v3217, %v3058
      %v3251 = vsel %vm3229, %v3218, %v3059
      %v3252 = vsel %vm3229, %v3219, %v3060
      %v3253 = vsel %vm3229, %v3220, %v3061
      %v3254 = vsel %vm3229, %v3221, %v3062
      %v3255 = vsel %vm3229, %v3222, %v3063
      %v3256 = vsel %vm3229, %v3223, %v3064
      %v3257 = vsel %vm3229, %v3224, %v3065
      %v3258 = vsel %vm3229, %v3225, %v3066
      %v3259 = vsel %vm3229, %v3226, %v3067
      %v3260 = vsel %vm3229, %v3227, %v3068
      %v3261 = vsel %vm3229, %v3228, %v3069
      %v3262 = vsel %vm2844, %v3038, %v3102
      %v3263 = vsel %vm2844, %v3039, %v3103
      %v3264 = vsel %vm2844, %v3040, %v3104
      %v3265 = vsel %vm2844, %v3041, %v3105
      %v3266 = vsel %vm2844, %v3042, %v3106
      %v3267 = vsel %vm2844, %v3043, %v3107
      %v3268 = vsel %vm2844, %v3044, %v3108
      %v3269 = vsel %vm2844, %v3045, %v3109
      %v3270 = vsel %vm2844, %v3046, %v3110
      %v3271 = vsel %vm2844, %v3047, %v3111
      %v3272 = vsel %vm2844, %v3048, %v3112
      %v3273 = vsel %vm2844, %v3049, %v3113
      %v3274 = vsel %vm2844, %v3050, %v3114
      %v3275 = vsel %vm2844, %v3051, %v3115
      %v3276 = vsel %vm2844, %v3052, %v3116
      %v3277 = vsel %vm2844, %v3053, %v3117
      %v3278 = vsel %vm2844, %v3054, %v3118
      %v3279 = vsel %vm2844, %v3055, %v3119
      %v3280 = vsel %vm2844, %v3056, %v3120
      %v3281 = vsel %vm2844, %v3057, %v3121
      %v3282 = vsel %vm2844, %v3058, %v3122
      %v3283 = vsel %vm2844, %v3059, %v3123
      %v3284 = vsel %vm2844, %v3060, %v3124
      %v3285 = vsel %vm2844, %v3061, %v3125
      %v3286 = vsel %vm2844, %v3062, %v3126
      %v3287 = vsel %vm2844, %v3063, %v3127
      %v3288 = vsel %vm2844, %v3064, %v3128
      %v3289 = vsel %vm2844, %v3065, %v3129
      %v3290 = vsel %vm2844, %v3066, %v3130
      %v3291 = vsel %vm2844, %v3067, %v3131
      %v3292 = vsel %vm2844, %v3068, %v3132
      %v3293 = vsel %vm2844, %v3069, %v3132
      %v3294 = vpack.c.bf16 %v3230, %v3165
      %v3295 = vpack.c.bf16 %v3231, %v3166
      %v3296 = vpack.c.bf16 %v3232, %v3167
      %v3297 = vpack.c.bf16 %v3233, %v3168
      %v3298 = vpack.c.bf16 %v3234, %v3169
      %v3299 = vpack.c.bf16 %v3235, %v3170
      %v3300 = vpack.c.bf16 %v3236, %v3171
      %v3301 = vpack.c.bf16 %v3237, %v3172
      %v3302 = vpack.c.bf16 %v3238, %v3173
      %v3303 = vpack.c.bf16 %v3239, %v3174
      %v3304 = vpack.c.bf16 %v3240, %v3175
      %v3305 = vpack.c.bf16 %v3241, %v3176
      %v3306 = vpack.c.bf16 %v3242, %v3177
      %v3307 = vpack.c.bf16 %v3243, %v3178
      %v3308 = vpack.c.bf16 %v3244, %v3179
      %v3309 = vpack.c.bf16 %v3245, %v3180
      %v3310 = vpack.c.bf16 %v3246, %v3181
      %v3311 = vpack.c.bf16 %v3247, %v3182
      %v3312 = vpack.c.bf16 %v3248, %v3183
      %v3313 = vpack.c.bf16 %v3249, %v3184
      %v3314 = vpack.c.bf16 %v3250, %v3185
      %v3315 = vpack.c.bf16 %v3251, %v3186
      %v3316 = vpack.c.bf16 %v3252, %v3187
      %v3317 = vpack.c.bf16 %v3253, %v3188
      %v3318 = vpack.c.bf16 %v3254, %v3189
      %v3319 = vpack.c.bf16 %v3255, %v3190
      %v3320 = vpack.c.bf16 %v3256, %v3191
      %v3321 = vpack.c.bf16 %v3257, %v3192
      %v3322 = vpack.c.bf16 %v3258, %v3193
      %v3323 = vpack.c.bf16 %v3259, %v3194
      %v3324 = vpack.c.bf16 %v3260, %v3195
      %v3325 = vpack.c.bf16 %v3261, %v3196
      %v3326 = vpack.c.bf16 %v3102, %v3262
      %v3327 = vpack.c.bf16 %v3103, %v3263
      %v3328 = vpack.c.bf16 %v3104, %v3264
      %v3329 = vpack.c.bf16 %v3105, %v3265
      %v3330 = vpack.c.bf16 %v3106, %v3266
      %v3331 = vpack.c.bf16 %v3107, %v3267
      %v3332 = vpack.c.bf16 %v3108, %v3268
      %v3333 = vpack.c.bf16 %v3109, %v3269
      %v3334 = vpack.c.bf16 %v3110, %v3270
      %v3335 = vpack.c.bf16 %v3111, %v3271
      %v3336 = vpack.c.bf16 %v3112, %v3272
      %v3337 = vpack.c.bf16 %v3113, %v3273
      %v3338 = vpack.c.bf16 %v3114, %v3274
      %v3339 = vpack.c.bf16 %v3115, %v3275
      %v3340 = vpack.c.bf16 %v3116, %v3276
      %v3341 = vpack.c.bf16 %v3117, %v3277
      %v3342 = vpack.c.bf16 %v3118, %v3278
      %v3343 = vpack.c.bf16 %v3119, %v3279
      %v3344 = vpack.c.bf16 %v3120, %v3280
      %v3345 = vpack.c.bf16 %v3121, %v3281
      %v3346 = vpack.c.bf16 %v3122, %v3282
      %v3347 = vpack.c.bf16 %v3123, %v3283
      %v3348 = vpack.c.bf16 %v3124, %v3284
      %v3349 = vpack.c.bf16 %v3125, %v3285
      %v3350 = vpack.c.bf16 %v3126, %v3286
      %v3351 = vpack.c.bf16 %v3127, %v3287
      %v3352 = vpack.c.bf16 %v3128, %v3288
      %v3353 = vpack.c.bf16 %v3129, %v3289
      %v3354 = vpack.c.bf16 %v3130, %v3290
      %v3355 = vpack.c.bf16 %v3131, %v3291
      %v3356 = vpack.c.bf16 %v3132, %v3292
      %v3357 = vpack.c.bf16 %v3132, %v3293
      %v3358 = vld [vmem:[%s1] sm:$0xf]
      %v3359 = vld [vmem:[%s1 + $0x4] sm:$0xf]
      %v3360 = vld [vmem:[%s2] sm:$0xff]
      %v3361 = vld [vmem:[%s2 + $0x8] sm:$0xff]
      %3363 = vset.pattern.permute.xlu0 0
      %3364 = vperm.xlu0 %3363, %v3360
      %v3365 = vpop.permute.xlu0 %3364
      %3368 = vset.pattern.permute.xlu0 0
      %3369 = vperm.xlu0 %3368, %v3361
      %v3370 = vpop.permute.xlu0 %3369
      %v3374 = vunpack.c.l.b16 %v3358
      %v3375 = vunpack.c.l.b16 %v3359
      %v3376 = vpack.c.b16 %v3375, %v3374
      %vm3377 = vcmask 203776
      %v3379 = vsel %vm3377, %v3376, 0
      %v3381 = vsel %vm2844, 4294967295, 65535
      %v3382 = vsel %vm3164, %v3381, 0
      %v3384 = vand.u32 %v3326, %v3382
      %v3387 = vand.u32 %v3327, %v3382
      %v3390 = vand.u32 %v3328, %v3382
      %v3393 = vand.u32 %v3329, %v3382
      %v3396 = vand.u32 %v3330, %v3382
      %v3399 = vand.u32 %v3331, %v3382
      %v3402 = vand.u32 %v3332, %v3382
      %v3405 = vand.u32 %v3333, %v3382
      %v3408 = vand.u32 %v3334, %v3382
      %v3411 = vand.u32 %v3335, %v3382
      %v3414 = vand.u32 %v3336, %v3382
      %v3417 = vand.u32 %v3337, %v3382
      %v3420 = vand.u32 %v3338, %v3382
      %v3423 = vand.u32 %v3339, %v3382
      %v3426 = vand.u32 %v3340, %v3382
      %v3429 = vand.u32 %v3341, %v3382
      %v3432 = vand.u32 %v3342, %v3382
      %v3435 = vand.u32 %v3343, %v3382
      %v3438 = vand.u32 %v3344, %v3382
      %v3441 = vand.u32 %v3345, %v3382
      %v3444 = vand.u32 %v3346, %v3382
      %v3447 = vand.u32 %v3347, %v3382
      %v3450 = vand.u32 %v3348, %v3382
      %v3453 = vand.u32 %v3349, %v3382
      %v3456 = vand.u32 %v3350, %v3382
      %v3459 = vand.u32 %v3351, %v3382
      %v3462 = vand.u32 %v3352, %v3382
      %v3465 = vand.u32 %v3353, %v3382
      %v3468 = vand.u32 %v3354, %v3382
      %v3471 = vand.u32 %v3355, %v3382
      %v3474 = vand.u32 %v3356, %v3382
      %v3477 = vand.u32 %v3357, %v3382
      %3479 = vmatprep.subr.bf16.mxu0 %v3295
      %3480 = vmatpush1.bf16.msra.mxu0 %v3294
      %3481 = vmatprep.subr.bf16.mxu0 %v3387
      %3482 = vmatpush1.bf16.msra.mxu0 %v3384
      %3483 = vmatprep.subr.bf16.mxu0 0
      %3484 = vmatpush1.bf16.msra.mxu0 0
      %3485 = vmatprep.subr.bf16.mxu0 0
      %3486 = vmatpush1.bf16.msra.mxu0 0
      %3487 = vmatprep.subr.bf16.mxu0 0
      %3488 = vmatpush1.bf16.msra.mxu0 0
      %3489 = vmatprep.subr.bf16.mxu0 0
      %3490 = vmatpush1.bf16.msra.mxu0 0
      %3491 = vmatprep.subr.bf16.mxu0 0
      %3492 = vmatpush1.bf16.msra.mxu0 0
      %3493 = vmatprep.subr.bf16.mxu0 0
      %3494 = vmatpush1.bf16.msra.mxu0 0
      %3495 = vmatprep.subr.bf16.mxu0 0
      %3496 = vmatpush1.bf16.msra.mxu0 0
      %3497 = vmatprep.subr.bf16.mxu0 0
      %3498 = vmatpush1.bf16.msra.mxu0 0
      %3499 = vmatprep.subr.bf16.mxu0 0
      %3500 = vmatpush1.bf16.msra.mxu0 0
      %3501 = vmatprep.subr.bf16.mxu0 0
      %3502 = vmatpush1.bf16.msra.mxu0 0
      %3503 = vmatprep.subr.bf16.mxu0 0
      %3504 = vmatpush1.bf16.msra.mxu0 0
      %3505 = vmatprep.subr.bf16.mxu0 0
      %3506 = vmatpush1.bf16.msra.mxu0 0
      %3507 = vmatprep.subr.bf16.mxu0 0
      %3508 = vmatpush1.bf16.msra.mxu0 0
      %3509 = vmatprep.subr.bf16.mxu0 0
      %3510 = vmatpush1.bf16.msra.mxu0 0
      %3511 = vmatprep.mubr.bf16.mxu0 0
      %3512 = vmatmul.mubr.bf16.gmra.mrb[0].mxu0 %v3379
      %v3513 = vpop.f32.mrb[0].mxu0
      %v3514 = vadd.f32 %v3365, %v3513
      %v3515 = vpop.f32.mrb[0].mxu0
      %v3516 = vadd.f32 %v3365, %v3515
      %v3517 = vpop.f32.mrb[0].mxu0
      %v3518 = vadd.f32 %v3370, %v3517
      %v3519 = vpop.f32.mrb[0].mxu0
      %v3520 = vadd.f32 %v3370, %v3519
      %3521 = vdwg.mxu0
      %3522 = vmatprep.subr.bf16.mxu0 %v3297
      %3523 = vmatpush1.bf16.msra.mxu0 %v3296
      %3524 = vmatprep.subr.bf16.mxu0 %v3393
      %3525 = vmatpush1.bf16.msra.mxu0 %v3390
      %3526 = vmatprep.subr.bf16.mxu0 0
      %3527 = vmatpush1.bf16.msra.mxu0 0
      %3528 = vmatprep.subr.bf16.mxu0 0
      %3529 = vmatpush1.bf16.msra.mxu0 0
      %3530 = vmatprep.subr.bf16.mxu0 0
      %3531 = vmatpush1.bf16.msra.mxu0 0
      %3532 = vmatprep.subr.bf16.mxu0 0
      %3533 = vmatpush1.bf16.msra.mxu0 0
      %3534 = vmatprep.subr.bf16.mxu0 0
      %3535 = vmatpush1.bf16.msra.mxu0 0
      %3536 = vmatprep.subr.bf16.mxu0 0
      %3537 = vmatpush1.bf16.msra.mxu0 0
      %3538 = vmatprep.subr.bf16.mxu0 0
      %3539 = vmatpush1.bf16.msra.mxu0 0
      %3540 = vmatprep.subr.bf16.mxu0 0
      %3541 = vmatpush1.bf16.msra.mxu0 0
      %3542 = vmatprep.subr.bf16.mxu0 0
      %3543 = vmatpush1.bf16.msra.mxu0 0
      %3544 = vmatprep.subr.bf16.mxu0 0
      %3545 = vmatpush1.bf16.msra.mxu0 0
      %3546 = vmatprep.subr.bf16.mxu0 0
      %3547 = vmatpush1.bf16.msra.mxu0 0
      %3548 = vmatprep.subr.bf16.mxu0 0
      %3549 = vmatpush1.bf16.msra.mxu0 0
      %3550 = vmatprep.subr.bf16.mxu0 0
      %3551 = vmatpush1.bf16.msra.mxu0 0
      %3552 = vmatprep.subr.bf16.mxu0 0
      %3553 = vmatpush1.bf16.msra.mxu0 0
      %3554 = vmatprep.mubr.bf16.mxu0 0
      %3555 = vmatmul.mubr.bf16.gmra.mrb[0].mxu0 %v3379
      %v3556 = vpop.f32.mrb[0].mxu0
      %v3557 = vadd.f32 %v3365, %v3556
      %v3558 = vpop.f32.mrb[0].mxu0
      %v3559 = vadd.f32 %v3365, %v3558
      %v3560 = vpop.f32.mrb[0].mxu0
      %v3561 = vadd.f32 %v3370, %v3560
      %v3562 = vpop.f32.mrb[0].mxu0
      %v3563 = vadd.f32 %v3370, %v3562
      %3564 = vdwg.mxu0
      %3565 = vmatprep.subr.bf16.mxu0 %v3299
      %3566 = vmatpush1.bf16.msra.mxu0 %v3298
      %3567 = vmatprep.subr.bf16.mxu0 %v3399
      %3568 = vmatpush1.bf16.msra.mxu0 %v3396
      %3569 = vmatprep.subr.bf16.mxu0 0
      %3570 = vmatpush1.bf16.msra.mxu0 0
      %3571 = vmatprep.subr.bf16.mxu0 0
      %3572 = vmatpush1.bf16.msra.mxu0 0
      %3573 = vmatprep.subr.bf16.mxu0 0
      %3574 = vmatpush1.bf16.msra.mxu0 0
      %3575 = vmatprep.subr.bf16.mxu0 0
      %3576 = vmatpush1.bf16.msra.mxu0 0
      %3577 = vmatprep.subr.bf16.mxu0 0
      %3578 = vmatpush1.bf16.msra.mxu0 0
      %3579 = vmatprep.subr.bf16.mxu0 0
      %3580 = vmatpush1.bf16.msra.mxu0 0
      %3581 = vmatprep.subr.bf16.mxu0 0
      %3582 = vmatpush1.bf16.msra.mxu0 0
      %3583 = vmatprep.subr.bf16.mxu0 0
      %3584 = vmatpush1.bf16.msra.mxu0 0
      %3585 = vmatprep.subr.bf16.mxu0 0
      %3586 = vmatpush1.bf16.msra.mxu0 0
      %3587 = vmatprep.subr.bf16.mxu0 0
      %3588 = vmatpush1.bf16.msra.mxu0 0
      %3589 = vmatprep.subr.bf16.mxu0 0
      %3590 = vmatpush1.bf16.msra.mxu0 0
      %3591 = vmatprep.subr.bf16.mxu0 0
      %3592 = vmatpush1.bf16.msra.mxu0 0
      %3593 = vmatprep.subr.bf16.mxu0 0
      %3594 = vmatpush1.bf16.msra.mxu0 0
      %3595 = vmatprep.subr.bf16.mxu0 0
      %3596 = vmatpush1.bf16.msra.mxu0 0
      %3597 = vmatprep.mubr.bf16.mxu0 0
      %3598 = vmatmul.mubr.bf16.gmra.mrb[0].mxu0 %v3379
      %v3599 = vpop.f32.mrb[0].mxu0
      %v3600 = vadd.f32 %v3365, %v3599
      %v3601 = vpop.f32.mrb[0].mxu0
      %v3602 = vadd.f32 %v3365, %v3601
      %v3603 = vpop.f32.mrb[0].mxu0
      %v3604 = vadd.f32 %v3370, %v3603
      %v3605 = vpop.f32.mrb[0].mxu0
      %v3606 = vadd.f32 %v3370, %v3605
      %3607 = vdwg.mxu0
      %3608 = vmatprep.subr.bf16.mxu0 %v3301
      %3609 = vmatpush1.bf16.msra.mxu0 %v3300
      %3610 = vmatprep.subr.bf16.mxu0 %v3405
      %3611 = vmatpush1.bf16.msra.mxu0 %v3402
      %3612 = vmatprep.subr.bf16.mxu0 0
      %3613 = vmatpush1.bf16.msra.mxu0 0
      %3614 = vmatprep.subr.bf16.mxu0 0
      %3615 = vmatpush1.bf16.msra.mxu0 0
      %3616 = vmatprep.subr.bf16.mxu0 0
      %3617 = vmatpush1.bf16.msra.mxu0 0
      %3618 = vmatprep.subr.bf16.mxu0 0
      %3619 = vmatpush1.bf16.msra.mxu0 0
      %3620 = vmatprep.subr.bf16.mxu0 0
      %3621 = vmatpush1.bf16.msra.mxu0 0
      %3622 = vmatprep.subr.bf16.mxu0 0
      %3623 = vmatpush1.bf16.msra.mxu0 0
      %3624 = vmatprep.subr.bf16.mxu0 0
      %3625 = vmatpush1.bf16.msra.mxu0 0
      %3626 = vmatprep.subr.bf16.mxu0 0
      %3627 = vmatpush1.bf16.msra.mxu0 0
      %3628 = vmatprep.subr.bf16.mxu0 0
      %3629 = vmatpush1.bf16.msra.mxu0 0
      %3630 = vmatprep.subr.bf16.mxu0 0
      %3631 = vmatpush1.bf16.msra.mxu0 0
      %3632 = vmatprep.subr.bf16.mxu0 0
      %3633 = vmatpush1.bf16.msra.mxu0 0
      %3634 = vmatprep.subr.bf16.mxu0 0
      %3635 = vmatpush1.bf16.msra.mxu0 0
      %3636 = vmatprep.subr.bf16.mxu0 0
      %3637 = vmatpush1.bf16.msra.mxu0 0
      %3638 = vmatprep.subr.bf16.mxu0 0
      %3639 = vmatpush1.bf16.msra.mxu0 0
      %3640 = vmatprep.mubr.bf16.mxu0 0
      %3641 = vmatmul.mubr.bf16.gmra.mrb[0].mxu0 %v3379
      %v3642 = vpop.f32.mrb[0].mxu0
      %v3643 = vadd.f32 %v3365, %v3642
      %v3644 = vpop.f32.mrb[0].mxu0
      %v3645 = vadd.f32 %v3365, %v3644
      %v3646 = vpop.f32.mrb[0].mxu0
      %v3647 = vadd.f32 %v3370, %v3646
      %v3648 = vpop.f32.mrb[0].mxu0
      %v3649 = vadd.f32 %v3370, %v3648
      %3650 = vdwg.mxu0
      %3651 = vmatprep.subr.bf16.mxu0 %v3303
      %3652 = vmatpush1.bf16.msra.mxu0 %v3302
      %3653 = vmatprep.subr.bf16.mxu0 %v3411
      %3654 = vmatpush1.bf16.msra.mxu0 %v3408
      %3655 = vmatprep.subr.bf16.mxu0 0
      %3656 = vmatpush1.bf16.msra.mxu0 0
      %3657 = vmatprep.subr.bf16.mxu0 0
      %3658 = vmatpush1.bf16.msra.mxu0 0
      %3659 = vmatprep.subr.bf16.mxu0 0
      %3660 = vmatpush1.bf16.msra.mxu0 0
      %3661 = vmatprep.subr.bf16.mxu0 0
      %3662 = vmatpush1.bf16.msra.mxu0 0
      %3663 = vmatprep.subr.bf16.mxu0 0
      %3664 = vmatpush1.bf16.msra.mxu0 0
      %3665 = vmatprep.subr.bf16.mxu0 0
      %3666 = vmatpush1.bf16.msra.mxu0 0
      %3667 = vmatprep.subr.bf16.mxu0 0
      %3668 = vmatpush1.bf16.msra.mxu0 0
      %3669 = vmatprep.subr.bf16.mxu0 0
      %3670 = vmatpush1.bf16.msra.mxu0 0
      %3671 = vmatprep.subr.bf16.mxu0 0
      %3672 = vmatpush1.bf16.msra.mxu0 0
      %3673 = vmatprep.subr.bf16.mxu0 0
      %3674 = vmatpush1.bf16.msra.mxu0 0
      %3675 = vmatprep.subr.bf16.mxu0 0
      %3676 = vmatpush1.bf16.msra.mxu0 0
      %3677 = vmatprep.subr.bf16.mxu0 0
      %3678 = vmatpush1.bf16.msra.mxu0 0
      %3679 = vmatprep.subr.bf16.mxu0 0
      %3680 = vmatpush1.bf16.msra.mxu0 0
      %3681 = vmatprep.subr.bf16.mxu0 0
      %3682 = vmatpush1.bf16.msra.mxu0 0
      %3683 = vmatprep.mubr.bf16.mxu0 0
      %3684 = vmatmul.mubr.bf16.gmra.mrb[0].mxu0 %v3379
      %v3685 = vpop.f32.mrb[0].mxu0
      %v3686 = vadd.f32 %v3365, %v3685
      %v3687 = vpop.f32.mrb[0].mxu0
      %v3688 = vadd.f32 %v3365, %v3687
      %v3689 = vpop.f32.mrb[0].mxu0
      %v3690 = vadd.f32 %v3370, %v3689
      %v3691 = vpop.f32.mrb[0].mxu0
      %v3692 = vadd.f32 %v3370, %v3691
      %3693 = vdwg.mxu0
      %3694 = vmatprep.subr.bf16.mxu0 %v3305
      %3695 = vmatpush1.bf16.msra.mxu0 %v3304
      %3696 = vmatprep.subr.bf16.mxu0 %v3417
      %3697 = vmatpush1.bf16.msra.mxu0 %v3414
      %3698 = vmatprep.subr.bf16.mxu0 0
      %3699 = vmatpush1.bf16.msra.mxu0 0
      %3700 = vmatprep.subr.bf16.mxu0 0
      %3701 = vmatpush1.bf16.msra.mxu0 0
      %3702 = vmatprep.subr.bf16.mxu0 0
      %3703 = vmatpush1.bf16.msra.mxu0 0
      %3704 = vmatprep.subr.bf16.mxu0 0
      %3705 = vmatpush1.bf16.msra.mxu0 0
      %3706 = vmatprep.subr.bf16.mxu0 0
      %3707 = vmatpush1.bf16.msra.mxu0 0
      %3708 = vmatprep.subr.bf16.mxu0 0
      %3709 = vmatpush1.bf16.msra.mxu0 0
      %3710 = vmatprep.subr.bf16.mxu0 0
      %3711 = vmatpush1.bf16.msra.mxu0 0
      %3712 = vmatprep.subr.bf16.mxu0 0
      %3713 = vmatpush1.bf16.msra.mxu0 0
      %3714 = vmatprep.subr.bf16.mxu0 0
      %3715 = vmatpush1.bf16.msra.mxu0 0
      %3716 = vmatprep.subr.bf16.mxu0 0
      %3717 = vmatpush1.bf16.msra.mxu0 0
      %3718 = vmatprep.subr.bf16.mxu0 0
      %3719 = vmatpush1.bf16.msra.mxu0 0
      %3720 = vmatprep.subr.bf16.mxu0 0
      %3721 = vmatpush1.bf16.msra.mxu0 0
      %3722 = vmatprep.subr.bf16.mxu0 0
      %3723 = vmatpush1.bf16.msra.mxu0 0
      %3724 = vmatprep.subr.bf16.mxu0 0
      %3725 = vmatpush1.bf16.msra.mxu0 0
      %3726 = vmatprep.mubr.bf16.mxu0 0
      %3727 = vmatmul.mubr.bf16.gmra.mrb[0].mxu0 %v3379
      %v3728 = vpop.f32.mrb[0].mxu0
      %v3729 = vadd.f32 %v3365, %v3728
      %v3730 = vpop.f32.mrb[0].mxu0
      %v3731 = vadd.f32 %v3365, %v3730
      %v3732 = vpop.f32.mrb[0].mxu0
      %v3733 = vadd.f32 %v3370, %v3732
      %v3734 = vpop.f32.mrb[0].mxu0
      %v3735 = vadd.f32 %v3370, %v3734
      %3736 = vdwg.mxu0
      %3737 = vmatprep.subr.bf16.mxu0 %v3307
      %3738 = vmatpush1.bf16.msra.mxu0 %v3306
      %3739 = vmatprep.subr.bf16.mxu0 %v3423
      %3740 = vmatpush1.bf16.msra.mxu0 %v3420
      %3741 = vmatprep.subr.bf16.mxu0 0
      %3742 = vmatpush1.bf16.msra.mxu0 0
      %3743 = vmatprep.subr.bf16.mxu0 0
      %3744 = vmatpush1.bf16.msra.mxu0 0
      %3745 = vmatprep.subr.bf16.mxu0 0
      %3746 = vmatpush1.bf16.msra.mxu0 0
      %3747 = vmatprep.subr.bf16.mxu0 0
      %3748 = vmatpush1.bf16.msra.mxu0 0
      %3749 = vmatprep.subr.bf16.mxu0 0
      %3750 = vmatpush1.bf16.msra.mxu0 0
      %3751 = vmatprep.subr.bf16.mxu0 0
      %3752 = vmatpush1.bf16.msra.mxu0 0
      %3753 = vmatprep.subr.bf16.mxu0 0
      %3754 = vmatpush1.bf16.msra.mxu0 0
      %3755 = vmatprep.subr.bf16.mxu0 0
      %3756 = vmatpush1.bf16.msra.mxu0 0
      %3757 = vmatprep.subr.bf16.mxu0 0
      %3758 = vmatpush1.bf16.msra.mxu0 0
      %3759 = vmatprep.subr.bf16.mxu0 0
      %3760 = vmatpush1.bf16.msra.mxu0 0
      %3761 = vmatprep.subr.bf16.mxu0 0
      %3762 = vmatpush1.bf16.msra.mxu0 0
      %3763 = vmatprep.subr.bf16.mxu0 0
      %3764 = vmatpush1.bf16.msra.mxu0 0
      %3765 = vmatprep.subr.bf16.mxu0 0
      %3766 = vmatpush1.bf16.msra.mxu0 0
      %3767 = vmatprep.subr.bf16.mxu0 0
      %3768 = vmatpush1.bf16.msra.mxu0 0
      %3769 = vmatprep.mubr.bf16.mxu0 0
      %3770 = vmatmul.mubr.bf16.gmra.mrb[0].mxu0 %v3379
      %v3771 = vpop.f32.mrb[0].mxu0
      %v3772 = vadd.f32 %v3365, %v3771
      %v3773 = vpop.f32.mrb[0].mxu0
      %v3774 = vadd.f32 %v3365, %v3773
      %v3775 = vpop.f32.mrb[0].mxu0
      %v3776 = vadd.f32 %v3370, %v3775
      %v3777 = vpop.f32.mrb[0].mxu0
      %v3778 = vadd.f32 %v3370, %v3777
      %3779 = vdwg.mxu0
      %3780 = vmatprep.subr.bf16.mxu0 %v3309
      %3781 = vmatpush1.bf16.msra.mxu0 %v3308
      %3782 = vmatprep.subr.bf16.mxu0 %v3429
      %3783 = vmatpush1.bf16.msra.mxu0 %v3426
      %3784 = vmatprep.subr.bf16.mxu0 0
      %3785 = vmatpush1.bf16.msra.mxu0 0
      %3786 = vmatprep.subr.bf16.mxu0 0
      %3787 = vmatpush1.bf16.msra.mxu0 0
      %3788 = vmatprep.subr.bf16.mxu0 0
      %3789 = vmatpush1.bf16.msra.mxu0 0
      %3790 = vmatprep.subr.bf16.mxu0 0
      %3791 = vmatpush1.bf16.msra.mxu0 0
      %3792 = vmatprep.subr.bf16.mxu0 0
      %3793 = vmatpush1.bf16.msra.mxu0 0
      %3794 = vmatprep.subr.bf16.mxu0 0
      %3795 = vmatpush1.bf16.msra.mxu0 0
      %3796 = vmatprep.subr.bf16.mxu0 0
      %3797 = vmatpush1.bf16.msra.mxu0 0
      %3798 = vmatprep.subr.bf16.mxu0 0
      %3799 = vmatpush1.bf16.msra.mxu0 0
      %3800 = vmatprep.subr.bf16.mxu0 0
      %3801 = vmatpush1.bf16.msra.mxu0 0
      %3802 = vmatprep.subr.bf16.mxu0 0
      %3803 = vmatpush1.bf16.msra.mxu0 0
      %3804 = vmatprep.subr.bf16.mxu0 0
      %3805 = vmatpush1.bf16.msra.mxu0 0
      %3806 = vmatprep.subr.bf16.mxu0 0
      %3807 = vmatpush1.bf16.msra.mxu0 0
      %3808 = vmatprep.subr.bf16.mxu0 0
      %3809 = vmatpush1.bf16.msra.mxu0 0
      %3810 = vmatprep.subr.bf16.mxu0 0
      %3811 = vmatpush1.bf16.msra.mxu0 0
      %3812 = vmatprep.mubr.bf16.mxu0 0
      %3813 = vmatmul.mubr.bf16.gmra.mrb[0].mxu0 %v3379
      %v3814 = vpop.f32.mrb[0].mxu0
      %v3815 = vadd.f32 %v3365, %v3814
      %v3816 = vpop.f32.mrb[0].mxu0
      %v3817 = vadd.f32 %v3365, %v3816
      %v3818 = vpop.f32.mrb[0].mxu0
      %v3819 = vadd.f32 %v3370, %v3818
      %v3820 = vpop.f32.mrb[0].mxu0
      %v3821 = vadd.f32 %v3370, %v3820
      %3822 = vdwg.mxu0
      %3823 = vmatprep.subr.bf16.mxu0 %v3311
      %3824 = vmatpush1.bf16.msra.mxu0 %v3310
      %3825 = vmatprep.subr.bf16.mxu0 %v3435
      %3826 = vmatpush1.bf16.msra.mxu0 %v3432
      %3827 = vmatprep.subr.bf16.mxu0 0
      %3828 = vmatpush1.bf16.msra.mxu0 0
      %3829 = vmatprep.subr.bf16.mxu0 0
      %3830 = vmatpush1.bf16.msra.mxu0 0
      %3831 = vmatprep.subr.bf16.mxu0 0
      %3832 = vmatpush1.bf16.msra.mxu0 0
      %3833 = vmatprep.subr.bf16.mxu0 0
      %3834 = vmatpush1.bf16.msra.mxu0 0
      %3835 = vmatprep.subr.bf16.mxu0 0
      %3836 = vmatpush1.bf16.msra.mxu0 0
      %3837 = vmatprep.subr.bf16.mxu0 0
      %3838 = vmatpush1.bf16.msra.mxu0 0
      %3839 = vmatprep.subr.bf16.mxu0 0
      %3840 = vmatpush1.bf16.msra.mxu0 0
      %3841 = vmatprep.subr.bf16.mxu0 0
      %3842 = vmatpush1.bf16.msra.mxu0 0
      %3843 = vmatprep.subr.bf16.mxu0 0
      %3844 = vmatpush1.bf16.msra.mxu0 0
      %3845 = vmatprep.subr.bf16.mxu0 0
      %3846 = vmatpush1.bf16.msra.mxu0 0
      %3847 = vmatprep.subr.bf16.mxu0 0
      %3848 = vmatpush1.bf16.msra.mxu0 0
      %3849 = vmatprep.subr.bf16.mxu0 0
      %3850 = vmatpush1.bf16.msra.mxu0 0
      %3851 = vmatprep.subr.bf16.mxu0 0
      %3852 = vmatpush1.bf16.msra.mxu0 0
      %3853 = vmatprep.subr.bf16.mxu0 0
      %3854 = vmatpush1.bf16.msra.mxu0 0
      %3855 = vmatprep.mubr.bf16.mxu0 0
      %3856 = vmatmul.mubr.bf16.gmra.mrb[0].mxu0 %v3379
      %v3857 = vpop.f32.mrb[0].mxu0
      %v3858 = vadd.f32 %v3365, %v3857
      %v3859 = vpop.f32.mrb[0].mxu0
      %v3860 = vadd.f32 %v3365, %v3859
      %v3861 = vpop.f32.mrb[0].mxu0
      %v3862 = vadd.f32 %v3370, %v3861
      %v3863 = vpop.f32.mrb[0].mxu0
      %v3864 = vadd.f32 %v3370, %v3863
      %3865 = vdwg.mxu0
      %3866 = vmatprep.subr.bf16.mxu0 %v3313
      %3867 = vmatpush1.bf16.msra.mxu0 %v3312
      %3868 = vmatprep.subr.bf16.mxu0 %v3441
      %3869 = vmatpush1.bf16.msra.mxu0 %v3438
      %3870 = vmatprep.subr.bf16.mxu0 0
      %3871 = vmatpush1.bf16.msra.mxu0 0
      %3872 = vmatprep.subr.bf16.mxu0 0
      %3873 = vmatpush1.bf16.msra.mxu0 0
      %3874 = vmatprep.subr.bf16.mxu0 0
      %3875 = vmatpush1.bf16.msra.mxu0 0
      %3876 = vmatprep.subr.bf16.mxu0 0
      %3877 = vmatpush1.bf16.msra.mxu0 0
      %3878 = vmatprep.subr.bf16.mxu0 0
      %3879 = vmatpush1.bf16.msra.mxu0 0
      %3880 = vmatprep.subr.bf16.mxu0 0
      %3881 = vmatpush1.bf16.msra.mxu0 0
      %3882 = vmatprep.subr.bf16.mxu0 0
      %3883 = vmatpush1.bf16.msra.mxu0 0
      %3884 = vmatprep.subr.bf16.mxu0 0
      %3885 = vmatpush1.bf16.msra.mxu0 0
      %3886 = vmatprep.subr.bf16.mxu0 0
      %3887 = vmatpush1.bf16.msra.mxu0 0
      %3888 = vmatprep.subr.bf16.mxu0 0
      %3889 = vmatpush1.bf16.msra.mxu0 0
      %3890 = vmatprep.subr.bf16.mxu0 0
      %3891 = vmatpush1.bf16.msra.mxu0 0
      %3892 = vmatprep.subr.bf16.mxu0 0
      %3893 = vmatpush1.bf16.msra.mxu0 0
      %3894 = vmatprep.subr.bf16.mxu0 0
      %3895 = vmatpush1.bf16.msra.mxu0 0
      %3896 = vmatprep.subr.bf16.mxu0 0
      %3897 = vmatpush1.bf16.msra.mxu0 0
      %3898 = vmatprep.mubr.bf16.mxu0 0
      %3899 = vmatmul.mubr.bf16.gmra.mrb[0].mxu0 %v3379
      %v3900 = vpop.f32.mrb[0].mxu0
      %v3901 = vadd.f32 %v3365, %v3900
      %v3902 = vpop.f32.mrb[0].mxu0
      %v3903 = vadd.f32 %v3365, %v3902
      %v3904 = vpop.f32.mrb[0].mxu0
      %v3905 = vadd.f32 %v3370, %v3904
      %v3906 = vpop.f32.mrb[0].mxu0
      %v3907 = vadd.f32 %v3370, %v3906
      %3908 = vdwg.mxu0
      %3909 = vmatprep.subr.bf16.mxu0 %v3315
      %3910 = vmatpush1.bf16.msra.mxu0 %v3314
      %3911 = vmatprep.subr.bf16.mxu0 %v3447
      %3912 = vmatpush1.bf16.msra.mxu0 %v3444
      %3913 = vmatprep.subr.bf16.mxu0 0
      %3914 = vmatpush1.bf16.msra.mxu0 0
      %3915 = vmatprep.subr.bf16.mxu0 0
      %3916 = vmatpush1.bf16.msra.mxu0 0
      %3917 = vmatprep.subr.bf16.mxu0 0
      %3918 = vmatpush1.bf16.msra.mxu0 0
      %3919 = vmatprep.subr.bf16.mxu0 0
      %3920 = vmatpush1.bf16.msra.mxu0 0
      %3921 = vmatprep.subr.bf16.mxu0 0
      %3922 = vmatpush1.bf16.msra.mxu0 0
      %3923 = vmatprep.subr.bf16.mxu0 0
      %3924 = vmatpush1.bf16.msra.mxu0 0
      %3925 = vmatprep.subr.bf16.mxu0 0
      %3926 = vmatpush1.bf16.msra.mxu0 0
      %3927 = vmatprep.subr.bf16.mxu0 0
      %3928 = vmatpush1.bf16.msra.mxu0 0
      %3929 = vmatprep.subr.bf16.mxu0 0
      %3930 = vmatpush1.bf16.msra.mxu0 0
      %3931 = vmatprep.subr.bf16.mxu0 0
      %3932 = vmatpush1.bf16.msra.mxu0 0
      %3933 = vmatprep.subr.bf16.mxu0 0
      %3934 = vmatpush1.bf16.msra.mxu0 0
      %3935 = vmatprep.subr.bf16.mxu0 0
      %3936 = vmatpush1.bf16.msra.mxu0 0
      %3937 = vmatprep.subr.bf16.mxu0 0
      %3938 = vmatpush1.bf16.msra.mxu0 0
      %3939 = vmatprep.subr.bf16.mxu0 0
      %3940 = vmatpush1.bf16.msra.mxu0 0
      %3941 = vmatprep.mubr.bf16.mxu0 0
      %3942 = vmatmul.mubr.bf16.gmra.mrb[0].mxu0 %v3379
      %v3943 = vpop.f32.mrb[0].mxu0
      %v3944 = vadd.f32 %v3365, %v3943
      %v3945 = vpop.f32.mrb[0].mxu0
      %v3946 = vadd.f32 %v3365, %v3945
      %v3947 = vpop.f32.mrb[0].mxu0
      %v3948 = vadd.f32 %v3370, %v3947
      %v3949 = vpop.f32.mrb[0].mxu0
      %v3950 = vadd.f32 %v3370, %v3949
      %3951 = vdwg.mxu0
      %3952 = vmatprep.subr.bf16.mxu0 %v3317
      %3953 = vmatpush1.bf16.msra.mxu0 %v3316
      %3954 = vmatprep.subr.bf16.mxu0 %v3453
      %3955 = vmatpush1.bf16.msra.mxu0 %v3450
      %3956 = vmatprep.subr.bf16.mxu0 0
      %3957 = vmatpush1.bf16.msra.mxu0 0
      %3958 = vmatprep.subr.bf16.mxu0 0
      %3959 = vmatpush1.bf16.msra.mxu0 0
      %3960 = vmatprep.subr.bf16.mxu0 0
      %3961 = vmatpush1.bf16.msra.mxu0 0
      %3962 = vmatprep.subr.bf16.mxu0 0
      %3963 = vmatpush1.bf16.msra.mxu0 0
      %3964 = vmatprep.subr.bf16.mxu0 0
      %3965 = vmatpush1.bf16.msra.mxu0 0
      %3966 = vmatprep.subr.bf16.mxu0 0
      %3967 = vmatpush1.bf16.msra.mxu0 0
      %3968 = vmatprep.subr.bf16.mxu0 0
      %3969 = vmatpush1.bf16.msra.mxu0 0
      %3970 = vmatprep.subr.bf16.mxu0 0
      %3971 = vmatpush1.bf16.msra.mxu0 0
      %3972 = vmatprep.subr.bf16.mxu0 0
      %3973 = vmatpush1.bf16.msra.mxu0 0
      %3974 = vmatprep.subr.bf16.mxu0 0
      %3975 = vmatpush1.bf16.msra.mxu0 0
      %3976 = vmatprep.subr.bf16.mxu0 0
      %3977 = vmatpush1.bf16.msra.mxu0 0
      %3978 = vmatprep.subr.bf16.mxu0 0
      %3979 = vmatpush1.bf16.msra.mxu0 0
      %3980 = vmatprep.subr.bf16.mxu0 0
      %3981 = vmatpush1.bf16.msra.mxu0 0
      %3982 = vmatprep.subr.bf16.mxu0 0
      %3983 = vmatpush1.bf16.msra.mxu0 0
      %3984 = vmatprep.mubr.bf16.mxu0 0
      %3985 = vmatmul.mubr.bf16.gmra.mrb[0].mxu0 %v3379
      %v3986 = vpop.f32.mrb[0].mxu0
      %v3987 = vadd.f32 %v3365, %v3986
      %v3988 = vpop.f32.mrb[0].mxu0
      %v3989 = vadd.f32 %v3365, %v3988
      %v3990 = vpop.f32.mrb[0].mxu0
      %v3991 = vadd.f32 %v3370, %v3990
      %v3992 = vpop.f32.mrb[0].mxu0
      %v3993 = vadd.f32 %v3370, %v3992
      %3994 = vdwg.mxu0
      %3995 = vmatprep.subr.bf16.mxu0 %v3319
      %3996 = vmatpush1.bf16.msra.mxu0 %v3318
      %3997 = vmatprep.subr.bf16.mxu0 %v3459
      %3998 = vmatpush1.bf16.msra.mxu0 %v3456
      %3999 = vmatprep.subr.bf16.mxu0 0
      %4000 = vmatpush1.bf16.msra.mxu0 0
      %4001 = vmatprep.subr.bf16.mxu0 0
      %4002 = vmatpush1.bf16.msra.mxu0 0
      %4003 = vmatprep.subr.bf16.mxu0 0
      %4004 = vmatpush1.bf16.msra.mxu0 0
      %4005 = vmatprep.subr.bf16.mxu0 0
      %4006 = vmatpush1.bf16.msra.mxu0 0
      %4007 = vmatprep.subr.bf16.mxu0 0
      %4008 = vmatpush1.bf16.msra.mxu0 0
      %4009 = vmatprep.subr.bf16.mxu0 0
      %4010 = vmatpush1.bf16.msra.mxu0 0
      %4011 = vmatprep.subr.bf16.mxu0 0
      %4012 = vmatpush1.bf16.msra.mxu0 0
      %4013 = vmatprep.subr.bf16.mxu0 0
      %4014 = vmatpush1.bf16.msra.mxu0 0
      %4015 = vmatprep.subr.bf16.mxu0 0
      %4016 = vmatpush1.bf16.msra.mxu0 0
      %4017 = vmatprep.subr.bf16.mxu0 0
      %4018 = vmatpush1.bf16.msra.mxu0 0
      %4019 = vmatprep.subr.bf16.mxu0 0
      %4020 = vmatpush1.bf16.msra.mxu0 0
      %4021 = vmatprep.subr.bf16.mxu0 0
      %4022 = vmatpush1.bf16.msra.mxu0 0
      %4023 = vmatprep.subr.bf16.mxu0 0
      %4024 = vmatpush1.bf16.msra.mxu0 0
      %4025 = vmatprep.subr.bf16.mxu0 0
      %4026 = vmatpush1.bf16.msra.mxu0 0
      %4027 = vmatprep.mubr.bf16.mxu0 0
      %4028 = vmatmul.mubr.bf16.gmra.mrb[0].mxu0 %v3379
      %v4029 = vpop.f32.mrb[0].mxu0
      %v4030 = vadd.f32 %v3365, %v4029
      %v4031 = vpop.f32.mrb[0].mxu0
      %v4032 = vadd.f32 %v3365, %v4031
      %v4033 = vpop.f32.mrb[0].mxu0
      %v4034 = vadd.f32 %v3370, %v4033
      %v4035 = vpop.f32.mrb[0].mxu0
      %v4036 = vadd.f32 %v3370, %v4035
      %4037 = vdwg.mxu0
      %4038 = vmatprep.subr.bf16.mxu0 %v3321
      %4039 = vmatpush1.bf16.msra.mxu0 %v3320
      %4040 = vmatprep.subr.bf16.mxu0 %v3465
      %4041 = vmatpush1.bf16.msra.mxu0 %v3462
      %4042 = vmatprep.subr.bf16.mxu0 0
      %4043 = vmatpush1.bf16.msra.mxu0 0
      %4044 = vmatprep.subr.bf16.mxu0 0
      %4045 = vmatpush1.bf16.msra.mxu0 0
      %4046 = vmatprep.subr.bf16.mxu0 0
      %4047 = vmatpush1.bf16.msra.mxu0 0
      %4048 = vmatprep.subr.bf16.mxu0 0
      %4049 = vmatpush1.bf16.msra.mxu0 0
      %4050 = vmatprep.subr.bf16.mxu0 0
      %4051 = vmatpush1.bf16.msra.mxu0 0
      %4052 = vmatprep.subr.bf16.mxu0 0
      %4053 = vmatpush1.bf16.msra.mxu0 0
      %4054 = vmatprep.subr.bf16.mxu0 0
      %4055 = vmatpush1.bf16.msra.mxu0 0
      %4056 = vmatprep.subr.bf16.mxu0 0
      %4057 = vmatpush1.bf16.msra.mxu0 0
      %4058 = vmatprep.subr.bf16.mxu0 0
      %4059 = vmatpush1.bf16.msra.mxu0 0
      %4060 = vmatprep.subr.bf16.mxu0 0
      %4061 = vmatpush1.bf16.msra.mxu0 0
      %4062 = vmatprep.subr.bf16.mxu0 0
      %4063 = vmatpush1.bf16.msra.mxu0 0
      %4064 = vmatprep.subr.bf16.mxu0 0
      %4065 = vmatpush1.bf16.msra.mxu0 0
      %4066 = vmatprep.subr.bf16.mxu0 0
      %4067 = vmatpush1.bf16.msra.mxu0 0
      %4068 = vmatprep.subr.bf16.mxu0 0
      %4069 = vmatpush1.bf16.msra.mxu0 0
      %4070 = vmatprep.mubr.bf16.mxu0 0
      %4071 = vmatmul.mubr.bf16.gmra.mrb[0].mxu0 %v3379
      %v4072 = vpop.f32.mrb[0].mxu0
      %v4073 = vadd.f32 %v3365, %v4072
      %v4074 = vpop.f32.mrb[0].mxu0
      %v4075 = vadd.f32 %v3365, %v4074
      %v4076 = vpop.f32.mrb[0].mxu0
      %v4077 = vadd.f32 %v3370, %v4076
      %v4078 = vpop.f32.mrb[0].mxu0
      %v4079 = vadd.f32 %v3370, %v4078
      %4080 = vdwg.mxu0
      %4081 = vmatprep.subr.bf16.mxu0 %v3323
      %4082 = vmatpush1.bf16.msra.mxu0 %v3322
      %4083 = vmatprep.subr.bf16.mxu0 %v3471
      %4084 = vmatpush1.bf16.msra.mxu0 %v3468
      %4085 = vmatprep.subr.bf16.mxu0 0
      %4086 = vmatpush1.bf16.msra.mxu0 0
      %4087 = vmatprep.subr.bf16.mxu0 0
      %4088 = vmatpush1.bf16.msra.mxu0 0
      %4089 = vmatprep.subr.bf16.mxu0 0
      %4090 = vmatpush1.bf16.msra.mxu0 0
      %4091 = vmatprep.subr.bf16.mxu0 0
      %4092 = vmatpush1.bf16.msra.mxu0 0
      %4093 = vmatprep.subr.bf16.mxu0 0
      %4094 = vmatpush1.bf16.msra.mxu0 0
      %4095 = vmatprep.subr.bf16.mxu0 0
      %4096 = vmatpush1.bf16.msra.mxu0 0
      %4097 = vmatprep.subr.bf16.mxu0 0
      %4098 = vmatpush1.bf16.msra.mxu0 0
      %4099 = vmatprep.subr.bf16.mxu0 0
      %4100 = vmatpush1.bf16.msra.mxu0 0
      %4101 = vmatprep.subr.bf16.mxu0 0
      %4102 = vmatpush1.bf16.msra.mxu0 0
      %4103 = vmatprep.subr.bf16.mxu0 0
      %4104 = vmatpush1.bf16.msra.mxu0 0
      %4105 = vmatprep.subr.bf16.mxu0 0
      %4106 = vmatpush1.bf16.msra.mxu0 0
      %4107 = vmatprep.subr.bf16.mxu0 0
      %4108 = vmatpush1.bf16.msra.mxu0 0
      %4109 = vmatprep.subr.bf16.mxu0 0
      %4110 = vmatpush1.bf16.msra.mxu0 0
      %4111 = vmatprep.subr.bf16.mxu0 0
      %4112 = vmatpush1.bf16.msra.mxu0 0
      %4113 = vmatprep.mubr.bf16.mxu0 0
      %4114 = vmatmul.mubr.bf16.gmra.mrb[0].mxu0 %v3379
      %v4115 = vpop.f32.mrb[0].mxu0
      %v4116 = vadd.f32 %v3365, %v4115
      %v4117 = vpop.f32.mrb[0].mxu0
      %v4118 = vadd.f32 %v3365, %v4117
      %v4119 = vpop.f32.mrb[0].mxu0
      %v4120 = vadd.f32 %v3370, %v4119
      %v4121 = vpop.f32.mrb[0].mxu0
      %v4122 = vadd.f32 %v3370, %v4121
      %4123 = vdwg.mxu0
      %4124 = vmatprep.subr.bf16.mxu0 %v3325
      %4125 = vmatpush1.bf16.msra.mxu0 %v3324
      %4126 = vmatprep.subr.bf16.mxu0 %v3477
      %4127 = vmatpush1.bf16.msra.mxu0 %v3474
      %4128 = vmatprep.subr.bf16.mxu0 0
      %4129 = vmatpush1.bf16.msra.mxu0 0
      %4130 = vmatprep.subr.bf16.mxu0 0
      %4131 = vmatpush1.bf16.msra.mxu0 0
      %4132 = vmatprep.subr.bf16.mxu0 0
      %4133 = vmatpush1.bf16.msra.mxu0 0
      %4134 = vmatprep.subr.bf16.mxu0 0
      %4135 = vmatpush1.bf16.msra.mxu0 0
      %4136 = vmatprep.subr.bf16.mxu0 0
      %4137 = vmatpush1.bf16.msra.mxu0 0
      %4138 = vmatprep.subr.bf16.mxu0 0
      %4139 = vmatpush1.bf16.msra.mxu0 0
      %4140 = vmatprep.subr.bf16.mxu0 0
      %4141 = vmatpush1.bf16.msra.mxu0 0
      %4142 = vmatprep.subr.bf16.mxu0 0
      %4143 = vmatpush1.bf16.msra.mxu0 0
      %4144 = vmatprep.subr.bf16.mxu0 0
      %4145 = vmatpush1.bf16.msra.mxu0 0
      %4146 = vmatprep.subr.bf16.mxu0 0
      %4147 = vmatpush1.bf16.msra.mxu0 0
      %4148 = vmatprep.subr.bf16.mxu0 0
      %4149 = vmatpush1.bf16.msra.mxu0 0
      %4150 = vmatprep.subr.bf16.mxu0 0
      %4151 = vmatpush1.bf16.msra.mxu0 0
      %4152 = vmatprep.subr.bf16.mxu0 0
      %4153 = vmatpush1.bf16.msra.mxu0 0
      %4154 = vmatprep.subr.bf16.mxu0 0
      %4155 = vmatpush1.bf16.msra.mxu0 0
      %4156 = vmatprep.mubr.bf16.mxu0 0
      %4157 = vmatmul.mubr.bf16.gmra.mrb[0].mxu0 %v3379
      %v4158 = vpop.f32.mrb[0].mxu0
      %v4159 = vadd.f32 %v3365, %v4158
      %v4160 = vpop.f32.mrb[0].mxu0
      %v4161 = vadd.f32 %v3365, %v4160
      %v4162 = vpop.f32.mrb[0].mxu0
      %v4163 = vadd.f32 %v3370, %v4162
      %v4164 = vpop.f32.mrb[0].mxu0
      %v4165 = vadd.f32 %v3370, %v4164
      %4166 = vdwg.mxu0
      %v4167 = vmax.f32 %v3514, 0.0
      %v4168 = vmax.f32 %v3516, 0.0
      %v4169 = vmax.f32 %v3557, 0.0
      %v4170 = vmax.f32 %v3559, 0.0
      %v4171 = vmax.f32 %v3600, 0.0
      %v4172 = vmax.f32 %v3602, 0.0
      %v4173 = vmax.f32 %v3643, 0.0
      %v4174 = vmax.f32 %v3645, 0.0
      %v4175 = vmax.f32 %v3686, 0.0
      %v4176 = vmax.f32 %v3688, 0.0
      %v4177 = vmax.f32 %v3729, 0.0
      %v4178 = vmax.f32 %v3731, 0.0
      %v4179 = vmax.f32 %v3772, 0.0
      %v4180 = vmax.f32 %v3774, 0.0
      %v4181 = vmax.f32 %v3815, 0.0
      %v4182 = vmax.f32 %v3817, 0.0
      %v4183 = vmax.f32 %v3858, 0.0
      %v4184 = vmax.f32 %v3860, 0.0
      %v4185 = vmax.f32 %v3901, 0.0
      %v4186 = vmax.f32 %v3903, 0.0
      %v4187 = vmax.f32 %v3944, 0.0
      %v4188 = vmax.f32 %v3946, 0.0
      %v4189 = vmax.f32 %v3987, 0.0
      %v4190 = vmax.f32 %v3989, 0.0
      %v4191 = vmax.f32 %v4030, 0.0
      %v4192 = vmax.f32 %v4032, 0.0
      %v4193 = vmax.f32 %v4073, 0.0
      %v4194 = vmax.f32 %v4075, 0.0
      %v4195 = vmax.f32 %v4116, 0.0
      %v4196 = vmax.f32 %v4118, 0.0
      %v4197 = vmax.f32 %v4159, 0.0
      %v4198 = vmax.f32 %v4161, 0.0
      %v4199 = vmax.f32 %v3518, 0.0
      %v4200 = vmax.f32 %v3520, 0.0
      %v4201 = vmax.f32 %v3561, 0.0
      %v4202 = vmax.f32 %v3563, 0.0
      %v4203 = vmax.f32 %v3604, 0.0
      %v4204 = vmax.f32 %v3606, 0.0
      %v4205 = vmax.f32 %v3647, 0.0
      %v4206 = vmax.f32 %v3649, 0.0
      %v4207 = vmax.f32 %v3690, 0.0
      %v4208 = vmax.f32 %v3692, 0.0
      %v4209 = vmax.f32 %v3733, 0.0
      %v4210 = vmax.f32 %v3735, 0.0
      %v4211 = vmax.f32 %v3776, 0.0
      %v4212 = vmax.f32 %v3778, 0.0
      %v4213 = vmax.f32 %v3819, 0.0
      %v4214 = vmax.f32 %v3821, 0.0
      %v4215 = vmax.f32 %v3862, 0.0
      %v4216 = vmax.f32 %v3864, 0.0
      %v4217 = vmax.f32 %v3905, 0.0
      %v4218 = vmax.f32 %v3907, 0.0
      %v4219 = vmax.f32 %v3948, 0.0
      %v4220 = vmax.f32 %v3950, 0.0
      %v4221 = vmax.f32 %v3991, 0.0
      %v4222 = vmax.f32 %v3993, 0.0
      %v4223 = vmax.f32 %v4034, 0.0
      %v4224 = vmax.f32 %v4036, 0.0
      %v4225 = vmax.f32 %v4077, 0.0
      %v4226 = vmax.f32 %v4079, 0.0
      %v4227 = vmax.f32 %v4120, 0.0
      %v4228 = vmax.f32 %v4122, 0.0
      %v4229 = vmax.f32 %v4163, 0.0
      %v4230 = vmax.f32 %v4165, 0.0
      %v4231 = vld [vmem:[%s3] sm:$0xff]
      %v4232 = vld [vmem:[%s3 + $0x8] sm:$0xff]
      %4234 = vset.pattern.permute.xlu0 0
      %4235 = vperm.xlu0 %4234, %v4231
      %v4236 = vpop.permute.xlu0 %4235
      %4239 = vset.pattern.permute.xlu0 0
      %4240 = vperm.xlu0 %4239, %v4232
      %v4241 = vpop.permute.xlu0 %4240
      %v4243 = vmul.f32 %v4167, %v4236
      %v4244 = vmul.f32 %v4168, %v4236
      %v4245 = vmul.f32 %v4169, %v4236
      %v4246 = vmul.f32 %v4170, %v4236
      %v4247 = vmul.f32 %v4171, %v4236
      %v4248 = vmul.f32 %v4172, %v4236
      %v4249 = vmul.f32 %v4173, %v4236
      %v4250 = vmul.f32 %v4174, %v4236
      %v4251 = vmul.f32 %v4175, %v4236
      %v4252 = vmul.f32 %v4176, %v4236
      %v4253 = vmul.f32 %v4177, %v4236
      %v4254 = vmul.f32 %v4178, %v4236
      %v4255 = vmul.f32 %v4179, %v4236
      %v4256 = vmul.f32 %v4180, %v4236
      %v4257 = vmul.f32 %v4181, %v4236
      %v4258 = vmul.f32 %v4182, %v4236
      %v4259 = vmul.f32 %v4183, %v4236
      %v4260 = vmul.f32 %v4184, %v4236
      %v4261 = vmul.f32 %v4185, %v4236
      %v4262 = vmul.f32 %v4186, %v4236
      %v4263 = vmul.f32 %v4187, %v4236
      %v4264 = vmul.f32 %v4188, %v4236
      %v4265 = vmul.f32 %v4189, %v4236
      %v4266 = vmul.f32 %v4190, %v4236
      %v4267 = vmul.f32 %v4191, %v4236
      %v4268 = vmul.f32 %v4192, %v4236
      %v4269 = vmul.f32 %v4193, %v4236
      %v4270 = vmul.f32 %v4194, %v4236
      %v4271 = vmul.f32 %v4195, %v4236
      %v4272 = vmul.f32 %v4196, %v4236
      %v4273 = vmul.f32 %v4197, %v4236
      %v4274 = vmul.f32 %v4198, %v4236
      %v4275 = vmul.f32 %v4199, %v4241
      %v4276 = vmul.f32 %v4200, %v4241
      %v4277 = vmul.f32 %v4201, %v4241
      %v4278 = vmul.f32 %v4202, %v4241
      %v4279 = vmul.f32 %v4203, %v4241
      %v4280 = vmul.f32 %v4204, %v4241
      %v4281 = vmul.f32 %v4205, %v4241
      %v4282 = vmul.f32 %v4206, %v4241
      %v4283 = vmul.f32 %v4207, %v4241
      %v4284 = vmul.f32 %v4208, %v4241
      %v4285 = vmul.f32 %v4209, %v4241
      %v4286 = vmul.f32 %v4210, %v4241
      %v4287 = vmul.f32 %v4211, %v4241
      %v4288 = vmul.f32 %v4212, %v4241
      %v4289 = vmul.f32 %v4213, %v4241
      %v4290 = vmul.f32 %v4214, %v4241
      %v4291 = vmul.f32 %v4215, %v4241
      %v4292 = vmul.f32 %v4216, %v4241
      %v4293 = vmul.f32 %v4217, %v4241
      %v4294 = vmul.f32 %v4218, %v4241
      %v4295 = vmul.f32 %v4219, %v4241
      %v4296 = vmul.f32 %v4220, %v4241
      %v4297 = vmul.f32 %v4221, %v4241
      %v4298 = vmul.f32 %v4222, %v4241
      %v4299 = vmul.f32 %v4223, %v4241
      %v4300 = vmul.f32 %v4224, %v4241
      %v4301 = vmul.f32 %v4225, %v4241
      %v4302 = vmul.f32 %v4226, %v4241
      %v4303 = vmul.f32 %v4227, %v4241
      %v4304 = vmul.f32 %v4228, %v4241
      %v4305 = vmul.f32 %v4229, %v4241
      %v4306 = vmul.f32 %v4230, %v4241
      %v4307 = vld [vmem:[%s4] sm:$0xff]
      %v4308 = vld [vmem:[%s4 + $0x8] sm:$0xff]
      %4310 = vset.pattern.permute.xlu0 0
      %4311 = vperm.xlu0 %4310, %v4307
      %v4312 = vpop.permute.xlu0 %4311
      %4315 = vset.pattern.permute.xlu0 0
      %4316 = vperm.xlu0 %4315, %v4308
      %v4317 = vpop.permute.xlu0 %4316
      %v4319 = vadd.f32 %v4243, %v4312
      %v4320 = vadd.f32 %v4244, %v4312
      %v4321 = vadd.f32 %v4245, %v4312
      %v4322 = vadd.f32 %v4246, %v4312
      %v4323 = vadd.f32 %v4247, %v4312
      %v4324 = vadd.f32 %v4248, %v4312
      %v4325 = vadd.f32 %v4249, %v4312
      %v4326 = vadd.f32 %v4250, %v4312
      %v4327 = vadd.f32 %v4251, %v4312
      %v4328 = vadd.f32 %v4252, %v4312
      %v4329 = vadd.f32 %v4253, %v4312
      %v4330 = vadd.f32 %v4254, %v4312
      %v4331 = vadd.f32 %v4255, %v4312
      %v4332 = vadd.f32 %v4256, %v4312
      %v4333 = vadd.f32 %v4257, %v4312
      %v4334 = vadd.f32 %v4258, %v4312
      %v4335 = vadd.f32 %v4259, %v4312
      %v4336 = vadd.f32 %v4260, %v4312
      %v4337 = vadd.f32 %v4261, %v4312
      %v4338 = vadd.f32 %v4262, %v4312
      %v4339 = vadd.f32 %v4263, %v4312
      %v4340 = vadd.f32 %v4264, %v4312
      %v4341 = vadd.f32 %v4265, %v4312
      %v4342 = vadd.f32 %v4266, %v4312
      %v4343 = vadd.f32 %v4267, %v4312
      %v4344 = vadd.f32 %v4268, %v4312
      %v4345 = vadd.f32 %v4269, %v4312
      %v4346 = vadd.f32 %v4270, %v4312
      %v4347 = vadd.f32 %v4271, %v4312
      %v4348 = vadd.f32 %v4272, %v4312
      %v4349 = vadd.f32 %v4273, %v4312
      %v4350 = vadd.f32 %v4274, %v4312
      %v4351 = vadd.f32 %v4275, %v4317
      %v4352 = vadd.f32 %v4276, %v4317
      %v4353 = vadd.f32 %v4277, %v4317
      %v4354 = vadd.f32 %v4278, %v4317
      %v4355 = vadd.f32 %v4279, %v4317
      %v4356 = vadd.f32 %v4280, %v4317
      %v4357 = vadd.f32 %v4281, %v4317
      %v4358 = vadd.f32 %v4282, %v4317
      %v4359 = vadd.f32 %v4283, %v4317
      %v4360 = vadd.f32 %v4284, %v4317
      %v4361 = vadd.f32 %v4285, %v4317
      %v4362 = vadd.f32 %v4286, %v4317
      %v4363 = vadd.f32 %v4287, %v4317
      %v4364 = vadd.f32 %v4288, %v4317
      %v4365 = vadd.f32 %v4289, %v4317
      %v4366 = vadd.f32 %v4290, %v4317
      %v4367 = vadd.f32 %v4291, %v4317
      %v4368 = vadd.f32 %v4292, %v4317
      %v4369 = vadd.f32 %v4293, %v4317
      %v4370 = vadd.f32 %v4294, %v4317
      %v4371 = vadd.f32 %v4295, %v4317
      %v4372 = vadd.f32 %v4296, %v4317
      %v4373 = vadd.f32 %v4297, %v4317
      %v4374 = vadd.f32 %v4298, %v4317
      %v4375 = vadd.f32 %v4299, %v4317
      %v4376 = vadd.f32 %v4300, %v4317
      %v4377 = vadd.f32 %v4301, %v4317
      %v4378 = vadd.f32 %v4302, %v4317
      %v4379 = vadd.f32 %v4303, %v4317
      %v4380 = vadd.f32 %v4304, %v4317
      %v4381 = vadd.f32 %v4305, %v4317
      %v4382 = vadd.f32 %v4306, %v4317
      %v4383 = vpack.c.bf16 %v4351, %v4319
      %v4384 = vpack.c.bf16 %v4352, %v4320
      %v4385 = vpack.c.bf16 %v4353, %v4321
      %v4386 = vpack.c.bf16 %v4354, %v4322
      %v4387 = vpack.c.bf16 %v4355, %v4323
      %v4388 = vpack.c.bf16 %v4356, %v4324
      %v4389 = vpack.c.bf16 %v4357, %v4325
      %v4390 = vpack.c.bf16 %v4358, %v4326
      %v4391 = vpack.c.bf16 %v4359, %v4327
      %v4392 = vpack.c.bf16 %v4360, %v4328
      %v4393 = vpack.c.bf16 %v4361, %v4329
      %v4394 = vpack.c.bf16 %v4362, %v4330
      %v4395 = vpack.c.bf16 %v4363, %v4331
      %v4396 = vpack.c.bf16 %v4364, %v4332
      %v4397 = vpack.c.bf16 %v4365, %v4333
      %v4398 = vpack.c.bf16 %v4366, %v4334
      %v4399 = vpack.c.bf16 %v4367, %v4335
      %v4400 = vpack.c.bf16 %v4368, %v4336
      %v4401 = vpack.c.bf16 %v4369, %v4337
      %v4402 = vpack.c.bf16 %v4370, %v4338
      %v4403 = vpack.c.bf16 %v4371, %v4339
      %v4404 = vpack.c.bf16 %v4372, %v4340
      %v4405 = vpack.c.bf16 %v4373, %v4341
      %v4406 = vpack.c.bf16 %v4374, %v4342
      %v4407 = vpack.c.bf16 %v4375, %v4343
      %v4408 = vpack.c.bf16 %v4376, %v4344
      %v4409 = vpack.c.bf16 %v4377, %v4345
      %v4410 = vpack.c.bf16 %v4378, %v4346
      %v4411 = vpack.c.bf16 %v4379, %v4347
      %v4412 = vpack.c.bf16 %v4380, %v4348
      %v4413 = vpack.c.bf16 %v4381, %v4349
      %v4414 = vpack.c.bf16 %v4382, %v4350
      %4447 = vrot.lane.b32.xlu0 %v4383, 1
      %v4448 = vpop.permute.xlu0 %4447
      %4449 = vrot.lane.b32.xlu0 %v4384, 1
      %v4450 = vpop.permute.xlu0 %4449
      %4451 = vrot.lane.b32.xlu0 %v4385, 1
      %v4452 = vpop.permute.xlu0 %4451
      %4453 = vrot.lane.b32.xlu0 %v4386, 1
      %v4454 = vpop.permute.xlu0 %4453
      %4455 = vrot.lane.b32.xlu0 %v4387, 1
      %v4456 = vpop.permute.xlu0 %4455
      %4457 = vrot.lane.b32.xlu0 %v4388, 1
      %v4458 = vpop.permute.xlu0 %4457
      %4459 = vrot.lane.b32.xlu0 %v4389, 1
      %v4460 = vpop.permute.xlu0 %4459
      %4461 = vrot.lane.b32.xlu0 %v4390, 1
      %v4462 = vpop.permute.xlu0 %4461
      %4463 = vrot.lane.b32.xlu0 %v4391, 1
      %v4464 = vpop.permute.xlu0 %4463
      %4465 = vrot.lane.b32.xlu0 %v4392, 1
      %v4466 = vpop.permute.xlu0 %4465
      %4467 = vrot.lane.b32.xlu0 %v4393, 1
      %v4468 = vpop.permute.xlu0 %4467
      %4469 = vrot.lane.b32.xlu0 %v4394, 1
      %v4470 = vpop.permute.xlu0 %4469
      %4471 = vrot.lane.b32.xlu0 %v4395, 1
      %v4472 = vpop.permute.xlu0 %4471
      %4473 = vrot.lane.b32.xlu0 %v4396, 1
      %v4474 = vpop.permute.xlu0 %4473
      %4475 = vrot.lane.b32.xlu0 %v4397, 1
      %v4476 = vpop.permute.xlu0 %4475
      %4477 = vrot.lane.b32.xlu0 %v4398, 1
      %v4478 = vpop.permute.xlu0 %4477
      %4479 = vrot.lane.b32.xlu0 %v4399, 1
      %v4480 = vpop.permute.xlu0 %4479
      %4481 = vrot.lane.b32.xlu0 %v4400, 1
      %v4482 = vpop.permute.xlu0 %4481
      %4483 = vrot.lane.b32.xlu0 %v4401, 1
      %v4484 = vpop.permute.xlu0 %4483
      %4485 = vrot.lane.b32.xlu0 %v4402, 1
      %v4486 = vpop.permute.xlu0 %4485
      %4487 = vrot.lane.b32.xlu0 %v4403, 1
      %v4488 = vpop.permute.xlu0 %4487
      %4489 = vrot.lane.b32.xlu0 %v4404, 1
      %v4490 = vpop.permute.xlu0 %4489
      %4491 = vrot.lane.b32.xlu0 %v4405, 1
      %v4492 = vpop.permute.xlu0 %4491
      %4493 = vrot.lane.b32.xlu0 %v4406, 1
      %v4494 = vpop.permute.xlu0 %4493
      %4495 = vrot.lane.b32.xlu0 %v4407, 1
      %v4496 = vpop.permute.xlu0 %4495
      %4497 = vrot.lane.b32.xlu0 %v4408, 1
      %v4498 = vpop.permute.xlu0 %4497
      %4499 = vrot.lane.b32.xlu0 %v4409, 1
      %v4500 = vpop.permute.xlu0 %4499
      %4501 = vrot.lane.b32.xlu0 %v4410, 1
      %v4502 = vpop.permute.xlu0 %4501
      %4503 = vrot.lane.b32.xlu0 %v4411, 1
      %v4504 = vpop.permute.xlu0 %4503
      %4505 = vrot.lane.b32.xlu0 %v4412, 1
      %v4506 = vpop.permute.xlu0 %4505
      %4507 = vrot.lane.b32.xlu0 %v4413, 1
      %v4508 = vpop.permute.xlu0 %4507
      %4509 = vrot.lane.b32.xlu0 %v4414, 1
      %v4510 = vpop.permute.xlu0 %4509
      %vm4511 = vcmask 7168
      %v4512 = vsel %vm4511, %v4448, %v4450
      %v4513 = vsel %vm4511, %v4450, %v4452
      %v4514 = vsel %vm4511, %v4452, %v4454
      %v4515 = vsel %vm4511, %v4454, %v4456
      %v4516 = vsel %vm4511, %v4456, %v4458
      %v4517 = vsel %vm4511, %v4458, %v4460
      %v4518 = vsel %vm4511, %v4460, %v4462
      %v4519 = vsel %vm4511, %v4462, %v4464
      %v4520 = vsel %vm4511, %v4464, %v4466
      %v4521 = vsel %vm4511, %v4466, %v4468
      %v4522 = vsel %vm4511, %v4468, %v4470
      %v4523 = vsel %vm4511, %v4470, %v4472
      %v4524 = vsel %vm4511, %v4472, %v4474
      %v4525 = vsel %vm4511, %v4474, %v4476
      %v4526 = vsel %vm4511, %v4476, %v4478
      %v4527 = vsel %vm4511, %v4478, %v4480
      %v4528 = vsel %vm4511, %v4480, %v4482
      %v4529 = vsel %vm4511, %v4482, %v4484
      %v4530 = vsel %vm4511, %v4484, %v4486
      %v4531 = vsel %vm4511, %v4486, %v4488
      %v4532 = vsel %vm4511, %v4488, %v4490
      %v4533 = vsel %vm4511, %v4490, %v4492
      %v4534 = vsel %vm4511, %v4492, %v4494
      %v4535 = vsel %vm4511, %v4494, %v4496
      %v4536 = vsel %vm4511, %v4496, %v4498
      %v4537 = vsel %vm4511, %v4498, %v4500
      %v4538 = vsel %vm4511, %v4500, %v4502
      %v4539 = vsel %vm4511, %v4502, %v4504
      %v4540 = vsel %vm4511, %v4504, %v4506
      %v4541 = vsel %vm4511, %v4506, %v4508
      %v4542 = vsel %vm4511, %v4508, %v4510
      %v4576 = vsel %vm1152, 0, %v4448
      %v4578 = vsel %vm1202, 1, 0
      %v4579 = vsel %vm1203, 1, 0
      %v4580 = vsel %vm1204, 1, 0
      %v4581 = vsel %vm1205, 1, 0
      %v4582 = vlaneseq
      %v4583 = vshrl.u32 %v4582, 7
      %v4584 = vsub.s32 0, %v4583
      %v4585 = vrot.slane %v4578, %v4584
      %v4586 = vlaneseq
      %v4587 = vshrl.u32 %v4586, 7
      %v4588 = vsub.s32 1, %v4587
      %v4589 = vrot.slane %v4578, %v4588
      %v4590 = vlaneseq
      %v4591 = vshrl.u32 %v4590, 7
      %v4592 = vsub.s32 2, %v4591
      %v4593 = vrot.slane %v4578, %v4592
      %v4594 = vlaneseq
      %v4595 = vshrl.u32 %v4594, 7
      %v4596 = vsub.s32 3, %v4595
      %v4597 = vrot.slane %v4578, %v4596
      %v4598 = vlaneseq
      %v4599 = vshrl.u32 %v4598, 7
      %v4600 = vsub.s32 4, %v4599
      %v4601 = vrot.slane %v4578, %v4600
      %v4602 = vlaneseq
      %v4603 = vshrl.u32 %v4602, 7
      %v4604 = vsub.s32 5, %v4603
      %v4605 = vrot.slane %v4578, %v4604
      %v4606 = vlaneseq
      %v4607 = vshrl.u32 %v4606, 7
      %v4608 = vsub.s32 6, %v4607
      %v4609 = vrot.slane %v4578, %v4608
      %v4610 = vlaneseq
      %v4611 = vshrl.u32 %v4610, 7
      %v4612 = vsub.s32 7, %v4611
      %v4613 = vrot.slane %v4578, %v4612
      %v4614 = vlaneseq
      %v4615 = vshrl.u32 %v4614, 7
      %v4616 = vsub.s32 0, %v4615
      %v4617 = vrot.slane %v4579, %v4616
      %v4618 = vlaneseq
      %v4619 = vshrl.u32 %v4618, 7
      %v4620 = vsub.s32 1, %v4619
      %v4621 = vrot.slane %v4579, %v4620
      %v4622 = vlaneseq
      %v4623 = vshrl.u32 %v4622, 7
      %v4624 = vsub.s32 2, %v4623
      %v4625 = vrot.slane %v4579, %v4624
      %v4626 = vlaneseq
      %v4627 = vshrl.u32 %v4626, 7
      %v4628 = vsub.s32 3, %v4627
      %v4629 = vrot.slane %v4579, %v4628
      %v4630 = vlaneseq
      %v4631 = vshrl.u32 %v4630, 7
      %v4632 = vsub.s32 4, %v4631
      %v4633 = vrot.slane %v4579, %v4632
      %v4634 = vlaneseq
      %v4635 = vshrl.u32 %v4634, 7
      %v4636 = vsub.s32 5, %v4635
      %v4637 = vrot.slane %v4579, %v4636
      %v4638 = vlaneseq
      %v4639 = vshrl.u32 %v4638, 7
      %v4640 = vsub.s32 6, %v4639
      %v4641 = vrot.slane %v4579, %v4640
      %v4642 = vlaneseq
      %v4643 = vshrl.u32 %v4642, 7
      %v4644 = vsub.s32 7, %v4643
      %v4645 = vrot.slane %v4579, %v4644
      %v4646 = vlaneseq
      %v4647 = vshrl.u32 %v4646, 7
      %v4648 = vsub.s32 0, %v4647
      %v4649 = vrot.slane %v4580, %v4648
      %v4650 = vlaneseq
      %v4651 = vshrl.u32 %v4650, 7
      %v4652 = vsub.s32 1, %v4651
      %v4653 = vrot.slane %v4580, %v4652
      %v4654 = vlaneseq
      %v4655 = vshrl.u32 %v4654, 7
      %v4656 = vsub.s32 2, %v4655
      %v4657 = vrot.slane %v4580, %v4656
      %v4658 = vlaneseq
      %v4659 = vshrl.u32 %v4658, 7
      %v4660 = vsub.s32 3, %v4659
      %v4661 = vrot.slane %v4580, %v4660
      %v4662 = vlaneseq
      %v4663 = vshrl.u32 %v4662, 7
      %v4664 = vsub.s32 4, %v4663
      %v4665 = vrot.slane %v4580, %v4664
      %v4666 = vlaneseq
      %v4667 = vshrl.u32 %v4666, 7
      %v4668 = vsub.s32 5, %v4667
      %v4669 = vrot.slane %v4580, %v4668
      %v4670 = vlaneseq
      %v4671 = vshrl.u32 %v4670, 7
      %v4672 = vsub.s32 6, %v4671
      %v4673 = vrot.slane %v4580, %v4672
      %v4674 = vlaneseq
      %v4675 = vshrl.u32 %v4674, 7
      %v4676 = vsub.s32 7, %v4675
      %v4677 = vrot.slane %v4580, %v4676
      %v4678 = vlaneseq
      %v4679 = vshrl.u32 %v4678, 7
      %v4680 = vsub.s32 0, %v4679
      %v4681 = vrot.slane %v4581, %v4680
      %v4682 = vlaneseq
      %v4683 = vshrl.u32 %v4682, 7
      %v4684 = vsub.s32 1, %v4683
      %v4685 = vrot.slane %v4581, %v4684
      %v4686 = vlaneseq
      %v4687 = vshrl.u32 %v4686, 7
      %v4688 = vsub.s32 2, %v4687
      %v4689 = vrot.slane %v4581, %v4688
      %v4690 = vlaneseq
      %v4691 = vshrl.u32 %v4690, 7
      %v4692 = vsub.s32 3, %v4691
      %v4693 = vrot.slane %v4581, %v4692
      %v4694 = vlaneseq
      %v4695 = vshrl.u32 %v4694, 7
      %v4696 = vsub.s32 4, %v4695
      %v4697 = vrot.slane %v4581, %v4696
      %v4698 = vlaneseq
      %v4699 = vshrl.u32 %v4698, 7
      %v4700 = vsub.s32 5, %v4699
      %v4701 = vrot.slane %v4581, %v4700
      %v4702 = vlaneseq
      %v4703 = vshrl.u32 %v4702, 7
      %v4704 = vsub.s32 6, %v4703
      %v4705 = vrot.slane %v4581, %v4704
      %v4706 = vlaneseq
      %v4707 = vshrl.u32 %v4706, 7
      %v4708 = vsub.s32 7, %v4707
      %v4709 = vrot.slane %v4581, %v4708
      %vm4710 = vcmp.eq.s32.totalorder %v4585, 1
      %vm4711 = vcmp.eq.s32.totalorder %v4589, 1
      %vm4712 = vcmp.eq.s32.totalorder %v4593, 1
      %vm4713 = vcmp.eq.s32.totalorder %v4597, 1
      %vm4714 = vcmp.eq.s32.totalorder %v4601, 1
      %vm4715 = vcmp.eq.s32.totalorder %v4605, 1
      %vm4716 = vcmp.eq.s32.totalorder %v4609, 1
      %vm4717 = vcmp.eq.s32.totalorder %v4613, 1
      %vm4718 = vcmp.eq.s32.totalorder %v4617, 1
      %vm4719 = vcmp.eq.s32.totalorder %v4621, 1
      %vm4720 = vcmp.eq.s32.totalorder %v4625, 1
      %vm4721 = vcmp.eq.s32.totalorder %v4629, 1
      %vm4722 = vcmp.eq.s32.totalorder %v4633, 1
      %vm4723 = vcmp.eq.s32.totalorder %v4637, 1
      %vm4724 = vcmp.eq.s32.totalorder %v4641, 1
      %vm4725 = vcmp.eq.s32.totalorder %v4645, 1
      %vm4726 = vcmp.eq.s32.totalorder %v4649, 1
      %vm4727 = vcmp.eq.s32.totalorder %v4653, 1
      %vm4728 = vcmp.eq.s32.totalorder %v4657, 1
      %vm4729 = vcmp.eq.s32.totalorder %v4661, 1
      %vm4730 = vcmp.eq.s32.totalorder %v4665, 1
      %vm4731 = vcmp.eq.s32.totalorder %v4669, 1
      %vm4732 = vcmp.eq.s32.totalorder %v4673, 1
      %vm4733 = vcmp.eq.s32.totalorder %v4677, 1
      %vm4734 = vcmp.eq.s32.totalorder %v4681, 1
      %vm4735 = vcmp.eq.s32.totalorder %v4685, 1
      %vm4736 = vcmp.eq.s32.totalorder %v4689, 1
      %vm4737 = vcmp.eq.s32.totalorder %v4693, 1
      %vm4738 = vcmp.eq.s32.totalorder %v4697, 1
      %vm4739 = vcmp.eq.s32.totalorder %v4701, 1
      %vm4740 = vcmp.eq.s32.totalorder %v4705, 1
      %vm4741 = vcmp.eq.s32.totalorder %v4709, 1
      %vm4742 = vmpackc.low %vm4711, %vm4710
      %vm4743 = vmpackc.low %vm4713, %vm4712
      %vm4744 = vmpackc.low %vm4715, %vm4714
      %vm4745 = vmpackc.low %vm4717, %vm4716
      %vm4746 = vmpackc.low %vm4719, %vm4718
      %vm4747 = vmpackc.low %vm4721, %vm4720
      %vm4748 = vmpackc.low %vm4723, %vm4722
      %vm4749 = vmpackc.low %vm4725, %vm4724
      %vm4750 = vmpackc.low %vm4727, %vm4726
      %vm4751 = vmpackc.low %vm4729, %vm4728
      %vm4752 = vmpackc.low %vm4731, %vm4730
      %vm4753 = vmpackc.low %vm4733, %vm4732
      %vm4754 = vmpackc.low %vm4735, %vm4734
      %vm4755 = vmpackc.low %vm4737, %vm4736
      %vm4756 = vmpackc.low %vm4739, %vm4738
      %vm4757 = vmpackc.low %vm4741, %vm4740
      %v4758 = vsel %vm4742, 65537, 0
      %v4759 = vsel %vm4743, 65537, 0
      %v4760 = vsel %vm4744, 65537, 0
      %v4761 = vsel %vm4745, 65537, 0
      %v4762 = vsel %vm4746, 65537, 0
      %v4763 = vsel %vm4747, 65537, 0
      %v4764 = vsel %vm4748, 65537, 0
      %v4765 = vsel %vm4749, 65537, 0
      %v4766 = vsel %vm4750, 65537, 0
      %v4767 = vsel %vm4751, 65537, 0
      %v4768 = vsel %vm4752, 65537, 0
      %v4769 = vsel %vm4753, 65537, 0
      %v4770 = vsel %vm4754, 65537, 0
      %v4771 = vsel %vm4755, 65537, 0
      %v4772 = vsel %vm4756, 65537, 0
      %v4773 = vsel %vm4757, 65537, 0
      %v4774 = vlaneseq
      %v4775 = vshrl.u32 %v4774, 7
      %v4776 = vsub.s32 0, %v4775
      %v4777 = vrot.slane %v4758, %v4776
      %v4778 = vlaneseq
      %v4779 = vshrl.u32 %v4778, 7
      %v4780 = vsub.s32 4, %v4779
      %v4781 = vrot.slane %v4758, %v4780
      %v4782 = vlaneseq
      %v4783 = vshrl.u32 %v4782, 7
      %v4784 = vsub.s32 0, %v4783
      %v4785 = vrot.slane %v4759, %v4784
      %v4786 = vlaneseq
      %v4787 = vshrl.u32 %v4786, 7
      %v4788 = vsub.s32 4, %v4787
      %v4789 = vrot.slane %v4759, %v4788
      %v4790 = vlaneseq
      %v4791 = vshrl.u32 %v4790, 7
      %v4792 = vsub.s32 0, %v4791
      %v4793 = vrot.slane %v4760, %v4792
      %v4794 = vlaneseq
      %v4795 = vshrl.u32 %v4794, 7
      %v4796 = vsub.s32 4, %v4795
      %v4797 = vrot.slane %v4760, %v4796
      %v4798 = vlaneseq
      %v4799 = vshrl.u32 %v4798, 7
      %v4800 = vsub.s32 0, %v4799
      %v4801 = vrot.slane %v4761, %v4800
      %v4802 = vlaneseq
      %v4803 = vshrl.u32 %v4802, 7
      %v4804 = vsub.s32 4, %v4803
      %v4805 = vrot.slane %v4761, %v4804
      %v4806 = vlaneseq
      %v4807 = vshrl.u32 %v4806, 7
      %v4808 = vsub.s32 0, %v4807
      %v4809 = vrot.slane %v4762, %v4808
      %v4810 = vlaneseq
      %v4811 = vshrl.u32 %v4810, 7
      %v4812 = vsub.s32 4, %v4811
      %v4813 = vrot.slane %v4762, %v4812
      %v4814 = vlaneseq
      %v4815 = vshrl.u32 %v4814, 7
      %v4816 = vsub.s32 0, %v4815
      %v4817 = vrot.slane %v4763, %v4816
      %v4818 = vlaneseq
      %v4819 = vshrl.u32 %v4818, 7
      %v4820 = vsub.s32 4, %v4819
      %v4821 = vrot.slane %v4763, %v4820
      %v4822 = vlaneseq
      %v4823 = vshrl.u32 %v4822, 7
      %v4824 = vsub.s32 0, %v4823
      %v4825 = vrot.slane %v4764, %v4824
      %v4826 = vlaneseq
      %v4827 = vshrl.u32 %v4826, 7
      %v4828 = vsub.s32 4, %v4827
      %v4829 = vrot.slane %v4764, %v4828
      %v4830 = vlaneseq
      %v4831 = vshrl.u32 %v4830, 7
      %v4832 = vsub.s32 0, %v4831
      %v4833 = vrot.slane %v4765, %v4832
      %v4834 = vlaneseq
      %v4835 = vshrl.u32 %v4834, 7
      %v4836 = vsub.s32 4, %v4835
      %v4837 = vrot.slane %v4765, %v4836
      %v4838 = vlaneseq
      %v4839 = vshrl.u32 %v4838, 7
      %v4840 = vsub.s32 0, %v4839
      %v4841 = vrot.slane %v4766, %v4840
      %v4842 = vlaneseq
      %v4843 = vshrl.u32 %v4842, 7
      %v4844 = vsub.s32 4, %v4843
      %v4845 = vrot.slane %v4766, %v4844
      %v4846 = vlaneseq
      %v4847 = vshrl.u32 %v4846, 7
      %v4848 = vsub.s32 0, %v4847
      %v4849 = vrot.slane %v4767, %v4848
      %v4850 = vlaneseq
      %v4851 = vshrl.u32 %v4850, 7
      %v4852 = vsub.s32 4, %v4851
      %v4853 = vrot.slane %v4767, %v4852
      %v4854 = vlaneseq
      %v4855 = vshrl.u32 %v4854, 7
      %v4856 = vsub.s32 0, %v4855
      %v4857 = vrot.slane %v4768, %v4856
      %v4858 = vlaneseq
      %v4859 = vshrl.u32 %v4858, 7
      %v4860 = vsub.s32 4, %v4859
      %v4861 = vrot.slane %v4768, %v4860
      %v4862 = vlaneseq
      %v4863 = vshrl.u32 %v4862, 7
      %v4864 = vsub.s32 0, %v4863
      %v4865 = vrot.slane %v4769, %v4864
      %v4866 = vlaneseq
      %v4867 = vshrl.u32 %v4866, 7
      %v4868 = vsub.s32 4, %v4867
      %v4869 = vrot.slane %v4769, %v4868
      %v4870 = vlaneseq
      %v4871 = vshrl.u32 %v4870, 7
      %v4872 = vsub.s32 0, %v4871
      %v4873 = vrot.slane %v4770, %v4872
      %v4874 = vlaneseq
      %v4875 = vshrl.u32 %v4874, 7
      %v4876 = vsub.s32 4, %v4875
      %v4877 = vrot.slane %v4770, %v4876
      %v4878 = vlaneseq
      %v4879 = vshrl.u32 %v4878, 7
      %v4880 = vsub.s32 0, %v4879
      %v4881 = vrot.slane %v4771, %v4880
      %v4882 = vlaneseq
      %v4883 = vshrl.u32 %v4882, 7
      %v4884 = vsub.s32 4, %v4883
      %v4885 = vrot.slane %v4771, %v4884
      %v4886 = vlaneseq
      %v4887 = vshrl.u32 %v4886, 7
      %v4888 = vsub.s32 0, %v4887
      %v4889 = vrot.slane %v4772, %v4888
      %v4890 = vlaneseq
      %v4891 = vshrl.u32 %v4890, 7
      %v4892 = vsub.s32 4, %v4891
      %v4893 = vrot.slane %v4772, %v4892
      %v4894 = vlaneseq
      %v4895 = vshrl.u32 %v4894, 7
      %v4896 = vsub.s32 0, %v4895
      %v4897 = vrot.slane %v4773, %v4896
      %v4898 = vlaneseq
      %v4899 = vshrl.u32 %v4898, 7
      %v4900 = vsub.s32 4, %v4899
      %v4901 = vrot.slane %v4773, %v4900
      %vm4902 = vcmp.ne.s16.totalorder %v4777, 0
      %vm4903 = vcmp.ne.s16.totalorder %v4781, 0
      %vm4904 = vcmp.ne.s16.totalorder %v4785, 0
      %vm4905 = vcmp.ne.s16.totalorder %v4789, 0
      %vm4906 = vcmp.ne.s16.totalorder %v4793, 0
      %vm4907 = vcmp.ne.s16.totalorder %v4797, 0
      %vm4908 = vcmp.ne.s16.totalorder %v4801, 0
      %vm4909 = vcmp.ne.s16.totalorder %v4805, 0
      %vm4910 = vcmp.ne.s16.totalorder %v4809, 0
      %vm4911 = vcmp.ne.s16.totalorder %v4813, 0
      %vm4912 = vcmp.ne.s16.totalorder %v4817, 0
      %vm4913 = vcmp.ne.s16.totalorder %v4821, 0
      %vm4914 = vcmp.ne.s16.totalorder %v4825, 0
      %vm4915 = vcmp.ne.s16.totalorder %v4829, 0
      %vm4916 = vcmp.ne.s16.totalorder %v4833, 0
      %vm4917 = vcmp.ne.s16.totalorder %v4837, 0
      %vm4918 = vcmp.ne.s16.totalorder %v4841, 0
      %vm4919 = vcmp.ne.s16.totalorder %v4845, 0
      %vm4920 = vcmp.ne.s16.totalorder %v4849, 0
      %vm4921 = vcmp.ne.s16.totalorder %v4853, 0
      %vm4922 = vcmp.ne.s16.totalorder %v4857, 0
      %vm4923 = vcmp.ne.s16.totalorder %v4861, 0
      %vm4924 = vcmp.ne.s16.totalorder %v4865, 0
      %vm4925 = vcmp.ne.s16.totalorder %v4869, 0
      %vm4926 = vcmp.ne.s16.totalorder %v4873, 0
      %vm4927 = vcmp.ne.s16.totalorder %v4877, 0
      %vm4928 = vcmp.ne.s16.totalorder %v4881, 0
      %vm4929 = vcmp.ne.s16.totalorder %v4885, 0
      %vm4930 = vcmp.ne.s16.totalorder %v4889, 0
      %vm4931 = vcmp.ne.s16.totalorder %v4893, 0
      %vm4932 = vcmp.ne.s16.totalorder %v4897, 0
      %vm4933 = vcmp.ne.s16.totalorder %v4901, 0
      %v4934 = vsel %vm4902, %v4576, 0
      %v4935 = vsel %vm4903, %v4512, 0
      %v4936 = vsel %vm4904, %v4513, 0
      %v4937 = vsel %vm4905, %v4514, 0
      %v4938 = vsel %vm4906, %v4515, 0
      %v4939 = vsel %vm4907, %v4516, 0
      %v4940 = vsel %vm4908, %v4517, 0
      %v4941 = vsel %vm4909, %v4518, 0
      %v4942 = vsel %vm4910, %v4519, 0
      %v4943 = vsel %vm4911, %v4520, 0
      %v4944 = vsel %vm4912, %v4521, 0
      %v4945 = vsel %vm4913, %v4522, 0
      %v4946 = vsel %vm4914, %v4523, 0
      %v4947 = vsel %vm4915, %v4524, 0
      %v4948 = vsel %vm4916, %v4525, 0
      %v4949 = vsel %vm4917, %v4526, 0
      %v4950 = vsel %vm4918, %v4527, 0
      %v4951 = vsel %vm4919, %v4528, 0
      %v4952 = vsel %vm4920, %v4529, 0
      %v4953 = vsel %vm4921, %v4530, 0
      %v4954 = vsel %vm4922, %v4531, 0
      %v4955 = vsel %vm4923, %v4532, 0
      %v4956 = vsel %vm4924, %v4533, 0
      %v4957 = vsel %vm4925, %v4534, 0
      %v4958 = vsel %vm4926, %v4535, 0
      %v4959 = vsel %vm4927, %v4536, 0
      %v4960 = vsel %vm4928, %v4537, 0
      %v4961 = vsel %vm4929, %v4538, 0
      %v4962 = vsel %vm4930, %v4539, 0
      %v4963 = vsel %vm4931, %v4540, 0
      %v4964 = vsel %vm4932, %v4541, 0
      %v4965 = vsel %vm4933, %v4542, 0
      %4966 = vrot.lane.b32.xlu0 %v4383, 127
      %v4967 = vpop.permute.xlu0 %4966
      %4968 = vrot.lane.b32.xlu0 %v4384, 127
      %v4969 = vpop.permute.xlu0 %4968
      %4970 = vrot.lane.b32.xlu0 %v4385, 127
      %v4971 = vpop.permute.xlu0 %4970
      %4972 = vrot.lane.b32.xlu0 %v4386, 127
      %v4973 = vpop.permute.xlu0 %4972
      %4974 = vrot.lane.b32.xlu0 %v4387, 127
      %v4975 = vpop.permute.xlu0 %4974
      %4976 = vrot.lane.b32.xlu0 %v4388, 127
      %v4977 = vpop.permute.xlu0 %4976
      %4978 = vrot.lane.b32.xlu0 %v4389, 127
      %v4979 = vpop.permute.xlu0 %4978
      %4980 = vrot.lane.b32.xlu0 %v4390, 127
      %v4981 = vpop.permute.xlu0 %4980
      %4982 = vrot.lane.b32.xlu0 %v4391, 127
      %v4983 = vpop.permute.xlu0 %4982
      %4984 = vrot.lane.b32.xlu0 %v4392, 127
      %v4985 = vpop.permute.xlu0 %4984
      %4986 = vrot.lane.b32.xlu0 %v4393, 127
      %v4987 = vpop.permute.xlu0 %4986
      %4988 = vrot.lane.b32.xlu0 %v4394, 127
      %v4989 = vpop.permute.xlu0 %4988
      %4990 = vrot.lane.b32.xlu0 %v4395, 127
      %v4991 = vpop.permute.xlu0 %4990
      %4992 = vrot.lane.b32.xlu0 %v4396, 127
      %v4993 = vpop.permute.xlu0 %4992
      %4994 = vrot.lane.b32.xlu0 %v4397, 127
      %v4995 = vpop.permute.xlu0 %4994
      %4996 = vrot.lane.b32.xlu0 %v4398, 127
      %v4997 = vpop.permute.xlu0 %4996
      %4998 = vrot.lane.b32.xlu0 %v4399, 127
      %v4999 = vpop.permute.xlu0 %4998
      %5000 = vrot.lane.b32.xlu0 %v4400, 127
      %v5001 = vpop.permute.xlu0 %5000
      %5002 = vrot.lane.b32.xlu0 %v4401, 127
      %v5003 = vpop.permute.xlu0 %5002
      %5004 = vrot.lane.b32.xlu0 %v4402, 127
      %v5005 = vpop.permute.xlu0 %5004
      %5006 = vrot.lane.b32.xlu0 %v4403, 127
      %v5007 = vpop.permute.xlu0 %5006
      %5008 = vrot.lane.b32.xlu0 %v4404, 127
      %v5009 = vpop.permute.xlu0 %5008
      %5010 = vrot.lane.b32.xlu0 %v4405, 127
      %v5011 = vpop.permute.xlu0 %5010
      %5012 = vrot.lane.b32.xlu0 %v4406, 127
      %v5013 = vpop.permute.xlu0 %5012
      %5014 = vrot.lane.b32.xlu0 %v4407, 127
      %v5015 = vpop.permute.xlu0 %5014
      %5016 = vrot.lane.b32.xlu0 %v4408, 127
      %v5017 = vpop.permute.xlu0 %5016
      %5018 = vrot.lane.b32.xlu0 %v4409, 127
      %v5019 = vpop.permute.xlu0 %5018
      %5020 = vrot.lane.b32.xlu0 %v4410, 127
      %v5021 = vpop.permute.xlu0 %5020
      %5022 = vrot.lane.b32.xlu0 %v4411, 127
      %v5023 = vpop.permute.xlu0 %5022
      %5024 = vrot.lane.b32.xlu0 %v4412, 127
      %v5025 = vpop.permute.xlu0 %5024
      %5026 = vrot.lane.b32.xlu0 %v4413, 127
      %v5027 = vpop.permute.xlu0 %5026
      %5028 = vrot.lane.b32.xlu0 %v4414, 127
      %v5029 = vpop.permute.xlu0 %5028
      %vm5030 = vcmask 1039360
      %v5031 = vsel %vm5030, %v4967, %v4969
      %v5032 = vsel %vm5030, %v4969, %v4971
      %v5033 = vsel %vm5030, %v4971, %v4973
      %v5034 = vsel %vm5030, %v4973, %v4975
      %v5035 = vsel %vm5030, %v4975, %v4977
      %v5036 = vsel %vm5030, %v4977, %v4979
      %v5037 = vsel %vm5030, %v4979, %v4981
      %v5038 = vsel %vm5030, %v4981, %v4983
      %v5039 = vsel %vm5030, %v4983, %v4985
      %v5040 = vsel %vm5030, %v4985, %v4987
      %v5041 = vsel %vm5030, %v4987, %v4989
      %v5042 = vsel %vm5030, %v4989, %v4991
      %v5043 = vsel %vm5030, %v4991, %v4993
      %v5044 = vsel %vm5030, %v4993, %v4995
      %v5045 = vsel %vm5030, %v4995, %v4997
      %v5046 = vsel %vm5030, %v4997, %v4999
      %v5047 = vsel %vm5030, %v4999, %v5001
      %v5048 = vsel %vm5030, %v5001, %v5003
      %v5049 = vsel %vm5030, %v5003, %v5005
      %v5050 = vsel %vm5030, %v5005, %v5007
      %v5051 = vsel %vm5030, %v5007, %v5009
      %v5052 = vsel %vm5030, %v5009, %v5011
      %v5053 = vsel %vm5030, %v5011, %v5013
      %v5054 = vsel %vm5030, %v5013, %v5015
      %v5055 = vsel %vm5030, %v5015, %v5017
      %v5056 = vsel %vm5030, %v5017, %v5019
      %v5057 = vsel %vm5030, %v5019, %v5021
      %v5058 = vsel %vm5030, %v5021, %v5023
      %v5059 = vsel %vm5030, %v5023, %v5025
      %v5060 = vsel %vm5030, %v5025, %v5027
      %v5061 = vsel %vm5030, %v5027, %v5029
      %v5094 = vsel %vm1475, %v5029, 0
      %v5096 = vsel %vm1525, 1, 0
      %v5097 = vsel %vm1526, 1, 0
      %v5098 = vsel %vm1527, 1, 0
      %v5099 = vsel %vm1528, 1, 0
      %v5100 = vlaneseq
      %v5101 = vshrl.u32 %v5100, 7
      %v5102 = vsub.s32 0, %v5101
      %v5103 = vrot.slane %v5096, %v5102
      %v5104 = vlaneseq
      %v5105 = vshrl.u32 %v5104, 7
      %v5106 = vsub.s32 1, %v5105
      %v5107 = vrot.slane %v5096, %v5106
      %v5108 = vlaneseq
      %v5109 = vshrl.u32 %v5108, 7
      %v5110 = vsub.s32 2, %v5109
      %v5111 = vrot.slane %v5096, %v5110
      %v5112 = vlaneseq
      %v5113 = vshrl.u32 %v5112, 7
      %v5114 = vsub.s32 3, %v5113
      %v5115 = vrot.slane %v5096, %v5114
      %v5116 = vlaneseq
      %v5117 = vshrl.u32 %v5116, 7
      %v5118 = vsub.s32 4, %v5117
      %v5119 = vrot.slane %v5096, %v5118
      %v5120 = vlaneseq
      %v5121 = vshrl.u32 %v5120, 7
      %v5122 = vsub.s32 5, %v5121
      %v5123 = vrot.slane %v5096, %v5122
      %v5124 = vlaneseq
      %v5125 = vshrl.u32 %v5124, 7
      %v5126 = vsub.s32 6, %v5125
      %v5127 = vrot.slane %v5096, %v5126
      %v5128 = vlaneseq
      %v5129 = vshrl.u32 %v5128, 7
      %v5130 = vsub.s32 7, %v5129
      %v5131 = vrot.slane %v5096, %v5130
      %v5132 = vlaneseq
      %v5133 = vshrl.u32 %v5132, 7
      %v5134 = vsub.s32 0, %v5133
      %v5135 = vrot.slane %v5097, %v5134
      %v5136 = vlaneseq
      %v5137 = vshrl.u32 %v5136, 7
      %v5138 = vsub.s32 1, %v5137
      %v5139 = vrot.slane %v5097, %v5138
      %v5140 = vlaneseq
      %v5141 = vshrl.u32 %v5140, 7
      %v5142 = vsub.s32 2, %v5141
      %v5143 = vrot.slane %v5097, %v5142
      %v5144 = vlaneseq
      %v5145 = vshrl.u32 %v5144, 7
      %v5146 = vsub.s32 3, %v5145
      %v5147 = vrot.slane %v5097, %v5146
      %v5148 = vlaneseq
      %v5149 = vshrl.u32 %v5148, 7
      %v5150 = vsub.s32 4, %v5149
      %v5151 = vrot.slane %v5097, %v5150
      %v5152 = vlaneseq
      %v5153 = vshrl.u32 %v5152, 7
      %v5154 = vsub.s32 5, %v5153
      %v5155 = vrot.slane %v5097, %v5154
      %v5156 = vlaneseq
      %v5157 = vshrl.u32 %v5156, 7
      %v5158 = vsub.s32 6, %v5157
      %v5159 = vrot.slane %v5097, %v5158
      %v5160 = vlaneseq
      %v5161 = vshrl.u32 %v5160, 7
      %v5162 = vsub.s32 7, %v5161
      %v5163 = vrot.slane %v5097, %v5162
      %v5164 = vlaneseq
      %v5165 = vshrl.u32 %v5164, 7
      %v5166 = vsub.s32 0, %v5165
      %v5167 = vrot.slane %v5098, %v5166
      %v5168 = vlaneseq
      %v5169 = vshrl.u32 %v5168, 7
      %v5170 = vsub.s32 1, %v5169
      %v5171 = vrot.slane %v5098, %v5170
      %v5172 = vlaneseq
      %v5173 = vshrl.u32 %v5172, 7
      %v5174 = vsub.s32 2, %v5173
      %v5175 = vrot.slane %v5098, %v5174
      %v5176 = vlaneseq
      %v5177 = vshrl.u32 %v5176, 7
      %v5178 = vsub.s32 3, %v5177
      %v5179 = vrot.slane %v5098, %v5178
      %v5180 = vlaneseq
      %v5181 = vshrl.u32 %v5180, 7
      %v5182 = vsub.s32 4, %v5181
      %v5183 = vrot.slane %v5098, %v5182
      %v5184 = vlaneseq
      %v5185 = vshrl.u32 %v5184, 7
      %v5186 = vsub.s32 5, %v5185
      %v5187 = vrot.slane %v5098, %v5186
      %v5188 = vlaneseq
      %v5189 = vshrl.u32 %v5188, 7
      %v5190 = vsub.s32 6, %v5189
      %v5191 = vrot.slane %v5098, %v5190
      %v5192 = vlaneseq
      %v5193 = vshrl.u32 %v5192, 7
      %v5194 = vsub.s32 7, %v5193
      %v5195 = vrot.slane %v5098, %v5194
      %v5196 = vlaneseq
      %v5197 = vshrl.u32 %v5196, 7
      %v5198 = vsub.s32 0, %v5197
      %v5199 = vrot.slane %v5099, %v5198
      %v5200 = vlaneseq
      %v5201 = vshrl.u32 %v5200, 7
      %v5202 = vsub.s32 1, %v5201
      %v5203 = vrot.slane %v5099, %v5202
      %v5204 = vlaneseq
      %v5205 = vshrl.u32 %v5204, 7
      %v5206 = vsub.s32 2, %v5205
      %v5207 = vrot.slane %v5099, %v5206
      %v5208 = vlaneseq
      %v5209 = vshrl.u32 %v5208, 7
      %v5210 = vsub.s32 3, %v5209
      %v5211 = vrot.slane %v5099, %v5210
      %v5212 = vlaneseq
      %v5213 = vshrl.u32 %v5212, 7
      %v5214 = vsub.s32 4, %v5213
      %v5215 = vrot.slane %v5099, %v5214
      %v5216 = vlaneseq
      %v5217 = vshrl.u32 %v5216, 7
      %v5218 = vsub.s32 5, %v5217
      %v5219 = vrot.slane %v5099, %v5218
      %v5220 = vlaneseq
      %v5221 = vshrl.u32 %v5220, 7
      %v5222 = vsub.s32 6, %v5221
      %v5223 = vrot.slane %v5099, %v5222
      %v5224 = vlaneseq
      %v5225 = vshrl.u32 %v5224, 7
      %v5226 = vsub.s32 7, %v5225
      %v5227 = vrot.slane %v5099, %v5226
      %vm5228 = vcmp.eq.s32.totalorder %v5103, 1
      %vm5229 = vcmp.eq.s32.totalorder %v5107, 1
      %vm5230 = vcmp.eq.s32.totalorder %v5111, 1
      %vm5231 = vcmp.eq.s32.totalorder %v5115, 1
      %vm5232 = vcmp.eq.s32.totalorder %v5119, 1
      %vm5233 = vcmp.eq.s32.totalorder %v5123, 1
      %vm5234 = vcmp.eq.s32.totalorder %v5127, 1
      %vm5235 = vcmp.eq.s32.totalorder %v5131, 1
      %vm5236 = vcmp.eq.s32.totalorder %v5135, 1
      %vm5237 = vcmp.eq.s32.totalorder %v5139, 1
      %vm5238 = vcmp.eq.s32.totalorder %v5143, 1
      %vm5239 = vcmp.eq.s32.totalorder %v5147, 1
      %vm5240 = vcmp.eq.s32.totalorder %v5151, 1
      %vm5241 = vcmp.eq.s32.totalorder %v5155, 1
      %vm5242 = vcmp.eq.s32.totalorder %v5159, 1
      %vm5243 = vcmp.eq.s32.totalorder %v5163, 1
      %vm5244 = vcmp.eq.s32.totalorder %v5167, 1
      %vm5245 = vcmp.eq.s32.totalorder %v5171, 1
      %vm5246 = vcmp.eq.s32.totalorder %v5175, 1
      %vm5247 = vcmp.eq.s32.totalorder %v5179, 1
      %vm5248 = vcmp.eq.s32.totalorder %v5183, 1
      %vm5249 = vcmp.eq.s32.totalorder %v5187, 1
      %vm5250 = vcmp.eq.s32.totalorder %v5191, 1
      %vm5251 = vcmp.eq.s32.totalorder %v5195, 1
      %vm5252 = vcmp.eq.s32.totalorder %v5199, 1
      %vm5253 = vcmp.eq.s32.totalorder %v5203, 1
      %vm5254 = vcmp.eq.s32.totalorder %v5207, 1
      %vm5255 = vcmp.eq.s32.totalorder %v5211, 1
      %vm5256 = vcmp.eq.s32.totalorder %v5215, 1
      %vm5257 = vcmp.eq.s32.totalorder %v5219, 1
      %vm5258 = vcmp.eq.s32.totalorder %v5223, 1
      %vm5259 = vcmp.eq.s32.totalorder %v5227, 1
      %vm5260 = vmpackc.low %vm5229, %vm5228
      %vm5261 = vmpackc.low %vm5231, %vm5230
      %vm5262 = vmpackc.low %vm5233, %vm5232
      %vm5263 = vmpackc.low %vm5235, %vm5234
      %vm5264 = vmpackc.low %vm5237, %vm5236
      %vm5265 = vmpackc.low %vm5239, %vm5238
      %vm5266 = vmpackc.low %vm5241, %vm5240
      %vm5267 = vmpackc.low %vm5243, %vm5242
      %vm5268 = vmpackc.low %vm5245, %vm5244
      %vm5269 = vmpackc.low %vm5247, %vm5246
      %vm5270 = vmpackc.low %vm5249, %vm5248
      %vm5271 = vmpackc.low %vm5251, %vm5250
      %vm5272 = vmpackc.low %vm5253, %vm5252
      %vm5273 = vmpackc.low %vm5255, %vm5254
      %vm5274 = vmpackc.low %vm5257, %vm5256
      %vm5275 = vmpackc.low %vm5259, %vm5258
      %v5276 = vsel %vm5260, 65537, 0
      %v5277 = vsel %vm5261, 65537, 0
      %v5278 = vsel %vm5262, 65537, 0
      %v5279 = vsel %vm5263, 65537, 0
      %v5280 = vsel %vm5264, 65537, 0
      %v5281 = vsel %vm5265, 65537, 0
      %v5282 = vsel %vm5266, 65537, 0
      %v5283 = vsel %vm5267, 65537, 0
      %v5284 = vsel %vm5268, 65537, 0
      %v5285 = vsel %vm5269, 65537, 0
      %v5286 = vsel %vm5270, 65537, 0
      %v5287 = vsel %vm5271, 65537, 0
      %v5288 = vsel %vm5272, 65537, 0
      %v5289 = vsel %vm5273, 65537, 0
      %v5290 = vsel %vm5274, 65537, 0
      %v5291 = vsel %vm5275, 65537, 0
      %v5292 = vlaneseq
      %v5293 = vshrl.u32 %v5292, 7
      %v5294 = vsub.s32 0, %v5293
      %v5295 = vrot.slane %v5276, %v5294
      %v5296 = vlaneseq
      %v5297 = vshrl.u32 %v5296, 7
      %v5298 = vsub.s32 4, %v5297
      %v5299 = vrot.slane %v5276, %v5298
      %v5300 = vlaneseq
      %v5301 = vshrl.u32 %v5300, 7
      %v5302 = vsub.s32 0, %v5301
      %v5303 = vrot.slane %v5277, %v5302
      %v5304 = vlaneseq
      %v5305 = vshrl.u32 %v5304, 7
      %v5306 = vsub.s32 4, %v5305
      %v5307 = vrot.slane %v5277, %v5306
      %v5308 = vlaneseq
      %v5309 = vshrl.u32 %v5308, 7
      %v5310 = vsub.s32 0, %v5309
      %v5311 = vrot.slane %v5278, %v5310
      %v5312 = vlaneseq
      %v5313 = vshrl.u32 %v5312, 7
      %v5314 = vsub.s32 4, %v5313
      %v5315 = vrot.slane %v5278, %v5314
      %v5316 = vlaneseq
      %v5317 = vshrl.u32 %v5316, 7
      %v5318 = vsub.s32 0, %v5317
      %v5319 = vrot.slane %v5279, %v5318
      %v5320 = vlaneseq
      %v5321 = vshrl.u32 %v5320, 7
      %v5322 = vsub.s32 4, %v5321
      %v5323 = vrot.slane %v5279, %v5322
      %v5324 = vlaneseq
      %v5325 = vshrl.u32 %v5324, 7
      %v5326 = vsub.s32 0, %v5325
      %v5327 = vrot.slane %v5280, %v5326
      %v5328 = vlaneseq
      %v5329 = vshrl.u32 %v5328, 7
      %v5330 = vsub.s32 4, %v5329
      %v5331 = vrot.slane %v5280, %v5330
      %v5332 = vlaneseq
      %v5333 = vshrl.u32 %v5332, 7
      %v5334 = vsub.s32 0, %v5333
      %v5335 = vrot.slane %v5281, %v5334
      %v5336 = vlaneseq
      %v5337 = vshrl.u32 %v5336, 7
      %v5338 = vsub.s32 4, %v5337
      %v5339 = vrot.slane %v5281, %v5338
      %v5340 = vlaneseq
      %v5341 = vshrl.u32 %v5340, 7
      %v5342 = vsub.s32 0, %v5341
      %v5343 = vrot.slane %v5282, %v5342
      %v5344 = vlaneseq
      %v5345 = vshrl.u32 %v5344, 7
      %v5346 = vsub.s32 4, %v5345
      %v5347 = vrot.slane %v5282, %v5346
      %v5348 = vlaneseq
      %v5349 = vshrl.u32 %v5348, 7
      %v5350 = vsub.s32 0, %v5349
      %v5351 = vrot.slane %v5283, %v5350
      %v5352 = vlaneseq
      %v5353 = vshrl.u32 %v5352, 7
      %v5354 = vsub.s32 4, %v5353
      %v5355 = vrot.slane %v5283, %v5354
      %v5356 = vlaneseq
      %v5357 = vshrl.u32 %v5356, 7
      %v5358 = vsub.s32 0, %v5357
      %v5359 = vrot.slane %v5284, %v5358
      %v5360 = vlaneseq
      %v5361 = vshrl.u32 %v5360, 7
      %v5362 = vsub.s32 4, %v5361
      %v5363 = vrot.slane %v5284, %v5362
      %v5364 = vlaneseq
      %v5365 = vshrl.u32 %v5364, 7
      %v5366 = vsub.s32 0, %v5365
      %v5367 = vrot.slane %v5285, %v5366
      %v5368 = vlaneseq
      %v5369 = vshrl.u32 %v5368, 7
      %v5370 = vsub.s32 4, %v5369
      %v5371 = vrot.slane %v5285, %v5370
      %v5372 = vlaneseq
      %v5373 = vshrl.u32 %v5372, 7
      %v5374 = vsub.s32 0, %v5373
      %v5375 = vrot.slane %v5286, %v5374
      %v5376 = vlaneseq
      %v5377 = vshrl.u32 %v5376, 7
      %v5378 = vsub.s32 4, %v5377
      %v5379 = vrot.slane %v5286, %v5378
      %v5380 = vlaneseq
      %v5381 = vshrl.u32 %v5380, 7
      %v5382 = vsub.s32 0, %v5381
      %v5383 = vrot.slane %v5287, %v5382
      %v5384 = vlaneseq
      %v5385 = vshrl.u32 %v5384, 7
      %v5386 = vsub.s32 4, %v5385
      %v5387 = vrot.slane %v5287, %v5386
      %v5388 = vlaneseq
      %v5389 = vshrl.u32 %v5388, 7
      %v5390 = vsub.s32 0, %v5389
      %v5391 = vrot.slane %v5288, %v5390
      %v5392 = vlaneseq
      %v5393 = vshrl.u32 %v5392, 7
      %v5394 = vsub.s32 4, %v5393
      %v5395 = vrot.slane %v5288, %v5394
      %v5396 = vlaneseq
      %v5397 = vshrl.u32 %v5396, 7
      %v5398 = vsub.s32 0, %v5397
      %v5399 = vrot.slane %v5289, %v5398
      %v5400 = vlaneseq
      %v5401 = vshrl.u32 %v5400, 7
      %v5402 = vsub.s32 4, %v5401
      %v5403 = vrot.slane %v5289, %v5402
      %v5404 = vlaneseq
      %v5405 = vshrl.u32 %v5404, 7
      %v5406 = vsub.s32 0, %v5405
      %v5407 = vrot.slane %v5290, %v5406
      %v5408 = vlaneseq
      %v5409 = vshrl.u32 %v5408, 7
      %v5410 = vsub.s32 4, %v5409
      %v5411 = vrot.slane %v5290, %v5410
      %v5412 = vlaneseq
      %v5413 = vshrl.u32 %v5412, 7
      %v5414 = vsub.s32 0, %v5413
      %v5415 = vrot.slane %v5291, %v5414
      %v5416 = vlaneseq
      %v5417 = vshrl.u32 %v5416, 7
      %v5418 = vsub.s32 4, %v5417
      %v5419 = vrot.slane %v5291, %v5418
      %vm5420 = vcmp.ne.s16.totalorder %v5295, 0
      %vm5421 = vcmp.ne.s16.totalorder %v5299, 0
      %vm5422 = vcmp.ne.s16.totalorder %v5303, 0
      %vm5423 = vcmp.ne.s16.totalorder %v5307, 0
      %vm5424 = vcmp.ne.s16.totalorder %v5311, 0
      %vm5425 = vcmp.ne.s16.totalorder %v5315, 0
      %vm5426 = vcmp.ne.s16.totalorder %v5319, 0
      %vm5427 = vcmp.ne.s16.totalorder %v5323, 0
      %vm5428 = vcmp.ne.s16.totalorder %v5327, 0
      %vm5429 = vcmp.ne.s16.totalorder %v5331, 0
      %vm5430 = vcmp.ne.s16.totalorder %v5335, 0
      %vm5431 = vcmp.ne.s16.totalorder %v5339, 0
      %vm5432 = vcmp.ne.s16.totalorder %v5343, 0
      %vm5433 = vcmp.ne.s16.totalorder %v5347, 0
      %vm5434 = vcmp.ne.s16.totalorder %v5351, 0
      %vm5435 = vcmp.ne.s16.totalorder %v5355, 0
      %vm5436 = vcmp.ne.s16.totalorder %v5359, 0
      %vm5437 = vcmp.ne.s16.totalorder %v5363, 0
      %vm5438 = vcmp.ne.s16.totalorder %v5367, 0
      %vm5439 = vcmp.ne.s16.totalorder %v5371, 0
      %vm5440 = vcmp.ne.s16.totalorder %v5375, 0
      %vm5441 = vcmp.ne.s16.totalorder %v5379, 0
      %vm5442 = vcmp.ne.s16.totalorder %v5383, 0
      %vm5443 = vcmp.ne.s16.totalorder %v5387, 0
      %vm5444 = vcmp.ne.s16.totalorder %v5391, 0
      %vm5445 = vcmp.ne.s16.totalorder %v5395, 0
      %vm5446 = vcmp.ne.s16.totalorder %v5399, 0
      %vm5447 = vcmp.ne.s16.totalorder %v5403, 0
      %vm5448 = vcmp.ne.s16.totalorder %v5407, 0
      %vm5449 = vcmp.ne.s16.totalorder %v5411, 0
      %vm5450 = vcmp.ne.s16.totalorder %v5415, 0
      %vm5451 = vcmp.ne.s16.totalorder %v5419, 0
      %v5452 = vsel %vm5420, %v5031, 0
      %v5453 = vsel %vm5421, %v5032, 0
      %v5454 = vsel %vm5422, %v5033, 0
      %v5455 = vsel %vm5423, %v5034, 0
      %v5456 = vsel %vm5424, %v5035, 0
      %v5457 = vsel %vm5425, %v5036, 0
      %v5458 = vsel %vm5426, %v5037, 0
      %v5459 = vsel %vm5427, %v5038, 0
      %v5460 = vsel %vm5428, %v5039, 0
      %v5461 = vsel %vm5429, %v5040, 0
      %v5462 = vsel %vm5430, %v5041, 0
      %v5463 = vsel %vm5431, %v5042, 0
      %v5464 = vsel %vm5432, %v5043, 0
      %v5465 = vsel %vm5433, %v5044, 0
      %v5466 = vsel %vm5434, %v5045, 0
      %v5467 = vsel %vm5435, %v5046, 0
      %v5468 = vsel %vm5436, %v5047, 0
      %v5469 = vsel %vm5437, %v5048, 0
      %v5470 = vsel %vm5438, %v5049, 0
      %v5471 = vsel %vm5439, %v5050, 0
      %v5472 = vsel %vm5440, %v5051, 0
      %v5473 = vsel %vm5441, %v5052, 0
      %v5474 = vsel %vm5442, %v5053, 0
      %v5475 = vsel %vm5443, %v5054, 0
      %v5476 = vsel %vm5444, %v5055, 0
      %v5477 = vsel %vm5445, %v5056, 0
      %v5478 = vsel %vm5446, %v5057, 0
      %v5479 = vsel %vm5447, %v5058, 0
      %v5480 = vsel %vm5448, %v5059, 0
      %v5481 = vsel %vm5449, %v5060, 0
      %v5482 = vsel %vm5450, %v5061, 0
      %v5483 = vsel %vm5451, %v5094, 0
      %v5484 = vld [vmem:[%s5] sm:$0xff]
      %v5485 = vld [vmem:[%s5 + $0x8] sm:$0xff]
      %v5486 = vld [vmem:[%s6] sm:$0xff]
      %v5487 = vld [vmem:[%s6 + $0x8] sm:$0xff]
      %5489 = vset.pattern.permute.xlu0 0
      %5490 = vperm.xlu0 %5489, %v5486
      %v5491 = vpop.permute.xlu0 %5490
      %5494 = vset.pattern.permute.xlu0 0
      %5495 = vperm.xlu0 %5494, %v5487
      %v5496 = vpop.permute.xlu0 %5495
      %v5500 = vunpack.c.l.b16 %v5484
      %v5501 = vunpack.c.h.b16 %v5484
      %v5502 = vunpack.c.l.b16 %v5485
      %v5503 = vunpack.c.h.b16 %v5485
      %v5504 = vpack.c.b16 %v5502, %v5500
      %v5505 = vpack.c.b16 %v5503, %v5501
      %vm5507 = vcmask 130048
      %v5509 = vsel %vm5507, %v5505, 0
      %5511 = vmatprep.subr.bf16.mxu0 %v4934
      %5512 = vmatpush1.bf16.msra.mxu0 0
      %5513 = vmatprep.subr.bf16.mxu0 %v4383
      %5514 = vmatpush1.bf16.msra.mxu0 0
      %5515 = vmatprep.subr.bf16.mxu0 %v5452
      %5516 = vmatpush1.bf16.msra.mxu0 0
      %5517 = vmatprep.subr.bf16.mxu0 %v4935
      %5518 = vmatpush1.bf16.msra.mxu0 %v4934
      %5519 = vmatprep.subr.bf16.mxu0 %v4384
      %5520 = vmatpush1.bf16.msra.mxu0 %v4383
      %5521 = vmatprep.subr.bf16.mxu0 %v5453
      %5522 = vmatpush1.bf16.msra.mxu0 %v5452
      %5523 = vmatprep.subr.bf16.mxu0 %v4936
      %5524 = vmatpush1.bf16.msra.mxu0 %v4935
      %5525 = vmatprep.subr.bf16.mxu0 %v4385
      %5526 = vmatpush1.bf16.msra.mxu0 %v4384
      %5527 = vmatprep.subr.bf16.mxu0 %v5454
      %5528 = vmatpush1.bf16.msra.mxu0 %v5453
      %5529 = vmatprep.subr.bf16.mxu0 0
      %5530 = vmatpush1.bf16.msra.mxu0 0
      %5531 = vmatprep.subr.bf16.mxu0 0
      %5532 = vmatpush1.bf16.msra.mxu0 0
      %5533 = vmatprep.subr.bf16.mxu0 0
      %5534 = vmatpush1.bf16.msra.mxu0 0
      %5535 = vmatprep.subr.bf16.mxu0 0
      %5536 = vmatpush1.bf16.msra.mxu0 0
      %5537 = vmatprep.subr.bf16.mxu0 0
      %5538 = vmatpush1.bf16.msra.mxu0 0
      %5539 = vmatprep.subr.bf16.mxu0 0
      %5540 = vmatpush1.bf16.msra.mxu0 0
      %5541 = vmatprep.subr.bf16.mxu0 0
      %5542 = vmatpush1.bf16.msra.mxu0 0
      %5543 = vmatprep.mubr.bf16.mxu0 %v5509
      %5544 = vmatmul.mubr.bf16.gmra.mrb[0].mxu0 %v5504
      %v5545 = vpop.f32.mrb[0].mxu0
      %v5546 = vadd.f32 %v5491, %v5545
      %v5547 = vpop.f32.mrb[0].mxu0
      %v5548 = vadd.f32 %v5491, %v5547
      %v5549 = vpop.f32.mrb[0].mxu0
      %v5550 = vadd.f32 %v5496, %v5549
      %v5551 = vpop.f32.mrb[0].mxu0
      %v5552 = vadd.f32 %v5496, %v5551
      %5553 = vdwg.mxu0
      %5554 = vmatprep.subr.bf16.mxu0 %v4936
      %5555 = vmatpush1.bf16.msra.mxu0 %v4935
      %5556 = vmatprep.subr.bf16.mxu0 %v4385
      %5557 = vmatpush1.bf16.msra.mxu0 %v4384
      %5558 = vmatprep.subr.bf16.mxu0 %v5454
      %5559 = vmatpush1.bf16.msra.mxu0 %v5453
      %5560 = vmatprep.subr.bf16.mxu0 %v4937
      %5561 = vmatpush1.bf16.msra.mxu0 %v4936
      %5562 = vmatprep.subr.bf16.mxu0 %v4386
      %5563 = vmatpush1.bf16.msra.mxu0 %v4385
      %5564 = vmatprep.subr.bf16.mxu0 %v5455
      %5565 = vmatpush1.bf16.msra.mxu0 %v5454
      %5566 = vmatprep.subr.bf16.mxu0 %v4938
      %5567 = vmatpush1.bf16.msra.mxu0 %v4937
      %5568 = vmatprep.subr.bf16.mxu0 %v4387
      %5569 = vmatpush1.bf16.msra.mxu0 %v4386
      %5570 = vmatprep.subr.bf16.mxu0 %v5456
      %5571 = vmatpush1.bf16.msra.mxu0 %v5455
      %5572 = vmatprep.subr.bf16.mxu0 0
      %5573 = vmatpush1.bf16.msra.mxu0 0
      %5574 = vmatprep.subr.bf16.mxu0 0
      %5575 = vmatpush1.bf16.msra.mxu0 0
      %5576 = vmatprep.subr.bf16.mxu0 0
      %5577 = vmatpush1.bf16.msra.mxu0 0
      %5578 = vmatprep.subr.bf16.mxu0 0
      %5579 = vmatpush1.bf16.msra.mxu0 0
      %5580 = vmatprep.subr.bf16.mxu0 0
      %5581 = vmatpush1.bf16.msra.mxu0 0
      %5582 = vmatprep.subr.bf16.mxu0 0
      %5583 = vmatpush1.bf16.msra.mxu0 0
      %5584 = vmatprep.subr.bf16.mxu0 0
      %5585 = vmatpush1.bf16.msra.mxu0 0
      %5586 = vmatprep.mubr.bf16.mxu0 %v5509
      %5587 = vmatmul.mubr.bf16.gmra.mrb[0].mxu0 %v5504
      %v5588 = vpop.f32.mrb[0].mxu0
      %v5589 = vadd.f32 %v5491, %v5588
      %v5590 = vpop.f32.mrb[0].mxu0
      %v5591 = vadd.f32 %v5491, %v5590
      %v5592 = vpop.f32.mrb[0].mxu0
      %v5593 = vadd.f32 %v5496, %v5592
      %v5594 = vpop.f32.mrb[0].mxu0
      %v5595 = vadd.f32 %v5496, %v5594
      %5596 = vdwg.mxu0
      %5597 = vmatprep.subr.bf16.mxu0 %v4938
      %5598 = vmatpush1.bf16.msra.mxu0 %v4937
      %5599 = vmatprep.subr.bf16.mxu0 %v4387
      %5600 = vmatpush1.bf16.msra.mxu0 %v4386
      %5601 = vmatprep.subr.bf16.mxu0 %v5456
      %5602 = vmatpush1.bf16.msra.mxu0 %v5455
      %5603 = vmatprep.subr.bf16.mxu0 %v4939
      %5604 = vmatpush1.bf16.msra.mxu0 %v4938
      %5605 = vmatprep.subr.bf16.mxu0 %v4388
      %5606 = vmatpush1.bf16.msra.mxu0 %v4387
      %5607 = vmatprep.subr.bf16.mxu0 %v5457
      %5608 = vmatpush1.bf16.msra.mxu0 %v5456
      %5609 = vmatprep.subr.bf16.mxu0 %v4940
      %5610 = vmatpush1.bf16.msra.mxu0 %v4939
      %5611 = vmatprep.subr.bf16.mxu0 %v4389
      %5612 = vmatpush1.bf16.msra.mxu0 %v4388
      %5613 = vmatprep.subr.bf16.mxu0 %v5458
      %5614 = vmatpush1.bf16.msra.mxu0 %v5457
      %5615 = vmatprep.subr.bf16.mxu0 0
      %5616 = vmatpush1.bf16.msra.mxu0 0
      %5617 = vmatprep.subr.bf16.mxu0 0
      %5618 = vmatpush1.bf16.msra.mxu0 0
      %5619 = vmatprep.subr.bf16.mxu0 0
      %5620 = vmatpush1.bf16.msra.mxu0 0
      %5621 = vmatprep.subr.bf16.mxu0 0
      %5622 = vmatpush1.bf16.msra.mxu0 0
      %5623 = vmatprep.subr.bf16.mxu0 0
      %5624 = vmatpush1.bf16.msra.mxu0 0
      %5625 = vmatprep.subr.bf16.mxu0 0
      %5626 = vmatpush1.bf16.msra.mxu0 0
      %5627 = vmatprep.subr.bf16.mxu0 0
      %5628 = vmatpush1.bf16.msra.mxu0 0
      %5629 = vmatprep.mubr.bf16.mxu0 %v5509
      %5630 = vmatmul.mubr.bf16.gmra.mrb[0].mxu0 %v5504
      %v5631 = vpop.f32.mrb[0].mxu0
      %v5632 = vadd.f32 %v5491, %v5631
      %v5633 = vpop.f32.mrb[0].mxu0
      %v5634 = vadd.f32 %v5491, %v5633
      %v5635 = vpop.f32.mrb[0].mxu0
      %v5636 = vadd.f32 %v5496, %v5635
      %v5637 = vpop.f32.mrb[0].mxu0
      %v5638 = vadd.f32 %v5496, %v5637
      %5639 = vdwg.mxu0
      %5640 = vmatprep.subr.bf16.mxu0 %v4940
      %5641 = vmatpush1.bf16.msra.mxu0 %v4939
      %5642 = vmatprep.subr.bf16.mxu0 %v4389
      %5643 = vmatpush1.bf16.msra.mxu0 %v4388
      %5644 = vmatprep.subr.bf16.mxu0 %v5458
      %5645 = vmatpush1.bf16.msra.mxu0 %v5457
      %5646 = vmatprep.subr.bf16.mxu0 %v4941
      %5647 = vmatpush1.bf16.msra.mxu0 %v4940
      %5648 = vmatprep.subr.bf16.mxu0 %v4390
      %5649 = vmatpush1.bf16.msra.mxu0 %v4389
      %5650 = vmatprep.subr.bf16.mxu0 %v5459
      %5651 = vmatpush1.bf16.msra.mxu0 %v5458
      %5652 = vmatprep.subr.bf16.mxu0 %v4942
      %5653 = vmatpush1.bf16.msra.mxu0 %v4941
      %5654 = vmatprep.subr.bf16.mxu0 %v4391
      %5655 = vmatpush1.bf16.msra.mxu0 %v4390
      %5656 = vmatprep.subr.bf16.mxu0 %v5460
      %5657 = vmatpush1.bf16.msra.mxu0 %v5459
      %5658 = vmatprep.subr.bf16.mxu0 0
      %5659 = vmatpush1.bf16.msra.mxu0 0
      %5660 = vmatprep.subr.bf16.mxu0 0
      %5661 = vmatpush1.bf16.msra.mxu0 0
      %5662 = vmatprep.subr.bf16.mxu0 0
      %5663 = vmatpush1.bf16.msra.mxu0 0
      %5664 = vmatprep.subr.bf16.mxu0 0
      %5665 = vmatpush1.bf16.msra.mxu0 0
      %5666 = vmatprep.subr.bf16.mxu0 0
      %5667 = vmatpush1.bf16.msra.mxu0 0
      %5668 = vmatprep.subr.bf16.mxu0 0
      %5669 = vmatpush1.bf16.msra.mxu0 0
      %5670 = vmatprep.subr.bf16.mxu0 0
      %5671 = vmatpush1.bf16.msra.mxu0 0
      %5672 = vmatprep.mubr.bf16.mxu0 %v5509
      %5673 = vmatmul.mubr.bf16.gmra.mrb[0].mxu0 %v5504
      %v5674 = vpop.f32.mrb[0].mxu0
      %v5675 = vadd.f32 %v5491, %v5674
      %v5676 = vpop.f32.mrb[0].mxu0
      %v5677 = vadd.f32 %v5491, %v5676
      %v5678 = vpop.f32.mrb[0].mxu0
      %v5679 = vadd.f32 %v5496, %v5678
      %v5680 = vpop.f32.mrb[0].mxu0
      %v5681 = vadd.f32 %v5496, %v5680
      %5682 = vdwg.mxu0
      %5683 = vmatprep.subr.bf16.mxu0 %v4942
      %5684 = vmatpush1.bf16.msra.mxu0 %v4941
      %5685 = vmatprep.subr.bf16.mxu0 %v4391
      %5686 = vmatpush1.bf16.msra.mxu0 %v4390
      %5687 = vmatprep.subr.bf16.mxu0 %v5460
      %5688 = vmatpush1.bf16.msra.mxu0 %v5459
      %5689 = vmatprep.subr.bf16.mxu0 %v4943
      %5690 = vmatpush1.bf16.msra.mxu0 %v4942
      %5691 = vmatprep.subr.bf16.mxu0 %v4392
      %5692 = vmatpush1.bf16.msra.mxu0 %v4391
      %5693 = vmatprep.subr.bf16.mxu0 %v5461
      %5694 = vmatpush1.bf16.msra.mxu0 %v5460
      %5695 = vmatprep.subr.bf16.mxu0 %v4944
      %5696 = vmatpush1.bf16.msra.mxu0 %v4943
      %5697 = vmatprep.subr.bf16.mxu0 %v4393
      %5698 = vmatpush1.bf16.msra.mxu0 %v4392
      %5699 = vmatprep.subr.bf16.mxu0 %v5462
      %5700 = vmatpush1.bf16.msra.mxu0 %v5461
      %5701 = vmatprep.subr.bf16.mxu0 0
      %5702 = vmatpush1.bf16.msra.mxu0 0
      %5703 = vmatprep.subr.bf16.mxu0 0
      %5704 = vmatpush1.bf16.msra.mxu0 0
      %5705 = vmatprep.subr.bf16.mxu0 0
      %5706 = vmatpush1.bf16.msra.mxu0 0
      %5707 = vmatprep.subr.bf16.mxu0 0
      %5708 = vmatpush1.bf16.msra.mxu0 0
      %5709 = vmatprep.subr.bf16.mxu0 0
      %5710 = vmatpush1.bf16.msra.mxu0 0
      %5711 = vmatprep.subr.bf16.mxu0 0
      %5712 = vmatpush1.bf16.msra.mxu0 0
      %5713 = vmatprep.subr.bf16.mxu0 0
      %5714 = vmatpush1.bf16.msra.mxu0 0
      %5715 = vmatprep.mubr.bf16.mxu0 %v5509
      %5716 = vmatmul.mubr.bf16.gmra.mrb[0].mxu0 %v5504
      %v5717 = vpop.f32.mrb[0].mxu0
      %v5718 = vadd.f32 %v5491, %v5717
      %v5719 = vpop.f32.mrb[0].mxu0
      %v5720 = vadd.f32 %v5491, %v5719
      %v5721 = vpop.f32.mrb[0].mxu0
      %v5722 = vadd.f32 %v5496, %v5721
      %v5723 = vpop.f32.mrb[0].mxu0
      %v5724 = vadd.f32 %v5496, %v5723
      %5725 = vdwg.mxu0
      %5726 = vmatprep.subr.bf16.mxu0 %v4944
      %5727 = vmatpush1.bf16.msra.mxu0 %v4943
      %5728 = vmatprep.subr.bf16.mxu0 %v4393
      %5729 = vmatpush1.bf16.msra.mxu0 %v4392
      %5730 = vmatprep.subr.bf16.mxu0 %v5462
      %5731 = vmatpush1.bf16.msra.mxu0 %v5461
      %5732 = vmatprep.subr.bf16.mxu0 %v4945
      %5733 = vmatpush1.bf16.msra.mxu0 %v4944
      %5734 = vmatprep.subr.bf16.mxu0 %v4394
      %5735 = vmatpush1.bf16.msra.mxu0 %v4393
      %5736 = vmatprep.subr.bf16.mxu0 %v5463
      %5737 = vmatpush1.bf16.msra.mxu0 %v5462
      %5738 = vmatprep.subr.bf16.mxu0 %v4946
      %5739 = vmatpush1.bf16.msra.mxu0 %v4945
      %5740 = vmatprep.subr.bf16.mxu0 %v4395
      %5741 = vmatpush1.bf16.msra.mxu0 %v4394
      %5742 = vmatprep.subr.bf16.mxu0 %v5464
      %5743 = vmatpush1.bf16.msra.mxu0 %v5463
      %5744 = vmatprep.subr.bf16.mxu0 0
      %5745 = vmatpush1.bf16.msra.mxu0 0
      %5746 = vmatprep.subr.bf16.mxu0 0
      %5747 = vmatpush1.bf16.msra.mxu0 0
      %5748 = vmatprep.subr.bf16.mxu0 0
      %5749 = vmatpush1.bf16.msra.mxu0 0
      %5750 = vmatprep.subr.bf16.mxu0 0
      %5751 = vmatpush1.bf16.msra.mxu0 0
      %5752 = vmatprep.subr.bf16.mxu0 0
      %5753 = vmatpush1.bf16.msra.mxu0 0
      %5754 = vmatprep.subr.bf16.mxu0 0
      %5755 = vmatpush1.bf16.msra.mxu0 0
      %5756 = vmatprep.subr.bf16.mxu0 0
      %5757 = vmatpush1.bf16.msra.mxu0 0
      %5758 = vmatprep.mubr.bf16.mxu0 %v5509
      %5759 = vmatmul.mubr.bf16.gmra.mrb[0].mxu0 %v5504
      %v5760 = vpop.f32.mrb[0].mxu0
      %v5761 = vadd.f32 %v5491, %v5760
      %v5762 = vpop.f32.mrb[0].mxu0
      %v5763 = vadd.f32 %v5491, %v5762
      %v5764 = vpop.f32.mrb[0].mxu0
      %v5765 = vadd.f32 %v5496, %v5764
      %v5766 = vpop.f32.mrb[0].mxu0
      %v5767 = vadd.f32 %v5496, %v5766
      %5768 = vdwg.mxu0
      %5769 = vmatprep.subr.bf16.mxu0 %v4946
      %5770 = vmatpush1.bf16.msra.mxu0 %v4945
      %5771 = vmatprep.subr.bf16.mxu0 %v4395
      %5772 = vmatpush1.bf16.msra.mxu0 %v4394
      %5773 = vmatprep.subr.bf16.mxu0 %v5464
      %5774 = vmatpush1.bf16.msra.mxu0 %v5463
      %5775 = vmatprep.subr.bf16.mxu0 %v4947
      %5776 = vmatpush1.bf16.msra.mxu0 %v4946
      %5777 = vmatprep.subr.bf16.mxu0 %v4396
      %5778 = vmatpush1.bf16.msra.mxu0 %v4395
      %5779 = vmatprep.subr.bf16.mxu0 %v5465
      %5780 = vmatpush1.bf16.msra.mxu0 %v5464
      %5781 = vmatprep.subr.bf16.mxu0 %v4948
      %5782 = vmatpush1.bf16.msra.mxu0 %v4947
      %5783 = vmatprep.subr.bf16.mxu0 %v4397
      %5784 = vmatpush1.bf16.msra.mxu0 %v4396
      %5785 = vmatprep.subr.bf16.mxu0 %v5466
      %5786 = vmatpush1.bf16.msra.mxu0 %v5465
      %5787 = vmatprep.subr.bf16.mxu0 0
      %5788 = vmatpush1.bf16.msra.mxu0 0
      %5789 = vmatprep.subr.bf16.mxu0 0
      %5790 = vmatpush1.bf16.msra.mxu0 0
      %5791 = vmatprep.subr.bf16.mxu0 0
      %5792 = vmatpush1.bf16.msra.mxu0 0
      %5793 = vmatprep.subr.bf16.mxu0 0
      %5794 = vmatpush1.bf16.msra.mxu0 0
      %5795 = vmatprep.subr.bf16.mxu0 0
      %5796 = vmatpush1.bf16.msra.mxu0 0
      %5797 = vmatprep.subr.bf16.mxu0 0
      %5798 = vmatpush1.bf16.msra.mxu0 0
      %5799 = vmatprep.subr.bf16.mxu0 0
      %5800 = vmatpush1.bf16.msra.mxu0 0
      %5801 = vmatprep.mubr.bf16.mxu0 %v5509
      %5802 = vmatmul.mubr.bf16.gmra.mrb[0].mxu0 %v5504
      %v5803 = vpop.f32.mrb[0].mxu0
      %v5804 = vadd.f32 %v5491, %v5803
      %v5805 = vpop.f32.mrb[0].mxu0
      %v5806 = vadd.f32 %v5491, %v5805
      %v5807 = vpop.f32.mrb[0].mxu0
      %v5808 = vadd.f32 %v5496, %v5807
      %v5809 = vpop.f32.mrb[0].mxu0
      %v5810 = vadd.f32 %v5496, %v5809
      %5811 = vdwg.mxu0
      %5812 = vmatprep.subr.bf16.mxu0 %v4948
      %5813 = vmatpush1.bf16.msra.mxu0 %v4947
      %5814 = vmatprep.subr.bf16.mxu0 %v4397
      %5815 = vmatpush1.bf16.msra.mxu0 %v4396
      %5816 = vmatprep.subr.bf16.mxu0 %v5466
      %5817 = vmatpush1.bf16.msra.mxu0 %v5465
      %5818 = vmatprep.subr.bf16.mxu0 %v4949
      %5819 = vmatpush1.bf16.msra.mxu0 %v4948
      %5820 = vmatprep.subr.bf16.mxu0 %v4398
      %5821 = vmatpush1.bf16.msra.mxu0 %v4397
      %5822 = vmatprep.subr.bf16.mxu0 %v5467
      %5823 = vmatpush1.bf16.msra.mxu0 %v5466
      %5824 = vmatprep.subr.bf16.mxu0 %v4950
      %5825 = vmatpush1.bf16.msra.mxu0 %v4949
      %5826 = vmatprep.subr.bf16.mxu0 %v4399
      %5827 = vmatpush1.bf16.msra.mxu0 %v4398
      %5828 = vmatprep.subr.bf16.mxu0 %v5468
      %5829 = vmatpush1.bf16.msra.mxu0 %v5467
      %5830 = vmatprep.subr.bf16.mxu0 0
      %5831 = vmatpush1.bf16.msra.mxu0 0
      %5832 = vmatprep.subr.bf16.mxu0 0
      %5833 = vmatpush1.bf16.msra.mxu0 0
      %5834 = vmatprep.subr.bf16.mxu0 0
      %5835 = vmatpush1.bf16.msra.mxu0 0
      %5836 = vmatprep.subr.bf16.mxu0 0
      %5837 = vmatpush1.bf16.msra.mxu0 0
      %5838 = vmatprep.subr.bf16.mxu0 0
      %5839 = vmatpush1.bf16.msra.mxu0 0
      %5840 = vmatprep.subr.bf16.mxu0 0
      %5841 = vmatpush1.bf16.msra.mxu0 0
      %5842 = vmatprep.subr.bf16.mxu0 0
      %5843 = vmatpush1.bf16.msra.mxu0 0
      %5844 = vmatprep.mubr.bf16.mxu0 %v5509
      %5845 = vmatmul.mubr.bf16.gmra.mrb[0].mxu0 %v5504
      %v5846 = vpop.f32.mrb[0].mxu0
      %v5847 = vadd.f32 %v5491, %v5846
      %v5848 = vpop.f32.mrb[0].mxu0
      %v5849 = vadd.f32 %v5491, %v5848
      %v5850 = vpop.f32.mrb[0].mxu0
      %v5851 = vadd.f32 %v5496, %v5850
      %v5852 = vpop.f32.mrb[0].mxu0
      %v5853 = vadd.f32 %v5496, %v5852
      %5854 = vdwg.mxu0
      %5855 = vmatprep.subr.bf16.mxu0 %v4950
      %5856 = vmatpush1.bf16.msra.mxu0 %v4949
      %5857 = vmatprep.subr.bf16.mxu0 %v4399
      %5858 = vmatpush1.bf16.msra.mxu0 %v4398
      %5859 = vmatprep.subr.bf16.mxu0 %v5468
      %5860 = vmatpush1.bf16.msra.mxu0 %v5467
      %5861 = vmatprep.subr.bf16.mxu0 %v4951
      %5862 = vmatpush1.bf16.msra.mxu0 %v4950
      %5863 = vmatprep.subr.bf16.mxu0 %v4400
      %5864 = vmatpush1.bf16.msra.mxu0 %v4399
      %5865 = vmatprep.subr.bf16.mxu0 %v5469
      %5866 = vmatpush1.bf16.msra.mxu0 %v5468
      %5867 = vmatprep.subr.bf16.mxu0 %v4952
      %5868 = vmatpush1.bf16.msra.mxu0 %v4951
      %5869 = vmatprep.subr.bf16.mxu0 %v4401
      %5870 = vmatpush1.bf16.msra.mxu0 %v4400
      %5871 = vmatprep.subr.bf16.mxu0 %v5470
      %5872 = vmatpush1.bf16.msra.mxu0 %v5469
      %5873 = vmatprep.subr.bf16.mxu0 0
      %5874 = vmatpush1.bf16.msra.mxu0 0
      %5875 = vmatprep.subr.bf16.mxu0 0
      %5876 = vmatpush1.bf16.msra.mxu0 0
      %5877 = vmatprep.subr.bf16.mxu0 0
      %5878 = vmatpush1.bf16.msra.mxu0 0
      %5879 = vmatprep.subr.bf16.mxu0 0
      %5880 = vmatpush1.bf16.msra.mxu0 0
      %5881 = vmatprep.subr.bf16.mxu0 0
      %5882 = vmatpush1.bf16.msra.mxu0 0
      %5883 = vmatprep.subr.bf16.mxu0 0
      %5884 = vmatpush1.bf16.msra.mxu0 0
      %5885 = vmatprep.subr.bf16.mxu0 0
      %5886 = vmatpush1.bf16.msra.mxu0 0
      %5887 = vmatprep.mubr.bf16.mxu0 %v5509
      %5888 = vmatmul.mubr.bf16.gmra.mrb[0].mxu0 %v5504
      %v5889 = vpop.f32.mrb[0].mxu0
      %v5890 = vadd.f32 %v5491, %v5889
      %v5891 = vpop.f32.mrb[0].mxu0
      %v5892 = vadd.f32 %v5491, %v5891
      %v5893 = vpop.f32.mrb[0].mxu0
      %v5894 = vadd.f32 %v5496, %v5893
      %v5895 = vpop.f32.mrb[0].mxu0
      %v5896 = vadd.f32 %v5496, %v5895
      %5897 = vdwg.mxu0
      %5898 = vmatprep.subr.bf16.mxu0 %v4952
      %5899 = vmatpush1.bf16.msra.mxu0 %v4951
      %5900 = vmatprep.subr.bf16.mxu0 %v4401
      %5901 = vmatpush1.bf16.msra.mxu0 %v4400
      %5902 = vmatprep.subr.bf16.mxu0 %v5470
      %5903 = vmatpush1.bf16.msra.mxu0 %v5469
      %5904 = vmatprep.subr.bf16.mxu0 %v4953
      %5905 = vmatpush1.bf16.msra.mxu0 %v4952
      %5906 = vmatprep.subr.bf16.mxu0 %v4402
      %5907 = vmatpush1.bf16.msra.mxu0 %v4401
      %5908 = vmatprep.subr.bf16.mxu0 %v5471
      %5909 = vmatpush1.bf16.msra.mxu0 %v5470
      %5910 = vmatprep.subr.bf16.mxu0 %v4954
      %5911 = vmatpush1.bf16.msra.mxu0 %v4953
      %5912 = vmatprep.subr.bf16.mxu0 %v4403
      %5913 = vmatpush1.bf16.msra.mxu0 %v4402
      %5914 = vmatprep.subr.bf16.mxu0 %v5472
      %5915 = vmatpush1.bf16.msra.mxu0 %v5471
      %5916 = vmatprep.subr.bf16.mxu0 0
      %5917 = vmatpush1.bf16.msra.mxu0 0
      %5918 = vmatprep.subr.bf16.mxu0 0
      %5919 = vmatpush1.bf16.msra.mxu0 0
      %5920 = vmatprep.subr.bf16.mxu0 0
      %5921 = vmatpush1.bf16.msra.mxu0 0
      %5922 = vmatprep.subr.bf16.mxu0 0
      %5923 = vmatpush1.bf16.msra.mxu0 0
      %5924 = vmatprep.subr.bf16.mxu0 0
      %5925 = vmatpush1.bf16.msra.mxu0 0
      %5926 = vmatprep.subr.bf16.mxu0 0
      %5927 = vmatpush1.bf16.msra.mxu0 0
      %5928 = vmatprep.subr.bf16.mxu0 0
      %5929 = vmatpush1.bf16.msra.mxu0 0
      %5930 = vmatprep.mubr.bf16.mxu0 %v5509
      %5931 = vmatmul.mubr.bf16.gmra.mrb[0].mxu0 %v5504
      %v5932 = vpop.f32.mrb[0].mxu0
      %v5933 = vadd.f32 %v5491, %v5932
      %v5934 = vpop.f32.mrb[0].mxu0
      %v5935 = vadd.f32 %v5491, %v5934
      %v5936 = vpop.f32.mrb[0].mxu0
      %v5937 = vadd.f32 %v5496, %v5936
      %v5938 = vpop.f32.mrb[0].mxu0
      %v5939 = vadd.f32 %v5496, %v5938
      %5940 = vdwg.mxu0
      %5941 = vmatprep.subr.bf16.mxu0 %v4954
      %5942 = vmatpush1.bf16.msra.mxu0 %v4953
      %5943 = vmatprep.subr.bf16.mxu0 %v4403
      %5944 = vmatpush1.bf16.msra.mxu0 %v4402
      %5945 = vmatprep.subr.bf16.mxu0 %v5472
      %5946 = vmatpush1.bf16.msra.mxu0 %v5471
      %5947 = vmatprep.subr.bf16.mxu0 %v4955
      %5948 = vmatpush1.bf16.msra.mxu0 %v4954
      %5949 = vmatprep.subr.bf16.mxu0 %v4404
      %5950 = vmatpush1.bf16.msra.mxu0 %v4403
      %5951 = vmatprep.subr.bf16.mxu0 %v5473
      %5952 = vmatpush1.bf16.msra.mxu0 %v5472
      %5953 = vmatprep.subr.bf16.mxu0 %v4956
      %5954 = vmatpush1.bf16.msra.mxu0 %v4955
      %5955 = vmatprep.subr.bf16.mxu0 %v4405
      %5956 = vmatpush1.bf16.msra.mxu0 %v4404
      %5957 = vmatprep.subr.bf16.mxu0 %v5474
      %5958 = vmatpush1.bf16.msra.mxu0 %v5473
      %5959 = vmatprep.subr.bf16.mxu0 0
      %5960 = vmatpush1.bf16.msra.mxu0 0
      %5961 = vmatprep.subr.bf16.mxu0 0
      %5962 = vmatpush1.bf16.msra.mxu0 0
      %5963 = vmatprep.subr.bf16.mxu0 0
      %5964 = vmatpush1.bf16.msra.mxu0 0
      %5965 = vmatprep.subr.bf16.mxu0 0
      %5966 = vmatpush1.bf16.msra.mxu0 0
      %5967 = vmatprep.subr.bf16.mxu0 0
      %5968 = vmatpush1.bf16.msra.mxu0 0
      %5969 = vmatprep.subr.bf16.mxu0 0
      %5970 = vmatpush1.bf16.msra.mxu0 0
      %5971 = vmatprep.subr.bf16.mxu0 0
      %5972 = vmatpush1.bf16.msra.mxu0 0
      %5973 = vmatprep.mubr.bf16.mxu0 %v5509
      %5974 = vmatmul.mubr.bf16.gmra.mrb[0].mxu0 %v5504
      %v5975 = vpop.f32.mrb[0].mxu0
      %v5976 = vadd.f32 %v5491, %v5975
      %v5977 = vpop.f32.mrb[0].mxu0
      %v5978 = vadd.f32 %v5491, %v5977
      %v5979 = vpop.f32.mrb[0].mxu0
      %v5980 = vadd.f32 %v5496, %v5979
      %v5981 = vpop.f32.mrb[0].mxu0
      %v5982 = vadd.f32 %v5496, %v5981
      %5983 = vdwg.mxu0
      %5984 = vmatprep.subr.bf16.mxu0 %v4956
      %5985 = vmatpush1.bf16.msra.mxu0 %v4955
      %5986 = vmatprep.subr.bf16.mxu0 %v4405
      %5987 = vmatpush1.bf16.msra.mxu0 %v4404
      %5988 = vmatprep.subr.bf16.mxu0 %v5474
      %5989 = vmatpush1.bf16.msra.mxu0 %v5473
      %5990 = vmatprep.subr.bf16.mxu0 %v4957
      %5991 = vmatpush1.bf16.msra.mxu0 %v4956
      %5992 = vmatprep.subr.bf16.mxu0 %v4406
      %5993 = vmatpush1.bf16.msra.mxu0 %v4405
      %5994 = vmatprep.subr.bf16.mxu0 %v5475
      %5995 = vmatpush1.bf16.msra.mxu0 %v5474
      %5996 = vmatprep.subr.bf16.mxu0 %v4958
      %5997 = vmatpush1.bf16.msra.mxu0 %v4957
      %5998 = vmatprep.subr.bf16.mxu0 %v4407
      %5999 = vmatpush1.bf16.msra.mxu0 %v4406
      %6000 = vmatprep.subr.bf16.mxu0 %v5476
      %6001 = vmatpush1.bf16.msra.mxu0 %v5475
      %6002 = vmatprep.subr.bf16.mxu0 0
      %6003 = vmatpush1.bf16.msra.mxu0 0
      %6004 = vmatprep.subr.bf16.mxu0 0
      %6005 = vmatpush1.bf16.msra.mxu0 0
      %6006 = vmatprep.subr.bf16.mxu0 0
      %6007 = vmatpush1.bf16.msra.mxu0 0
      %6008 = vmatprep.subr.bf16.mxu0 0
      %6009 = vmatpush1.bf16.msra.mxu0 0
      %6010 = vmatprep.subr.bf16.mxu0 0
      %6011 = vmatpush1.bf16.msra.mxu0 0
      %6012 = vmatprep.subr.bf16.mxu0 0
      %6013 = vmatpush1.bf16.msra.mxu0 0
      %6014 = vmatprep.subr.bf16.mxu0 0
      %6015 = vmatpush1.bf16.msra.mxu0 0
      %6016 = vmatprep.mubr.bf16.mxu0 %v5509
      %6017 = vmatmul.mubr.bf16.gmra.mrb[0].mxu0 %v5504
      %v6018 = vpop.f32.mrb[0].mxu0
      %v6019 = vadd.f32 %v5491, %v6018
      %v6020 = vpop.f32.mrb[0].mxu0
      %v6021 = vadd.f32 %v5491, %v6020
      %v6022 = vpop.f32.mrb[0].mxu0
      %v6023 = vadd.f32 %v5496, %v6022
      %v6024 = vpop.f32.mrb[0].mxu0
      %v6025 = vadd.f32 %v5496, %v6024
      %6026 = vdwg.mxu0
      %6027 = vmatprep.subr.bf16.mxu0 %v4958
      %6028 = vmatpush1.bf16.msra.mxu0 %v4957
      %6029 = vmatprep.subr.bf16.mxu0 %v4407
      %6030 = vmatpush1.bf16.msra.mxu0 %v4406
      %6031 = vmatprep.subr.bf16.mxu0 %v5476
      %6032 = vmatpush1.bf16.msra.mxu0 %v5475
      %6033 = vmatprep.subr.bf16.mxu0 %v4959
      %6034 = vmatpush1.bf16.msra.mxu0 %v4958
      %6035 = vmatprep.subr.bf16.mxu0 %v4408
      %6036 = vmatpush1.bf16.msra.mxu0 %v4407
      %6037 = vmatprep.subr.bf16.mxu0 %v5477
      %6038 = vmatpush1.bf16.msra.mxu0 %v5476
      %6039 = vmatprep.subr.bf16.mxu0 %v4960
      %6040 = vmatpush1.bf16.msra.mxu0 %v4959
      %6041 = vmatprep.subr.bf16.mxu0 %v4409
      %6042 = vmatpush1.bf16.msra.mxu0 %v4408
      %6043 = vmatprep.subr.bf16.mxu0 %v5478
      %6044 = vmatpush1.bf16.msra.mxu0 %v5477
      %6045 = vmatprep.subr.bf16.mxu0 0
      %6046 = vmatpush1.bf16.msra.mxu0 0
      %6047 = vmatprep.subr.bf16.mxu0 0
      %6048 = vmatpush1.bf16.msra.mxu0 0
      %6049 = vmatprep.subr.bf16.mxu0 0
      %6050 = vmatpush1.bf16.msra.mxu0 0
      %6051 = vmatprep.subr.bf16.mxu0 0
      %6052 = vmatpush1.bf16.msra.mxu0 0
      %6053 = vmatprep.subr.bf16.mxu0 0
      %6054 = vmatpush1.bf16.msra.mxu0 0
      %6055 = vmatprep.subr.bf16.mxu0 0
      %6056 = vmatpush1.bf16.msra.mxu0 0
      %6057 = vmatprep.subr.bf16.mxu0 0
      %6058 = vmatpush1.bf16.msra.mxu0 0
      %6059 = vmatprep.mubr.bf16.mxu0 %v5509
      %6060 = vmatmul.mubr.bf16.gmra.mrb[0].mxu0 %v5504
      %v6061 = vpop.f32.mrb[0].mxu0
      %v6062 = vadd.f32 %v5491, %v6061
      %v6063 = vpop.f32.mrb[0].mxu0
      %v6064 = vadd.f32 %v5491, %v6063
      %v6065 = vpop.f32.mrb[0].mxu0
      %v6066 = vadd.f32 %v5496, %v6065
      %v6067 = vpop.f32.mrb[0].mxu0
      %v6068 = vadd.f32 %v5496, %v6067
      %6069 = vdwg.mxu0
      %6070 = vmatprep.subr.bf16.mxu0 %v4960
      %6071 = vmatpush1.bf16.msra.mxu0 %v4959
      %6072 = vmatprep.subr.bf16.mxu0 %v4409
      %6073 = vmatpush1.bf16.msra.mxu0 %v4408
      %6074 = vmatprep.subr.bf16.mxu0 %v5478
      %6075 = vmatpush1.bf16.msra.mxu0 %v5477
      %6076 = vmatprep.subr.bf16.mxu0 %v4961
      %6077 = vmatpush1.bf16.msra.mxu0 %v4960
      %6078 = vmatprep.subr.bf16.mxu0 %v4410
      %6079 = vmatpush1.bf16.msra.mxu0 %v4409
      %6080 = vmatprep.subr.bf16.mxu0 %v5479
      %6081 = vmatpush1.bf16.msra.mxu0 %v5478
      %6082 = vmatprep.subr.bf16.mxu0 %v4962
      %6083 = vmatpush1.bf16.msra.mxu0 %v4961
      %6084 = vmatprep.subr.bf16.mxu0 %v4411
      %6085 = vmatpush1.bf16.msra.mxu0 %v4410
      %6086 = vmatprep.subr.bf16.mxu0 %v5480
      %6087 = vmatpush1.bf16.msra.mxu0 %v5479
      %6088 = vmatprep.subr.bf16.mxu0 0
      %6089 = vmatpush1.bf16.msra.mxu0 0
      %6090 = vmatprep.subr.bf16.mxu0 0
      %6091 = vmatpush1.bf16.msra.mxu0 0
      %6092 = vmatprep.subr.bf16.mxu0 0
      %6093 = vmatpush1.bf16.msra.mxu0 0
      %6094 = vmatprep.subr.bf16.mxu0 0
      %6095 = vmatpush1.bf16.msra.mxu0 0
      %6096 = vmatprep.subr.bf16.mxu0 0
      %6097 = vmatpush1.bf16.msra.mxu0 0
      %6098 = vmatprep.subr.bf16.mxu0 0
      %6099 = vmatpush1.bf16.msra.mxu0 0
      %6100 = vmatprep.subr.bf16.mxu0 0
      %6101 = vmatpush1.bf16.msra.mxu0 0
      %6102 = vmatprep.mubr.bf16.mxu0 %v5509
      %6103 = vmatmul.mubr.bf16.gmra.mrb[0].mxu0 %v5504
      %v6104 = vpop.f32.mrb[0].mxu0
      %v6105 = vadd.f32 %v5491, %v6104
      %v6106 = vpop.f32.mrb[0].mxu0
      %v6107 = vadd.f32 %v5491, %v6106
      %v6108 = vpop.f32.mrb[0].mxu0
      %v6109 = vadd.f32 %v5496, %v6108
      %v6110 = vpop.f32.mrb[0].mxu0
      %v6111 = vadd.f32 %v5496, %v6110
      %6112 = vdwg.mxu0
      %6113 = vmatprep.subr.bf16.mxu0 %v4962
      %6114 = vmatpush1.bf16.msra.mxu0 %v4961
      %6115 = vmatprep.subr.bf16.mxu0 %v4411
      %6116 = vmatpush1.bf16.msra.mxu0 %v4410
      %6117 = vmatprep.subr.bf16.mxu0 %v5480
      %6118 = vmatpush1.bf16.msra.mxu0 %v5479
      %6119 = vmatprep.subr.bf16.mxu0 %v4963
      %6120 = vmatpush1.bf16.msra.mxu0 %v4962
      %6121 = vmatprep.subr.bf16.mxu0 %v4412
      %6122 = vmatpush1.bf16.msra.mxu0 %v4411
      %6123 = vmatprep.subr.bf16.mxu0 %v5481
      %6124 = vmatpush1.bf16.msra.mxu0 %v5480
      %6125 = vmatprep.subr.bf16.mxu0 %v4964
      %6126 = vmatpush1.bf16.msra.mxu0 %v4963
      %6127 = vmatprep.subr.bf16.mxu0 %v4413
      %6128 = vmatpush1.bf16.msra.mxu0 %v4412
      %6129 = vmatprep.subr.bf16.mxu0 %v5482
      %6130 = vmatpush1.bf16.msra.mxu0 %v5481
      %6131 = vmatprep.subr.bf16.mxu0 0
      %6132 = vmatpush1.bf16.msra.mxu0 0
      %6133 = vmatprep.subr.bf16.mxu0 0
      %6134 = vmatpush1.bf16.msra.mxu0 0
      %6135 = vmatprep.subr.bf16.mxu0 0
      %6136 = vmatpush1.bf16.msra.mxu0 0
      %6137 = vmatprep.subr.bf16.mxu0 0
      %6138 = vmatpush1.bf16.msra.mxu0 0
      %6139 = vmatprep.subr.bf16.mxu0 0
      %6140 = vmatpush1.bf16.msra.mxu0 0
      %6141 = vmatprep.subr.bf16.mxu0 0
      %6142 = vmatpush1.bf16.msra.mxu0 0
      %6143 = vmatprep.subr.bf16.mxu0 0
      %6144 = vmatpush1.bf16.msra.mxu0 0
      %6145 = vmatprep.mubr.bf16.mxu0 %v5509
      %6146 = vmatmul.mubr.bf16.gmra.mrb[0].mxu0 %v5504
      %v6147 = vpop.f32.mrb[0].mxu0
      %v6148 = vadd.f32 %v5491, %v6147
      %v6149 = vpop.f32.mrb[0].mxu0
      %v6150 = vadd.f32 %v5491, %v6149
      %v6151 = vpop.f32.mrb[0].mxu0
      %v6152 = vadd.f32 %v5496, %v6151
      %v6153 = vpop.f32.mrb[0].mxu0
      %v6154 = vadd.f32 %v5496, %v6153
      %6155 = vdwg.mxu0
      %6156 = vmatprep.subr.bf16.mxu0 %v4964
      %6157 = vmatpush1.bf16.msra.mxu0 %v4963
      %6158 = vmatprep.subr.bf16.mxu0 %v4413
      %6159 = vmatpush1.bf16.msra.mxu0 %v4412
      %6160 = vmatprep.subr.bf16.mxu0 %v5482
      %6161 = vmatpush1.bf16.msra.mxu0 %v5481
      %6162 = vmatprep.subr.bf16.mxu0 %v4965
      %6163 = vmatpush1.bf16.msra.mxu0 %v4964
      %6164 = vmatprep.subr.bf16.mxu0 %v4414
      %6165 = vmatpush1.bf16.msra.mxu0 %v4413
      %6166 = vmatprep.subr.bf16.mxu0 %v5483
      %6167 = vmatpush1.bf16.msra.mxu0 %v5482
      %6168 = vmatprep.subr.bf16.mxu0 0
      %6169 = vmatpush1.bf16.msra.mxu0 %v4965
      %6170 = vmatprep.subr.bf16.mxu0 0
      %6171 = vmatpush1.bf16.msra.mxu0 %v4414
      %6172 = vmatprep.subr.bf16.mxu0 0
      %6173 = vmatpush1.bf16.msra.mxu0 %v5483
      %6174 = vmatprep.subr.bf16.mxu0 0
      %6175 = vmatpush1.bf16.msra.mxu0 0
      %6176 = vmatprep.subr.bf16.mxu0 0
      %6177 = vmatpush1.bf16.msra.mxu0 0
      %6178 = vmatprep.subr.bf16.mxu0 0
      %6179 = vmatpush1.bf16.msra.mxu0 0
      %6180 = vmatprep.subr.bf16.mxu0 0
      %6181 = vmatpush1.bf16.msra.mxu0 0
      %6182 = vmatprep.subr.bf16.mxu0 0
      %6183 = vmatpush1.bf16.msra.mxu0 0
      %6184 = vmatprep.subr.bf16.mxu0 0
      %6185 = vmatpush1.bf16.msra.mxu0 0
      %6186 = vmatprep.subr.bf16.mxu0 0
      %6187 = vmatpush1.bf16.msra.mxu0 0
      %6188 = vmatprep.mubr.bf16.mxu0 %v5509
      %6189 = vmatmul.mubr.bf16.gmra.mrb[0].mxu0 %v5504
      %v6190 = vpop.f32.mrb[0].mxu0
      %v6191 = vadd.f32 %v5491, %v6190
      %v6192 = vpop.f32.mrb[0].mxu0
      %v6193 = vadd.f32 %v5491, %v6192
      %v6194 = vpop.f32.mrb[0].mxu0
      %v6195 = vadd.f32 %v5496, %v6194
      %v6196 = vpop.f32.mrb[0].mxu0
      %v6197 = vadd.f32 %v5496, %v6196
      %6198 = vdwg.mxu0
      %v6199 = vmax.f32 %v5546, 0.0
      %v6200 = vmax.f32 %v5548, 0.0
      %v6201 = vmax.f32 %v5589, 0.0
      %v6202 = vmax.f32 %v5591, 0.0
      %v6203 = vmax.f32 %v5632, 0.0
      %v6204 = vmax.f32 %v5634, 0.0
      %v6205 = vmax.f32 %v5675, 0.0
      %v6206 = vmax.f32 %v5677, 0.0
      %v6207 = vmax.f32 %v5718, 0.0
      %v6208 = vmax.f32 %v5720, 0.0
      %v6209 = vmax.f32 %v5761, 0.0
      %v6210 = vmax.f32 %v5763, 0.0
      %v6211 = vmax.f32 %v5804, 0.0
      %v6212 = vmax.f32 %v5806, 0.0
      %v6213 = vmax.f32 %v5847, 0.0
      %v6214 = vmax.f32 %v5849, 0.0
      %v6215 = vmax.f32 %v5890, 0.0
      %v6216 = vmax.f32 %v5892, 0.0
      %v6217 = vmax.f32 %v5933, 0.0
      %v6218 = vmax.f32 %v5935, 0.0
      %v6219 = vmax.f32 %v5976, 0.0
      %v6220 = vmax.f32 %v5978, 0.0
      %v6221 = vmax.f32 %v6019, 0.0
      %v6222 = vmax.f32 %v6021, 0.0
      %v6223 = vmax.f32 %v6062, 0.0
      %v6224 = vmax.f32 %v6064, 0.0
      %v6225 = vmax.f32 %v6105, 0.0
      %v6226 = vmax.f32 %v6107, 0.0
      %v6227 = vmax.f32 %v6148, 0.0
      %v6228 = vmax.f32 %v6150, 0.0
      %v6229 = vmax.f32 %v6191, 0.0
      %v6230 = vmax.f32 %v6193, 0.0
      %v6231 = vmax.f32 %v5550, 0.0
      %v6232 = vmax.f32 %v5552, 0.0
      %v6233 = vmax.f32 %v5593, 0.0
      %v6234 = vmax.f32 %v5595, 0.0
      %v6235 = vmax.f32 %v5636, 0.0
      %v6236 = vmax.f32 %v5638, 0.0
      %v6237 = vmax.f32 %v5679, 0.0
      %v6238 = vmax.f32 %v5681, 0.0
      %v6239 = vmax.f32 %v5722, 0.0
      %v6240 = vmax.f32 %v5724, 0.0
      %v6241 = vmax.f32 %v5765, 0.0
      %v6242 = vmax.f32 %v5767, 0.0
      %v6243 = vmax.f32 %v5808, 0.0
      %v6244 = vmax.f32 %v5810, 0.0
      %v6245 = vmax.f32 %v5851, 0.0
      %v6246 = vmax.f32 %v5853, 0.0
      %v6247 = vmax.f32 %v5894, 0.0
      %v6248 = vmax.f32 %v5896, 0.0
      %v6249 = vmax.f32 %v5937, 0.0
      %v6250 = vmax.f32 %v5939, 0.0
      %v6251 = vmax.f32 %v5980, 0.0
      %v6252 = vmax.f32 %v5982, 0.0
      %v6253 = vmax.f32 %v6023, 0.0
      %v6254 = vmax.f32 %v6025, 0.0
      %v6255 = vmax.f32 %v6066, 0.0
      %v6256 = vmax.f32 %v6068, 0.0
      %v6257 = vmax.f32 %v6109, 0.0
      %v6258 = vmax.f32 %v6111, 0.0
      %v6259 = vmax.f32 %v6152, 0.0
      %v6260 = vmax.f32 %v6154, 0.0
      %v6261 = vmax.f32 %v6195, 0.0
      %v6262 = vmax.f32 %v6197, 0.0
      %v6263 = vld [vmem:[%s7] sm:$0xff]
      %v6264 = vld [vmem:[%s7 + $0x8] sm:$0xff]
      %6266 = vset.pattern.permute.xlu0 0
      %6267 = vperm.xlu0 %6266, %v6263
      %v6268 = vpop.permute.xlu0 %6267
      %6271 = vset.pattern.permute.xlu0 0
      %6272 = vperm.xlu0 %6271, %v6264
      %v6273 = vpop.permute.xlu0 %6272
      %v6275 = vmul.f32 %v6199, %v6268
      %v6276 = vmul.f32 %v6200, %v6268
      %v6277 = vmul.f32 %v6201, %v6268
      %v6278 = vmul.f32 %v6202, %v6268
      %v6279 = vmul.f32 %v6203, %v6268
      %v6280 = vmul.f32 %v6204, %v6268
      %v6281 = vmul.f32 %v6205, %v6268
      %v6282 = vmul.f32 %v6206, %v6268
      %v6283 = vmul.f32 %v6207, %v6268
      %v6284 = vmul.f32 %v6208, %v6268
      %v6285 = vmul.f32 %v6209, %v6268
      %v6286 = vmul.f32 %v6210, %v6268
      %v6287 = vmul.f32 %v6211, %v6268
      %v6288 = vmul.f32 %v6212, %v6268
      %v6289 = vmul.f32 %v6213, %v6268
      %v6290 = vmul.f32 %v6214, %v6268
      %v6291 = vmul.f32 %v6215, %v6268
      %v6292 = vmul.f32 %v6216, %v6268
      %v6293 = vmul.f32 %v6217, %v6268
      %v6294 = vmul.f32 %v6218, %v6268
      %v6295 = vmul.f32 %v6219, %v6268
      %v6296 = vmul.f32 %v6220, %v6268
      %v6297 = vmul.f32 %v6221, %v6268
      %v6298 = vmul.f32 %v6222, %v6268
      %v6299 = vmul.f32 %v6223, %v6268
      %v6300 = vmul.f32 %v6224, %v6268
      %v6301 = vmul.f32 %v6225, %v6268
      %v6302 = vmul.f32 %v6226, %v6268
      %v6303 = vmul.f32 %v6227, %v6268
      %v6304 = vmul.f32 %v6228, %v6268
      %v6305 = vmul.f32 %v6229, %v6268
      %v6306 = vmul.f32 %v6230, %v6268
      %v6307 = vmul.f32 %v6231, %v6273
      %v6308 = vmul.f32 %v6232, %v6273
      %v6309 = vmul.f32 %v6233, %v6273
      %v6310 = vmul.f32 %v6234, %v6273
      %v6311 = vmul.f32 %v6235, %v6273
      %v6312 = vmul.f32 %v6236, %v6273
      %v6313 = vmul.f32 %v6237, %v6273
      %v6314 = vmul.f32 %v6238, %v6273
      %v6315 = vmul.f32 %v6239, %v6273
      %v6316 = vmul.f32 %v6240, %v6273
      %v6317 = vmul.f32 %v6241, %v6273
      %v6318 = vmul.f32 %v6242, %v6273
      %v6319 = vmul.f32 %v6243, %v6273
      %v6320 = vmul.f32 %v6244, %v6273
      %v6321 = vmul.f32 %v6245, %v6273
      %v6322 = vmul.f32 %v6246, %v6273
      %v6323 = vmul.f32 %v6247, %v6273
      %v6324 = vmul.f32 %v6248, %v6273
      %v6325 = vmul.f32 %v6249, %v6273
      %v6326 = vmul.f32 %v6250, %v6273
      %v6327 = vmul.f32 %v6251, %v6273
      %v6328 = vmul.f32 %v6252, %v6273
      %v6329 = vmul.f32 %v6253, %v6273
      %v6330 = vmul.f32 %v6254, %v6273
      %v6331 = vmul.f32 %v6255, %v6273
      %v6332 = vmul.f32 %v6256, %v6273
      %v6333 = vmul.f32 %v6257, %v6273
      %v6334 = vmul.f32 %v6258, %v6273
      %v6335 = vmul.f32 %v6259, %v6273
      %v6336 = vmul.f32 %v6260, %v6273
      %v6337 = vmul.f32 %v6261, %v6273
      %v6338 = vmul.f32 %v6262, %v6273
      %v6339 = vld [vmem:[%s8] sm:$0xff]
      %v6340 = vld [vmem:[%s8 + $0x8] sm:$0xff]
      %6342 = vset.pattern.permute.xlu0 0
      %6343 = vperm.xlu0 %6342, %v6339
      %v6344 = vpop.permute.xlu0 %6343
      %6347 = vset.pattern.permute.xlu0 0
      %6348 = vperm.xlu0 %6347, %v6340
      %v6349 = vpop.permute.xlu0 %6348
      %v6351 = vadd.f32 %v6275, %v6344
      %v6352 = vadd.f32 %v6276, %v6344
      %v6353 = vadd.f32 %v6277, %v6344
      %v6354 = vadd.f32 %v6278, %v6344
      %v6355 = vadd.f32 %v6279, %v6344
      %v6356 = vadd.f32 %v6280, %v6344
      %v6357 = vadd.f32 %v6281, %v6344
      %v6358 = vadd.f32 %v6282, %v6344
      %v6359 = vadd.f32 %v6283, %v6344
      %v6360 = vadd.f32 %v6284, %v6344
      %v6361 = vadd.f32 %v6285, %v6344
      %v6362 = vadd.f32 %v6286, %v6344
      %v6363 = vadd.f32 %v6287, %v6344
      %v6364 = vadd.f32 %v6288, %v6344
      %v6365 = vadd.f32 %v6289, %v6344
      %v6366 = vadd.f32 %v6290, %v6344
      %v6367 = vadd.f32 %v6291, %v6344
      %v6368 = vadd.f32 %v6292, %v6344
      %v6369 = vadd.f32 %v6293, %v6344
      %v6370 = vadd.f32 %v6294, %v6344
      %v6371 = vadd.f32 %v6295, %v6344
      %v6372 = vadd.f32 %v6296, %v6344
      %v6373 = vadd.f32 %v6297, %v6344
      %v6374 = vadd.f32 %v6298, %v6344
      %v6375 = vadd.f32 %v6299, %v6344
      %v6376 = vadd.f32 %v6300, %v6344
      %v6377 = vadd.f32 %v6301, %v6344
      %v6378 = vadd.f32 %v6302, %v6344
      %v6379 = vadd.f32 %v6303, %v6344
      %v6380 = vadd.f32 %v6304, %v6344
      %v6381 = vadd.f32 %v6305, %v6344
      %v6382 = vadd.f32 %v6306, %v6344
      %v6383 = vadd.f32 %v6307, %v6349
      %v6384 = vadd.f32 %v6308, %v6349
      %v6385 = vadd.f32 %v6309, %v6349
      %v6386 = vadd.f32 %v6310, %v6349
      %v6387 = vadd.f32 %v6311, %v6349
      %v6388 = vadd.f32 %v6312, %v6349
      %v6389 = vadd.f32 %v6313, %v6349
      %v6390 = vadd.f32 %v6314, %v6349
      %v6391 = vadd.f32 %v6315, %v6349
      %v6392 = vadd.f32 %v6316, %v6349
      %v6393 = vadd.f32 %v6317, %v6349
      %v6394 = vadd.f32 %v6318, %v6349
      %v6395 = vadd.f32 %v6319, %v6349
      %v6396 = vadd.f32 %v6320, %v6349
      %v6397 = vadd.f32 %v6321, %v6349
      %v6398 = vadd.f32 %v6322, %v6349
      %v6399 = vadd.f32 %v6323, %v6349
      %v6400 = vadd.f32 %v6324, %v6349
      %v6401 = vadd.f32 %v6325, %v6349
      %v6402 = vadd.f32 %v6326, %v6349
      %v6403 = vadd.f32 %v6327, %v6349
      %v6404 = vadd.f32 %v6328, %v6349
      %v6405 = vadd.f32 %v6329, %v6349
      %v6406 = vadd.f32 %v6330, %v6349
      %v6407 = vadd.f32 %v6331, %v6349
      %v6408 = vadd.f32 %v6332, %v6349
      %v6409 = vadd.f32 %v6333, %v6349
      %v6410 = vadd.f32 %v6334, %v6349
      %v6411 = vadd.f32 %v6335, %v6349
      %v6412 = vadd.f32 %v6336, %v6349
      %v6413 = vadd.f32 %v6337, %v6349
      %v6414 = vadd.f32 %v6338, %v6349
      %v6415 = vmax.f32 %v6351, %v6352
      %v6416 = vmax.f32 %v6353, %v6354
      %v6417 = vmax.f32 %v6355, %v6356
      %v6418 = vmax.f32 %v6357, %v6358
      %v6419 = vmax.f32 %v6359, %v6360
      %v6420 = vmax.f32 %v6361, %v6362
      %v6421 = vmax.f32 %v6363, %v6364
      %v6422 = vmax.f32 %v6365, %v6366
      %v6423 = vmax.f32 %v6367, %v6368
      %v6424 = vmax.f32 %v6369, %v6370
      %v6425 = vmax.f32 %v6371, %v6372
      %v6426 = vmax.f32 %v6373, %v6374
      %v6427 = vmax.f32 %v6375, %v6376
      %v6428 = vmax.f32 %v6377, %v6378
      %v6429 = vmax.f32 %v6379, %v6380
      %v6430 = vmax.f32 %v6381, %v6382
      %v6431 = vmax.f32 %v6383, %v6384
      %v6432 = vmax.f32 %v6385, %v6386
      %v6433 = vmax.f32 %v6387, %v6388
      %v6434 = vmax.f32 %v6389, %v6390
      %v6435 = vmax.f32 %v6391, %v6392
      %v6436 = vmax.f32 %v6393, %v6394
      %v6437 = vmax.f32 %v6395, %v6396
      %v6438 = vmax.f32 %v6397, %v6398
      %v6439 = vmax.f32 %v6399, %v6400
      %v6440 = vmax.f32 %v6401, %v6402
      %v6441 = vmax.f32 %v6403, %v6404
      %v6442 = vmax.f32 %v6405, %v6406
      %v6443 = vmax.f32 %v6407, %v6408
      %v6444 = vmax.f32 %v6409, %v6410
      %v6445 = vmax.f32 %v6411, %v6412
      %v6446 = vmax.f32 %v6413, %v6414
      %v6447 = vpack.c.bf16 %v6431, %v6415
      %v6448 = vpack.c.bf16 %v6432, %v6416
      %v6449 = vpack.c.bf16 %v6433, %v6417
      %v6450 = vpack.c.bf16 %v6434, %v6418
      %v6451 = vpack.c.bf16 %v6435, %v6419
      %v6452 = vpack.c.bf16 %v6436, %v6420
      %v6453 = vpack.c.bf16 %v6437, %v6421
      %v6454 = vpack.c.bf16 %v6438, %v6422
      %v6455 = vpack.c.bf16 %v6439, %v6423
      %v6456 = vpack.c.bf16 %v6440, %v6424
      %v6457 = vpack.c.bf16 %v6441, %v6425
      %v6458 = vpack.c.bf16 %v6442, %v6426
      %v6459 = vpack.c.bf16 %v6443, %v6427
      %v6460 = vpack.c.bf16 %v6444, %v6428
      %v6461 = vpack.c.bf16 %v6445, %v6429
      %v6462 = vpack.c.bf16 %v6446, %v6430
      %6479 = vrot.lane.b32.xlu0 %v6447, 1
      %v6480 = vpop.permute.xlu0 %6479
      %6481 = vrot.lane.b32.xlu0 %v6448, 1
      %v6482 = vpop.permute.xlu0 %6481
      %6483 = vrot.lane.b32.xlu0 %v6449, 1
      %v6484 = vpop.permute.xlu0 %6483
      %6485 = vrot.lane.b32.xlu0 %v6450, 1
      %v6486 = vpop.permute.xlu0 %6485
      %6487 = vrot.lane.b32.xlu0 %v6451, 1
      %v6488 = vpop.permute.xlu0 %6487
      %6489 = vrot.lane.b32.xlu0 %v6452, 1
      %v6490 = vpop.permute.xlu0 %6489
      %6491 = vrot.lane.b32.xlu0 %v6453, 1
      %v6492 = vpop.permute.xlu0 %6491
      %6493 = vrot.lane.b32.xlu0 %v6454, 1
      %v6494 = vpop.permute.xlu0 %6493
      %6495 = vrot.lane.b32.xlu0 %v6455, 1
      %v6496 = vpop.permute.xlu0 %6495
      %6497 = vrot.lane.b32.xlu0 %v6456, 1
      %v6498 = vpop.permute.xlu0 %6497
      %6499 = vrot.lane.b32.xlu0 %v6457, 1
      %v6500 = vpop.permute.xlu0 %6499
      %6501 = vrot.lane.b32.xlu0 %v6458, 1
      %v6502 = vpop.permute.xlu0 %6501
      %6503 = vrot.lane.b32.xlu0 %v6459, 1
      %v6504 = vpop.permute.xlu0 %6503
      %6505 = vrot.lane.b32.xlu0 %v6460, 1
      %v6506 = vpop.permute.xlu0 %6505
      %6507 = vrot.lane.b32.xlu0 %v6461, 1
      %v6508 = vpop.permute.xlu0 %6507
      %6509 = vrot.lane.b32.xlu0 %v6462, 1
      %v6510 = vpop.permute.xlu0 %6509
      %v6511 = vsel %vm4511, %v6480, %v6482
      %v6512 = vsel %vm4511, %v6482, %v6484
      %v6513 = vsel %vm4511, %v6484, %v6486
      %v6514 = vsel %vm4511, %v6486, %v6488
      %v6515 = vsel %vm4511, %v6488, %v6490
      %v6516 = vsel %vm4511, %v6490, %v6492
      %v6517 = vsel %vm4511, %v6492, %v6494
      %v6518 = vsel %vm4511, %v6494, %v6496
      %v6519 = vsel %vm4511, %v6496, %v6498
      %v6520 = vsel %vm4511, %v6498, %v6500
      %v6521 = vsel %vm4511, %v6500, %v6502
      %v6522 = vsel %vm4511, %v6502, %v6504
      %v6523 = vsel %vm4511, %v6504, %v6506
      %v6524 = vsel %vm4511, %v6506, %v6508
      %v6525 = vsel %vm4511, %v6508, %v6510
      %v6542 = vsel %vm1152, 0, %v6480
      %v6544 = vld [vmem:[%s1186] ss:$8 sm:$0xf]
      %v6545 = vld [vmem:[%s1186] ss:$8 sm:$0xf0]
      %v6546 = vor.u32 %v6544, %v6545
      %v6547 = vld [vmem:[%s1190] ss:$8 sm:$0xf]
      %v6548 = vld [vmem:[%s1190] ss:$8 sm:$0xf0]
      %v6549 = vor.u32 %v6547, %v6548
      %vm6550 = vcmp.gt.f32.partialorder %v6546, 0.5
      %vm6551 = vcmp.gt.f32.partialorder %v6549, 0.5
      %v6552 = vsel %vm6550, 1, 0
      %v6553 = vsel %vm6551, 1, 0
      %v6554 = vlaneseq
      %v6555 = vshrl.u32 %v6554, 7
      %v6556 = vsub.s32 0, %v6555
      %v6557 = vrot.slane %v6552, %v6556
      %v6558 = vlaneseq
      %v6559 = vshrl.u32 %v6558, 7
      %v6560 = vsub.s32 1, %v6559
      %v6561 = vrot.slane %v6552, %v6560
      %v6562 = vlaneseq
      %v6563 = vshrl.u32 %v6562, 7
      %v6564 = vsub.s32 2, %v6563
      %v6565 = vrot.slane %v6552, %v6564
      %v6566 = vlaneseq
      %v6567 = vshrl.u32 %v6566, 7
      %v6568 = vsub.s32 3, %v6567
      %v6569 = vrot.slane %v6552, %v6568
      %v6570 = vlaneseq
      %v6571 = vshrl.u32 %v6570, 7
      %v6572 = vsub.s32 4, %v6571
      %v6573 = vrot.slane %v6552, %v6572
      %v6574 = vlaneseq
      %v6575 = vshrl.u32 %v6574, 7
      %v6576 = vsub.s32 5, %v6575
      %v6577 = vrot.slane %v6552, %v6576
      %v6578 = vlaneseq
      %v6579 = vshrl.u32 %v6578, 7
      %v6580 = vsub.s32 6, %v6579
      %v6581 = vrot.slane %v6552, %v6580
      %v6582 = vlaneseq
      %v6583 = vshrl.u32 %v6582, 7
      %v6584 = vsub.s32 7, %v6583
      %v6585 = vrot.slane %v6552, %v6584
      %v6586 = vlaneseq
      %v6587 = vshrl.u32 %v6586, 7
      %v6588 = vsub.s32 0, %v6587
      %v6589 = vrot.slane %v6553, %v6588
      %v6590 = vlaneseq
      %v6591 = vshrl.u32 %v6590, 7
      %v6592 = vsub.s32 1, %v6591
      %v6593 = vrot.slane %v6553, %v6592
      %v6594 = vlaneseq
      %v6595 = vshrl.u32 %v6594, 7
      %v6596 = vsub.s32 2, %v6595
      %v6597 = vrot.slane %v6553, %v6596
      %v6598 = vlaneseq
      %v6599 = vshrl.u32 %v6598, 7
      %v6600 = vsub.s32 3, %v6599
      %v6601 = vrot.slane %v6553, %v6600
      %v6602 = vlaneseq
      %v6603 = vshrl.u32 %v6602, 7
      %v6604 = vsub.s32 4, %v6603
      %v6605 = vrot.slane %v6553, %v6604
      %v6606 = vlaneseq
      %v6607 = vshrl.u32 %v6606, 7
      %v6608 = vsub.s32 5, %v6607
      %v6609 = vrot.slane %v6553, %v6608
      %v6610 = vlaneseq
      %v6611 = vshrl.u32 %v6610, 7
      %v6612 = vsub.s32 6, %v6611
      %v6613 = vrot.slane %v6553, %v6612
      %v6614 = vlaneseq
      %v6615 = vshrl.u32 %v6614, 7
      %v6616 = vsub.s32 7, %v6615
      %v6617 = vrot.slane %v6553, %v6616
      %vm6618 = vcmp.eq.s32.totalorder %v6557, 1
      %vm6619 = vcmp.eq.s32.totalorder %v6561, 1
      %vm6620 = vcmp.eq.s32.totalorder %v6565, 1
      %vm6621 = vcmp.eq.s32.totalorder %v6569, 1
      %vm6622 = vcmp.eq.s32.totalorder %v6573, 1
      %vm6623 = vcmp.eq.s32.totalorder %v6577, 1
      %vm6624 = vcmp.eq.s32.totalorder %v6581, 1
      %vm6625 = vcmp.eq.s32.totalorder %v6585, 1
      %vm6626 = vcmp.eq.s32.totalorder %v6589, 1
      %vm6627 = vcmp.eq.s32.totalorder %v6593, 1
      %vm6628 = vcmp.eq.s32.totalorder %v6597, 1
      %vm6629 = vcmp.eq.s32.totalorder %v6601, 1
      %vm6630 = vcmp.eq.s32.totalorder %v6605, 1
      %vm6631 = vcmp.eq.s32.totalorder %v6609, 1
      %vm6632 = vcmp.eq.s32.totalorder %v6613, 1
      %vm6633 = vcmp.eq.s32.totalorder %v6617, 1
      %vm6634 = vmpackc.low %vm6619, %vm6618
      %vm6635 = vmpackc.low %vm6621, %vm6620
      %vm6636 = vmpackc.low %vm6623, %vm6622
      %vm6637 = vmpackc.low %vm6625, %vm6624
      %vm6638 = vmpackc.low %vm6627, %vm6626
      %vm6639 = vmpackc.low %vm6629, %vm6628
      %vm6640 = vmpackc.low %vm6631, %vm6630
      %vm6641 = vmpackc.low %vm6633, %vm6632
      %v6642 = vsel %vm6634, 65537, 0
      %v6643 = vsel %vm6635, 65537, 0
      %v6644 = vsel %vm6636, 65537, 0
      %v6645 = vsel %vm6637, 65537, 0
      %v6646 = vsel %vm6638, 65537, 0
      %v6647 = vsel %vm6639, 65537, 0
      %v6648 = vsel %vm6640, 65537, 0
      %v6649 = vsel %vm6641, 65537, 0
      %v6650 = vlaneseq
      %v6651 = vshrl.u32 %v6650, 7
      %v6652 = vsub.s32 0, %v6651
      %v6653 = vrot.slane %v6642, %v6652
      %v6654 = vlaneseq
      %v6655 = vshrl.u32 %v6654, 7
      %v6656 = vsub.s32 4, %v6655
      %v6657 = vrot.slane %v6642, %v6656
      %v6658 = vlaneseq
      %v6659 = vshrl.u32 %v6658, 7
      %v6660 = vsub.s32 0, %v6659
      %v6661 = vrot.slane %v6643, %v6660
      %v6662 = vlaneseq
      %v6663 = vshrl.u32 %v6662, 7
      %v6664 = vsub.s32 4, %v6663
      %v6665 = vrot.slane %v6643, %v6664
      %v6666 = vlaneseq
      %v6667 = vshrl.u32 %v6666, 7
      %v6668 = vsub.s32 0, %v6667
      %v6669 = vrot.slane %v6644, %v6668
      %v6670 = vlaneseq
      %v6671 = vshrl.u32 %v6670, 7
      %v6672 = vsub.s32 4, %v6671
      %v6673 = vrot.slane %v6644, %v6672
      %v6674 = vlaneseq
      %v6675 = vshrl.u32 %v6674, 7
      %v6676 = vsub.s32 0, %v6675
      %v6677 = vrot.slane %v6645, %v6676
      %v6678 = vlaneseq
      %v6679 = vshrl.u32 %v6678, 7
      %v6680 = vsub.s32 4, %v6679
      %v6681 = vrot.slane %v6645, %v6680
      %v6682 = vlaneseq
      %v6683 = vshrl.u32 %v6682, 7
      %v6684 = vsub.s32 0, %v6683
      %v6685 = vrot.slane %v6646, %v6684
      %v6686 = vlaneseq
      %v6687 = vshrl.u32 %v6686, 7
      %v6688 = vsub.s32 4, %v6687
      %v6689 = vrot.slane %v6646, %v6688
      %v6690 = vlaneseq
      %v6691 = vshrl.u32 %v6690, 7
      %v6692 = vsub.s32 0, %v6691
      %v6693 = vrot.slane %v6647, %v6692
      %v6694 = vlaneseq
      %v6695 = vshrl.u32 %v6694, 7
      %v6696 = vsub.s32 4, %v6695
      %v6697 = vrot.slane %v6647, %v6696
      %v6698 = vlaneseq
      %v6699 = vshrl.u32 %v6698, 7
      %v6700 = vsub.s32 0, %v6699
      %v6701 = vrot.slane %v6648, %v6700
      %v6702 = vlaneseq
      %v6703 = vshrl.u32 %v6702, 7
      %v6704 = vsub.s32 4, %v6703
      %v6705 = vrot.slane %v6648, %v6704
      %v6706 = vlaneseq
      %v6707 = vshrl.u32 %v6706, 7
      %v6708 = vsub.s32 0, %v6707
      %v6709 = vrot.slane %v6649, %v6708
      %v6710 = vlaneseq
      %v6711 = vshrl.u32 %v6710, 7
      %v6712 = vsub.s32 4, %v6711
      %v6713 = vrot.slane %v6649, %v6712
      %vm6714 = vcmp.ne.s16.totalorder %v6653, 0
      %vm6715 = vcmp.ne.s16.totalorder %v6657, 0
      %vm6716 = vcmp.ne.s16.totalorder %v6661, 0
      %vm6717 = vcmp.ne.s16.totalorder %v6665, 0
      %vm6718 = vcmp.ne.s16.totalorder %v6669, 0
      %vm6719 = vcmp.ne.s16.totalorder %v6673, 0
      %vm6720 = vcmp.ne.s16.totalorder %v6677, 0
      %vm6721 = vcmp.ne.s16.totalorder %v6681, 0
      %vm6722 = vcmp.ne.s16.totalorder %v6685, 0
      %vm6723 = vcmp.ne.s16.totalorder %v6689, 0
      %vm6724 = vcmp.ne.s16.totalorder %v6693, 0
      %vm6725 = vcmp.ne.s16.totalorder %v6697, 0
      %vm6726 = vcmp.ne.s16.totalorder %v6701, 0
      %vm6727 = vcmp.ne.s16.totalorder %v6705, 0
      %vm6728 = vcmp.ne.s16.totalorder %v6709, 0
      %vm6729 = vcmp.ne.s16.totalorder %v6713, 0
      %v6730 = vsel %vm6714, %v6542, 0
      %v6731 = vsel %vm6715, %v6511, 0
      %v6732 = vsel %vm6716, %v6512, 0
      %v6733 = vsel %vm6717, %v6513, 0
      %v6734 = vsel %vm6718, %v6514, 0
      %v6735 = vsel %vm6719, %v6515, 0
      %v6736 = vsel %vm6720, %v6516, 0
      %v6737 = vsel %vm6721, %v6517, 0
      %v6738 = vsel %vm6722, %v6518, 0
      %v6739 = vsel %vm6723, %v6519, 0
      %v6740 = vsel %vm6724, %v6520, 0
      %v6741 = vsel %vm6725, %v6521, 0
      %v6742 = vsel %vm6726, %v6522, 0
      %v6743 = vsel %vm6727, %v6523, 0
      %v6744 = vsel %vm6728, %v6524, 0
      %v6745 = vsel %vm6729, %v6525, 0
      %6746 = vrot.lane.b32.xlu0 %v6447, 127
      %v6747 = vpop.permute.xlu0 %6746
      %6748 = vrot.lane.b32.xlu0 %v6448, 127
      %v6749 = vpop.permute.xlu0 %6748
      %6750 = vrot.lane.b32.xlu0 %v6449, 127
      %v6751 = vpop.permute.xlu0 %6750
      %6752 = vrot.lane.b32.xlu0 %v6450, 127
      %v6753 = vpop.permute.xlu0 %6752
      %6754 = vrot.lane.b32.xlu0 %v6451, 127
      %v6755 = vpop.permute.xlu0 %6754
      %6756 = vrot.lane.b32.xlu0 %v6452, 127
      %v6757 = vpop.permute.xlu0 %6756
      %6758 = vrot.lane.b32.xlu0 %v6453, 127
      %v6759 = vpop.permute.xlu0 %6758
      %6760 = vrot.lane.b32.xlu0 %v6454, 127
      %v6761 = vpop.permute.xlu0 %6760
      %6762 = vrot.lane.b32.xlu0 %v6455, 127
      %v6763 = vpop.permute.xlu0 %6762
      %6764 = vrot.lane.b32.xlu0 %v6456, 127
      %v6765 = vpop.permute.xlu0 %6764
      %6766 = vrot.lane.b32.xlu0 %v6457, 127
      %v6767 = vpop.permute.xlu0 %6766
      %6768 = vrot.lane.b32.xlu0 %v6458, 127
      %v6769 = vpop.permute.xlu0 %6768
      %6770 = vrot.lane.b32.xlu0 %v6459, 127
      %v6771 = vpop.permute.xlu0 %6770
      %6772 = vrot.lane.b32.xlu0 %v6460, 127
      %v6773 = vpop.permute.xlu0 %6772
      %6774 = vrot.lane.b32.xlu0 %v6461, 127
      %v6775 = vpop.permute.xlu0 %6774
      %6776 = vrot.lane.b32.xlu0 %v6462, 127
      %v6777 = vpop.permute.xlu0 %6776
      %v6778 = vsel %vm5030, %v6747, %v6749
      %v6779 = vsel %vm5030, %v6749, %v6751
      %v6780 = vsel %vm5030, %v6751, %v6753
      %v6781 = vsel %vm5030, %v6753, %v6755
      %v6782 = vsel %vm5030, %v6755, %v6757
      %v6783 = vsel %vm5030, %v6757, %v6759
      %v6784 = vsel %vm5030, %v6759, %v6761
      %v6785 = vsel %vm5030, %v6761, %v6763
      %v6786 = vsel %vm5030, %v6763, %v6765
      %v6787 = vsel %vm5030, %v6765, %v6767
      %v6788 = vsel %vm5030, %v6767, %v6769
      %v6789 = vsel %vm5030, %v6769, %v6771
      %v6790 = vsel %vm5030, %v6771, %v6773
      %v6791 = vsel %vm5030, %v6773, %v6775
      %v6792 = vsel %vm5030, %v6775, %v6777
      %v6809 = vsel %vm1475, %v6777, 0
      %v6811 = vld [vmem:[%s1509] ss:$8 sm:$0xf]
      %v6812 = vld [vmem:[%s1509] ss:$8 sm:$0xf0]
      %v6813 = vor.u32 %v6811, %v6812
      %v6814 = vld [vmem:[%s1513] ss:$8 sm:$0xf]
      %v6815 = vld [vmem:[%s1513] ss:$8 sm:$0xf0]
      %v6816 = vor.u32 %v6814, %v6815
      %vm6817 = vcmp.gt.f32.partialorder %v6813, 0.5
      %vm6818 = vcmp.gt.f32.partialorder %v6816, 0.5
      %v6819 = vsel %vm6817, 1, 0
      %v6820 = vsel %vm6818, 1, 0
      %v6821 = vlaneseq
      %v6822 = vshrl.u32 %v6821, 7
      %v6823 = vsub.s32 0, %v6822
      %v6824 = vrot.slane %v6819, %v6823
      %v6825 = vlaneseq
      %v6826 = vshrl.u32 %v6825, 7
      %v6827 = vsub.s32 1, %v6826
      %v6828 = vrot.slane %v6819, %v6827
      %v6829 = vlaneseq
      %v6830 = vshrl.u32 %v6829, 7
      %v6831 = vsub.s32 2, %v6830
      %v6832 = vrot.slane %v6819, %v6831
      %v6833 = vlaneseq
      %v6834 = vshrl.u32 %v6833, 7
      %v6835 = vsub.s32 3, %v6834
      %v6836 = vrot.slane %v6819, %v6835
      %v6837 = vlaneseq
      %v6838 = vshrl.u32 %v6837, 7
      %v6839 = vsub.s32 4, %v6838
      %v6840 = vrot.slane %v6819, %v6839
      %v6841 = vlaneseq
      %v6842 = vshrl.u32 %v6841, 7
      %v6843 = vsub.s32 5, %v6842
      %v6844 = vrot.slane %v6819, %v6843
      %v6845 = vlaneseq
      %v6846 = vshrl.u32 %v6845, 7
      %v6847 = vsub.s32 6, %v6846
      %v6848 = vrot.slane %v6819, %v6847
      %v6849 = vlaneseq
      %v6850 = vshrl.u32 %v6849, 7
      %v6851 = vsub.s32 7, %v6850
      %v6852 = vrot.slane %v6819, %v6851
      %v6853 = vlaneseq
      %v6854 = vshrl.u32 %v6853, 7
      %v6855 = vsub.s32 0, %v6854
      %v6856 = vrot.slane %v6820, %v6855
      %v6857 = vlaneseq
      %v6858 = vshrl.u32 %v6857, 7
      %v6859 = vsub.s32 1, %v6858
      %v6860 = vrot.slane %v6820, %v6859
      %v6861 = vlaneseq
      %v6862 = vshrl.u32 %v6861, 7
      %v6863 = vsub.s32 2, %v6862
      %v6864 = vrot.slane %v6820, %v6863
      %v6865 = vlaneseq
      %v6866 = vshrl.u32 %v6865, 7
      %v6867 = vsub.s32 3, %v6866
      %v6868 = vrot.slane %v6820, %v6867
      %v6869 = vlaneseq
      %v6870 = vshrl.u32 %v6869, 7
      %v6871 = vsub.s32 4, %v6870
      %v6872 = vrot.slane %v6820, %v6871
      %v6873 = vlaneseq
      %v6874 = vshrl.u32 %v6873, 7
      %v6875 = vsub.s32 5, %v6874
      %v6876 = vrot.slane %v6820, %v6875
      %v6877 = vlaneseq
      %v6878 = vshrl.u32 %v6877, 7
      %v6879 = vsub.s32 6, %v6878
      %v6880 = vrot.slane %v6820, %v6879
      %v6881 = vlaneseq
      %v6882 = vshrl.u32 %v6881, 7
      %v6883 = vsub.s32 7, %v6882
      %v6884 = vrot.slane %v6820, %v6883
      %vm6885 = vcmp.eq.s32.totalorder %v6824, 1
      %vm6886 = vcmp.eq.s32.totalorder %v6828, 1
      %vm6887 = vcmp.eq.s32.totalorder %v6832, 1
      %vm6888 = vcmp.eq.s32.totalorder %v6836, 1
      %vm6889 = vcmp.eq.s32.totalorder %v6840, 1
      %vm6890 = vcmp.eq.s32.totalorder %v6844, 1
      %vm6891 = vcmp.eq.s32.totalorder %v6848, 1
      %vm6892 = vcmp.eq.s32.totalorder %v6852, 1
      %vm6893 = vcmp.eq.s32.totalorder %v6856, 1
      %vm6894 = vcmp.eq.s32.totalorder %v6860, 1
      %vm6895 = vcmp.eq.s32.totalorder %v6864, 1
      %vm6896 = vcmp.eq.s32.totalorder %v6868, 1
      %vm6897 = vcmp.eq.s32.totalorder %v6872, 1
      %vm6898 = vcmp.eq.s32.totalorder %v6876, 1
      %vm6899 = vcmp.eq.s32.totalorder %v6880, 1
      %vm6900 = vcmp.eq.s32.totalorder %v6884, 1
      %vm6901 = vmpackc.low %vm6886, %vm6885
      %vm6902 = vmpackc.low %vm6888, %vm6887
      %vm6903 = vmpackc.low %vm6890, %vm6889
      %vm6904 = vmpackc.low %vm6892, %vm6891
      %vm6905 = vmpackc.low %vm6894, %vm6893
      %vm6906 = vmpackc.low %vm6896, %vm6895
      %vm6907 = vmpackc.low %vm6898, %vm6897
      %vm6908 = vmpackc.low %vm6900, %vm6899
      %v6909 = vsel %vm6901, 65537, 0
      %v6910 = vsel %vm6902, 65537, 0
      %v6911 = vsel %vm6903, 65537, 0
      %v6912 = vsel %vm6904, 65537, 0
      %v6913 = vsel %vm6905, 65537, 0
      %v6914 = vsel %vm6906, 65537, 0
      %v6915 = vsel %vm6907, 65537, 0
      %v6916 = vsel %vm6908, 65537, 0
      %v6917 = vlaneseq
      %v6918 = vshrl.u32 %v6917, 7
      %v6919 = vsub.s32 0, %v6918
      %v6920 = vrot.slane %v6909, %v6919
      %v6921 = vlaneseq
      %v6922 = vshrl.u32 %v6921, 7
      %v6923 = vsub.s32 4, %v6922
      %v6924 = vrot.slane %v6909, %v6923
      %v6925 = vlaneseq
      %v6926 = vshrl.u32 %v6925, 7
      %v6927 = vsub.s32 0, %v6926
      %v6928 = vrot.slane %v6910, %v6927
      %v6929 = vlaneseq
      %v6930 = vshrl.u32 %v6929, 7
      %v6931 = vsub.s32 4, %v6930
      %v6932 = vrot.slane %v6910, %v6931
      %v6933 = vlaneseq
      %v6934 = vshrl.u32 %v6933, 7
      %v6935 = vsub.s32 0, %v6934
      %v6936 = vrot.slane %v6911, %v6935
      %v6937 = vlaneseq
      %v6938 = vshrl.u32 %v6937, 7
      %v6939 = vsub.s32 4, %v6938
      %v6940 = vrot.slane %v6911, %v6939
      %v6941 = vlaneseq
      %v6942 = vshrl.u32 %v6941, 7
      %v6943 = vsub.s32 0, %v6942
      %v6944 = vrot.slane %v6912, %v6943
      %v6945 = vlaneseq
      %v6946 = vshrl.u32 %v6945, 7
      %v6947 = vsub.s32 4, %v6946
      %v6948 = vrot.slane %v6912, %v6947
      %v6949 = vlaneseq
      %v6950 = vshrl.u32 %v6949, 7
      %v6951 = vsub.s32 0, %v6950
      %v6952 = vrot.slane %v6913, %v6951
      %v6953 = vlaneseq
      %v6954 = vshrl.u32 %v6953, 7
      %v6955 = vsub.s32 4, %v6954
      %v6956 = vrot.slane %v6913, %v6955
      %v6957 = vlaneseq
      %v6958 = vshrl.u32 %v6957, 7
      %v6959 = vsub.s32 0, %v6958
      %v6960 = vrot.slane %v6914, %v6959
      %v6961 = vlaneseq
      %v6962 = vshrl.u32 %v6961, 7
      %v6963 = vsub.s32 4, %v6962
      %v6964 = vrot.slane %v6914, %v6963
      %v6965 = vlaneseq
      %v6966 = vshrl.u32 %v6965, 7
      %v6967 = vsub.s32 0, %v6966
      %v6968 = vrot.slane %v6915, %v6967
      %v6969 = vlaneseq
      %v6970 = vshrl.u32 %v6969, 7
      %v6971 = vsub.s32 4, %v6970
      %v6972 = vrot.slane %v6915, %v6971
      %v6973 = vlaneseq
      %v6974 = vshrl.u32 %v6973, 7
      %v6975 = vsub.s32 0, %v6974
      %v6976 = vrot.slane %v6916, %v6975
      %v6977 = vlaneseq
      %v6978 = vshrl.u32 %v6977, 7
      %v6979 = vsub.s32 4, %v6978
      %v6980 = vrot.slane %v6916, %v6979
      %vm6981 = vcmp.ne.s16.totalorder %v6920, 0
      %vm6982 = vcmp.ne.s16.totalorder %v6924, 0
      %vm6983 = vcmp.ne.s16.totalorder %v6928, 0
      %vm6984 = vcmp.ne.s16.totalorder %v6932, 0
      %vm6985 = vcmp.ne.s16.totalorder %v6936, 0
      %vm6986 = vcmp.ne.s16.totalorder %v6940, 0
      %vm6987 = vcmp.ne.s16.totalorder %v6944, 0
      %vm6988 = vcmp.ne.s16.totalorder %v6948, 0
      %vm6989 = vcmp.ne.s16.totalorder %v6952, 0
      %vm6990 = vcmp.ne.s16.totalorder %v6956, 0
      %vm6991 = vcmp.ne.s16.totalorder %v6960, 0
      %vm6992 = vcmp.ne.s16.totalorder %v6964, 0
      %vm6993 = vcmp.ne.s16.totalorder %v6968, 0
      %vm6994 = vcmp.ne.s16.totalorder %v6972, 0
      %vm6995 = vcmp.ne.s16.totalorder %v6976, 0
      %vm6996 = vcmp.ne.s16.totalorder %v6980, 0
      %v6997 = vsel %vm6981, %v6778, 0
      %v6998 = vsel %vm6982, %v6779, 0
      %v6999 = vsel %vm6983, %v6780, 0
      %v7000 = vsel %vm6984, %v6781, 0
      %v7001 = vsel %vm6985, %v6782, 0
      %v7002 = vsel %vm6986, %v6783, 0
      %v7003 = vsel %vm6987, %v6784, 0
      %v7004 = vsel %vm6988, %v6785, 0
      %v7005 = vsel %vm6989, %v6786, 0
      %v7006 = vsel %vm6990, %v6787, 0
      %v7007 = vsel %vm6991, %v6788, 0
      %v7008 = vsel %vm6992, %v6789, 0
      %v7009 = vsel %vm6993, %v6790, 0
      %v7010 = vsel %vm6994, %v6791, 0
      %v7011 = vsel %vm6995, %v6792, 0
      %v7012 = vsel %vm6996, %v6809, 0
      %v7013 = vld [vmem:[%s9] sm:$0xff]
      %v7014 = vld [vmem:[%s9 + $0x8] sm:$0xff]
      %v7015 = vld [vmem:[%s9 + $0x10] sm:$0xff]
      %v7016 = vld [vmem:[%s9 + $0x18] sm:$0xff]
      %v7017 = vld [vmem:[%s10] sm:$0xff]
      %v7018 = vld [vmem:[%s10 + $0x8] sm:$0xff]
      %v7019 = vld [vmem:[%s10 + $0x10] sm:$0xff]
      %v7020 = vld [vmem:[%s10 + $0x18] sm:$0xff]
      %7022 = vset.pattern.permute.xlu0 0
      %7023 = vperm.xlu0 %7022, %v7017
      %v7024 = vpop.permute.xlu0 %7023
      %7027 = vset.pattern.permute.xlu0 0
      %7028 = vperm.xlu0 %7027, %v7018
      %v7029 = vpop.permute.xlu0 %7028
      %7032 = vset.pattern.permute.xlu0 0
      %7033 = vperm.xlu0 %7032, %v7019
      %v7034 = vpop.permute.xlu0 %7033
      %7037 = vset.pattern.permute.xlu0 0
      %7038 = vperm.xlu0 %7037, %v7020
      %v7039 = vpop.permute.xlu0 %7038
      %v7045 = vunpack.c.l.b16 %v7013
      %v7046 = vunpack.c.h.b16 %v7013
      %v7047 = vunpack.c.l.b16 %v7014
      %v7048 = vunpack.c.h.b16 %v7014
      %v7049 = vunpack.c.l.b16 %v7015
      %v7050 = vunpack.c.h.b16 %v7015
      %v7051 = vunpack.c.l.b16 %v7016
      %v7052 = vunpack.c.h.b16 %v7016
      %v7053 = vpack.c.b16 %v7047, %v7045
      %v7054 = vpack.c.b16 %v7048, %v7046
      %v7055 = vpack.c.b16 %v7051, %v7049
      %v7056 = vpack.c.b16 %v7052, %v7050
      %v7060 = vsel %vm5507, %v7054, 0
      %v7063 = vsel %vm5507, %v7056, 0
      %7065 = vmatprep.subr.bf16.mxu0 %v6730
      %7066 = vmatpush1.bf16.msra.mxu0 0
      %7067 = vmatprep.subr.bf16.mxu0 %v6447
      %7068 = vmatpush1.bf16.msra.mxu0 0
      %7069 = vmatprep.subr.bf16.mxu0 %v6997
      %7070 = vmatpush1.bf16.msra.mxu0 0
      %7071 = vmatprep.subr.bf16.mxu0 %v6731
      %7072 = vmatpush1.bf16.msra.mxu0 %v6730
      %7073 = vmatprep.subr.bf16.mxu0 %v6448
      %7074 = vmatpush1.bf16.msra.mxu0 %v6447
      %7075 = vmatprep.subr.bf16.mxu0 %v6998
      %7076 = vmatpush1.bf16.msra.mxu0 %v6997
      %7077 = vmatprep.subr.bf16.mxu0 %v6732
      %7078 = vmatpush1.bf16.msra.mxu0 %v6731
      %7079 = vmatprep.subr.bf16.mxu0 %v6449
      %7080 = vmatpush1.bf16.msra.mxu0 %v6448
      %7081 = vmatprep.subr.bf16.mxu0 %v6999
      %7082 = vmatpush1.bf16.msra.mxu0 %v6998
      %7083 = vmatprep.subr.bf16.mxu0 0
      %7084 = vmatpush1.bf16.msra.mxu0 0
      %7085 = vmatprep.subr.bf16.mxu0 0
      %7086 = vmatpush1.bf16.msra.mxu0 0
      %7087 = vmatprep.subr.bf16.mxu0 0
      %7088 = vmatpush1.bf16.msra.mxu0 0
      %7089 = vmatprep.subr.bf16.mxu0 0
      %7090 = vmatpush1.bf16.msra.mxu0 0
      %7091 = vmatprep.subr.bf16.mxu0 0
      %7092 = vmatpush1.bf16.msra.mxu0 0
      %7093 = vmatprep.subr.bf16.mxu0 0
      %7094 = vmatpush1.bf16.msra.mxu0 0
      %7095 = vmatprep.subr.bf16.mxu0 0
      %7096 = vmatpush1.bf16.msra.mxu0 0
      %7097 = vmatprep.mubr.bf16.mxu0 %v7060
      %7098 = vmatmul.mubr.bf16.gmra.mrb[0].mxu0 %v7053
      %v7099 = vpop.f32.mrb[0].mxu0
      %v7100 = vadd.f32 %v7024, %v7099
      %v7101 = vpop.f32.mrb[0].mxu0
      %v7102 = vadd.f32 %v7024, %v7101
      %v7103 = vpop.f32.mrb[0].mxu0
      %v7104 = vadd.f32 %v7029, %v7103
      %v7105 = vpop.f32.mrb[0].mxu0
      %v7106 = vadd.f32 %v7029, %v7105
      %7107 = vmatprep.mubr.bf16.mxu0 %v7063
      %7108 = vmatmul.mubr.bf16.gmra.mrb[0].mxu0 %v7055
      %v7109 = vpop.f32.mrb[0].mxu0
      %v7110 = vadd.f32 %v7034, %v7109
      %v7111 = vpop.f32.mrb[0].mxu0
      %v7112 = vadd.f32 %v7034, %v7111
      %v7113 = vpop.f32.mrb[0].mxu0
      %v7114 = vadd.f32 %v7039, %v7113
      %v7115 = vpop.f32.mrb[0].mxu0
      %v7116 = vadd.f32 %v7039, %v7115
      %7117 = vdwg.mxu0
      %7118 = vmatprep.subr.bf16.mxu0 %v6732
      %7119 = vmatpush1.bf16.msra.mxu0 %v6731
      %7120 = vmatprep.subr.bf16.mxu0 %v6449
      %7121 = vmatpush1.bf16.msra.mxu0 %v6448
      %7122 = vmatprep.subr.bf16.mxu0 %v6999
      %7123 = vmatpush1.bf16.msra.mxu0 %v6998
      %7124 = vmatprep.subr.bf16.mxu0 %v6733
      %7125 = vmatpush1.bf16.msra.mxu0 %v6732
      %7126 = vmatprep.subr.bf16.mxu0 %v6450
      %7127 = vmatpush1.bf16.msra.mxu0 %v6449
      %7128 = vmatprep.subr.bf16.mxu0 %v7000
      %7129 = vmatpush1.bf16.msra.mxu0 %v6999
      %7130 = vmatprep.subr.bf16.mxu0 %v6734
      %7131 = vmatpush1.bf16.msra.mxu0 %v6733
      %7132 = vmatprep.subr.bf16.mxu0 %v6451
      %7133 = vmatpush1.bf16.msra.mxu0 %v6450
      %7134 = vmatprep.subr.bf16.mxu0 %v7001
      %7135 = vmatpush1.bf16.msra.mxu0 %v7000
      %7136 = vmatprep.subr.bf16.mxu0 0
      %7137 = vmatpush1.bf16.msra.mxu0 0
      %7138 = vmatprep.subr.bf16.mxu0 0
      %7139 = vmatpush1.bf16.msra.mxu0 0
      %7140 = vmatprep.subr.bf16.mxu0 0
      %7141 = vmatpush1.bf16.msra.mxu0 0
      %7142 = vmatprep.subr.bf16.mxu0 0
      %7143 = vmatpush1.bf16.msra.mxu0 0
      %7144 = vmatprep.subr.bf16.mxu0 0
      %7145 = vmatpush1.bf16.msra.mxu0 0
      %7146 = vmatprep.subr.bf16.mxu0 0
      %7147 = vmatpush1.bf16.msra.mxu0 0
      %7148 = vmatprep.subr.bf16.mxu0 0
      %7149 = vmatpush1.bf16.msra.mxu0 0
      %7150 = vmatprep.mubr.bf16.mxu0 %v7060
      %7151 = vmatmul.mubr.bf16.gmra.mrb[0].mxu0 %v7053
      %v7152 = vpop.f32.mrb[0].mxu0
      %v7153 = vadd.f32 %v7024, %v7152
      %v7154 = vpop.f32.mrb[0].mxu0
      %v7155 = vadd.f32 %v7024, %v7154
      %v7156 = vpop.f32.mrb[0].mxu0
      %v7157 = vadd.f32 %v7029, %v7156
      %v7158 = vpop.f32.mrb[0].mxu0
      %v7159 = vadd.f32 %v7029, %v7158
      %7160 = vmatprep.mubr.bf16.mxu0 %v7063
      %7161 = vmatmul.mubr.bf16.gmra.mrb[0].mxu0 %v7055
      %v7162 = vpop.f32.mrb[0].mxu0
      %v7163 = vadd.f32 %v7034, %v7162
      %v7164 = vpop.f32.mrb[0].mxu0
      %v7165 = vadd.f32 %v7034, %v7164
      %v7166 = vpop.f32.mrb[0].mxu0
      %v7167 = vadd.f32 %v7039, %v7166
      %v7168 = vpop.f32.mrb[0].mxu0
      %v7169 = vadd.f32 %v7039, %v7168
      %7170 = vdwg.mxu0
      %7171 = vmatprep.subr.bf16.mxu0 %v6734
      %7172 = vmatpush1.bf16.msra.mxu0 %v6733
      %7173 = vmatprep.subr.bf16.mxu0 %v6451
      %7174 = vmatpush1.bf16.msra.mxu0 %v6450
      %7175 = vmatprep.subr.bf16.mxu0 %v7001
      %7176 = vmatpush1.bf16.msra.mxu0 %v7000
      %7177 = vmatprep.subr.bf16.mxu0 %v6735
      %7178 = vmatpush1.bf16.msra.mxu0 %v6734
      %7179 = vmatprep.subr.bf16.mxu0 %v6452
      %7180 = vmatpush1.bf16.msra.mxu0 %v6451
      %7181 = vmatprep.subr.bf16.mxu0 %v7002
      %7182 = vmatpush1.bf16.msra.mxu0 %v7001
      %7183 = vmatprep.subr.bf16.mxu0 %v6736
      %7184 = vmatpush1.bf16.msra.mxu0 %v6735
      %7185 = vmatprep.subr.bf16.mxu0 %v6453
      %7186 = vmatpush1.bf16.msra.mxu0 %v6452
      %7187 = vmatprep.subr.bf16.mxu0 %v7003
      %7188 = vmatpush1.bf16.msra.mxu0 %v7002
      %7189 = vmatprep.subr.bf16.mxu0 0
      %7190 = vmatpush1.bf16.msra.mxu0 0
      %7191 = vmatprep.subr.bf16.mxu0 0
      %7192 = vmatpush1.bf16.msra.mxu0 0
      %7193 = vmatprep.subr.bf16.mxu0 0
      %7194 = vmatpush1.bf16.msra.mxu0 0
      %7195 = vmatprep.subr.bf16.mxu0 0
      %7196 = vmatpush1.bf16.msra.mxu0 0
      %7197 = vmatprep.subr.bf16.mxu0 0
      %7198 = vmatpush1.bf16.msra.mxu0 0
      %7199 = vmatprep.subr.bf16.mxu0 0
      %7200 = vmatpush1.bf16.msra.mxu0 0
      %7201 = vmatprep.subr.bf16.mxu0 0
      %7202 = vmatpush1.bf16.msra.mxu0 0
      %7203 = vmatprep.mubr.bf16.mxu0 %v7060
      %7204 = vmatmul.mubr.bf16.gmra.mrb[0].mxu0 %v7053
      %v7205 = vpop.f32.mrb[0].mxu0
      %v7206 = vadd.f32 %v7024, %v7205
      %v7207 = vpop.f32.mrb[0].mxu0
      %v7208 = vadd.f32 %v7024, %v7207
      %v7209 = vpop.f32.mrb[0].mxu0
      %v7210 = vadd.f32 %v7029, %v7209
      %v7211 = vpop.f32.mrb[0].mxu0
      %v7212 = vadd.f32 %v7029, %v7211
      %7213 = vmatprep.mubr.bf16.mxu0 %v7063
      %7214 = vmatmul.mubr.bf16.gmra.mrb[0].mxu0 %v7055
      %v7215 = vpop.f32.mrb[0].mxu0
      %v7216 = vadd.f32 %v7034, %v7215
      %v7217 = vpop.f32.mrb[0].mxu0
      %v7218 = vadd.f32 %v7034, %v7217
      %v7219 = vpop.f32.mrb[0].mxu0
      %v7220 = vadd.f32 %v7039, %v7219
      %v7221 = vpop.f32.mrb[0].mxu0
      %v7222 = vadd.f32 %v7039, %v7221
      %7223 = vdwg.mxu0
      %7224 = vmatprep.subr.bf16.mxu0 %v6736
      %7225 = vmatpush1.bf16.msra.mxu0 %v6735
      %7226 = vmatprep.subr.bf16.mxu0 %v6453
      %7227 = vmatpush1.bf16.msra.mxu0 %v6452
      %7228 = vmatprep.subr.bf16.mxu0 %v7003
      %7229 = vmatpush1.bf16.msra.mxu0 %v7002
      %7230 = vmatprep.subr.bf16.mxu0 %v6737
      %7231 = vmatpush1.bf16.msra.mxu0 %v6736
      %7232 = vmatprep.subr.bf16.mxu0 %v6454
      %7233 = vmatpush1.bf16.msra.mxu0 %v6453
      %7234 = vmatprep.subr.bf16.mxu0 %v7004
      %7235 = vmatpush1.bf16.msra.mxu0 %v7003
      %7236 = vmatprep.subr.bf16.mxu0 %v6738
      %7237 = vmatpush1.bf16.msra.mxu0 %v6737
      %7238 = vmatprep.subr.bf16.mxu0 %v6455
      %7239 = vmatpush1.bf16.msra.mxu0 %v6454
      %7240 = vmatprep.subr.bf16.mxu0 %v7005
      %7241 = vmatpush1.bf16.msra.mxu0 %v7004
      %7242 = vmatprep.subr.bf16.mxu0 0
      %7243 = vmatpush1.bf16.msra.mxu0 0
      %7244 = vmatprep.subr.bf16.mxu0 0
      %7245 = vmatpush1.bf16.msra.mxu0 0
      %7246 = vmatprep.subr.bf16.mxu0 0
      %7247 = vmatpush1.bf16.msra.mxu0 0
      %7248 = vmatprep.subr.bf16.mxu0 0
      %7249 = vmatpush1.bf16.msra.mxu0 0
      %7250 = vmatprep.subr.bf16.mxu0 0
      %7251 = vmatpush1.bf16.msra.mxu0 0
      %7252 = vmatprep.subr.bf16.mxu0 0
      %7253 = vmatpush1.bf16.msra.mxu0 0
      %7254 = vmatprep.subr.bf16.mxu0 0
      %7255 = vmatpush1.bf16.msra.mxu0 0
      %7256 = vmatprep.mubr.bf16.mxu0 %v7060
      %7257 = vmatmul.mubr.bf16.gmra.mrb[0].mxu0 %v7053
      %v7258 = vpop.f32.mrb[0].mxu0
      %v7259 = vadd.f32 %v7024, %v7258
      %v7260 = vpop.f32.mrb[0].mxu0
      %v7261 = vadd.f32 %v7024, %v7260
      %v7262 = vpop.f32.mrb[0].mxu0
      %v7263 = vadd.f32 %v7029, %v7262
      %v7264 = vpop.f32.mrb[0].mxu0
      %v7265 = vadd.f32 %v7029, %v7264
      %7266 = vmatprep.mubr.bf16.mxu0 %v7063
      %7267 = vmatmul.mubr.bf16.gmra.mrb[0].mxu0 %v7055
      %v7268 = vpop.f32.mrb[0].mxu0
      %v7269 = vadd.f32 %v7034, %v7268
      %v7270 = vpop.f32.mrb[0].mxu0
      %v7271 = vadd.f32 %v7034, %v7270
      %v7272 = vpop.f32.mrb[0].mxu0
      %v7273 = vadd.f32 %v7039, %v7272
      %v7274 = vpop.f32.mrb[0].mxu0
      %v7275 = vadd.f32 %v7039, %v7274
      %7276 = vdwg.mxu0
      %7277 = vmatprep.subr.bf16.mxu0 %v6738
      %7278 = vmatpush1.bf16.msra.mxu0 %v6737
      %7279 = vmatprep.subr.bf16.mxu0 %v6455
      %7280 = vmatpush1.bf16.msra.mxu0 %v6454
      %7281 = vmatprep.subr.bf16.mxu0 %v7005
      %7282 = vmatpush1.bf16.msra.mxu0 %v7004
      %7283 = vmatprep.subr.bf16.mxu0 %v6739
      %7284 = vmatpush1.bf16.msra.mxu0 %v6738
      %7285 = vmatprep.subr.bf16.mxu0 %v6456
      %7286 = vmatpush1.bf16.msra.mxu0 %v6455
      %7287 = vmatprep.subr.bf16.mxu0 %v7006
      %7288 = vmatpush1.bf16.msra.mxu0 %v7005
      %7289 = vmatprep.subr.bf16.mxu0 %v6740
      %7290 = vmatpush1.bf16.msra.mxu0 %v6739
      %7291 = vmatprep.subr.bf16.mxu0 %v6457
      %7292 = vmatpush1.bf16.msra.mxu0 %v6456
      %7293 = vmatprep.subr.bf16.mxu0 %v7007
      %7294 = vmatpush1.bf16.msra.mxu0 %v7006
      %7295 = vmatprep.subr.bf16.mxu0 0
      %7296 = vmatpush1.bf16.msra.mxu0 0
      %7297 = vmatprep.subr.bf16.mxu0 0
      %7298 = vmatpush1.bf16.msra.mxu0 0
      %7299 = vmatprep.subr.bf16.mxu0 0
      %7300 = vmatpush1.bf16.msra.mxu0 0
      %7301 = vmatprep.subr.bf16.mxu0 0
      %7302 = vmatpush1.bf16.msra.mxu0 0
      %7303 = vmatprep.subr.bf16.mxu0 0
      %7304 = vmatpush1.bf16.msra.mxu0 0
      %7305 = vmatprep.subr.bf16.mxu0 0
      %7306 = vmatpush1.bf16.msra.mxu0 0
      %7307 = vmatprep.subr.bf16.mxu0 0
      %7308 = vmatpush1.bf16.msra.mxu0 0
      %7309 = vmatprep.mubr.bf16.mxu0 %v7060
      %7310 = vmatmul.mubr.bf16.gmra.mrb[0].mxu0 %v7053
      %v7311 = vpop.f32.mrb[0].mxu0
      %v7312 = vadd.f32 %v7024, %v7311
      %v7313 = vpop.f32.mrb[0].mxu0
      %v7314 = vadd.f32 %v7024, %v7313
      %v7315 = vpop.f32.mrb[0].mxu0
      %v7316 = vadd.f32 %v7029, %v7315
      %v7317 = vpop.f32.mrb[0].mxu0
      %v7318 = vadd.f32 %v7029, %v7317
      %7319 = vmatprep.mubr.bf16.mxu0 %v7063
      %7320 = vmatmul.mubr.bf16.gmra.mrb[0].mxu0 %v7055
      %v7321 = vpop.f32.mrb[0].mxu0
      %v7322 = vadd.f32 %v7034, %v7321
      %v7323 = vpop.f32.mrb[0].mxu0
      %v7324 = vadd.f32 %v7034, %v7323
      %v7325 = vpop.f32.mrb[0].mxu0
      %v7326 = vadd.f32 %v7039, %v7325
      %v7327 = vpop.f32.mrb[0].mxu0
      %v7328 = vadd.f32 %v7039, %v7327
      %7329 = vdwg.mxu0
      %7330 = vmatprep.subr.bf16.mxu0 %v6740
      %7331 = vmatpush1.bf16.msra.mxu0 %v6739
      %7332 = vmatprep.subr.bf16.mxu0 %v6457
      %7333 = vmatpush1.bf16.msra.mxu0 %v6456
      %7334 = vmatprep.subr.bf16.mxu0 %v7007
      %7335 = vmatpush1.bf16.msra.mxu0 %v7006
      %7336 = vmatprep.subr.bf16.mxu0 %v6741
      %7337 = vmatpush1.bf16.msra.mxu0 %v6740
      %7338 = vmatprep.subr.bf16.mxu0 %v6458
      %7339 = vmatpush1.bf16.msra.mxu0 %v6457
      %7340 = vmatprep.subr.bf16.mxu0 %v7008
      %7341 = vmatpush1.bf16.msra.mxu0 %v7007
      %7342 = vmatprep.subr.bf16.mxu0 %v6742
      %7343 = vmatpush1.bf16.msra.mxu0 %v6741
      %7344 = vmatprep.subr.bf16.mxu0 %v6459
      %7345 = vmatpush1.bf16.msra.mxu0 %v6458
      %7346 = vmatprep.subr.bf16.mxu0 %v7009
      %7347 = vmatpush1.bf16.msra.mxu0 %v7008
      %7348 = vmatprep.subr.bf16.mxu0 0
      %7349 = vmatpush1.bf16.msra.mxu0 0
      %7350 = vmatprep.subr.bf16.mxu0 0
      %7351 = vmatpush1.bf16.msra.mxu0 0
      %7352 = vmatprep.subr.bf16.mxu0 0
      %7353 = vmatpush1.bf16.msra.mxu0 0
      %7354 = vmatprep.subr.bf16.mxu0 0
      %7355 = vmatpush1.bf16.msra.mxu0 0
      %7356 = vmatprep.subr.bf16.mxu0 0
      %7357 = vmatpush1.bf16.msra.mxu0 0
      %7358 = vmatprep.subr.bf16.mxu0 0
      %7359 = vmatpush1.bf16.msra.mxu0 0
      %7360 = vmatprep.subr.bf16.mxu0 0
      %7361 = vmatpush1.bf16.msra.mxu0 0
      %7362 = vmatprep.mubr.bf16.mxu0 %v7060
      %7363 = vmatmul.mubr.bf16.gmra.mrb[0].mxu0 %v7053
      %v7364 = vpop.f32.mrb[0].mxu0
      %v7365 = vadd.f32 %v7024, %v7364
      %v7366 = vpop.f32.mrb[0].mxu0
      %v7367 = vadd.f32 %v7024, %v7366
      %v7368 = vpop.f32.mrb[0].mxu0
      %v7369 = vadd.f32 %v7029, %v7368
      %v7370 = vpop.f32.mrb[0].mxu0
      %v7371 = vadd.f32 %v7029, %v7370
      %7372 = vmatprep.mubr.bf16.mxu0 %v7063
      %7373 = vmatmul.mubr.bf16.gmra.mrb[0].mxu0 %v7055
      %v7374 = vpop.f32.mrb[0].mxu0
      %v7375 = vadd.f32 %v7034, %v7374
      %v7376 = vpop.f32.mrb[0].mxu0
      %v7377 = vadd.f32 %v7034, %v7376
      %v7378 = vpop.f32.mrb[0].mxu0
      %v7379 = vadd.f32 %v7039, %v7378
      %v7380 = vpop.f32.mrb[0].mxu0
      %v7381 = vadd.f32 %v7039, %v7380
      %7382 = vdwg.mxu0
      %7383 = vmatprep.subr.bf16.mxu0 %v6742
      %7384 = vmatpush1.bf16.msra.mxu0 %v6741
      %7385 = vmatprep.subr.bf16.mxu0 %v6459
      %7386 = vmatpush1.bf16.msra.mxu0 %v6458
      %7387 = vmatprep.subr.bf16.mxu0 %v7009
      %7388 = vmatpush1.bf16.msra.mxu0 %v7008
      %7389 = vmatprep.subr.bf16.mxu0 %v6743
      %7390 = vmatpush1.bf16.msra.mxu0 %v6742
      %7391 = vmatprep.subr.bf16.mxu0 %v6460
      %7392 = vmatpush1.bf16.msra.mxu0 %v6459
      %7393 = vmatprep.subr.bf16.mxu0 %v7010
      %7394 = vmatpush1.bf16.msra.mxu0 %v7009
      %7395 = vmatprep.subr.bf16.mxu0 %v6744
      %7396 = vmatpush1.bf16.msra.mxu0 %v6743
      %7397 = vmatprep.subr.bf16.mxu0 %v6461
      %7398 = vmatpush1.bf16.msra.mxu0 %v6460
      %7399 = vmatprep.subr.bf16.mxu0 %v7011
      %7400 = vmatpush1.bf16.msra.mxu0 %v7010
      %7401 = vmatprep.subr.bf16.mxu0 0
      %7402 = vmatpush1.bf16.msra.mxu0 0
      %7403 = vmatprep.subr.bf16.mxu0 0
      %7404 = vmatpush1.bf16.msra.mxu0 0
      %7405 = vmatprep.subr.bf16.mxu0 0
      %7406 = vmatpush1.bf16.msra.mxu0 0
      %7407 = vmatprep.subr.bf16.mxu0 0
      %7408 = vmatpush1.bf16.msra.mxu0 0
      %7409 = vmatprep.subr.bf16.mxu0 0
      %7410 = vmatpush1.bf16.msra.mxu0 0
      %7411 = vmatprep.subr.bf16.mxu0 0
      %7412 = vmatpush1.bf16.msra.mxu0 0
      %7413 = vmatprep.subr.bf16.mxu0 0
      %7414 = vmatpush1.bf16.msra.mxu0 0
      %7415 = vmatprep.mubr.bf16.mxu0 %v7060
      %7416 = vmatmul.mubr.bf16.gmra.mrb[0].mxu0 %v7053
      %v7417 = vpop.f32.mrb[0].mxu0
      %v7418 = vadd.f32 %v7024, %v7417
      %v7419 = vpop.f32.mrb[0].mxu0
      %v7420 = vadd.f32 %v7024, %v7419
      %v7421 = vpop.f32.mrb[0].mxu0
      %v7422 = vadd.f32 %v7029, %v7421
      %v7423 = vpop.f32.mrb[0].mxu0
      %v7424 = vadd.f32 %v7029, %v7423
      %7425 = vmatprep.mubr.bf16.mxu0 %v7063
      %7426 = vmatmul.mubr.bf16.gmra.mrb[0].mxu0 %v7055
      %v7427 = vpop.f32.mrb[0].mxu0
      %v7428 = vadd.f32 %v7034, %v7427
      %v7429 = vpop.f32.mrb[0].mxu0
      %v7430 = vadd.f32 %v7034, %v7429
      %v7431 = vpop.f32.mrb[0].mxu0
      %v7432 = vadd.f32 %v7039, %v7431
      %v7433 = vpop.f32.mrb[0].mxu0
      %v7434 = vadd.f32 %v7039, %v7433
      %7435 = vdwg.mxu0
      %7436 = vmatprep.subr.bf16.mxu0 %v6744
      %7437 = vmatpush1.bf16.msra.mxu0 %v6743
      %7438 = vmatprep.subr.bf16.mxu0 %v6461
      %7439 = vmatpush1.bf16.msra.mxu0 %v6460
      %7440 = vmatprep.subr.bf16.mxu0 %v7011
      %7441 = vmatpush1.bf16.msra.mxu0 %v7010
      %7442 = vmatprep.subr.bf16.mxu0 %v6745
      %7443 = vmatpush1.bf16.msra.mxu0 %v6744
      %7444 = vmatprep.subr.bf16.mxu0 %v6462
      %7445 = vmatpush1.bf16.msra.mxu0 %v6461
      %7446 = vmatprep.subr.bf16.mxu0 %v7012
      %7447 = vmatpush1.bf16.msra.mxu0 %v7011
      %7448 = vmatprep.subr.bf16.mxu0 0
      %7449 = vmatpush1.bf16.msra.mxu0 %v6745
      %7450 = vmatprep.subr.bf16.mxu0 0
      %7451 = vmatpush1.bf16.msra.mxu0 %v6462
      %7452 = vmatprep.subr.bf16.mxu0 0
      %7453 = vmatpush1.bf16.msra.mxu0 %v7012
      %7454 = vmatprep.subr.bf16.mxu0 0
      %7455 = vmatpush1.bf16.msra.mxu0 0
      %7456 = vmatprep.subr.bf16.mxu0 0
      %7457 = vmatpush1.bf16.msra.mxu0 0
      %7458 = vmatprep.subr.bf16.mxu0 0
      %7459 = vmatpush1.bf16.msra.mxu0 0
      %7460 = vmatprep.subr.bf16.mxu0 0
      %7461 = vmatpush1.bf16.msra.mxu0 0
      %7462 = vmatprep.subr.bf16.mxu0 0
      %7463 = vmatpush1.bf16.msra.mxu0 0
      %7464 = vmatprep.subr.bf16.mxu0 0
      %7465 = vmatpush1.bf16.msra.mxu0 0
      %7466 = vmatprep.subr.bf16.mxu0 0
      %7467 = vmatpush1.bf16.msra.mxu0 0
      %7468 = vmatprep.mubr.bf16.mxu0 %v7060
      %7469 = vmatmul.mubr.bf16.gmra.mrb[0].mxu0 %v7053
      %v7470 = vpop.f32.mrb[0].mxu0
      %v7471 = vadd.f32 %v7024, %v7470
      %v7472 = vpop.f32.mrb[0].mxu0
      %v7473 = vadd.f32 %v7024, %v7472
      %v7474 = vpop.f32.mrb[0].mxu0
      %v7475 = vadd.f32 %v7029, %v7474
      %v7476 = vpop.f32.mrb[0].mxu0
      %v7477 = vadd.f32 %v7029, %v7476
      %7478 = vmatprep.mubr.bf16.mxu0 %v7063
      %7479 = vmatmul.mubr.bf16.gmra.mrb[0].mxu0 %v7055
      %v7480 = vpop.f32.mrb[0].mxu0
      %v7481 = vadd.f32 %v7034, %v7480
      %v7482 = vpop.f32.mrb[0].mxu0
      %v7483 = vadd.f32 %v7034, %v7482
      %v7484 = vpop.f32.mrb[0].mxu0
      %v7485 = vadd.f32 %v7039, %v7484
      %v7486 = vpop.f32.mrb[0].mxu0
      %v7487 = vadd.f32 %v7039, %v7486
      %7488 = vdwg.mxu0
      %v7489 = vmax.f32 %v7100, 0.0
      %v7490 = vmax.f32 %v7102, 0.0
      %v7491 = vmax.f32 %v7153, 0.0
      %v7492 = vmax.f32 %v7155, 0.0
      %v7493 = vmax.f32 %v7206, 0.0
      %v7494 = vmax.f32 %v7208, 0.0
      %v7495 = vmax.f32 %v7259, 0.0
      %v7496 = vmax.f32 %v7261, 0.0
      %v7497 = vmax.f32 %v7312, 0.0
      %v7498 = vmax.f32 %v7314, 0.0
      %v7499 = vmax.f32 %v7365, 0.0
      %v7500 = vmax.f32 %v7367, 0.0
      %v7501 = vmax.f32 %v7418, 0.0
      %v7502 = vmax.f32 %v7420, 0.0
      %v7503 = vmax.f32 %v7471, 0.0
      %v7504 = vmax.f32 %v7473, 0.0
      %v7505 = vmax.f32 %v7104, 0.0
      %v7506 = vmax.f32 %v7106, 0.0
      %v7507 = vmax.f32 %v7157, 0.0
      %v7508 = vmax.f32 %v7159, 0.0
      %v7509 = vmax.f32 %v7210, 0.0
      %v7510 = vmax.f32 %v7212, 0.0
      %v7511 = vmax.f32 %v7263, 0.0
      %v7512 = vmax.f32 %v7265, 0.0
      %v7513 = vmax.f32 %v7316, 0.0
      %v7514 = vmax.f32 %v7318, 0.0
      %v7515 = vmax.f32 %v7369, 0.0
      %v7516 = vmax.f32 %v7371, 0.0
      %v7517 = vmax.f32 %v7422, 0.0
      %v7518 = vmax.f32 %v7424, 0.0
      %v7519 = vmax.f32 %v7475, 0.0
      %v7520 = vmax.f32 %v7477, 0.0
      %v7521 = vmax.f32 %v7110, 0.0
      %v7522 = vmax.f32 %v7112, 0.0
      %v7523 = vmax.f32 %v7163, 0.0
      %v7524 = vmax.f32 %v7165, 0.0
      %v7525 = vmax.f32 %v7216, 0.0
      %v7526 = vmax.f32 %v7218, 0.0
      %v7527 = vmax.f32 %v7269, 0.0
      %v7528 = vmax.f32 %v7271, 0.0
      %v7529 = vmax.f32 %v7322, 0.0
      %v7530 = vmax.f32 %v7324, 0.0
      %v7531 = vmax.f32 %v7375, 0.0
      %v7532 = vmax.f32 %v7377, 0.0
      %v7533 = vmax.f32 %v7428, 0.0
      %v7534 = vmax.f32 %v7430, 0.0
      %v7535 = vmax.f32 %v7481, 0.0
      %v7536 = vmax.f32 %v7483, 0.0
      %v7537 = vmax.f32 %v7114, 0.0
      %v7538 = vmax.f32 %v7116, 0.0
      %v7539 = vmax.f32 %v7167, 0.0
      %v7540 = vmax.f32 %v7169, 0.0
      %v7541 = vmax.f32 %v7220, 0.0
      %v7542 = vmax.f32 %v7222, 0.0
      %v7543 = vmax.f32 %v7273, 0.0
      %v7544 = vmax.f32 %v7275, 0.0
      %v7545 = vmax.f32 %v7326, 0.0
      %v7546 = vmax.f32 %v7328, 0.0
      %v7547 = vmax.f32 %v7379, 0.0
      %v7548 = vmax.f32 %v7381, 0.0
      %v7549 = vmax.f32 %v7432, 0.0
      %v7550 = vmax.f32 %v7434, 0.0
      %v7551 = vmax.f32 %v7485, 0.0
      %v7552 = vmax.f32 %v7487, 0.0
      %v7553 = vld [vmem:[%s11] sm:$0xff]
      %v7554 = vld [vmem:[%s11 + $0x8] sm:$0xff]
      %v7555 = vld [vmem:[%s11 + $0x10] sm:$0xff]
      %v7556 = vld [vmem:[%s11 + $0x18] sm:$0xff]
      %7558 = vset.pattern.permute.xlu0 0
      %7559 = vperm.xlu0 %7558, %v7553
      %v7560 = vpop.permute.xlu0 %7559
      %7563 = vset.pattern.permute.xlu0 0
      %7564 = vperm.xlu0 %7563, %v7554
      %v7565 = vpop.permute.xlu0 %7564
      %7568 = vset.pattern.permute.xlu0 0
      %7569 = vperm.xlu0 %7568, %v7555
      %v7570 = vpop.permute.xlu0 %7569
      %7573 = vset.pattern.permute.xlu0 0
      %7574 = vperm.xlu0 %7573, %v7556
      %v7575 = vpop.permute.xlu0 %7574
      %v7577 = vmul.f32 %v7489, %v7560
      %v7578 = vmul.f32 %v7490, %v7560
      %v7579 = vmul.f32 %v7491, %v7560
      %v7580 = vmul.f32 %v7492, %v7560
      %v7581 = vmul.f32 %v7493, %v7560
      %v7582 = vmul.f32 %v7494, %v7560
      %v7583 = vmul.f32 %v7495, %v7560
      %v7584 = vmul.f32 %v7496, %v7560
      %v7585 = vmul.f32 %v7497, %v7560
      %v7586 = vmul.f32 %v7498, %v7560
      %v7587 = vmul.f32 %v7499, %v7560
      %v7588 = vmul.f32 %v7500, %v7560
      %v7589 = vmul.f32 %v7501, %v7560
      %v7590 = vmul.f32 %v7502, %v7560
      %v7591 = vmul.f32 %v7503, %v7560
      %v7592 = vmul.f32 %v7504, %v7560
      %v7593 = vmul.f32 %v7505, %v7565
      %v7594 = vmul.f32 %v7506, %v7565
      %v7595 = vmul.f32 %v7507, %v7565
      %v7596 = vmul.f32 %v7508, %v7565
      %v7597 = vmul.f32 %v7509, %v7565
      %v7598 = vmul.f32 %v7510, %v7565
      %v7599 = vmul.f32 %v7511, %v7565
      %v7600 = vmul.f32 %v7512, %v7565
      %v7601 = vmul.f32 %v7513, %v7565
      %v7602 = vmul.f32 %v7514, %v7565
      %v7603 = vmul.f32 %v7515, %v7565
      %v7604 = vmul.f32 %v7516, %v7565
      %v7605 = vmul.f32 %v7517, %v7565
      %v7606 = vmul.f32 %v7518, %v7565
      %v7607 = vmul.f32 %v7519, %v7565
      %v7608 = vmul.f32 %v7520, %v7565
      %v7609 = vmul.f32 %v7521, %v7570
      %v7610 = vmul.f32 %v7522, %v7570
      %v7611 = vmul.f32 %v7523, %v7570
      %v7612 = vmul.f32 %v7524, %v7570
      %v7613 = vmul.f32 %v7525, %v7570
      %v7614 = vmul.f32 %v7526, %v7570
      %v7615 = vmul.f32 %v7527, %v7570
      %v7616 = vmul.f32 %v7528, %v7570
      %v7617 = vmul.f32 %v7529, %v7570
      %v7618 = vmul.f32 %v7530, %v7570
      %v7619 = vmul.f32 %v7531, %v7570
      %v7620 = vmul.f32 %v7532, %v7570
      %v7621 = vmul.f32 %v7533, %v7570
      %v7622 = vmul.f32 %v7534, %v7570
      %v7623 = vmul.f32 %v7535, %v7570
      %v7624 = vmul.f32 %v7536, %v7570
      %v7625 = vmul.f32 %v7537, %v7575
      %v7626 = vmul.f32 %v7538, %v7575
      %v7627 = vmul.f32 %v7539, %v7575
      %v7628 = vmul.f32 %v7540, %v7575
      %v7629 = vmul.f32 %v7541, %v7575
      %v7630 = vmul.f32 %v7542, %v7575
      %v7631 = vmul.f32 %v7543, %v7575
      %v7632 = vmul.f32 %v7544, %v7575
      %v7633 = vmul.f32 %v7545, %v7575
      %v7634 = vmul.f32 %v7546, %v7575
      %v7635 = vmul.f32 %v7547, %v7575
      %v7636 = vmul.f32 %v7548, %v7575
      %v7637 = vmul.f32 %v7549, %v7575
      %v7638 = vmul.f32 %v7550, %v7575
      %v7639 = vmul.f32 %v7551, %v7575
      %v7640 = vmul.f32 %v7552, %v7575
      %v7641 = vld [vmem:[%s12] sm:$0xff]
      %v7642 = vld [vmem:[%s12 + $0x8] sm:$0xff]
      %v7643 = vld [vmem:[%s12 + $0x10] sm:$0xff]
      %v7644 = vld [vmem:[%s12 + $0x18] sm:$0xff]
      %7646 = vset.pattern.permute.xlu0 0
      %7647 = vperm.xlu0 %7646, %v7641
      %v7648 = vpop.permute.xlu0 %7647
      %7651 = vset.pattern.permute.xlu0 0
      %7652 = vperm.xlu0 %7651, %v7642
      %v7653 = vpop.permute.xlu0 %7652
      %7656 = vset.pattern.permute.xlu0 0
      %7657 = vperm.xlu0 %7656, %v7643
      %v7658 = vpop.permute.xlu0 %7657
      %7661 = vset.pattern.permute.xlu0 0
      %7662 = vperm.xlu0 %7661, %v7644
      %v7663 = vpop.permute.xlu0 %7662
      %v7665 = vadd.f32 %v7577, %v7648
      %v7666 = vadd.f32 %v7578, %v7648
      %v7667 = vadd.f32 %v7579, %v7648
      %v7668 = vadd.f32 %v7580, %v7648
      %v7669 = vadd.f32 %v7581, %v7648
      %v7670 = vadd.f32 %v7582, %v7648
      %v7671 = vadd.f32 %v7583, %v7648
      %v7672 = vadd.f32 %v7584, %v7648
      %v7673 = vadd.f32 %v7585, %v7648
      %v7674 = vadd.f32 %v7586, %v7648
      %v7675 = vadd.f32 %v7587, %v7648
      %v7676 = vadd.f32 %v7588, %v7648
      %v7677 = vadd.f32 %v7589, %v7648
      %v7678 = vadd.f32 %v7590, %v7648
      %v7679 = vadd.f32 %v7591, %v7648
      %v7680 = vadd.f32 %v7592, %v7648
      %v7681 = vadd.f32 %v7593, %v7653
      %v7682 = vadd.f32 %v7594, %v7653
      %v7683 = vadd.f32 %v7595, %v7653
      %v7684 = vadd.f32 %v7596, %v7653
      %v7685 = vadd.f32 %v7597, %v7653
      %v7686 = vadd.f32 %v7598, %v7653
      %v7687 = vadd.f32 %v7599, %v7653
      %v7688 = vadd.f32 %v7600, %v7653
      %v7689 = vadd.f32 %v7601, %v7653
      %v7690 = vadd.f32 %v7602, %v7653
      %v7691 = vadd.f32 %v7603, %v7653
      %v7692 = vadd.f32 %v7604, %v7653
      %v7693 = vadd.f32 %v7605, %v7653
      %v7694 = vadd.f32 %v7606, %v7653
      %v7695 = vadd.f32 %v7607, %v7653
      %v7696 = vadd.f32 %v7608, %v7653
      %v7697 = vadd.f32 %v7609, %v7658
      %v7698 = vadd.f32 %v7610, %v7658
      %v7699 = vadd.f32 %v7611, %v7658
      %v7700 = vadd.f32 %v7612, %v7658
      %v7701 = vadd.f32 %v7613, %v7658
      %v7702 = vadd.f32 %v7614, %v7658
      %v7703 = vadd.f32 %v7615, %v7658
      %v7704 = vadd.f32 %v7616, %v7658
      %v7705 = vadd.f32 %v7617, %v7658
      %v7706 = vadd.f32 %v7618, %v7658
      %v7707 = vadd.f32 %v7619, %v7658
      %v7708 = vadd.f32 %v7620, %v7658
      %v7709 = vadd.f32 %v7621, %v7658
      %v7710 = vadd.f32 %v7622, %v7658
      %v7711 = vadd.f32 %v7623, %v7658
      %v7712 = vadd.f32 %v7624, %v7658
      %v7713 = vadd.f32 %v7625, %v7663
      %v7714 = vadd.f32 %v7626, %v7663
      %v7715 = vadd.f32 %v7627, %v7663
      %v7716 = vadd.f32 %v7628, %v7663
      %v7717 = vadd.f32 %v7629, %v7663
      %v7718 = vadd.f32 %v7630, %v7663
      %v7719 = vadd.f32 %v7631, %v7663
      %v7720 = vadd.f32 %v7632, %v7663
      %v7721 = vadd.f32 %v7633, %v7663
      %v7722 = vadd.f32 %v7634, %v7663
      %v7723 = vadd.f32 %v7635, %v7663
      %v7724 = vadd.f32 %v7636, %v7663
      %v7725 = vadd.f32 %v7637, %v7663
      %v7726 = vadd.f32 %v7638, %v7663
      %v7727 = vadd.f32 %v7639, %v7663
      %v7728 = vadd.f32 %v7640, %v7663
      %v7729 = vpack.c.bf16 %v7681, %v7665
      %v7730 = vpack.c.bf16 %v7682, %v7666
      %v7731 = vpack.c.bf16 %v7683, %v7667
      %v7732 = vpack.c.bf16 %v7684, %v7668
      %v7733 = vpack.c.bf16 %v7685, %v7669
      %v7734 = vpack.c.bf16 %v7686, %v7670
      %v7735 = vpack.c.bf16 %v7687, %v7671
      %v7736 = vpack.c.bf16 %v7688, %v7672
      %v7737 = vpack.c.bf16 %v7689, %v7673
      %v7738 = vpack.c.bf16 %v7690, %v7674
      %v7739 = vpack.c.bf16 %v7691, %v7675
      %v7740 = vpack.c.bf16 %v7692, %v7676
      %v7741 = vpack.c.bf16 %v7693, %v7677
      %v7742 = vpack.c.bf16 %v7694, %v7678
      %v7743 = vpack.c.bf16 %v7695, %v7679
      %v7744 = vpack.c.bf16 %v7696, %v7680
      %v7745 = vpack.c.bf16 %v7713, %v7697
      %v7746 = vpack.c.bf16 %v7714, %v7698
      %v7747 = vpack.c.bf16 %v7715, %v7699
      %v7748 = vpack.c.bf16 %v7716, %v7700
      %v7749 = vpack.c.bf16 %v7717, %v7701
      %v7750 = vpack.c.bf16 %v7718, %v7702
      %v7751 = vpack.c.bf16 %v7719, %v7703
      %v7752 = vpack.c.bf16 %v7720, %v7704
      %v7753 = vpack.c.bf16 %v7721, %v7705
      %v7754 = vpack.c.bf16 %v7722, %v7706
      %v7755 = vpack.c.bf16 %v7723, %v7707
      %v7756 = vpack.c.bf16 %v7724, %v7708
      %v7757 = vpack.c.bf16 %v7725, %v7709
      %v7758 = vpack.c.bf16 %v7726, %v7710
      %v7759 = vpack.c.bf16 %v7727, %v7711
      %v7760 = vpack.c.bf16 %v7728, %v7712
      %7793 = vrot.lane.b32.xlu0 %v7729, 1
      %v7794 = vpop.permute.xlu0 %7793
      %7795 = vrot.lane.b32.xlu0 %v7730, 1
      %v7796 = vpop.permute.xlu0 %7795
      %7797 = vrot.lane.b32.xlu0 %v7731, 1
      %v7798 = vpop.permute.xlu0 %7797
      %7799 = vrot.lane.b32.xlu0 %v7732, 1
      %v7800 = vpop.permute.xlu0 %7799
      %7801 = vrot.lane.b32.xlu0 %v7733, 1
      %v7802 = vpop.permute.xlu0 %7801
      %7803 = vrot.lane.b32.xlu0 %v7734, 1
      %v7804 = vpop.permute.xlu0 %7803
      %7805 = vrot.lane.b32.xlu0 %v7735, 1
      %v7806 = vpop.permute.xlu0 %7805
      %7807 = vrot.lane.b32.xlu0 %v7736, 1
      %v7808 = vpop.permute.xlu0 %7807
      %7809 = vrot.lane.b32.xlu0 %v7737, 1
      %v7810 = vpop.permute.xlu0 %7809
      %7811 = vrot.lane.b32.xlu0 %v7738, 1
      %v7812 = vpop.permute.xlu0 %7811
      %7813 = vrot.lane.b32.xlu0 %v7739, 1
      %v7814 = vpop.permute.xlu0 %7813
      %7815 = vrot.lane.b32.xlu0 %v7740, 1
      %v7816 = vpop.permute.xlu0 %7815
      %7817 = vrot.lane.b32.xlu0 %v7741, 1
      %v7818 = vpop.permute.xlu0 %7817
      %7819 = vrot.lane.b32.xlu0 %v7742, 1
      %v7820 = vpop.permute.xlu0 %7819
      %7821 = vrot.lane.b32.xlu0 %v7743, 1
      %v7822 = vpop.permute.xlu0 %7821
      %7823 = vrot.lane.b32.xlu0 %v7744, 1
      %v7824 = vpop.permute.xlu0 %7823
      %7825 = vrot.lane.b32.xlu0 %v7745, 1
      %v7826 = vpop.permute.xlu0 %7825
      %7827 = vrot.lane.b32.xlu0 %v7746, 1
      %v7828 = vpop.permute.xlu0 %7827
      %7829 = vrot.lane.b32.xlu0 %v7747, 1
      %v7830 = vpop.permute.xlu0 %7829
      %7831 = vrot.lane.b32.xlu0 %v7748, 1
      %v7832 = vpop.permute.xlu0 %7831
      %7833 = vrot.lane.b32.xlu0 %v7749, 1
      %v7834 = vpop.permute.xlu0 %7833
      %7835 = vrot.lane.b32.xlu0 %v7750, 1
      %v7836 = vpop.permute.xlu0 %7835
      %7837 = vrot.lane.b32.xlu0 %v7751, 1
      %v7838 = vpop.permute.xlu0 %7837
      %7839 = vrot.lane.b32.xlu0 %v7752, 1
      %v7840 = vpop.permute.xlu0 %7839
      %7841 = vrot.lane.b32.xlu0 %v7753, 1
      %v7842 = vpop.permute.xlu0 %7841
      %7843 = vrot.lane.b32.xlu0 %v7754, 1
      %v7844 = vpop.permute.xlu0 %7843
      %7845 = vrot.lane.b32.xlu0 %v7755, 1
      %v7846 = vpop.permute.xlu0 %7845
      %7847 = vrot.lane.b32.xlu0 %v7756, 1
      %v7848 = vpop.permute.xlu0 %7847
      %7849 = vrot.lane.b32.xlu0 %v7757, 1
      %v7850 = vpop.permute.xlu0 %7849
      %7851 = vrot.lane.b32.xlu0 %v7758, 1
      %v7852 = vpop.permute.xlu0 %7851
      %7853 = vrot.lane.b32.xlu0 %v7759, 1
      %v7854 = vpop.permute.xlu0 %7853
      %7855 = vrot.lane.b32.xlu0 %v7760, 1
      %v7856 = vpop.permute.xlu0 %7855
      %v7857 = vsel %vm4511, %v7794, %v7796
      %v7858 = vsel %vm4511, %v7796, %v7798
      %v7859 = vsel %vm4511, %v7798, %v7800
      %v7860 = vsel %vm4511, %v7800, %v7802
      %v7861 = vsel %vm4511, %v7802, %v7804
      %v7862 = vsel %vm4511, %v7804, %v7806
      %v7863 = vsel %vm4511, %v7806, %v7808
      %v7864 = vsel %vm4511, %v7808, %v7810
      %v7865 = vsel %vm4511, %v7810, %v7812
      %v7866 = vsel %vm4511, %v7812, %v7814
      %v7867 = vsel %vm4511, %v7814, %v7816
      %v7868 = vsel %vm4511, %v7816, %v7818
      %v7869 = vsel %vm4511, %v7818, %v7820
      %v7870 = vsel %vm4511, %v7820, %v7822
      %v7871 = vsel %vm4511, %v7822, %v7824
      %v7872 = vsel %vm4511, %v7826, %v7828
      %v7873 = vsel %vm4511, %v7828, %v7830
      %v7874 = vsel %vm4511, %v7830, %v7832
      %v7875 = vsel %vm4511, %v7832, %v7834
      %v7876 = vsel %vm4511, %v7834, %v7836
      %v7877 = vsel %vm4511, %v7836, %v7838
      %v7878 = vsel %vm4511, %v7838, %v7840
      %v7879 = vsel %vm4511, %v7840, %v7842
      %v7880 = vsel %vm4511, %v7842, %v7844
      %v7881 = vsel %vm4511, %v7844, %v7846
      %v7882 = vsel %vm4511, %v7846, %v7848
      %v7883 = vsel %vm4511, %v7848, %v7850
      %v7884 = vsel %vm4511, %v7850, %v7852
      %v7885 = vsel %vm4511, %v7852, %v7854
      %v7886 = vsel %vm4511, %v7854, %v7856
      %v7918 = vsel %vm1152, 0, %v7794
      %v7921 = vsel %vm1152, 0, %v7826
      %v7923 = vsel %vm6714, %v7918, 0
      %v7924 = vsel %vm6715, %v7857, 0
      %v7925 = vsel %vm6716, %v7858, 0
      %v7926 = vsel %vm6717, %v7859, 0
      %v7927 = vsel %vm6718, %v7860, 0
      %v7928 = vsel %vm6719, %v7861, 0
      %v7929 = vsel %vm6720, %v7862, 0
      %v7930 = vsel %vm6721, %v7863, 0
      %v7931 = vsel %vm6722, %v7864, 0
      %v7932 = vsel %vm6723, %v7865, 0
      %v7933 = vsel %vm6724, %v7866, 0
      %v7934 = vsel %vm6725, %v7867, 0
      %v7935 = vsel %vm6726, %v7868, 0
      %v7936 = vsel %vm6727, %v7869, 0
      %v7937 = vsel %vm6728, %v7870, 0
      %v7938 = vsel %vm6729, %v7871, 0
      %v7939 = vsel %vm6714, %v7921, 0
      %v7940 = vsel %vm6715, %v7872, 0
      %v7941 = vsel %vm6716, %v7873, 0
      %v7942 = vsel %vm6717, %v7874, 0
      %v7943 = vsel %vm6718, %v7875, 0
      %v7944 = vsel %vm6719, %v7876, 0
      %v7945 = vsel %vm6720, %v7877, 0
      %v7946 = vsel %vm6721, %v7878, 0
      %v7947 = vsel %vm6722, %v7879, 0
      %v7948 = vsel %vm6723, %v7880, 0
      %v7949 = vsel %vm6724, %v7881, 0
      %v7950 = vsel %vm6725, %v7882, 0
      %v7951 = vsel %vm6726, %v7883, 0
      %v7952 = vsel %vm6727, %v7884, 0
      %v7953 = vsel %vm6728, %v7885, 0
      %v7954 = vsel %vm6729, %v7886, 0
      %7955 = vrot.lane.b32.xlu0 %v7729, 127
      %v7956 = vpop.permute.xlu0 %7955
      %7957 = vrot.lane.b32.xlu0 %v7730, 127
      %v7958 = vpop.permute.xlu0 %7957
      %7959 = vrot.lane.b32.xlu0 %v7731, 127
      %v7960 = vpop.permute.xlu0 %7959
      %7961 = vrot.lane.b32.xlu0 %v7732, 127
      %v7962 = vpop.permute.xlu0 %7961
      %7963 = vrot.lane.b32.xlu0 %v7733, 127
      %v7964 = vpop.permute.xlu0 %7963
      %7965 = vrot.lane.b32.xlu0 %v7734, 127
      %v7966 = vpop.permute.xlu0 %7965
      %7967 = vrot.lane.b32.xlu0 %v7735, 127
      %v7968 = vpop.permute.xlu0 %7967
      %7969 = vrot.lane.b32.xlu0 %v7736, 127
      %v7970 = vpop.permute.xlu0 %7969
      %7971 = vrot.lane.b32.xlu0 %v7737, 127
      %v7972 = vpop.permute.xlu0 %7971
      %7973 = vrot.lane.b32.xlu0 %v7738, 127
      %v7974 = vpop.permute.xlu0 %7973
      %7975 = vrot.lane.b32.xlu0 %v7739, 127
      %v7976 = vpop.permute.xlu0 %7975
      %7977 = vrot.lane.b32.xlu0 %v7740, 127
      %v7978 = vpop.permute.xlu0 %7977
      %7979 = vrot.lane.b32.xlu0 %v7741, 127
      %v7980 = vpop.permute.xlu0 %7979
      %7981 = vrot.lane.b32.xlu0 %v7742, 127
      %v7982 = vpop.permute.xlu0 %7981
      %7983 = vrot.lane.b32.xlu0 %v7743, 127
      %v7984 = vpop.permute.xlu0 %7983
      %7985 = vrot.lane.b32.xlu0 %v7744, 127
      %v7986 = vpop.permute.xlu0 %7985
      %7987 = vrot.lane.b32.xlu0 %v7745, 127
      %v7988 = vpop.permute.xlu0 %7987
      %7989 = vrot.lane.b32.xlu0 %v7746, 127
      %v7990 = vpop.permute.xlu0 %7989
      %7991 = vrot.lane.b32.xlu0 %v7747, 127
      %v7992 = vpop.permute.xlu0 %7991
      %7993 = vrot.lane.b32.xlu0 %v7748, 127
      %v7994 = vpop.permute.xlu0 %7993
      %7995 = vrot.lane.b32.xlu0 %v7749, 127
      %v7996 = vpop.permute.xlu0 %7995
      %7997 = vrot.lane.b32.xlu0 %v7750, 127
      %v7998 = vpop.permute.xlu0 %7997
      %7999 = vrot.lane.b32.xlu0 %v7751, 127
      %v8000 = vpop.permute.xlu0 %7999
      %8001 = vrot.lane.b32.xlu0 %v7752, 127
      %v8002 = vpop.permute.xlu0 %8001
      %8003 = vrot.lane.b32.xlu0 %v7753, 127
      %v8004 = vpop.permute.xlu0 %8003
      %8005 = vrot.lane.b32.xlu0 %v7754, 127
      %v8006 = vpop.permute.xlu0 %8005
      %8007 = vrot.lane.b32.xlu0 %v7755, 127
      %v8008 = vpop.permute.xlu0 %8007
      %8009 = vrot.lane.b32.xlu0 %v7756, 127
      %v8010 = vpop.permute.xlu0 %8009
      %8011 = vrot.lane.b32.xlu0 %v7757, 127
      %v8012 = vpop.permute.xlu0 %8011
      %8013 = vrot.lane.b32.xlu0 %v7758, 127
      %v8014 = vpop.permute.xlu0 %8013
      %8015 = vrot.lane.b32.xlu0 %v7759, 127
      %v8016 = vpop.permute.xlu0 %8015
      %8017 = vrot.lane.b32.xlu0 %v7760, 127
      %v8018 = vpop.permute.xlu0 %8017
      %v8019 = vsel %vm5030, %v7956, %v7958
      %v8020 = vsel %vm5030, %v7958, %v7960
      %v8021 = vsel %vm5030, %v7960, %v7962
      %v8022 = vsel %vm5030, %v7962, %v7964
      %v8023 = vsel %vm5030, %v7964, %v7966
      %v8024 = vsel %vm5030, %v7966, %v7968
      %v8025 = vsel %vm5030, %v7968, %v7970
      %v8026 = vsel %vm5030, %v7970, %v7972
      %v8027 = vsel %vm5030, %v7972, %v7974
      %v8028 = vsel %vm5030, %v7974, %v7976
      %v8029 = vsel %vm5030, %v7976, %v7978
      %v8030 = vsel %vm5030, %v7978, %v7980
      %v8031 = vsel %vm5030, %v7980, %v7982
      %v8032 = vsel %vm5030, %v7982, %v7984
      %v8033 = vsel %vm5030, %v7984, %v7986
      %v8034 = vsel %vm5030, %v7988, %v7990
      %v8035 = vsel %vm5030, %v7990, %v7992
      %v8036 = vsel %vm5030, %v7992, %v7994
      %v8037 = vsel %vm5030, %v7994, %v7996
      %v8038 = vsel %vm5030, %v7996, %v7998
      %v8039 = vsel %vm5030, %v7998, %v8000
      %v8040 = vsel %vm5030, %v8000, %v8002
      %v8041 = vsel %vm5030, %v8002, %v8004
      %v8042 = vsel %vm5030, %v8004, %v8006
      %v8043 = vsel %vm5030, %v8006, %v8008
      %v8044 = vsel %vm5030, %v8008, %v8010
      %v8045 = vsel %vm5030, %v8010, %v8012
      %v8046 = vsel %vm5030, %v8012, %v8014
      %v8047 = vsel %vm5030, %v8014, %v8016
      %v8048 = vsel %vm5030, %v8016, %v8018
      %v8080 = vsel %vm1475, %v7986, 0
      %v8083 = vsel %vm1475, %v8018, 0
      %v8085 = vsel %vm6981, %v8019, 0
      %v8086 = vsel %vm6982, %v8020, 0
      %v8087 = vsel %vm6983, %v8021, 0
      %v8088 = vsel %vm6984, %v8022, 0
      %v8089 = vsel %vm6985, %v8023, 0
      %v8090 = vsel %vm6986, %v8024, 0
      %v8091 = vsel %vm6987, %v8025, 0
      %v8092 = vsel %vm6988, %v8026, 0
      %v8093 = vsel %vm6989, %v8027, 0
      %v8094 = vsel %vm6990, %v8028, 0
      %v8095 = vsel %vm6991, %v8029, 0
      %v8096 = vsel %vm6992, %v8030, 0
      %v8097 = vsel %vm6993, %v8031, 0
      %v8098 = vsel %vm6994, %v8032, 0
      %v8099 = vsel %vm6995, %v8033, 0
      %v8100 = vsel %vm6996, %v8080, 0
      %v8101 = vsel %vm6981, %v8034, 0
      %v8102 = vsel %vm6982, %v8035, 0
      %v8103 = vsel %vm6983, %v8036, 0
      %v8104 = vsel %vm6984, %v8037, 0
      %v8105 = vsel %vm6985, %v8038, 0
      %v8106 = vsel %vm6986, %v8039, 0
      %v8107 = vsel %vm6987, %v8040, 0
      %v8108 = vsel %vm6988, %v8041, 0
      %v8109 = vsel %vm6989, %v8042, 0
      %v8110 = vsel %vm6990, %v8043, 0
      %v8111 = vsel %vm6991, %v8044, 0
      %v8112 = vsel %vm6992, %v8045, 0
      %v8113 = vsel %vm6993, %v8046, 0
      %v8114 = vsel %vm6994, %v8047, 0
      %v8115 = vsel %vm6995, %v8048, 0
      %v8116 = vsel %vm6996, %v8083, 0
      %v8117 = vld [vmem:[%s13] sm:$0xff]
      %v8118 = vld [vmem:[%s13 + $0x8] sm:$0xf]
      %v8119 = vld [vmem:[%s13 + $0xc] sm:$0xff]
      %v8120 = vld [vmem:[%s13 + $0x14] sm:$0xf]
      %v8121 = vld [vmem:[%s13 + $0x18] sm:$0xff]
      %v8122 = vld [vmem:[%s13 + $0x20] sm:$0xf]
      %v8123 = vld [vmem:[%s13 + $0x24] sm:$0xff]
      %v8124 = vld [vmem:[%s13 + $0x2c] sm:$0xf]
      %v8125 = vld [vmem:[%s14] sm:$0xff]
      %v8126 = vld [vmem:[%s14 + $0x8] sm:$0xff]
      %v8127 = vld [vmem:[%s14 + $0x10] sm:$0xff]
      %v8128 = vld [vmem:[%s14 + $0x18] sm:$0xff]
      %8130 = vset.pattern.permute.xlu0 0
      %8131 = vperm.xlu0 %8130, %v8125
      %v8132 = vpop.permute.xlu0 %8131
      %8135 = vset.pattern.permute.xlu0 0
      %8136 = vperm.xlu0 %8135, %v8126
      %v8137 = vpop.permute.xlu0 %8136
      %8140 = vset.pattern.permute.xlu0 0
      %8141 = vperm.xlu0 %8140, %v8127
      %v8142 = vpop.permute.xlu0 %8141
      %8145 = vset.pattern.permute.xlu0 0
      %8146 = vperm.xlu0 %8145, %v8128
      %v8147 = vpop.permute.xlu0 %8146
      %v8157 = vunpack.c.l.b16 %v8117
      %v8158 = vunpack.c.h.b16 %v8117
      %v8159 = vunpack.c.l.b16 %v8118
      %v8160 = vunpack.c.l.b16 %v8119
      %v8161 = vunpack.c.h.b16 %v8119
      %v8162 = vunpack.c.l.b16 %v8120
      %v8163 = vunpack.c.l.b16 %v8121
      %v8164 = vunpack.c.h.b16 %v8121
      %v8165 = vunpack.c.l.b16 %v8122
      %v8166 = vunpack.c.l.b16 %v8123
      %v8167 = vunpack.c.h.b16 %v8123
      %v8168 = vunpack.c.l.b16 %v8124
      %v8169 = vpack.c.b16 %v8160, %v8157
      %v8170 = vpack.c.b16 %v8161, %v8158
      %v8171 = vpack.c.b16 %v8162, %v8159
      %v8172 = vpack.c.b16 %v8166, %v8163
      %v8173 = vpack.c.b16 %v8167, %v8164
      %v8174 = vpack.c.b16 %v8168, %v8165
      %vm8179 = vcmask 261120
      %v8181 = vsel %vm8179, %v8171, 0
      %v8184 = vsel %vm8179, %v8174, 0
      %8186 = vmatprep.subr.bf16.mxu0 %v7923
      %8187 = vmatpush1.bf16.msra.mxu0 0
      %8188 = vmatprep.subr.bf16.mxu0 %v7939
      %8189 = vmatpush1.bf16.msra.mxu0 0
      %8190 = vmatprep.subr.bf16.mxu0 %v7729
      %8191 = vmatpush1.bf16.msra.mxu0 0
      %8192 = vmatprep.subr.bf16.mxu0 %v7745
      %8193 = vmatpush1.bf16.msra.mxu0 0
      %8194 = vmatprep.subr.bf16.mxu0 %v8085
      %8195 = vmatpush1.bf16.msra.mxu0 0
      %8196 = vmatprep.subr.bf16.mxu0 %v8101
      %8197 = vmatpush1.bf16.msra.mxu0 0
      %8198 = vmatprep.subr.bf16.mxu0 %v7924
      %8199 = vmatpush1.bf16.msra.mxu0 %v7923
      %8200 = vmatprep.subr.bf16.mxu0 %v7940
      %8201 = vmatpush1.bf16.msra.mxu0 %v7939
      %8202 = vmatprep.subr.bf16.mxu0 %v7730
      %8203 = vmatpush1.bf16.msra.mxu0 %v7729
      %8204 = vmatprep.subr.bf16.mxu0 %v7746
      %8205 = vmatpush1.bf16.msra.mxu0 %v7745
      %8206 = vmatprep.subr.bf16.mxu0 %v8086
      %8207 = vmatpush1.bf16.msra.mxu0 %v8085
      %8208 = vmatprep.subr.bf16.mxu0 %v8102
      %8209 = vmatpush1.bf16.msra.mxu0 %v8101
      %8210 = vmatprep.subr.bf16.mxu0 %v7925
      %8211 = vmatpush1.bf16.msra.mxu0 %v7924
      %8212 = vmatprep.subr.bf16.mxu0 %v7941
      %8213 = vmatpush1.bf16.msra.mxu0 %v7940
      %8214 = vmatprep.subr.bf16.mxu0 %v7731
      %8215 = vmatpush1.bf16.msra.mxu0 %v7730
      %8216 = vmatprep.subr.bf16.mxu0 %v7747
      %8217 = vmatpush1.bf16.msra.mxu0 %v7746
      %8218 = vmatprep.mubr.bf16.mxu0 %v8170
      %8219 = vmatmul.mubr.bf16.gmra.mrb[0].mxu0 %v8169
      %v8220 = vpop.f32.mrb[0].mxu0
      %v8221 = vadd.f32 %v8132, %v8220
      %v8222 = vpop.f32.mrb[0].mxu0
      %v8223 = vadd.f32 %v8132, %v8222
      %v8224 = vpop.f32.mrb[0].mxu0
      %v8225 = vadd.f32 %v8137, %v8224
      %v8226 = vpop.f32.mrb[0].mxu0
      %v8227 = vadd.f32 %v8137, %v8226
      %8228 = vmatprep.mubr.bf16.mxu0 %v8173
      %8229 = vmatmul.mubr.bf16.gmra.mrb[0].mxu0 %v8172
      %v8230 = vpop.f32.mrb[0].mxu0
      %v8231 = vadd.f32 %v8142, %v8230
      %v8232 = vpop.f32.mrb[0].mxu0
      %v8233 = vadd.f32 %v8142, %v8232
      %v8234 = vpop.f32.mrb[0].mxu0
      %v8235 = vadd.f32 %v8147, %v8234
      %v8236 = vpop.f32.mrb[0].mxu0
      %v8237 = vadd.f32 %v8147, %v8236
      %8238 = vdwg.mxu0
      %8239 = vmatprep.subr.bf16.mxu0 %v8087
      %8240 = vmatpush1.bf16.msra.mxu0 %v8086
      %8241 = vmatprep.subr.bf16.mxu0 %v8103
      %8242 = vmatpush1.bf16.msra.mxu0 %v8102
      %8243 = vmatprep.subr.bf16.mxu0 0
      %8244 = vmatpush1.bf16.msra.mxu0 0
      %8245 = vmatprep.subr.bf16.mxu0 0
      %8246 = vmatpush1.bf16.msra.mxu0 0
      %8247 = vmatprep.subr.bf16.mxu0 0
      %8248 = vmatpush1.bf16.msra.mxu0 0
      %8249 = vmatprep.subr.bf16.mxu0 0
      %8250 = vmatpush1.bf16.msra.mxu0 0
      %8251 = vmatprep.subr.bf16.mxu0 0
      %8252 = vmatpush1.bf16.msra.mxu0 0
      %8253 = vmatprep.subr.bf16.mxu0 0
      %8254 = vmatpush1.bf16.msra.mxu0 0
      %8255 = vmatprep.subr.bf16.mxu0 0
      %8256 = vmatpush1.bf16.msra.mxu0 0
      %8257 = vmatprep.subr.bf16.mxu0 0
      %8258 = vmatpush1.bf16.msra.mxu0 0
      %8259 = vmatprep.subr.bf16.mxu0 0
      %8260 = vmatpush1.bf16.msra.mxu0 0
      %8261 = vmatprep.subr.bf16.mxu0 0
      %8262 = vmatpush1.bf16.msra.mxu0 0
      %8263 = vmatprep.subr.bf16.mxu0 0
      %8264 = vmatpush1.bf16.msra.mxu0 0
      %8265 = vmatprep.subr.bf16.mxu0 0
      %8266 = vmatpush1.bf16.msra.mxu0 0
      %8267 = vmatprep.subr.bf16.mxu0 0
      %8268 = vmatpush1.bf16.msra.mxu0 0
      %8269 = vmatprep.subr.bf16.mxu0 0
      %8270 = vmatpush1.bf16.msra.mxu0 0
      %8271 = vmatprep.mubr.bf16.mxu0 0
      %8272 = vmatmul.mubr.bf16.gmra.mrb[0].mxu0 %v8181
      %v8273 = vpop.f32.mrb[0].mxu0
      %v8274 = vadd.f32 %v8221, %v8273
      %v8275 = vpop.f32.mrb[0].mxu0
      %v8276 = vadd.f32 %v8223, %v8275
      %v8277 = vpop.f32.mrb[0].mxu0
      %v8278 = vadd.f32 %v8225, %v8277
      %v8279 = vpop.f32.mrb[0].mxu0
      %v8280 = vadd.f32 %v8227, %v8279
      %8281 = vmatprep.mubr.bf16.mxu0 0
      %8282 = vmatmul.mubr.bf16.gmra.mrb[0].mxu0 %v8184
      %v8283 = vpop.f32.mrb[0].mxu0
      %v8284 = vadd.f32 %v8231, %v8283
      %v8285 = vpop.f32.mrb[0].mxu0
      %v8286 = vadd.f32 %v8233, %v8285
      %v8287 = vpop.f32.mrb[0].mxu0
      %v8288 = vadd.f32 %v8235, %v8287
      %v8289 = vpop.f32.mrb[0].mxu0
      %v8290 = vadd.f32 %v8237, %v8289
      %8291 = vdwg.mxu0
      %8292 = vmatprep.subr.bf16.mxu0 %v7925
      %8293 = vmatpush1.bf16.msra.mxu0 %v7924
      %8294 = vmatprep.subr.bf16.mxu0 %v7941
      %8295 = vmatpush1.bf16.msra.mxu0 %v7940
      %8296 = vmatprep.subr.bf16.mxu0 %v7731
      %8297 = vmatpush1.bf16.msra.mxu0 %v7730
      %8298 = vmatprep.subr.bf16.mxu0 %v7747
      %8299 = vmatpush1.bf16.msra.mxu0 %v7746
      %8300 = vmatprep.subr.bf16.mxu0 %v8087
      %8301 = vmatpush1.bf16.msra.mxu0 %v8086
      %8302 = vmatprep.subr.bf16.mxu0 %v8103
      %8303 = vmatpush1.bf16.msra.mxu0 %v8102
      %8304 = vmatprep.subr.bf16.mxu0 %v7926
      %8305 = vmatpush1.bf16.msra.mxu0 %v7925
      %8306 = vmatprep.subr.bf16.mxu0 %v7942
      %8307 = vmatpush1.bf16.msra.mxu0 %v7941
      %8308 = vmatprep.subr.bf16.mxu0 %v7732
      %8309 = vmatpush1.bf16.msra.mxu0 %v7731
      %8310 = vmatprep.subr.bf16.mxu0 %v7748
      %8311 = vmatpush1.bf16.msra.mxu0 %v7747
      %8312 = vmatprep.subr.bf16.mxu0 %v8088
      %8313 = vmatpush1.bf16.msra.mxu0 %v8087
      %8314 = vmatprep.subr.bf16.mxu0 %v8104
      %8315 = vmatpush1.bf16.msra.mxu0 %v8103
      %8316 = vmatprep.subr.bf16.mxu0 %v7927
      %8317 = vmatpush1.bf16.msra.mxu0 %v7926
      %8318 = vmatprep.subr.bf16.mxu0 %v7943
      %8319 = vmatpush1.bf16.msra.mxu0 %v7942
      %8320 = vmatprep.subr.bf16.mxu0 %v7733
      %8321 = vmatpush1.bf16.msra.mxu0 %v7732
      %8322 = vmatprep.subr.bf16.mxu0 %v7749
      %8323 = vmatpush1.bf16.msra.mxu0 %v7748
      %8324 = vmatprep.mubr.bf16.mxu0 %v8170
      %8325 = vmatmul.mubr.bf16.gmra.mrb[0].mxu0 %v8169
      %v8326 = vpop.f32.mrb[0].mxu0
      %v8327 = vadd.f32 %v8132, %v8326
      %v8328 = vpop.f32.mrb[0].mxu0
      %v8329 = vadd.f32 %v8132, %v8328
      %v8330 = vpop.f32.mrb[0].mxu0
      %v8331 = vadd.f32 %v8137, %v8330
      %v8332 = vpop.f32.mrb[0].mxu0
      %v8333 = vadd.f32 %v8137, %v8332
      %8334 = vmatprep.mubr.bf16.mxu0 %v8173
      %8335 = vmatmul.mubr.bf16.gmra.mrb[0].mxu0 %v8172
      %v8336 = vpop.f32.mrb[0].mxu0
      %v8337 = vadd.f32 %v8142, %v8336
      %v8338 = vpop.f32.mrb[0].mxu0
      %v8339 = vadd.f32 %v8142, %v8338
      %v8340 = vpop.f32.mrb[0].mxu0
      %v8341 = vadd.f32 %v8147, %v8340
      %v8342 = vpop.f32.mrb[0].mxu0
      %v8343 = vadd.f32 %v8147, %v8342
      %8344 = vdwg.mxu0
      %8345 = vmatprep.subr.bf16.mxu0 %v8089
      %8346 = vmatpush1.bf16.msra.mxu0 %v8088
      %8347 = vmatprep.subr.bf16.mxu0 %v8105
      %8348 = vmatpush1.bf16.msra.mxu0 %v8104
      %8349 = vmatprep.subr.bf16.mxu0 0
      %8350 = vmatpush1.bf16.msra.mxu0 0
      %8351 = vmatprep.subr.bf16.mxu0 0
      %8352 = vmatpush1.bf16.msra.mxu0 0
      %8353 = vmatprep.subr.bf16.mxu0 0
      %8354 = vmatpush1.bf16.msra.mxu0 0
      %8355 = vmatprep.subr.bf16.mxu0 0
      %8356 = vmatpush1.bf16.msra.mxu0 0
      %8357 = vmatprep.subr.bf16.mxu0 0
      %8358 = vmatpush1.bf16.msra.mxu0 0
      %8359 = vmatprep.subr.bf16.mxu0 0
      %8360 = vmatpush1.bf16.msra.mxu0 0
      %8361 = vmatprep.subr.bf16.mxu0 0
      %8362 = vmatpush1.bf16.msra.mxu0 0
      %8363 = vmatprep.subr.bf16.mxu0 0
      %8364 = vmatpush1.bf16.msra.mxu0 0
      %8365 = vmatprep.subr.bf16.mxu0 0
      %8366 = vmatpush1.bf16.msra.mxu0 0
      %8367 = vmatprep.subr.bf16.mxu0 0
      %8368 = vmatpush1.bf16.msra.mxu0 0
      %8369 = vmatprep.subr.bf16.mxu0 0
      %8370 = vmatpush1.bf16.msra.mxu0 0
      %8371 = vmatprep.subr.bf16.mxu0 0
      %8372 = vmatpush1.bf16.msra.mxu0 0
      %8373 = vmatprep.subr.bf16.mxu0 0
      %8374 = vmatpush1.bf16.msra.mxu0 0
      %8375 = vmatprep.subr.bf16.mxu0 0
      %8376 = vmatpush1.bf16.msra.mxu0 0
      %8377 = vmatprep.mubr.bf16.mxu0 0
      %8378 = vmatmul.mubr.bf16.gmra.mrb[0].mxu0 %v8181
      %v8379 = vpop.f32.mrb[0].mxu0
      %v8380 = vadd.f32 %v8327, %v8379
      %v8381 = vpop.f32.mrb[0].mxu0
      %v8382 = vadd.f32 %v8329, %v8381
      %v8383 = vpop.f32.mrb[0].mxu0
      %v8384 = vadd.f32 %v8331, %v8383
      %v8385 = vpop.f32.mrb[0].mxu0
      %v8386 = vadd.f32 %v8333, %v8385
      %8387 = vmatprep.mubr.bf16.mxu0 0
      %8388 = vmatmul.mubr.bf16.gmra.mrb[0].mxu0 %v8184
      %v8389 = vpop.f32.mrb[0].mxu0
      %v8390 = vadd.f32 %v8337, %v8389
      %v8391 = vpop.f32.mrb[0].mxu0
      %v8392 = vadd.f32 %v8339, %v8391
      %v8393 = vpop.f32.mrb[0].mxu0
      %v8394 = vadd.f32 %v8341, %v8393
      %v8395 = vpop.f32.mrb[0].mxu0
      %v8396 = vadd.f32 %v8343, %v8395
      %8397 = vdwg.mxu0
      %8398 = vmatprep.subr.bf16.mxu0 %v7927
      %8399 = vmatpush1.bf16.msra.mxu0 %v7926
      %8400 = vmatprep.subr.bf16.mxu0 %v7943
      %8401 = vmatpush1.bf16.msra.mxu0 %v7942
      %8402 = vmatprep.subr.bf16.mxu0 %v7733
      %8403 = vmatpush1.bf16.msra.mxu0 %v7732
      %8404 = vmatprep.subr.bf16.mxu0 %v7749
      %8405 = vmatpush1.bf16.msra.mxu0 %v7748
      %8406 = vmatprep.subr.bf16.mxu0 %v8089
      %8407 = vmatpush1.bf16.msra.mxu0 %v8088
      %8408 = vmatprep.subr.bf16.mxu0 %v8105
      %8409 = vmatpush1.bf16.msra.mxu0 %v8104
      %8410 = vmatprep.subr.bf16.mxu0 %v7928
      %8411 = vmatpush1.bf16.msra.mxu0 %v7927
      %8412 = vmatprep.subr.bf16.mxu0 %v7944
      %8413 = vmatpush1.bf16.msra.mxu0 %v7943
      %8414 = vmatprep.subr.bf16.mxu0 %v7734
      %8415 = vmatpush1.bf16.msra.mxu0 %v7733
      %8416 = vmatprep.subr.bf16.mxu0 %v7750
      %8417 = vmatpush1.bf16.msra.mxu0 %v7749
      %8418 = vmatprep.subr.bf16.mxu0 %v8090
      %8419 = vmatpush1.bf16.msra.mxu0 %v8089
      %8420 = vmatprep.subr.bf16.mxu0 %v8106
      %8421 = vmatpush1.bf16.msra.mxu0 %v8105
      %8422 = vmatprep.subr.bf16.mxu0 %v7929
      %8423 = vmatpush1.bf16.msra.mxu0 %v7928
      %8424 = vmatprep.subr.bf16.mxu0 %v7945
      %8425 = vmatpush1.bf16.msra.mxu0 %v7944
      %8426 = vmatprep.subr.bf16.mxu0 %v7735
      %8427 = vmatpush1.bf16.msra.mxu0 %v7734
      %8428 = vmatprep.subr.bf16.mxu0 %v7751
      %8429 = vmatpush1.bf16.msra.mxu0 %v7750
      %8430 = vmatprep.mubr.bf16.mxu0 %v8170
      %8431 = vmatmul.mubr.bf16.gmra.mrb[0].mxu0 %v8169
      %v8432 = vpop.f32.mrb[0].mxu0
      %v8433 = vadd.f32 %v8132, %v8432
      %v8434 = vpop.f32.mrb[0].mxu0
      %v8435 = vadd.f32 %v8132, %v8434
      %v8436 = vpop.f32.mrb[0].mxu0
      %v8437 = vadd.f32 %v8137, %v8436
      %v8438 = vpop.f32.mrb[0].mxu0
      %v8439 = vadd.f32 %v8137, %v8438
      %8440 = vmatprep.mubr.bf16.mxu0 %v8173
      %8441 = vmatmul.mubr.bf16.gmra.mrb[0].mxu0 %v8172
      %v8442 = vpop.f32.mrb[0].mxu0
      %v8443 = vadd.f32 %v8142, %v8442
      %v8444 = vpop.f32.mrb[0].mxu0
      %v8445 = vadd.f32 %v8142, %v8444
      %v8446 = vpop.f32.mrb[0].mxu0
      %v8447 = vadd.f32 %v8147, %v8446
      %v8448 = vpop.f32.mrb[0].mxu0
      %v8449 = vadd.f32 %v8147, %v8448
      %8450 = vdwg.mxu0
      %8451 = vmatprep.subr.bf16.mxu0 %v8091
      %8452 = vmatpush1.bf16.msra.mxu0 %v8090
      %8453 = vmatprep.subr.bf16.mxu0 %v8107
      %8454 = vmatpush1.bf16.msra.mxu0 %v8106
      %8455 = vmatprep.subr.bf16.mxu0 0
      %8456 = vmatpush1.bf16.msra.mxu0 0
      %8457 = vmatprep.subr.bf16.mxu0 0
      %8458 = vmatpush1.bf16.msra.mxu0 0
      %8459 = vmatprep.subr.bf16.mxu0 0
      %8460 = vmatpush1.bf16.msra.mxu0 0
      %8461 = vmatprep.subr.bf16.mxu0 0
      %8462 = vmatpush1.bf16.msra.mxu0 0
      %8463 = vmatprep.subr.bf16.mxu0 0
      %8464 = vmatpush1.bf16.msra.mxu0 0
      %8465 = vmatprep.subr.bf16.mxu0 0
      %8466 = vmatpush1.bf16.msra.mxu0 0
      %8467 = vmatprep.subr.bf16.mxu0 0
      %8468 = vmatpush1.bf16.msra.mxu0 0
      %8469 = vmatprep.subr.bf16.mxu0 0
      %8470 = vmatpush1.bf16.msra.mxu0 0
      %8471 = vmatprep.subr.bf16.mxu0 0
      %8472 = vmatpush1.bf16.msra.mxu0 0
      %8473 = vmatprep.subr.bf16.mxu0 0
      %8474 = vmatpush1.bf16.msra.mxu0 0
      %8475 = vmatprep.subr.bf16.mxu0 0
      %8476 = vmatpush1.bf16.msra.mxu0 0
      %8477 = vmatprep.subr.bf16.mxu0 0
      %8478 = vmatpush1.bf16.msra.mxu0 0
      %8479 = vmatprep.subr.bf16.mxu0 0
      %8480 = vmatpush1.bf16.msra.mxu0 0
      %8481 = vmatprep.subr.bf16.mxu0 0
      %8482 = vmatpush1.bf16.msra.mxu0 0
      %8483 = vmatprep.mubr.bf16.mxu0 0
      %8484 = vmatmul.mubr.bf16.gmra.mrb[0].mxu0 %v8181
      %v8485 = vpop.f32.mrb[0].mxu0
      %v8486 = vadd.f32 %v8433, %v8485
      %v8487 = vpop.f32.mrb[0].mxu0
      %v8488 = vadd.f32 %v8435, %v8487
      %v8489 = vpop.f32.mrb[0].mxu0
      %v8490 = vadd.f32 %v8437, %v8489
      %v8491 = vpop.f32.mrb[0].mxu0
      %v8492 = vadd.f32 %v8439, %v8491
      %8493 = vmatprep.mubr.bf16.mxu0 0
      %8494 = vmatmul.mubr.bf16.gmra.mrb[0].mxu0 %v8184
      %v8495 = vpop.f32.mrb[0].mxu0
      %v8496 = vadd.f32 %v8443, %v8495
      %v8497 = vpop.f32.mrb[0].mxu0
      %v8498 = vadd.f32 %v8445, %v8497
      %v8499 = vpop.f32.mrb[0].mxu0
      %v8500 = vadd.f32 %v8447, %v8499
      %v8501 = vpop.f32.mrb[0].mxu0
      %v8502 = vadd.f32 %v8449, %v8501
      %8503 = vdwg.mxu0
      %8504 = vmatprep.subr.bf16.mxu0 %v7929
      %8505 = vmatpush1.bf16.msra.mxu0 %v7928
      %8506 = vmatprep.subr.bf16.mxu0 %v7945
      %8507 = vmatpush1.bf16.msra.mxu0 %v7944
      %8508 = vmatprep.subr.bf16.mxu0 %v7735
      %8509 = vmatpush1.bf16.msra.mxu0 %v7734
      %8510 = vmatprep.subr.bf16.mxu0 %v7751
      %8511 = vmatpush1.bf16.msra.mxu0 %v7750
      %8512 = vmatprep.subr.bf16.mxu0 %v8091
      %8513 = vmatpush1.bf16.msra.mxu0 %v8090
      %8514 = vmatprep.subr.bf16.mxu0 %v8107
      %8515 = vmatpush1.bf16.msra.mxu0 %v8106
      %8516 = vmatprep.subr.bf16.mxu0 %v7930
      %8517 = vmatpush1.bf16.msra.mxu0 %v7929
      %8518 = vmatprep.subr.bf16.mxu0 %v7946
      %8519 = vmatpush1.bf16.msra.mxu0 %v7945
      %8520 = vmatprep.subr.bf16.mxu0 %v7736
      %8521 = vmatpush1.bf16.msra.mxu0 %v7735
      %8522 = vmatprep.subr.bf16.mxu0 %v7752
      %8523 = vmatpush1.bf16.msra.mxu0 %v7751
      %8524 = vmatprep.subr.bf16.mxu0 %v8092
      %8525 = vmatpush1.bf16.msra.mxu0 %v8091
      %8526 = vmatprep.subr.bf16.mxu0 %v8108
      %8527 = vmatpush1.bf16.msra.mxu0 %v8107
      %8528 = vmatprep.subr.bf16.mxu0 %v7931
      %8529 = vmatpush1.bf16.msra.mxu0 %v7930
      %8530 = vmatprep.subr.bf16.mxu0 %v7947
      %8531 = vmatpush1.bf16.msra.mxu0 %v7946
      %8532 = vmatprep.subr.bf16.mxu0 %v7737
      %8533 = vmatpush1.bf16.msra.mxu0 %v7736
      %8534 = vmatprep.subr.bf16.mxu0 %v7753
      %8535 = vmatpush1.bf16.msra.mxu0 %v7752
      %8536 = vmatprep.mubr.bf16.mxu0 %v8170
      %8537 = vmatmul.mubr.bf16.gmra.mrb[0].mxu0 %v8169
      %v8538 = vpop.f32.mrb[0].mxu0
      %v8539 = vadd.f32 %v8132, %v8538
      %v8540 = vpop.f32.mrb[0].mxu0
      %v8541 = vadd.f32 %v8132, %v8540
      %v8542 = vpop.f32.mrb[0].mxu0
      %v8543 = vadd.f32 %v8137, %v8542
      %v8544 = vpop.f32.mrb[0].mxu0
      %v8545 = vadd.f32 %v8137, %v8544
      %8546 = vmatprep.mubr.bf16.mxu0 %v8173
      %8547 = vmatmul.mubr.bf16.gmra.mrb[0].mxu0 %v8172
      %v8548 = vpop.f32.mrb[0].mxu0
      %v8549 = vadd.f32 %v8142, %v8548
      %v8550 = vpop.f32.mrb[0].mxu0
      %v8551 = vadd.f32 %v8142, %v8550
      %v8552 = vpop.f32.mrb[0].mxu0
      %v8553 = vadd.f32 %v8147, %v8552
      %v8554 = vpop.f32.mrb[0].mxu0
      %v8555 = vadd.f32 %v8147, %v8554
      %8556 = vdwg.mxu0
      %8557 = vmatprep.subr.bf16.mxu0 %v8093
      %8558 = vmatpush1.bf16.msra.mxu0 %v8092
      %8559 = vmatprep.subr.bf16.mxu0 %v8109
      %8560 = vmatpush1.bf16.msra.mxu0 %v8108
      %8561 = vmatprep.subr.bf16.mxu0 0
      %8562 = vmatpush1.bf16.msra.mxu0 0
      %8563 = vmatprep.subr.bf16.mxu0 0
      %8564 = vmatpush1.bf16.msra.mxu0 0
      %8565 = vmatprep.subr.bf16.mxu0 0
      %8566 = vmatpush1.bf16.msra.mxu0 0
      %8567 = vmatprep.subr.bf16.mxu0 0
      %8568 = vmatpush1.bf16.msra.mxu0 0
      %8569 = vmatprep.subr.bf16.mxu0 0
      %8570 = vmatpush1.bf16.msra.mxu0 0
      %8571 = vmatprep.subr.bf16.mxu0 0
      %8572 = vmatpush1.bf16.msra.mxu0 0
      %8573 = vmatprep.subr.bf16.mxu0 0
      %8574 = vmatpush1.bf16.msra.mxu0 0
      %8575 = vmatprep.subr.bf16.mxu0 0
      %8576 = vmatpush1.bf16.msra.mxu0 0
      %8577 = vmatprep.subr.bf16.mxu0 0
      %8578 = vmatpush1.bf16.msra.mxu0 0
      %8579 = vmatprep.subr.bf16.mxu0 0
      %8580 = vmatpush1.bf16.msra.mxu0 0
      %8581 = vmatprep.subr.bf16.mxu0 0
      %8582 = vmatpush1.bf16.msra.mxu0 0
      %8583 = vmatprep.subr.bf16.mxu0 0
      %8584 = vmatpush1.bf16.msra.mxu0 0
      %8585 = vmatprep.subr.bf16.mxu0 0
      %8586 = vmatpush1.bf16.msra.mxu0 0
      %8587 = vmatprep.subr.bf16.mxu0 0
      %8588 = vmatpush1.bf16.msra.mxu0 0
      %8589 = vmatprep.mubr.bf16.mxu0 0
      %8590 = vmatmul.mubr.bf16.gmra.mrb[0].mxu0 %v8181
      %v8591 = vpop.f32.mrb[0].mxu0
      %v8592 = vadd.f32 %v8539, %v8591
      %v8593 = vpop.f32.mrb[0].mxu0
      %v8594 = vadd.f32 %v8541, %v8593
      %v8595 = vpop.f32.mrb[0].mxu0
      %v8596 = vadd.f32 %v8543, %v8595
      %v8597 = vpop.f32.mrb[0].mxu0
      %v8598 = vadd.f32 %v8545, %v8597
      %8599 = vmatprep.mubr.bf16.mxu0 0
      %8600 = vmatmul.mubr.bf16.gmra.mrb[0].mxu0 %v8184
      %v8601 = vpop.f32.mrb[0].mxu0
      %v8602 = vadd.f32 %v8549, %v8601
      %v8603 = vpop.f32.mrb[0].mxu0
      %v8604 = vadd.f32 %v8551, %v8603
      %v8605 = vpop.f32.mrb[0].mxu0
      %v8606 = vadd.f32 %v8553, %v8605
      %v8607 = vpop.f32.mrb[0].mxu0
      %v8608 = vadd.f32 %v8555, %v8607
      %8609 = vdwg.mxu0
      %8610 = vmatprep.subr.bf16.mxu0 %v7931
      %8611 = vmatpush1.bf16.msra.mxu0 %v7930
      %8612 = vmatprep.subr.bf16.mxu0 %v7947
      %8613 = vmatpush1.bf16.msra.mxu0 %v7946
      %8614 = vmatprep.subr.bf16.mxu0 %v7737
      %8615 = vmatpush1.bf16.msra.mxu0 %v7736
      %8616 = vmatprep.subr.bf16.mxu0 %v7753
      %8617 = vmatpush1.bf16.msra.mxu0 %v7752
      %8618 = vmatprep.subr.bf16.mxu0 %v8093
      %8619 = vmatpush1.bf16.msra.mxu0 %v8092
      %8620 = vmatprep.subr.bf16.mxu0 %v8109
      %8621 = vmatpush1.bf16.msra.mxu0 %v8108
      %8622 = vmatprep.subr.bf16.mxu0 %v7932
      %8623 = vmatpush1.bf16.msra.mxu0 %v7931
      %8624 = vmatprep.subr.bf16.mxu0 %v7948
      %8625 = vmatpush1.bf16.msra.mxu0 %v7947
      %8626 = vmatprep.subr.bf16.mxu0 %v7738
      %8627 = vmatpush1.bf16.msra.mxu0 %v7737
      %8628 = vmatprep.subr.bf16.mxu0 %v7754
      %8629 = vmatpush1.bf16.msra.mxu0 %v7753
      %8630 = vmatprep.subr.bf16.mxu0 %v8094
      %8631 = vmatpush1.bf16.msra.mxu0 %v8093
      %8632 = vmatprep.subr.bf16.mxu0 %v8110
      %8633 = vmatpush1.bf16.msra.mxu0 %v8109
      %8634 = vmatprep.subr.bf16.mxu0 %v7933
      %8635 = vmatpush1.bf16.msra.mxu0 %v7932
      %8636 = vmatprep.subr.bf16.mxu0 %v7949
      %8637 = vmatpush1.bf16.msra.mxu0 %v7948
      %8638 = vmatprep.subr.bf16.mxu0 %v7739
      %8639 = vmatpush1.bf16.msra.mxu0 %v7738
      %8640 = vmatprep.subr.bf16.mxu0 %v7755
      %8641 = vmatpush1.bf16.msra.mxu0 %v7754
      %8642 = vmatprep.mubr.bf16.mxu0 %v8170
      %8643 = vmatmul.mubr.bf16.gmra.mrb[0].mxu0 %v8169
      %v8644 = vpop.f32.mrb[0].mxu0
      %v8645 = vadd.f32 %v8132, %v8644
      %v8646 = vpop.f32.mrb[0].mxu0
      %v8647 = vadd.f32 %v8132, %v8646
      %v8648 = vpop.f32.mrb[0].mxu0
      %v8649 = vadd.f32 %v8137, %v8648
      %v8650 = vpop.f32.mrb[0].mxu0
      %v8651 = vadd.f32 %v8137, %v8650
      %8652 = vmatprep.mubr.bf16.mxu0 %v8173
      %8653 = vmatmul.mubr.bf16.gmra.mrb[0].mxu0 %v8172
      %v8654 = vpop.f32.mrb[0].mxu0
      %v8655 = vadd.f32 %v8142, %v8654
      %v8656 = vpop.f32.mrb[0].mxu0
      %v8657 = vadd.f32 %v8142, %v8656
      %v8658 = vpop.f32.mrb[0].mxu0
      %v8659 = vadd.f32 %v8147, %v8658
      %v8660 = vpop.f32.mrb[0].mxu0
      %v8661 = vadd.f32 %v8147, %v8660
      %8662 = vdwg.mxu0
      %8663 = vmatprep.subr.bf16.mxu0 %v8095
      %8664 = vmatpush1.bf16.msra.mxu0 %v8094
      %8665 = vmatprep.subr.bf16.mxu0 %v8111
      %8666 = vmatpush1.bf16.msra.mxu0 %v8110
      %8667 = vmatprep.subr.bf16.mxu0 0
      %8668 = vmatpush1.bf16.msra.mxu0 0
      %8669 = vmatprep.subr.bf16.mxu0 0
      %8670 = vmatpush1.bf16.msra.mxu0 0
      %8671 = vmatprep.subr.bf16.mxu0 0
      %8672 = vmatpush1.bf16.msra.mxu0 0
      %8673 = vmatprep.subr.bf16.mxu0 0
      %8674 = vmatpush1.bf16.msra.mxu0 0
      %8675 = vmatprep.subr.bf16.mxu0 0
      %8676 = vmatpush1.bf16.msra.mxu0 0
      %8677 = vmatprep.subr.bf16.mxu0 0
      %8678 = vmatpush1.bf16.msra.mxu0 0
      %8679 = vmatprep.subr.bf16.mxu0 0
      %8680 = vmatpush1.bf16.msra.mxu0 0
      %8681 = vmatprep.subr.bf16.mxu0 0
      %8682 = vmatpush1.bf16.msra.mxu0 0
      %8683 = vmatprep.subr.bf16.mxu0 0
      %8684 = vmatpush1.bf16.msra.mxu0 0
      %8685 = vmatprep.subr.bf16.mxu0 0
      %8686 = vmatpush1.bf16.msra.mxu0 0
      %8687 = vmatprep.subr.bf16.mxu0 0
      %8688 = vmatpush1.bf16.msra.mxu0 0
      %8689 = vmatprep.subr.bf16.mxu0 0
      %8690 = vmatpush1.bf16.msra.mxu0 0
      %8691 = vmatprep.subr.bf16.mxu0 0
      %8692 = vmatpush1.bf16.msra.mxu0 0
      %8693 = vmatprep.subr.bf16.mxu0 0
      %8694 = vmatpush1.bf16.msra.mxu0 0
      %8695 = vmatprep.mubr.bf16.mxu0 0
      %8696 = vmatmul.mubr.bf16.gmra.mrb[0].mxu0 %v8181
      %v8697 = vpop.f32.mrb[0].mxu0
      %v8698 = vadd.f32 %v8645, %v8697
      %v8699 = vpop.f32.mrb[0].mxu0
      %v8700 = vadd.f32 %v8647, %v8699
      %v8701 = vpop.f32.mrb[0].mxu0
      %v8702 = vadd.f32 %v8649, %v8701
      %v8703 = vpop.f32.mrb[0].mxu0
      %v8704 = vadd.f32 %v8651, %v8703
      %8705 = vmatprep.mubr.bf16.mxu0 0
      %8706 = vmatmul.mubr.bf16.gmra.mrb[0].mxu0 %v8184
      %v8707 = vpop.f32.mrb[0].mxu0
      %v8708 = vadd.f32 %v8655, %v8707
      %v8709 = vpop.f32.mrb[0].mxu0
      %v8710 = vadd.f32 %v8657, %v8709
      %v8711 = vpop.f32.mrb[0].mxu0
      %v8712 = vadd.f32 %v8659, %v8711
      %v8713 = vpop.f32.mrb[0].mxu0
      %v8714 = vadd.f32 %v8661, %v8713
      %8715 = vdwg.mxu0
      %8716 = vmatprep.subr.bf16.mxu0 %v7933
      %8717 = vmatpush1.bf16.msra.mxu0 %v7932
      %8718 = vmatprep.subr.bf16.mxu0 %v7949
      %8719 = vmatpush1.bf16.msra.mxu0 %v7948
      %8720 = vmatprep.subr.bf16.mxu0 %v7739
      %8721 = vmatpush1.bf16.msra.mxu0 %v7738
      %8722 = vmatprep.subr.bf16.mxu0 %v7755
      %8723 = vmatpush1.bf16.msra.mxu0 %v7754
      %8724 = vmatprep.subr.bf16.mxu0 %v8095
      %8725 = vmatpush1.bf16.msra.mxu0 %v8094
      %8726 = vmatprep.subr.bf16.mxu0 %v8111
      %8727 = vmatpush1.bf16.msra.mxu0 %v8110
      %8728 = vmatprep.subr.bf16.mxu0 %v7934
      %8729 = vmatpush1.bf16.msra.mxu0 %v7933
      %8730 = vmatprep.subr.bf16.mxu0 %v7950
      %8731 = vmatpush1.bf16.msra.mxu0 %v7949
      %8732 = vmatprep.subr.bf16.mxu0 %v7740
      %8733 = vmatpush1.bf16.msra.mxu0 %v7739
      %8734 = vmatprep.subr.bf16.mxu0 %v7756
      %8735 = vmatpush1.bf16.msra.mxu0 %v7755
      %8736 = vmatprep.subr.bf16.mxu0 %v8096
      %8737 = vmatpush1.bf16.msra.mxu0 %v8095
      %8738 = vmatprep.subr.bf16.mxu0 %v8112
      %8739 = vmatpush1.bf16.msra.mxu0 %v8111
      %8740 = vmatprep.subr.bf16.mxu0 %v7935
      %8741 = vmatpush1.bf16.msra.mxu0 %v7934
      %8742 = vmatprep.subr.bf16.mxu0 %v7951
      %8743 = vmatpush1.bf16.msra.mxu0 %v7950
      %8744 = vmatprep.subr.bf16.mxu0 %v7741
      %8745 = vmatpush1.bf16.msra.mxu0 %v7740
      %8746 = vmatprep.subr.bf16.mxu0 %v7757
      %8747 = vmatpush1.bf16.msra.mxu0 %v7756
      %8748 = vmatprep.mubr.bf16.mxu0 %v8170
      %8749 = vmatmul.mubr.bf16.gmra.mrb[0].mxu0 %v8169
      %v8750 = vpop.f32.mrb[0].mxu0
      %v8751 = vadd.f32 %v8132, %v8750
      %v8752 = vpop.f32.mrb[0].mxu0
      %v8753 = vadd.f32 %v8132, %v8752
      %v8754 = vpop.f32.mrb[0].mxu0
      %v8755 = vadd.f32 %v8137, %v8754
      %v8756 = vpop.f32.mrb[0].mxu0
      %v8757 = vadd.f32 %v8137, %v8756
      %8758 = vmatprep.mubr.bf16.mxu0 %v8173
      %8759 = vmatmul.mubr.bf16.gmra.mrb[0].mxu0 %v8172
      %v8760 = vpop.f32.mrb[0].mxu0
      %v8761 = vadd.f32 %v8142, %v8760
      %v8762 = vpop.f32.mrb[0].mxu0
      %v8763 = vadd.f32 %v8142, %v8762
      %v8764 = vpop.f32.mrb[0].mxu0
      %v8765 = vadd.f32 %v8147, %v8764
      %v8766 = vpop.f32.mrb[0].mxu0
      %v8767 = vadd.f32 %v8147, %v8766
      %8768 = vdwg.mxu0
      %8769 = vmatprep.subr.bf16.mxu0 %v8097
      %8770 = vmatpush1.bf16.msra.mxu0 %v8096
      %8771 = vmatprep.subr.bf16.mxu0 %v8113
      %8772 = vmatpush1.bf16.msra.mxu0 %v8112
      %8773 = vmatprep.subr.bf16.mxu0 0
      %8774 = vmatpush1.bf16.msra.mxu0 0
      %8775 = vmatprep.subr.bf16.mxu0 0
      %8776 = vmatpush1.bf16.msra.mxu0 0
      %8777 = vmatprep.subr.bf16.mxu0 0
      %8778 = vmatpush1.bf16.msra.mxu0 0
      %8779 = vmatprep.subr.bf16.mxu0 0
      %8780 = vmatpush1.bf16.msra.mxu0 0
      %8781 = vmatprep.subr.bf16.mxu0 0
      %8782 = vmatpush1.bf16.msra.mxu0 0
      %8783 = vmatprep.subr.bf16.mxu0 0
      %8784 = vmatpush1.bf16.msra.mxu0 0
      %8785 = vmatprep.subr.bf16.mxu0 0
      %8786 = vmatpush1.bf16.msra.mxu0 0
      %8787 = vmatprep.subr.bf16.mxu0 0
      %8788 = vmatpush1.bf16.msra.mxu0 0
      %8789 = vmatprep.subr.bf16.mxu0 0
      %8790 = vmatpush1.bf16.msra.mxu0 0
      %8791 = vmatprep.subr.bf16.mxu0 0
      %8792 = vmatpush1.bf16.msra.mxu0 0
      %8793 = vmatprep.subr.bf16.mxu0 0
      %8794 = vmatpush1.bf16.msra.mxu0 0
      %8795 = vmatprep.subr.bf16.mxu0 0
      %8796 = vmatpush1.bf16.msra.mxu0 0
      %8797 = vmatprep.subr.bf16.mxu0 0
      %8798 = vmatpush1.bf16.msra.mxu0 0
      %8799 = vmatprep.subr.bf16.mxu0 0
      %8800 = vmatpush1.bf16.msra.mxu0 0
      %8801 = vmatprep.mubr.bf16.mxu0 0
      %8802 = vmatmul.mubr.bf16.gmra.mrb[0].mxu0 %v8181
      %v8803 = vpop.f32.mrb[0].mxu0
      %v8804 = vadd.f32 %v8751, %v8803
      %v8805 = vpop.f32.mrb[0].mxu0
      %v8806 = vadd.f32 %v8753, %v8805
      %v8807 = vpop.f32.mrb[0].mxu0
      %v8808 = vadd.f32 %v8755, %v8807
      %v8809 = vpop.f32.mrb[0].mxu0
      %v8810 = vadd.f32 %v8757, %v8809
      %8811 = vmatprep.mubr.bf16.mxu0 0
      %8812 = vmatmul.mubr.bf16.gmra.mrb[0].mxu0 %v8184
      %v8813 = vpop.f32.mrb[0].mxu0
      %v8814 = vadd.f32 %v8761, %v8813
      %v8815 = vpop.f32.mrb[0].mxu0
      %v8816 = vadd.f32 %v8763, %v8815
      %v8817 = vpop.f32.mrb[0].mxu0
      %v8818 = vadd.f32 %v8765, %v8817
      %v8819 = vpop.f32.mrb[0].mxu0
      %v8820 = vadd.f32 %v8767, %v8819
      %8821 = vdwg.mxu0
      %8822 = vmatprep.subr.bf16.mxu0 %v7935
      %8823 = vmatpush1.bf16.msra.mxu0 %v7934
      %8824 = vmatprep.subr.bf16.mxu0 %v7951
      %8825 = vmatpush1.bf16.msra.mxu0 %v7950
      %8826 = vmatprep.subr.bf16.mxu0 %v7741
      %8827 = vmatpush1.bf16.msra.mxu0 %v7740
      %8828 = vmatprep.subr.bf16.mxu0 %v7757
      %8829 = vmatpush1.bf16.msra.mxu0 %v7756
      %8830 = vmatprep.subr.bf16.mxu0 %v8097
      %8831 = vmatpush1.bf16.msra.mxu0 %v8096
      %8832 = vmatprep.subr.bf16.mxu0 %v8113
      %8833 = vmatpush1.bf16.msra.mxu0 %v8112
      %8834 = vmatprep.subr.bf16.mxu0 %v7936
      %8835 = vmatpush1.bf16.msra.mxu0 %v7935
      %8836 = vmatprep.subr.bf16.mxu0 %v7952
      %8837 = vmatpush1.bf16.msra.mxu0 %v7951
      %8838 = vmatprep.subr.bf16.mxu0 %v7742
      %8839 = vmatpush1.bf16.msra.mxu0 %v7741
      %8840 = vmatprep.subr.bf16.mxu0 %v7758
      %8841 = vmatpush1.bf16.msra.mxu0 %v7757
      %8842 = vmatprep.subr.bf16.mxu0 %v8098
      %8843 = vmatpush1.bf16.msra.mxu0 %v8097
      %8844 = vmatprep.subr.bf16.mxu0 %v8114
      %8845 = vmatpush1.bf16.msra.mxu0 %v8113
      %8846 = vmatprep.subr.bf16.mxu0 %v7937
      %8847 = vmatpush1.bf16.msra.mxu0 %v7936
      %8848 = vmatprep.subr.bf16.mxu0 %v7953
      %8849 = vmatpush1.bf16.msra.mxu0 %v7952
      %8850 = vmatprep.subr.bf16.mxu0 %v7743
      %8851 = vmatpush1.bf16.msra.mxu0 %v7742
      %8852 = vmatprep.subr.bf16.mxu0 %v7759
      %8853 = vmatpush1.bf16.msra.mxu0 %v7758
      %8854 = vmatprep.mubr.bf16.mxu0 %v8170
      %8855 = vmatmul.mubr.bf16.gmra.mrb[0].mxu0 %v8169
      %v8856 = vpop.f32.mrb[0].mxu0
      %v8857 = vadd.f32 %v8132, %v8856
      %v8858 = vpop.f32.mrb[0].mxu0
      %v8859 = vadd.f32 %v8132, %v8858
      %v8860 = vpop.f32.mrb[0].mxu0
      %v8861 = vadd.f32 %v8137, %v8860
      %v8862 = vpop.f32.mrb[0].mxu0
      %v8863 = vadd.f32 %v8137, %v8862
      %8864 = vmatprep.mubr.bf16.mxu0 %v8173
      %8865 = vmatmul.mubr.bf16.gmra.mrb[0].mxu0 %v8172
      %v8866 = vpop.f32.mrb[0].mxu0
      %v8867 = vadd.f32 %v8142, %v8866
      %v8868 = vpop.f32.mrb[0].mxu0
      %v8869 = vadd.f32 %v8142, %v8868
      %v8870 = vpop.f32.mrb[0].mxu0
      %v8871 = vadd.f32 %v8147, %v8870
      %v8872 = vpop.f32.mrb[0].mxu0
      %v8873 = vadd.f32 %v8147, %v8872
      %8874 = vdwg.mxu0
      %8875 = vmatprep.subr.bf16.mxu0 %v8099
      %8876 = vmatpush1.bf16.msra.mxu0 %v8098
      %8877 = vmatprep.subr.bf16.mxu0 %v8115
      %8878 = vmatpush1.bf16.msra.mxu0 %v8114
      %8879 = vmatprep.subr.bf16.mxu0 0
      %8880 = vmatpush1.bf16.msra.mxu0 0
      %8881 = vmatprep.subr.bf16.mxu0 0
      %8882 = vmatpush1.bf16.msra.mxu0 0
      %8883 = vmatprep.subr.bf16.mxu0 0
      %8884 = vmatpush1.bf16.msra.mxu0 0
      %8885 = vmatprep.subr.bf16.mxu0 0
      %8886 = vmatpush1.bf16.msra.mxu0 0
      %8887 = vmatprep.subr.bf16.mxu0 0
      %8888 = vmatpush1.bf16.msra.mxu0 0
      %8889 = vmatprep.subr.bf16.mxu0 0
      %8890 = vmatpush1.bf16.msra.mxu0 0
      %8891 = vmatprep.subr.bf16.mxu0 0
      %8892 = vmatpush1.bf16.msra.mxu0 0
      %8893 = vmatprep.subr.bf16.mxu0 0
      %8894 = vmatpush1.bf16.msra.mxu0 0
      %8895 = vmatprep.subr.bf16.mxu0 0
      %8896 = vmatpush1.bf16.msra.mxu0 0
      %8897 = vmatprep.subr.bf16.mxu0 0
      %8898 = vmatpush1.bf16.msra.mxu0 0
      %8899 = vmatprep.subr.bf16.mxu0 0
      %8900 = vmatpush1.bf16.msra.mxu0 0
      %8901 = vmatprep.subr.bf16.mxu0 0
      %8902 = vmatpush1.bf16.msra.mxu0 0
      %8903 = vmatprep.subr.bf16.mxu0 0
      %8904 = vmatpush1.bf16.msra.mxu0 0
      %8905 = vmatprep.subr.bf16.mxu0 0
      %8906 = vmatpush1.bf16.msra.mxu0 0
      %8907 = vmatprep.mubr.bf16.mxu0 0
      %8908 = vmatmul.mubr.bf16.gmra.mrb[0].mxu0 %v8181
      %v8909 = vpop.f32.mrb[0].mxu0
      %v8910 = vadd.f32 %v8857, %v8909
      %v8911 = vpop.f32.mrb[0].mxu0
      %v8912 = vadd.f32 %v8859, %v8911
      %v8913 = vpop.f32.mrb[0].mxu0
      %v8914 = vadd.f32 %v8861, %v8913
      %v8915 = vpop.f32.mrb[0].mxu0
      %v8916 = vadd.f32 %v8863, %v8915
      %8917 = vmatprep.mubr.bf16.mxu0 0
      %8918 = vmatmul.mubr.bf16.gmra.mrb[0].mxu0 %v8184
      %v8919 = vpop.f32.mrb[0].mxu0
      %v8920 = vadd.f32 %v8867, %v8919
      %v8921 = vpop.f32.mrb[0].mxu0
      %v8922 = vadd.f32 %v8869, %v8921
      %v8923 = vpop.f32.mrb[0].mxu0
      %v8924 = vadd.f32 %v8871, %v8923
      %v8925 = vpop.f32.mrb[0].mxu0
      %v8926 = vadd.f32 %v8873, %v8925
      %8927 = vdwg.mxu0
      %8928 = vmatprep.subr.bf16.mxu0 %v7937
      %8929 = vmatpush1.bf16.msra.mxu0 %v7936
      %8930 = vmatprep.subr.bf16.mxu0 %v7953
      %8931 = vmatpush1.bf16.msra.mxu0 %v7952
      %8932 = vmatprep.subr.bf16.mxu0 %v7743
      %8933 = vmatpush1.bf16.msra.mxu0 %v7742
      %8934 = vmatprep.subr.bf16.mxu0 %v7759
      %8935 = vmatpush1.bf16.msra.mxu0 %v7758
      %8936 = vmatprep.subr.bf16.mxu0 %v8099
      %8937 = vmatpush1.bf16.msra.mxu0 %v8098
      %8938 = vmatprep.subr.bf16.mxu0 %v8115
      %8939 = vmatpush1.bf16.msra.mxu0 %v8114
      %8940 = vmatprep.subr.bf16.mxu0 %v7938
      %8941 = vmatpush1.bf16.msra.mxu0 %v7937
      %8942 = vmatprep.subr.bf16.mxu0 %v7954
      %8943 = vmatpush1.bf16.msra.mxu0 %v7953
      %8944 = vmatprep.subr.bf16.mxu0 %v7744
      %8945 = vmatpush1.bf16.msra.mxu0 %v7743
      %8946 = vmatprep.subr.bf16.mxu0 %v7760
      %8947 = vmatpush1.bf16.msra.mxu0 %v7759
      %8948 = vmatprep.subr.bf16.mxu0 %v8100
      %8949 = vmatpush1.bf16.msra.mxu0 %v8099
      %8950 = vmatprep.subr.bf16.mxu0 %v8116
      %8951 = vmatpush1.bf16.msra.mxu0 %v8115
      %8952 = vmatprep.subr.bf16.mxu0 0
      %8953 = vmatpush1.bf16.msra.mxu0 %v7938
      %8954 = vmatprep.subr.bf16.mxu0 0
      %8955 = vmatpush1.bf16.msra.mxu0 %v7954
      %8956 = vmatprep.subr.bf16.mxu0 0
      %8957 = vmatpush1.bf16.msra.mxu0 %v7744
      %8958 = vmatprep.subr.bf16.mxu0 0
      %8959 = vmatpush1.bf16.msra.mxu0 %v7760
      %8960 = vmatprep.mubr.bf16.mxu0 %v8170
      %8961 = vmatmul.mubr.bf16.gmra.mrb[0].mxu0 %v8169
      %v8962 = vpop.f32.mrb[0].mxu0
      %v8963 = vadd.f32 %v8132, %v8962
      %v8964 = vpop.f32.mrb[0].mxu0
      %v8965 = vadd.f32 %v8132, %v8964
      %v8966 = vpop.f32.mrb[0].mxu0
      %v8967 = vadd.f32 %v8137, %v8966
      %v8968 = vpop.f32.mrb[0].mxu0
      %v8969 = vadd.f32 %v8137, %v8968
      %8970 = vmatprep.mubr.bf16.mxu0 %v8173
      %8971 = vmatmul.mubr.bf16.gmra.mrb[0].mxu0 %v8172
      %v8972 = vpop.f32.mrb[0].mxu0
      %v8973 = vadd.f32 %v8142, %v8972
      %v8974 = vpop.f32.mrb[0].mxu0
      %v8975 = vadd.f32 %v8142, %v8974
      %v8976 = vpop.f32.mrb[0].mxu0
      %v8977 = vadd.f32 %v8147, %v8976
      %v8978 = vpop.f32.mrb[0].mxu0
      %v8979 = vadd.f32 %v8147, %v8978
      %8980 = vdwg.mxu0
      %8981 = vmatprep.subr.bf16.mxu0 0
      %8982 = vmatpush1.bf16.msra.mxu0 %v8100
      %8983 = vmatprep.subr.bf16.mxu0 0
      %8984 = vmatpush1.bf16.msra.mxu0 %v8116
      %8985 = vmatprep.subr.bf16.mxu0 0
      %8986 = vmatpush1.bf16.msra.mxu0 0
      %8987 = vmatprep.subr.bf16.mxu0 0
      %8988 = vmatpush1.bf16.msra.mxu0 0
      %8989 = vmatprep.subr.bf16.mxu0 0
      %8990 = vmatpush1.bf16.msra.mxu0 0
      %8991 = vmatprep.subr.bf16.mxu0 0
      %8992 = vmatpush1.bf16.msra.mxu0 0
      %8993 = vmatprep.subr.bf16.mxu0 0
      %8994 = vmatpush1.bf16.msra.mxu0 0
      %8995 = vmatprep.subr.bf16.mxu0 0
      %8996 = vmatpush1.bf16.msra.mxu0 0
      %8997 = vmatprep.subr.bf16.mxu0 0
      %8998 = vmatpush1.bf16.msra.mxu0 0
      %8999 = vmatprep.subr.bf16.mxu0 0
      %9000 = vmatpush1.bf16.msra.mxu0 0
      %9001 = vmatprep.subr.bf16.mxu0 0
      %9002 = vmatpush1.bf16.msra.mxu0 0
      %9003 = vmatprep.subr.bf16.mxu0 0
      %9004 = vmatpush1.bf16.msra.mxu0 0
      %9005 = vmatprep.subr.bf16.mxu0 0
      %9006 = vmatpush1.bf16.msra.mxu0 0
      %9007 = vmatprep.subr.bf16.mxu0 0
      %9008 = vmatpush1.bf16.msra.mxu0 0
      %9009 = vmatprep.subr.bf16.mxu0 0
      %9010 = vmatpush1.bf16.msra.mxu0 0
      %9011 = vmatprep.subr.bf16.mxu0 0
      %9012 = vmatpush1.bf16.msra.mxu0 0
      %9013 = vmatprep.mubr.bf16.mxu0 0
      %9014 = vmatmul.mubr.bf16.gmra.mrb[0].mxu0 %v8181
      %v9015 = vpop.f32.mrb[0].mxu0
      %v9016 = vadd.f32 %v8963, %v9015
      %v9017 = vpop.f32.mrb[0].mxu0
      %v9018 = vadd.f32 %v8965, %v9017
      %v9019 = vpop.f32.mrb[0].mxu0
      %v9020 = vadd.f32 %v8967, %v9019
      %v9021 = vpop.f32.mrb[0].mxu0
      %v9022 = vadd.f32 %v8969, %v9021
      %9023 = vmatprep.mubr.bf16.mxu0 0
      %9024 = vmatmul.mubr.bf16.gmra.mrb[0].mxu0 %v8184
      %v9025 = vpop.f32.mrb[0].mxu0
      %v9026 = vadd.f32 %v8973, %v9025
      %v9027 = vpop.f32.mrb[0].mxu0
      %v9028 = vadd.f32 %v8975, %v9027
      %v9029 = vpop.f32.mrb[0].mxu0
      %v9030 = vadd.f32 %v8977, %v9029
      %v9031 = vpop.f32.mrb[0].mxu0
      %v9032 = vadd.f32 %v8979, %v9031
      %9033 = vdwg.mxu0
      %v9034 = vmax.f32 %v8274, 0.0
      %v9035 = vmax.f32 %v8276, 0.0
      %v9036 = vmax.f32 %v8380, 0.0
      %v9037 = vmax.f32 %v8382, 0.0
      %v9038 = vmax.f32 %v8486, 0.0
      %v9039 = vmax.f32 %v8488, 0.0
      %v9040 = vmax.f32 %v8592, 0.0
      %v9041 = vmax.f32 %v8594, 0.0
      %v9042 = vmax.f32 %v8698, 0.0
      %v9043 = vmax.f32 %v8700, 0.0
      %v9044 = vmax.f32 %v8804, 0.0
      %v9045 = vmax.f32 %v8806, 0.0
      %v9046 = vmax.f32 %v8910, 0.0
      %v9047 = vmax.f32 %v8912, 0.0
      %v9048 = vmax.f32 %v9016, 0.0
      %v9049 = vmax.f32 %v9018, 0.0
      %v9050 = vmax.f32 %v8278, 0.0
      %v9051 = vmax.f32 %v8280, 0.0
      %v9052 = vmax.f32 %v8384, 0.0
      %v9053 = vmax.f32 %v8386, 0.0
      %v9054 = vmax.f32 %v8490, 0.0
      %v9055 = vmax.f32 %v8492, 0.0
      %v9056 = vmax.f32 %v8596, 0.0
      %v9057 = vmax.f32 %v8598, 0.0
      %v9058 = vmax.f32 %v8702, 0.0
      %v9059 = vmax.f32 %v8704, 0.0
      %v9060 = vmax.f32 %v8808, 0.0
      %v9061 = vmax.f32 %v8810, 0.0
      %v9062 = vmax.f32 %v8914, 0.0
      %v9063 = vmax.f32 %v8916, 0.0
      %v9064 = vmax.f32 %v9020, 0.0
      %v9065 = vmax.f32 %v9022, 0.0
      %v9066 = vmax.f32 %v8284, 0.0
      %v9067 = vmax.f32 %v8286, 0.0
      %v9068 = vmax.f32 %v8390, 0.0
      %v9069 = vmax.f32 %v8392, 0.0
      %v9070 = vmax.f32 %v8496, 0.0
      %v9071 = vmax.f32 %v8498, 0.0
      %v9072 = vmax.f32 %v8602, 0.0
      %v9073 = vmax.f32 %v8604, 0.0
      %v9074 = vmax.f32 %v8708, 0.0
      %v9075 = vmax.f32 %v8710, 0.0
      %v9076 = vmax.f32 %v8814, 0.0
      %v9077 = vmax.f32 %v8816, 0.0
      %v9078 = vmax.f32 %v8920, 0.0
      %v9079 = vmax.f32 %v8922, 0.0
      %v9080 = vmax.f32 %v9026, 0.0
      %v9081 = vmax.f32 %v9028, 0.0
      %v9082 = vmax.f32 %v8288, 0.0
      %v9083 = vmax.f32 %v8290, 0.0
      %v9084 = vmax.f32 %v8394, 0.0
      %v9085 = vmax.f32 %v8396, 0.0
      %v9086 = vmax.f32 %v8500, 0.0
      %v9087 = vmax.f32 %v8502, 0.0
      %v9088 = vmax.f32 %v8606, 0.0
      %v9089 = vmax.f32 %v8608, 0.0
      %v9090 = vmax.f32 %v8712, 0.0
      %v9091 = vmax.f32 %v8714, 0.0
      %v9092 = vmax.f32 %v8818, 0.0
      %v9093 = vmax.f32 %v8820, 0.0
      %v9094 = vmax.f32 %v8924, 0.0
      %v9095 = vmax.f32 %v8926, 0.0
      %v9096 = vmax.f32 %v9030, 0.0
      %v9097 = vmax.f32 %v9032, 0.0
      %v9098 = vld [vmem:[%s15] sm:$0xff]
      %v9099 = vld [vmem:[%s15 + $0x8] sm:$0xff]
      %v9100 = vld [vmem:[%s15 + $0x10] sm:$0xff]
      %v9101 = vld [vmem:[%s15 + $0x18] sm:$0xff]
      %9103 = vset.pattern.permute.xlu0 0
      %9104 = vperm.xlu0 %9103, %v9098
      %v9105 = vpop.permute.xlu0 %9104
      %9108 = vset.pattern.permute.xlu0 0
      %9109 = vperm.xlu0 %9108, %v9099
      %v9110 = vpop.permute.xlu0 %9109
      %9113 = vset.pattern.permute.xlu0 0
      %9114 = vperm.xlu0 %9113, %v9100
      %v9115 = vpop.permute.xlu0 %9114
      %9118 = vset.pattern.permute.xlu0 0
      %9119 = vperm.xlu0 %9118, %v9101
      %v9120 = vpop.permute.xlu0 %9119
      %v9122 = vmul.f32 %v9034, %v9105
      %v9123 = vmul.f32 %v9035, %v9105
      %v9124 = vmul.f32 %v9036, %v9105
      %v9125 = vmul.f32 %v9037, %v9105
      %v9126 = vmul.f32 %v9038, %v9105
      %v9127 = vmul.f32 %v9039, %v9105
      %v9128 = vmul.f32 %v9040, %v9105
      %v9129 = vmul.f32 %v9041, %v9105
      %v9130 = vmul.f32 %v9042, %v9105
      %v9131 = vmul.f32 %v9043, %v9105
      %v9132 = vmul.f32 %v9044, %v9105
      %v9133 = vmul.f32 %v9045, %v9105
      %v9134 = vmul.f32 %v9046, %v9105
      %v9135 = vmul.f32 %v9047, %v9105
      %v9136 = vmul.f32 %v9048, %v9105
      %v9137 = vmul.f32 %v9049, %v9105
      %v9138 = vmul.f32 %v9050, %v9110
      %v9139 = vmul.f32 %v9051, %v9110
      %v9140 = vmul.f32 %v9052, %v9110
      %v9141 = vmul.f32 %v9053, %v9110
      %v9142 = vmul.f32 %v9054, %v9110
      %v9143 = vmul.f32 %v9055, %v9110
      %v9144 = vmul.f32 %v9056, %v9110
      %v9145 = vmul.f32 %v9057, %v9110
      %v9146 = vmul.f32 %v9058, %v9110
      %v9147 = vmul.f32 %v9059, %v9110
      %v9148 = vmul.f32 %v9060, %v9110
      %v9149 = vmul.f32 %v9061, %v9110
      %v9150 = vmul.f32 %v9062, %v9110
      %v9151 = vmul.f32 %v9063, %v9110
      %v9152 = vmul.f32 %v9064, %v9110
      %v9153 = vmul.f32 %v9065, %v9110
      %v9154 = vmul.f32 %v9066, %v9115
      %v9155 = vmul.f32 %v9067, %v9115
      %v9156 = vmul.f32 %v9068, %v9115
      %v9157 = vmul.f32 %v9069, %v9115
      %v9158 = vmul.f32 %v9070, %v9115
      %v9159 = vmul.f32 %v9071, %v9115
      %v9160 = vmul.f32 %v9072, %v9115
      %v9161 = vmul.f32 %v9073, %v9115
      %v9162 = vmul.f32 %v9074, %v9115
      %v9163 = vmul.f32 %v9075, %v9115
      %v9164 = vmul.f32 %v9076, %v9115
      %v9165 = vmul.f32 %v9077, %v9115
      %v9166 = vmul.f32 %v9078, %v9115
      %v9167 = vmul.f32 %v9079, %v9115
      %v9168 = vmul.f32 %v9080, %v9115
      %v9169 = vmul.f32 %v9081, %v9115
      %v9170 = vmul.f32 %v9082, %v9120
      %v9171 = vmul.f32 %v9083, %v9120
      %v9172 = vmul.f32 %v9084, %v9120
      %v9173 = vmul.f32 %v9085, %v9120
      %v9174 = vmul.f32 %v9086, %v9120
      %v9175 = vmul.f32 %v9087, %v9120
      %v9176 = vmul.f32 %v9088, %v9120
      %v9177 = vmul.f32 %v9089, %v9120
      %v9178 = vmul.f32 %v9090, %v9120
      %v9179 = vmul.f32 %v9091, %v9120
      %v9180 = vmul.f32 %v9092, %v9120
      %v9181 = vmul.f32 %v9093, %v9120
      %v9182 = vmul.f32 %v9094, %v9120
      %v9183 = vmul.f32 %v9095, %v9120
      %v9184 = vmul.f32 %v9096, %v9120
      %v9185 = vmul.f32 %v9097, %v9120
      %v9186 = vld [vmem:[%s16] sm:$0xff]
      %v9187 = vld [vmem:[%s16 + $0x8] sm:$0xff]
      %v9188 = vld [vmem:[%s16 + $0x10] sm:$0xff]
      %v9189 = vld [vmem:[%s16 + $0x18] sm:$0xff]
      %9191 = vset.pattern.permute.xlu0 0
      %9192 = vperm.xlu0 %9191, %v9186
      %v9193 = vpop.permute.xlu0 %9192
      %9196 = vset.pattern.permute.xlu0 0
      %9197 = vperm.xlu0 %9196, %v9187
      %v9198 = vpop.permute.xlu0 %9197
      %9201 = vset.pattern.permute.xlu0 0
      %9202 = vperm.xlu0 %9201, %v9188
      %v9203 = vpop.permute.xlu0 %9202
      %9206 = vset.pattern.permute.xlu0 0
      %9207 = vperm.xlu0 %9206, %v9189
      %v9208 = vpop.permute.xlu0 %9207
      %v9210 = vadd.f32 %v9122, %v9193
      %v9211 = vadd.f32 %v9123, %v9193
      %v9212 = vadd.f32 %v9124, %v9193
      %v9213 = vadd.f32 %v9125, %v9193
      %v9214 = vadd.f32 %v9126, %v9193
      %v9215 = vadd.f32 %v9127, %v9193
      %v9216 = vadd.f32 %v9128, %v9193
      %v9217 = vadd.f32 %v9129, %v9193
      %v9218 = vadd.f32 %v9130, %v9193
      %v9219 = vadd.f32 %v9131, %v9193
      %v9220 = vadd.f32 %v9132, %v9193
      %v9221 = vadd.f32 %v9133, %v9193
      %v9222 = vadd.f32 %v9134, %v9193
      %v9223 = vadd.f32 %v9135, %v9193
      %v9224 = vadd.f32 %v9136, %v9193
      %v9225 = vadd.f32 %v9137, %v9193
      %v9226 = vadd.f32 %v9138, %v9198
      %v9227 = vadd.f32 %v9139, %v9198
      %v9228 = vadd.f32 %v9140, %v9198
      %v9229 = vadd.f32 %v9141, %v9198
      %v9230 = vadd.f32 %v9142, %v9198
      %v9231 = vadd.f32 %v9143, %v9198
      %v9232 = vadd.f32 %v9144, %v9198
      %v9233 = vadd.f32 %v9145, %v9198
      %v9234 = vadd.f32 %v9146, %v9198
      %v9235 = vadd.f32 %v9147, %v9198
      %v9236 = vadd.f32 %v9148, %v9198
      %v9237 = vadd.f32 %v9149, %v9198
      %v9238 = vadd.f32 %v9150, %v9198
      %v9239 = vadd.f32 %v9151, %v9198
      %v9240 = vadd.f32 %v9152, %v9198
      %v9241 = vadd.f32 %v9153, %v9198
      %v9242 = vadd.f32 %v9154, %v9203
      %v9243 = vadd.f32 %v9155, %v9203
      %v9244 = vadd.f32 %v9156, %v9203
      %v9245 = vadd.f32 %v9157, %v9203
      %v9246 = vadd.f32 %v9158, %v9203
      %v9247 = vadd.f32 %v9159, %v9203
      %v9248 = vadd.f32 %v9160, %v9203
      %v9249 = vadd.f32 %v9161, %v9203
      %v9250 = vadd.f32 %v9162, %v9203
      %v9251 = vadd.f32 %v9163, %v9203
      %v9252 = vadd.f32 %v9164, %v9203
      %v9253 = vadd.f32 %v9165, %v9203
      %v9254 = vadd.f32 %v9166, %v9203
      %v9255 = vadd.f32 %v9167, %v9203
      %v9256 = vadd.f32 %v9168, %v9203
      %v9257 = vadd.f32 %v9169, %v9203
      %v9258 = vadd.f32 %v9170, %v9208
      %v9259 = vadd.f32 %v9171, %v9208
      %v9260 = vadd.f32 %v9172, %v9208
      %v9261 = vadd.f32 %v9173, %v9208
      %v9262 = vadd.f32 %v9174, %v9208
      %v9263 = vadd.f32 %v9175, %v9208
      %v9264 = vadd.f32 %v9176, %v9208
      %v9265 = vadd.f32 %v9177, %v9208
      %v9266 = vadd.f32 %v9178, %v9208
      %v9267 = vadd.f32 %v9179, %v9208
      %v9268 = vadd.f32 %v9180, %v9208
      %v9269 = vadd.f32 %v9181, %v9208
      %v9270 = vadd.f32 %v9182, %v9208
      %v9271 = vadd.f32 %v9183, %v9208
      %v9272 = vadd.f32 %v9184, %v9208
      %v9273 = vadd.f32 %v9185, %v9208
      %v9274 = vmax.f32 %v9210, %v9211
      %v9275 = vmax.f32 %v9212, %v9213
      %v9276 = vmax.f32 %v9214, %v9215
      %v9277 = vmax.f32 %v9216, %v9217
      %v9278 = vmax.f32 %v9218, %v9219
      %v9279 = vmax.f32 %v9220, %v9221
      %v9280 = vmax.f32 %v9222, %v9223
      %v9281 = vmax.f32 %v9224, %v9225
      %v9282 = vmax.f32 %v9226, %v9227
      %v9283 = vmax.f32 %v9228, %v9229
      %v9284 = vmax.f32 %v9230, %v9231
      %v9285 = vmax.f32 %v9232, %v9233
      %v9286 = vmax.f32 %v9234, %v9235
      %v9287 = vmax.f32 %v9236, %v9237
      %v9288 = vmax.f32 %v9238, %v9239
      %v9289 = vmax.f32 %v9240, %v9241
      %v9290 = vmax.f32 %v9242, %v9243
      %v9291 = vmax.f32 %v9244, %v9245
      %v9292 = vmax.f32 %v9246, %v9247
      %v9293 = vmax.f32 %v9248, %v9249
      %v9294 = vmax.f32 %v9250, %v9251
      %v9295 = vmax.f32 %v9252, %v9253
      %v9296 = vmax.f32 %v9254, %v9255
      %v9297 = vmax.f32 %v9256, %v9257
      %v9298 = vmax.f32 %v9258, %v9259
      %v9299 = vmax.f32 %v9260, %v9261
      %v9300 = vmax.f32 %v9262, %v9263
      %v9301 = vmax.f32 %v9264, %v9265
      %v9302 = vmax.f32 %v9266, %v9267
      %v9303 = vmax.f32 %v9268, %v9269
      %v9304 = vmax.f32 %v9270, %v9271
      %v9305 = vmax.f32 %v9272, %v9273
      %v9306 = vpack.c.bf16 %v9282, %v9274
      %v9307 = vpack.c.bf16 %v9283, %v9275
      %v9308 = vpack.c.bf16 %v9284, %v9276
      %v9309 = vpack.c.bf16 %v9285, %v9277
      %v9310 = vpack.c.bf16 %v9286, %v9278
      %v9311 = vpack.c.bf16 %v9287, %v9279
      %v9312 = vpack.c.bf16 %v9288, %v9280
      %v9313 = vpack.c.bf16 %v9289, %v9281
      %v9314 = vpack.c.bf16 %v9298, %v9290
      %v9315 = vpack.c.bf16 %v9299, %v9291
      %v9316 = vpack.c.bf16 %v9300, %v9292
      %v9317 = vpack.c.bf16 %v9301, %v9293
      %v9318 = vpack.c.bf16 %v9302, %v9294
      %v9319 = vpack.c.bf16 %v9303, %v9295
      %v9320 = vpack.c.bf16 %v9304, %v9296
      %v9321 = vpack.c.bf16 %v9305, %v9297
      %v9322 = vld [vmem:[%s17] sm:$0xff]
      %v9323 = vld [vmem:[%s17 + $0x8] sm:$0xff]
      %v9324 = vld [vmem:[%s17 + $0x10] sm:$0x11]
      %v9325 = vld [vmem:[%s18] sm:$0xff]
      %v9326 = vld [vmem:[%s18 + $0x8] sm:$0xff]
      %v9327 = vld [vmem:[%s18 + $0x10] sm:$0x3]
      %9329 = vset.pattern.permute.xlu0 0
      %9330 = vperm.xlu0 %9329, %v9325
      %v9331 = vpop.permute.xlu0 %9330
      %9334 = vset.pattern.permute.xlu0 0
      %9335 = vperm.xlu0 %9334, %v9326
      %v9336 = vpop.permute.xlu0 %9335
      %9339 = vset.pattern.permute.xlu0 0
      %9340 = vperm.xlu0 %9339, %v9327
      %v9341 = vpop.permute.xlu0 %9340
      %v9346 = vunpack.c.l.b16 %v9322
      %v9347 = vunpack.c.h.b16 %v9322
      %v9348 = vunpack.c.l.b16 %v9323
      %v9349 = vunpack.c.h.b16 %v9323
      %v9350 = vunpack.c.l.b16 %v9324
      %v9351 = vunpack.c.h.b16 %v9324
      %v9352 = vpack.c.b16 %v9348, %v9346
      %v9353 = vpack.c.b16 %v9349, %v9347
      %v9354 = vpack.c.b16 %v9350, %v9350
      %v9355 = vpack.c.b16 %v9351, %v9351
      %9360 = vmatprep.subr.bf16.mxu0 0
      %9361 = vmatpush1.bf16.msra.mxu0 %v9306
      %9362 = vmatprep.subr.bf16.mxu0 0
      %9363 = vmatpush1.bf16.msra.mxu0 %v9314
      %9364 = vmatprep.subr.bf16.mxu0 0
      %9365 = vmatpush1.bf16.msra.mxu0 %v9307
      %9366 = vmatprep.subr.bf16.mxu0 0
      %9367 = vmatpush1.bf16.msra.mxu0 %v9315
      %9368 = vmatprep.subr.bf16.mxu0 0
      %9369 = vmatpush1.bf16.msra.mxu0 %v9308
      %9370 = vmatprep.subr.bf16.mxu0 0
      %9371 = vmatpush1.bf16.msra.mxu0 %v9316
      %9372 = vmatprep.subr.bf16.mxu0 0
      %9373 = vmatpush1.bf16.msra.mxu0 %v9309
      %9374 = vmatprep.subr.bf16.mxu0 0
      %9375 = vmatpush1.bf16.msra.mxu0 %v9317
      %9376 = vmatprep.subr.bf16.mxu0 0
      %9377 = vmatpush1.bf16.msra.mxu0 %v9310
      %9378 = vmatprep.subr.bf16.mxu0 0
      %9379 = vmatpush1.bf16.msra.mxu0 %v9318
      %9380 = vmatprep.subr.bf16.mxu0 0
      %9381 = vmatpush1.bf16.msra.mxu0 %v9311
      %9382 = vmatprep.subr.bf16.mxu0 0
      %9383 = vmatpush1.bf16.msra.mxu0 %v9319
      %9384 = vmatprep.subr.bf16.mxu0 0
      %9385 = vmatpush1.bf16.msra.mxu0 %v9312
      %9386 = vmatprep.subr.bf16.mxu0 0
      %9387 = vmatpush1.bf16.msra.mxu0 %v9320
      %9388 = vmatprep.subr.bf16.mxu0 0
      %9389 = vmatpush1.bf16.msra.mxu0 %v9313
      %9390 = vmatprep.subr.bf16.mxu0 0
      %9391 = vmatpush1.bf16.msra.mxu0 %v9321
      %9392 = vmatprep.mubr.bf16.mxu0 %v9353
      %9393 = vmatmul.mubr.bf16.gmra.mrb[0].mxu0 %v9352
      %v9394 = vpop.f32.mrb[0].mxu0
      %v9395 = vadd.f32 %v9331, %v9394
      %v9396 = vpop.f32.mrb[0].mxu0
      %v9397 = vpop.f32.mrb[0].mxu0
      %v9398 = vadd.f32 %v9336, %v9397
      %v9399 = vpop.f32.mrb[0].mxu0
      %9400 = vmatprep.mubr.bf16.mxu0 %v9355
      %9401 = vmatmul.mubr.bf16.gmra.mrb[0].mxu0 %v9354
      %v9402 = vpop.f32.mrb[0].mxu0
      %v9403 = vadd.f32 %v9341, %v9402
      %v9404 = vpop.f32.mrb[0].mxu0
      %v9405 = vpop.f32.mrb[0].mxu0
      %v9406 = vpop.f32.mrb[0].mxu0
      %9407 = vdwg.mxu0
      %v9408 = vsub.f32 0.0, %v9395
      %v9409 = vsub.f32 0.0, %v9398
      %v9410 = vsub.f32 0.0, %v9403
      %v9411 = vmul.f32 %v9408, 1.442695
      %v9412 = vpow.pop %v9411
      %v9413 = vmul.f32 %v9409, 1.442695
      %v9414 = vpow.pop %v9413
      %v9415 = vmul.f32 %v9410, 1.442695
      %v9416 = vpow.pop %v9415
      %v9417 = vadd.f32 %v9412, 1.0
      %v9418 = vadd.f32 %v9414, 1.0
      %v9419 = vadd.f32 %v9416, 1.0
      %v9420 = vrcp.pop %v9417
      %v9421 = vrcp.pop %v9418
      %v9422 = vrcp.pop %v9419
      %9423 = vst [vmem:[%s626] sm:$0xff] %v9420
      %9424 = vst [vmem:[%s626 + $0x8] sm:$0xff] %v9421
      %9425 = vst [vmem:[%s626 + $0x10] sm:$0x3] %v9422
      %p9426 = scmp.lt.s32.totalorder %s31, 1
      %s9427 = scalar_select %p9426, %s31, 1
      %s9428 = smul.addr %s9427, 3
      %s9429 = smul.addr %s9428, 8
      %s9430 = scalar_lea.vmem %s20, %s9429
      // Predicated region
      $region101: #{simple_cnn_forward.1} parent=99 // pred_check
        %p9431 = pneg %p474
      $region102: #{simple_cnn_forward.1} parent=99 // pred_check_branch
        %9433 = sbr.rel (%p9431) target = $region104
      $region103: #{simple_cnn_forward.1} parent=99 // pred_region
        _
      $region104: #{simple_cnn_forward.1} parent=99 // pred_fallthru
        _
    $region100: #{simple_cnn_forward.1} parent=5 // pred_fallthru
      _
    %p9434 = scmp.le.s32.totalorder 2, %s26
    // Predicated region
    $region105: #{simple_cnn_forward.1} parent=5 // pred_check
      %p9435 = pneg %p9434
    $region106: #{simple_cnn_forward.1} parent=5 // pred_check_branch
      %9437 = sbr.rel (%p9435) target = $region108
    $region107: #{simple_cnn_forward.1} parent=5 // pred_region
      %s9438 = ssub.s32 %s26, 2
      // Predicated region
      $region109: #{simple_cnn_forward.1} parent=107 // pred_check
        %p9439 = pneg %p480
      $region110: #{simple_cnn_forward.1} parent=107 // pred_check_branch
        %9441 = sbr.rel (%p9439) target = $region112
      $region111: #{simple_cnn_forward.1} parent=107 // pred_region
        %p9442 = scmp.lt.s32.totalorder %s32, 1
        %s9443 = scalar_select %p9442, %s32, 1
        %s9444 = smul.addr %s9443, 3
        %s9445 = smul.addr %s9444, 8
        %s9446 = scalar_lea.vmem %s20, %s9445
      $region112: #{simple_cnn_forward.1} parent=107 // pred_fallthru
        _
    $region108: #{simple_cnn_forward.1} parent=5 // pred_fallthru
      _
  $region6: #{simple_cnn_forward.1} parent=0 // loop_footer
    %s30 = sadd.s32 1, %s26
  $region7: #{simple_cnn_forward.1} parent=0 // loop_footer_branch
    %25 = sbr.rel target = $region3
  $region8: #{simple_cnn_forward.1} parent=0 // loop_exit
    _

</llo_original>
